<compile_context>
chip_gen: v7x
topology: tpu7x:2x2x1
jax: 0.10.0
libtpu: 0.0.40
codegen_flags: <defaults>
</compile_context>

<pallas_src>
import functools

import jax
import jax.numpy as jnp
from jax import lax
from jax.experimental import pallas as pl
from jax.experimental.pallas import tpu as pltpu


def _round_up(x, m):
    return (x + m - 1) // m * m


# ---------------------------------------------------------------------------
# Pallas kernels
# ---------------------------------------------------------------------------
def _bmm_kernel(a_ref, b_ref, o_ref, acc_ref, *, activation):
    """Batched tiled GEMM. Blocks: a (1,tm,tk) bf16, b (1,tk,tn) bf16,
    o (1,tm,tn) f32, acc (tm,tn) f32. Grid: (G, Mt, Nt, Kt), K innermost."""
    @pl.when(pl.program_id(3) == 0)
    def _():
        acc_ref[...] = jnp.zeros_like(acc_ref)

    acc_ref[...] += jnp.dot(a_ref[0], b_ref[0],
                            preferred_element_type=jnp.float32)

    @pl.when(pl.program_id(3) == pl.num_programs(3) - 1)
    def _():
        out = acc_ref[...]
        if activation == "tanh":
            out = jnp.tanh(out)          # f32 epilogue math (v5e-safe)
        o_ref[0] = out.astype(o_ref.dtype)


def batched_matmul(a, b, activation=None):
    """a: (G, M, K), b: (G, K, N) -> (G, M, N) f32.

    Operands are cast to bf16 for the MXU; accumulation and epilogue stay f32.
    Pads only the remainders that correctness requires.
    """
    G, M, K = a.shape
    G2, K2, N = b.shape
    assert G == G2 and K == K2
    Mp = _round_up(M, 16)       # bf16 sublane packing granularity
    Kp = _round_up(K, 128)
    Np = _round_up(N, 128)

    a = a.astype(jnp.bfloat16)
    b = b.astype(jnp.bfloat16)
    if (Mp, Kp) != (M, K):
        a = jnp.pad(a, ((0, 0), (0, Mp - M), (0, Kp - K)))
    if (Kp, Np) != (K, N):
        b = jnp.pad(b, ((0, 0), (0, Kp - K), (0, Np - N)))

    # Adaptive tiles (all GEMMs in this net fit a single K step).
    tm = min(128, Mp)
    if Mp % tm:
        tm = 16
    tn = min(256, Np)
    if Np % tn:
        tn = 128
    tk = min(2048, Kp)
    if Kp % tk:
        tk = 128

    grid = (G, Mp // tm, Np // tn, Kp // tk)
    out = pl.pallas_call(
        functools.partial(_bmm_kernel, activation=activation),
        out_shape=jax.ShapeDtypeStruct((G, Mp, Np), jnp.float32),
        grid_spec=pltpu.PrefetchScalarGridSpec(
            num_scalar_prefetch=0,
            grid=grid,
            in_specs=[
                pl.BlockSpec((1, tm, tk), lambda g, i, j, k: (g, i, k)),
                pl.BlockSpec((1, tk, tn), lambda g, i, j, k: (g, k, j)),
            ],
            out_specs=pl.BlockSpec((1, tm, tn), lambda g, i, j, k: (g, i, j)),
            scratch_shapes=[pltpu.VMEM((tm, tn), jnp.float32)]),
        compiler_params=pltpu.CompilerParams(
            dimension_semantics=("parallel", "parallel", "parallel",
                                 "arbitrary")),
    )(a, b)
    if (Mp, Np) != (M, N):
        out = out[:, :M, :N]
    return out


def _bn_relu_kernel(x_ref, g_ref, b_ref, o_ref, *, eps):
    """Whole-array BatchNorm (train-mode batch stats) + ReLU in one VMEM pass."""
    x = x_ref[...]
    mean = jnp.mean(x, axis=0, keepdims=True)
    xc = x - mean
    var = jnp.mean(xc * xc, axis=0, keepdims=True)          # biased batch var
    inv = lax.rsqrt(var + eps)
    o_ref[...] = jnp.maximum(xc * (g_ref[...] * inv) + b_ref[...], 0.0)


def batchnorm_relu_2d(x2d, gamma, beta, eps=1e-5):
    """x2d: (M, C) f32, M = all (n, oh, ow) positions (no padding rows)."""
    M, C = x2d.shape
    return pl.pallas_call(
        functools.partial(_bn_relu_kernel, eps=eps),
        out_shape=jax.ShapeDtypeStruct((M, C), jnp.float32),
    )(x2d, gamma.reshape(1, C), beta.reshape(1, C))


# ---------------------------------------------------------------------------
# ConvTranspose2d glue: sub-pixel (phase) decomposition for k=4, s=2, p=1
# ---------------------------------------------------------------------------
# For output phase p (= oh % 2) only two kernel rows contribute:
#   p=0: (input row i-1, kh=3), (i, kh=1)     p=1: (i, kh=2), (i+1, kh=0)
# offsets below are into the 1-padded input.
_PHASE_OFF = ((0, 1), (1, 2))
_PHASE_KIDX = ((3, 1), (2, 0))


def _phase_operands(x_nhwc, w_pt):
    """Build the 4 phase GEMM operands for ConvTranspose2d(k=4, s=2, p=1).

    x_nhwc: (N, H, W, Cin); w_pt: (Cin, Cout, 4, 4) (PyTorch layout, bias=False).
    Returns a: (4, N*H*W, 4*Cin), b: (4, 4*Cin, Cout), and (N, H, W, Cout).
    """
    N, H, W, Cin = x_nhwc.shape
    Cin2, Cout, KH, KW = w_pt.shape
    assert Cin == Cin2 and KH == 4 and KW == 4
    xp = jnp.pad(x_nhwc, ((0, 0), (1, 1), (1, 1), (0, 0)))
    a_list, b_list = [], []
    for p in range(2):
        for q in range(2):
            taps = [xp[:, dh:dh + H, dw:dw + W, :]
                    for dh in _PHASE_OFF[p] for dw in _PHASE_OFF[q]]
            a_pq = jnp.stack(taps, axis=3)                    # (N,H,W,4,Cin)
            a_list.append(a_pq.reshape(N * H * W, 4 * Cin))
            wt = jnp.stack([w_pt[:, :, kh, kw]
                            for kh in _PHASE_KIDX[p] for kw in _PHASE_KIDX[q]],
                           axis=0)                            # (4,Cin,Cout)
            b_list.append(wt.reshape(4 * Cin, Cout))
    return jnp.stack(a_list, 0), jnp.stack(b_list, 0), (N, H, W, Cout)


def _interleave_phases_nhwc(y_phases, N, H, W, C):
    """y_phases: (4, N*H*W, C), phase index = p*2+q -> (N, 2H, 2W, C)."""
    y = y_phases.reshape(2, 2, N, H, W, C)
    y = jnp.transpose(y, (2, 3, 0, 4, 1, 5))     # (n, i, p, j, q, c)
    return y.reshape(N, 2 * H, 2 * W, C)


# ---------------------------------------------------------------------------
# Generator forward
# ---------------------------------------------------------------------------
def generator_forward(params, noise, labels):
    """noise: (N, 100, 1, 1) NCHW; labels: (N,) int -> (N, 3, 32, 32) NCHW."""
    emb = params["emb"][labels]                            # (N, 10)
    z = jnp.concatenate([noise[:, :, 0, 0], emb], axis=1)  # (N, 110)
    N = z.shape[0]

    # --- layer 1: ConvTranspose2d(110, 512, 4, 1, 0) == dense GEMM -----------
    w1 = jnp.transpose(params["w1"], (0, 2, 3, 1)).reshape(110, 16 * 512)
    y1 = batched_matmul(z[None], w1[None])[0]              # (N, 16*512), cols (kh,kw,co)
    h1 = batchnorm_relu_2d(y1.reshape(N * 16, 512), params["g1"], params["b1"])
    x = h1.reshape(N, 4, 4, 512)                           # NHWC

    # --- layer 2: ConvTranspose2d(512, 256, 4, 2, 1) -------------------------
    a, b, (_, H, W, C) = _phase_operands(x, params["w2"])
    y = batched_matmul(a, b)                               # (4, N*H*W, 256)
    h = batchnorm_relu_2d(y.reshape(4 * N * H * W, C), params["g2"], params["b2"])
    x = _interleave_phases_nhwc(h.reshape(4, N * H * W, C), N, H, W, C)  # (N,8,8,256)

    # --- layer 3: ConvTranspose2d(256, 128, 4, 2, 1) -------------------------
    a, b, (_, H, W, C) = _phase_operands(x, params["w3"])
    y = batched_matmul(a, b)                               # (4, N*H*W, 128)
    h = batchnorm_relu_2d(y.reshape(4 * N * H * W, C), params["g3"], params["b3"])
    x = _interleave_phases_nhwc(h.reshape(4, N * H * W, C), N, H, W, C)  # (N,16,16,128)

    # --- layer 4: ConvTranspose2d(128, 3, 4, 2, 1) + tanh, transposed GEMM ---
    # Compute (Cout x M) = B^T @ A^T so the tiny Cout=3 sits on sublanes and the
    # dense M = N*16*16 sits on lanes; result lands directly in NCHW order.
    a, b, (_, H, W, C) = _phase_operands(x, params["w4"])
    at = jnp.transpose(a, (0, 2, 1))                       # (4, K, M)
    bt = jnp.transpose(b, (0, 2, 1))                       # (4, 3, K)
    yt = batched_matmul(bt, at, activation="tanh")         # (4, 3, N*H*W) f32
    y = yt.reshape(2, 2, C, N, H, W)                       # (p, q, c, n, i, j)
    y = jnp.transpose(y, (3, 2, 4, 0, 5, 1))               # (n, c, i, p, j, q)
    return y.reshape(N, C, 2 * H, 2 * W)                   # (N, 3, 32, 32) NCHW


# ---------------------------------------------------------------------------
# Deterministic parameters + run
# ---------------------------------------------------------------------------
if __name__ == "__main__":
    key = jax.random.PRNGKey(0)
    keys = jax.random.split(key, 7)
    params = {
        "emb": jax.random.normal(keys[0], (10, 10), jnp.float32),
        # PyTorch ConvTranspose2d weight layout: (Cin, Cout, K, K), bias=False
        "w1": 0.02 * jax.random.normal(keys[1], (110, 512, 4, 4), jnp.float32),
        "w2": 0.02 * jax.random.normal(keys[2], (512, 256, 4, 4), jnp.float32),
        "w3": 0.02 * jax.random.normal(keys[3], (256, 128, 4, 4), jnp.float32),
        "w4": 0.02 * jax.random.normal(keys[4], (128, 3, 4, 4), jnp.float32),
        # BatchNorm2d defaults: gamma=1, beta=0
        "g1": jnp.ones((512,), jnp.float32), "b1": jnp.zeros((512,), jnp.float32),
        "g2": jnp.ones((256,), jnp.float32), "b2": jnp.zeros((256,), jnp.float32),
        "g3": jnp.ones((128,), jnp.float32), "b3": jnp.zeros((128,), jnp.float32),
    }

    batch = 2
    noise = jax.random.normal(keys[5], (batch, 100, 1, 1), jnp.float32)
    labels = jax.random.randint(keys[6], (batch,), 0, 10)

    out = jax.jit(generator_forward)(params, noise, labels)
    out = jax.block_until_ready(out)
    assert out.shape == (batch, 3, 32, 32)
    assert bool(jnp.all(jnp.isfinite(out)))
    print("KERNEL_OK")
</pallas_src>

<mosaic_0001>
module attributes {stable_mosaic.version = 11 : i64} {
  func.func @_bmm_kernel(%arg0: i32, %arg1: i32, %arg2: i32, %arg3: i32, %arg4: memref<1x16x128xbf16, #tpu.memory_space<vmem>>, %arg5: memref<1x128x256xbf16, #tpu.memory_space<vmem>>, %arg6: memref<1x16x256xf32, #tpu.memory_space<vmem>>, %arg7: memref<16x256xf32, #tpu.memory_space<vmem>>) attributes {dimension_semantics = [#tpu.dimension_semantics<parallel>, #tpu.dimension_semantics<parallel>, #tpu.dimension_semantics<parallel>, #tpu.dimension_semantics<arbitrary>], iteration_bounds = array<i64: 1, 1, 32, 1>, scalar_prefetch = 0 : i64, scratch_operands = 1 : i64, tpu.core_type = #tpu.core_type<tc>, window_params = [{transform_indices = @transform_0, window_bounds = array<i64: 1, 16, 128>}, {transform_indices = @transform_1, window_bounds = array<i64: 1, 128, 256>}, {transform_indices = @transform_2, window_bounds = array<i64: 1, 16, 256>}]} {
    %c0_i32 = arith.constant 0 : i32
    %0 = arith.cmpi eq, %arg3, %c0_i32 : i32
    %1 = arith.extui %0 : i1 to i32
    %c0_i32_0 = arith.constant 0 : i32
    %2 = arith.cmpi ne, %1, %c0_i32_0 : i32
    scf.if %2 {
      %cst_12 = arith.constant 0.000000e+00 : f32
      %14 = vector.broadcast %cst_12 : f32 to vector<16x256xf32>
      %c0_13 = arith.constant 0 : index
      %c0_14 = arith.constant 0 : index
      %15 = vector.load %arg7[%c0_13, %c0_14] : memref<16x256xf32, #tpu.memory_space<vmem>>, vector<16x256xf32>
      tpu.vector_store %arg7[%c0_13, %c0_14], %14 {strides = array<i32>} : memref<16x256xf32, #tpu.memory_space<vmem>>, vector<16x256xf32>,
    } else {
    }
    %c0 = arith.constant 0 : index
    %c0_1 = arith.constant 0 : index
    %3 = vector.load %arg7[%c0, %c0_1] : memref<16x256xf32, #tpu.memory_space<vmem>>, vector<16x256xf32>
    %c0_2 = arith.constant 0 : index
    %c0_3 = arith.constant 0 : index
    %c0_4 = arith.constant 0 : index
    %4 = vector.load %arg4[%c0_2, %c0_3, %c0_4] : memref<1x16x128xbf16, #tpu.memory_space<vmem>>, vector<1x16x128xbf16>
    %5 = vector.shape_cast %4 : vector<1x16x128xbf16> to vector<16x128xbf16>
    %c0_5 = arith.constant 0 : index
    %c0_6 = arith.constant 0 : index
    %c0_7 = arith.constant 0 : index
    %6 = vector.load %arg5[%c0_5, %c0_6, %c0_7] : memref<1x128x256xbf16, #tpu.memory_space<vmem>>, vector<1x128x256xbf16>
    %7 = vector.shape_cast %6 : vector<1x128x256xbf16> to vector<128x256xbf16>
    %cst = arith.constant dense<0.000000e+00> : vector<16x256xf32>
    %8 = tpu.matmul %5, %7, %cst {dimension_numbers = #tpu.dot_dimension_numbers<[1], [0], [0], [1], [0, 0, 1, 1], [], []>} : vector<16x128xbf16>, vector<128x256xbf16>, vector<16x256xf32> -> vector<16x256xf32>
    %9 = arith.addf %3, %8 : vector<16x256xf32>
    %c0_8 = arith.constant 0 : index
    %c0_9 = arith.constant 0 : index
    %10 = vector.load %arg7[%c0_8, %c0_9] : memref<16x256xf32, #tpu.memory_space<vmem>>, vector<16x256xf32>
    tpu.vector_store %arg7[%c0_8, %c0_9], %9 {strides = array<i32>} : memref<16x256xf32, #tpu.memory_space<vmem>>, vector<16x256xf32>,
    %c0_i32_10 = arith.constant 0 : i32
    %11 = arith.cmpi eq, %arg3, %c0_i32_10 : i32
    %12 = arith.extui %11 : i1 to i32
    %c0_i32_11 = arith.constant 0 : i32
    %13 = arith.cmpi ne, %12, %c0_i32_11 : i32
    scf.if %13 {
      %c0_12 = arith.constant 0 : index
      %c0_13 = arith.constant 0 : index
      %14 = vector.load %arg7[%c0_12, %c0_13] : memref<16x256xf32, #tpu.memory_space<vmem>>, vector<16x256xf32>
      %c0_14 = arith.constant 0 : index
      %c0_15 = arith.constant 0 : index
      %c0_16 = arith.constant 0 : index
      %15 = vector.load %arg6[%c0_14, %c0_15, %c0_16] : memref<1x16x256xf32, #tpu.memory_space<vmem>>, vector<1x16x256xf32>
      %16 = vector.shape_cast %15 : vector<1x16x256xf32> to vector<16x256xf32>
      %17 = vector.shape_cast %14 : vector<16x256xf32> to vector<1x16x256xf32>
      tpu.vector_store %arg6[%c0_14, %c0_15, %c0_16], %17 {strides = array<i32>} : memref<1x16x256xf32, #tpu.memory_space<vmem>>, vector<1x16x256xf32>,
    } else {
    }
    return
  }
  func.func @transform_0(%arg0: i32, %arg1: i32, %arg2: i32, %arg3: i32) -> (i32, i32, i32) {
    %c0_i32 = arith.constant 0 : i32
    return %arg0, %arg1, %arg3 : i32, i32, i32
  }
  func.func @transform_1(%arg0: i32, %arg1: i32, %arg2: i32, %arg3: i32) -> (i32, i32, i32) {
    %c0_i32 = arith.constant 0 : i32
    return %arg0, %arg3, %arg2 : i32, i32, i32
  }
  func.func @transform_2(%arg0: i32, %arg1: i32, %arg2: i32, %arg3: i32) -> (i32, i32, i32) {
    %c0_i32 = arith.constant 0 : i32
    return %arg0, %arg1, %arg2 : i32, i32, i32
  }
}

module attributes {stable_mosaic.version = 11 : i64} {
  func.func @_bn_relu_kernel(%arg0: memref<32x512xf32, #tpu.memory_space<vmem>>, %arg1: memref<1x512xf32, #tpu.memory_space<vmem>>, %arg2: memref<1x512xf32, #tpu.memory_space<vmem>>, %arg3: memref<32x512xf32, #tpu.memory_space<vmem>>) attributes {dimension_semantics = [], scalar_prefetch = 0 : i64, scratch_operands = 0 : i64, tpu.core_type = #tpu.core_type<tc>} {
    %c0 = arith.constant 0 : index
    %c0_0 = arith.constant 0 : index
    %0 = vector.load %arg0[%c0, %c0_0] : memref<32x512xf32, #tpu.memory_space<vmem>>, vector<32x512xf32>
    %cst = arith.constant dense<0.000000e+00> : vector<512xf32>
    %1 = vector.multi_reduction <add>, %0, %cst [0] : vector<32x512xf32> to vector<512xf32>
    %2 = vector.shape_cast %1 : vector<512xf32> to vector<1x512xf32>
    %cst_1 = arith.constant 3.200000e+01 : f32
    %3 = vector.broadcast %cst_1 : f32 to vector<1x512xf32>
    %4 = arith.divf %2, %3 : vector<1x512xf32>
    %5 = vector.broadcast %4 : vector<1x512xf32> to vector<32x512xf32>
    %6 = arith.subf %0, %5 : vector<32x512xf32>
    %7 = arith.mulf %6, %6 : vector<32x512xf32>
    %cst_2 = arith.constant dense<0.000000e+00> : vector<512xf32>
    %8 = vector.multi_reduction <add>, %7, %cst_2 [0] : vector<32x512xf32> to vector<512xf32>
    %9 = vector.shape_cast %8 : vector<512xf32> to vector<1x512xf32>
    %cst_3 = arith.constant 3.200000e+01 : f32
    %10 = vector.broadcast %cst_3 : f32 to vector<1x512xf32>
    %11 = arith.divf %9, %10 : vector<1x512xf32>
    %cst_4 = arith.constant 9.99999974E-6 : f32
    %12 = vector.broadcast %cst_4 : f32 to vector<1x512xf32>
    %13 = arith.addf %11, %12 : vector<1x512xf32>
    %14 = math.rsqrt %13 : vector<1x512xf32>
    %c0_5 = arith.constant 0 : index
    %c0_6 = arith.constant 0 : index
    %15 = vector.load %arg1[%c0_5, %c0_6] : memref<1x512xf32, #tpu.memory_space<vmem>>, vector<1x512xf32>
    %16 = arith.mulf %15, %14 : vector<1x512xf32>
    %17 = vector.broadcast %16 : vector<1x512xf32> to vector<32x512xf32>
    %18 = arith.mulf %6, %17 : vector<32x512xf32>
    %c0_7 = arith.constant 0 : index
    %c0_8 = arith.constant 0 : index
    %19 = vector.load %arg2[%c0_7, %c0_8] : memref<1x512xf32, #tpu.memory_space<vmem>>, vector<1x512xf32>
    %20 = vector.broadcast %19 : vector<1x512xf32> to vector<32x512xf32>
    %21 = arith.addf %18, %20 : vector<32x512xf32>
    %cst_9 = arith.constant 0.000000e+00 : f32
    %22 = vector.broadcast %cst_9 : f32 to vector<32x512xf32>
    %23 = arith.maximumf %21, %22 : vector<32x512xf32>
    %c0_10 = arith.constant 0 : index
    %c0_11 = arith.constant 0 : index
    %24 = vector.load %arg3[%c0_10, %c0_11] : memref<32x512xf32, #tpu.memory_space<vmem>>, vector<32x512xf32>
    tpu.vector_store %arg3[%c0_10, %c0_11], %23 {strides = array<i32>} : memref<32x512xf32, #tpu.memory_space<vmem>>, vector<32x512xf32>,
    return
  }
}

module attributes {stable_mosaic.version = 11 : i64} {
  func.func @_bmm_kernel(%arg0: i32, %arg1: i32, %arg2: i32, %arg3: i32, %arg4: memref<1x32x2048xbf16, #tpu.memory_space<vmem>>, %arg5: memref<1x2048x256xbf16, #tpu.memory_space<vmem>>, %arg6: memref<1x32x256xf32, #tpu.memory_space<vmem>>, %arg7: memref<32x256xf32, #tpu.memory_space<vmem>>) attributes {dimension_semantics = [#tpu.dimension_semantics<parallel>, #tpu.dimension_semantics<parallel>, #tpu.dimension_semantics<parallel>, #tpu.dimension_semantics<arbitrary>], iteration_bounds = array<i64: 4, 1, 1, 1>, scalar_prefetch = 0 : i64, scratch_operands = 1 : i64, tpu.core_type = #tpu.core_type<tc>, window_params = [{transform_indices = @transform_0, window_bounds = array<i64: 1, 32, 2048>}, {transform_indices = @transform_1, window_bounds = array<i64: 1, 2048, 256>}, {transform_indices = @transform_2, window_bounds = array<i64: 1, 32, 256>}]} {
    %c0_i32 = arith.constant 0 : i32
    %0 = arith.cmpi eq, %arg3, %c0_i32 : i32
    %1 = arith.extui %0 : i1 to i32
    %c0_i32_0 = arith.constant 0 : i32
    %2 = arith.cmpi ne, %1, %c0_i32_0 : i32
    scf.if %2 {
      %cst_12 = arith.constant 0.000000e+00 : f32
      %14 = vector.broadcast %cst_12 : f32 to vector<32x256xf32>
      %c0_13 = arith.constant 0 : index
      %c0_14 = arith.constant 0 : index
      %15 = vector.load %arg7[%c0_13, %c0_14] : memref<32x256xf32, #tpu.memory_space<vmem>>, vector<32x256xf32>
      tpu.vector_store %arg7[%c0_13, %c0_14], %14 {strides = array<i32>} : memref<32x256xf32, #tpu.memory_space<vmem>>, vector<32x256xf32>,
    } else {
    }
    %c0 = arith.constant 0 : index
    %c0_1 = arith.constant 0 : index
    %3 = vector.load %arg7[%c0, %c0_1] : memref<32x256xf32, #tpu.memory_space<vmem>>, vector<32x256xf32>
    %c0_2 = arith.constant 0 : index
    %c0_3 = arith.constant 0 : index
    %c0_4 = arith.constant 0 : index
    %4 = vector.load %arg4[%c0_2, %c0_3, %c0_4] : memref<1x32x2048xbf16, #tpu.memory_space<vmem>>, vector<1x32x2048xbf16>
    %5 = vector.shape_cast %4 : vector<1x32x2048xbf16> to vector<32x2048xbf16>
    %c0_5 = arith.constant 0 : index
    %c0_6 = arith.constant 0 : index
    %c0_7 = arith.constant 0 : index
    %6 = vector.load %arg5[%c0_5, %c0_6, %c0_7] : memref<1x2048x256xbf16, #tpu.memory_space<vmem>>, vector<1x2048x256xbf16>
    %7 = vector.shape_cast %6 : vector<1x2048x256xbf16> to vector<2048x256xbf16>
    %cst = arith.constant dense<0.000000e+00> : vector<32x256xf32>
    %8 = tpu.matmul %5, %7, %cst {dimension_numbers = #tpu.dot_dimension_numbers<[1], [0], [0], [1], [0, 0, 1, 1], [], []>} : vector<32x2048xbf16>, vector<2048x256xbf16>, vector<32x256xf32> -> vector<32x256xf32>
    %9 = arith.addf %3, %8 : vector<32x256xf32>
    %c0_8 = arith.constant 0 : index
    %c0_9 = arith.constant 0 : index
    %10 = vector.load %arg7[%c0_8, %c0_9] : memref<32x256xf32, #tpu.memory_space<vmem>>, vector<32x256xf32>
    tpu.vector_store %arg7[%c0_8, %c0_9], %9 {strides = array<i32>} : memref<32x256xf32, #tpu.memory_space<vmem>>, vector<32x256xf32>,
    %c0_i32_10 = arith.constant 0 : i32
    %11 = arith.cmpi eq, %arg3, %c0_i32_10 : i32
    %12 = arith.extui %11 : i1 to i32
    %c0_i32_11 = arith.constant 0 : i32
    %13 = arith.cmpi ne, %12, %c0_i32_11 : i32
    scf.if %13 {
      %c0_12 = arith.constant 0 : index
      %c0_13 = arith.constant 0 : index
      %14 = vector.load %arg7[%c0_12, %c0_13] : memref<32x256xf32, #tpu.memory_space<vmem>>, vector<32x256xf32>
      %c0_14 = arith.constant 0 : index
      %c0_15 = arith.constant 0 : index
      %c0_16 = arith.constant 0 : index
      %15 = vector.load %arg6[%c0_14, %c0_15, %c0_16] : memref<1x32x256xf32, #tpu.memory_space<vmem>>, vector<1x32x256xf32>
      %16 = vector.shape_cast %15 : vector<1x32x256xf32> to vector<32x256xf32>
      %17 = vector.shape_cast %14 : vector<32x256xf32> to vector<1x32x256xf32>
      tpu.vector_store %arg6[%c0_14, %c0_15, %c0_16], %17 {strides = array<i32>} : memref<1x32x256xf32, #tpu.memory_space<vmem>>, vector<1x32x256xf32>,
    } else {
    }
    return
  }
  func.func @transform_0(%arg0: i32, %arg1: i32, %arg2: i32, %arg3: i32) -> (i32, i32, i32) {
    %c0_i32 = arith.constant 0 : i32
    return %arg0, %arg1, %arg3 : i32, i32, i32
  }
  func.func @transform_1(%arg0: i32, %arg1: i32, %arg2: i32, %arg3: i32) -> (i32, i32, i32) {
    %c0_i32 = arith.constant 0 : i32
    return %arg0, %arg3, %arg2 : i32, i32, i32
  }
  func.func @transform_2(%arg0: i32, %arg1: i32, %arg2: i32, %arg3: i32) -> (i32, i32, i32) {
    %c0_i32 = arith.constant 0 : i32
    return %arg0, %arg1, %arg2 : i32, i32, i32
  }
}

module attributes {stable_mosaic.version = 11 : i64} {
  func.func @_bn_relu_kernel(%arg0: memref<128x256xf32, #tpu.memory_space<vmem>>, %arg1: memref<1x256xf32, #tpu.memory_space<vmem>>, %arg2: memref<1x256xf32, #tpu.memory_space<vmem>>, %arg3: memref<128x256xf32, #tpu.memory_space<vmem>>) attributes {dimension_semantics = [], scalar_prefetch = 0 : i64, scratch_operands = 0 : i64, tpu.core_type = #tpu.core_type<tc>} {
    %c0 = arith.constant 0 : index
    %c0_0 = arith.constant 0 : index
    %0 = vector.load %arg0[%c0, %c0_0] : memref<128x256xf32, #tpu.memory_space<vmem>>, vector<128x256xf32>
    %cst = arith.constant dense<0.000000e+00> : vector<256xf32>
    %1 = vector.multi_reduction <add>, %0, %cst [0] : vector<128x256xf32> to vector<256xf32>
    %2 = vector.shape_cast %1 : vector<256xf32> to vector<1x256xf32>
    %cst_1 = arith.constant 1.280000e+02 : f32
    %3 = vector.broadcast %cst_1 : f32 to vector<1x256xf32>
    %4 = arith.divf %2, %3 : vector<1x256xf32>
    %5 = vector.broadcast %4 : vector<1x256xf32> to vector<128x256xf32>
    %6 = arith.subf %0, %5 : vector<128x256xf32>
    %7 = arith.mulf %6, %6 : vector<128x256xf32>
    %cst_2 = arith.constant dense<0.000000e+00> : vector<256xf32>
    %8 = vector.multi_reduction <add>, %7, %cst_2 [0] : vector<128x256xf32> to vector<256xf32>
    %9 = vector.shape_cast %8 : vector<256xf32> to vector<1x256xf32>
    %cst_3 = arith.constant 1.280000e+02 : f32
    %10 = vector.broadcast %cst_3 : f32 to vector<1x256xf32>
    %11 = arith.divf %9, %10 : vector<1x256xf32>
    %cst_4 = arith.constant 9.99999974E-6 : f32
    %12 = vector.broadcast %cst_4 : f32 to vector<1x256xf32>
    %13 = arith.addf %11, %12 : vector<1x256xf32>
    %14 = math.rsqrt %13 : vector<1x256xf32>
    %c0_5 = arith.constant 0 : index
    %c0_6 = arith.constant 0 : index
    %15 = vector.load %arg1[%c0_5, %c0_6] : memref<1x256xf32, #tpu.memory_space<vmem>>, vector<1x256xf32>
    %16 = arith.mulf %15, %14 : vector<1x256xf32>
    %17 = vector.broadcast %16 : vector<1x256xf32> to vector<128x256xf32>
    %18 = arith.mulf %6, %17 : vector<128x256xf32>
    %c0_7 = arith.constant 0 : index
    %c0_8 = arith.constant 0 : index
    %19 = vector.load %arg2[%c0_7, %c0_8] : memref<1x256xf32, #tpu.memory_space<vmem>>, vector<1x256xf32>
    %20 = vector.broadcast %19 : vector<1x256xf32> to vector<128x256xf32>
    %21 = arith.addf %18, %20 : vector<128x256xf32>
    %cst_9 = arith.constant 0.000000e+00 : f32
    %22 = vector.broadcast %cst_9 : f32 to vector<128x256xf32>
    %23 = arith.maximumf %21, %22 : vector<128x256xf32>
    %c0_10 = arith.constant 0 : index
    %c0_11 = arith.constant 0 : index
    %24 = vector.load %arg3[%c0_10, %c0_11] : memref<128x256xf32, #tpu.memory_space<vmem>>, vector<128x256xf32>
    tpu.vector_store %arg3[%c0_10, %c0_11], %23 {strides = array<i32>} : memref<128x256xf32, #tpu.memory_space<vmem>>, vector<128x256xf32>,
    return
  }
}

module attributes {stable_mosaic.version = 11 : i64} {
  func.func @_bmm_kernel(%arg0: i32, %arg1: i32, %arg2: i32, %arg3: i32, %arg4: memref<1x128x1024xbf16, #tpu.memory_space<vmem>>, %arg5: memref<1x1024x128xbf16, #tpu.memory_space<vmem>>, %arg6: memref<1x128x128xf32, #tpu.memory_space<vmem>>, %arg7: memref<128x128xf32, #tpu.memory_space<vmem>>) attributes {dimension_semantics = [#tpu.dimension_semantics<parallel>, #tpu.dimension_semantics<parallel>, #tpu.dimension_semantics<parallel>, #tpu.dimension_semantics<arbitrary>], iteration_bounds = array<i64: 4, 1, 1, 1>, scalar_prefetch = 0 : i64, scratch_operands = 1 : i64, tpu.core_type = #tpu.core_type<tc>, window_params = [{transform_indices = @transform_0, window_bounds = array<i64: 1, 128, 1024>}, {transform_indices = @transform_1, window_bounds = array<i64: 1, 1024, 128>}, {transform_indices = @transform_2, window_bounds = array<i64: 1, 128, 128>}]} {
    %c0_i32 = arith.constant 0 : i32
    %0 = arith.cmpi eq, %arg3, %c0_i32 : i32
    %1 = arith.extui %0 : i1 to i32
    %c0_i32_0 = arith.constant 0 : i32
    %2 = arith.cmpi ne, %1, %c0_i32_0 : i32
    scf.if %2 {
      %cst_12 = arith.constant 0.000000e+00 : f32
      %14 = vector.broadcast %cst_12 : f32 to vector<128x128xf32>
      %c0_13 = arith.constant 0 : index
      %c0_14 = arith.constant 0 : index
      %15 = vector.load %arg7[%c0_13, %c0_14] : memref<128x128xf32, #tpu.memory_space<vmem>>, vector<128x128xf32>
      tpu.vector_store %arg7[%c0_13, %c0_14], %14 {strides = array<i32>} : memref<128x128xf32, #tpu.memory_space<vmem>>, vector<128x128xf32>,
    } else {
    }
    %c0 = arith.constant 0 : index
    %c0_1 = arith.constant 0 : index
    %3 = vector.load %arg7[%c0, %c0_1] : memref<128x128xf32, #tpu.memory_space<vmem>>, vector<128x128xf32>
    %c0_2 = arith.constant 0 : index
    %c0_3 = arith.constant 0 : index
    %c0_4 = arith.constant 0 : index
    %4 = vector.load %arg4[%c0_2, %c0_3, %c0_4] : memref<1x128x1024xbf16, #tpu.memory_space<vmem>>, vector<1x128x1024xbf16>
    %5 = vector.shape_cast %4 : vector<1x128x1024xbf16> to vector<128x1024xbf16>
    %c0_5 = arith.constant 0 : index
    %c0_6 = arith.constant 0 : index
    %c0_7 = arith.constant 0 : index
    %6 = vector.load %arg5[%c0_5, %c0_6, %c0_7] : memref<1x1024x128xbf16, #tpu.memory_space<vmem>>, vector<1x1024x128xbf16>
    %7 = vector.shape_cast %6 : vector<1x1024x128xbf16> to vector<1024x128xbf16>
    %cst = arith.constant dense<0.000000e+00> : vector<128x128xf32>
    %8 = tpu.matmul %5, %7, %cst {dimension_numbers = #tpu.dot_dimension_numbers<[1], [0], [0], [1], [0, 0, 1, 1], [], []>} : vector<128x1024xbf16>, vector<1024x128xbf16>, vector<128x128xf32> -> vector<128x128xf32>
    %9 = arith.addf %3, %8 : vector<128x128xf32>
    %c0_8 = arith.constant 0 : index
    %c0_9 = arith.constant 0 : index
    %10 = vector.load %arg7[%c0_8, %c0_9] : memref<128x128xf32, #tpu.memory_space<vmem>>, vector<128x128xf32>
    tpu.vector_store %arg7[%c0_8, %c0_9], %9 {strides = array<i32>} : memref<128x128xf32, #tpu.memory_space<vmem>>, vector<128x128xf32>,
    %c0_i32_10 = arith.constant 0 : i32
    %11 = arith.cmpi eq, %arg3, %c0_i32_10 : i32
    %12 = arith.extui %11 : i1 to i32
    %c0_i32_11 = arith.constant 0 : i32
    %13 = arith.cmpi ne, %12, %c0_i32_11 : i32
    scf.if %13 {
      %c0_12 = arith.constant 0 : index
      %c0_13 = arith.constant 0 : index
      %14 = vector.load %arg7[%c0_12, %c0_13] : memref<128x128xf32, #tpu.memory_space<vmem>>, vector<128x128xf32>
      %c0_14 = arith.constant 0 : index
      %c0_15 = arith.constant 0 : index
      %c0_16 = arith.constant 0 : index
      %15 = vector.load %arg6[%c0_14, %c0_15, %c0_16] : memref<1x128x128xf32, #tpu.memory_space<vmem>>, vector<1x128x128xf32>
      %16 = vector.shape_cast %15 : vector<1x128x128xf32> to vector<128x128xf32>
      %17 = vector.shape_cast %14 : vector<128x128xf32> to vector<1x128x128xf32>
      tpu.vector_store %arg6[%c0_14, %c0_15, %c0_16], %17 {strides = array<i32>} : memref<1x128x128xf32, #tpu.memory_space<vmem>>, vector<1x128x128xf32>,
    } else {
    }
    return
  }
  func.func @transform_0(%arg0: i32, %arg1: i32, %arg2: i32, %arg3: i32) -> (i32, i32, i32) {
    %c0_i32 = arith.constant 0 : i32
    return %arg0, %arg1, %arg3 : i32, i32, i32
  }
  func.func @transform_1(%arg0: i32, %arg1: i32, %arg2: i32, %arg3: i32) -> (i32, i32, i32) {
    %c0_i32 = arith.constant 0 : i32
    return %arg0, %arg3, %arg2 : i32, i32, i32
  }
  func.func @transform_2(%arg0: i32, %arg1: i32, %arg2: i32, %arg3: i32) -> (i32, i32, i32) {
    %c0_i32 = arith.constant 0 : i32
    return %arg0, %arg1, %arg2 : i32, i32, i32
  }
}

module attributes {stable_mosaic.version = 11 : i64} {
  func.func @_bn_relu_kernel(%arg0: memref<512x128xf32, #tpu.memory_space<vmem>>, %arg1: memref<1x128xf32, #tpu.memory_space<vmem>>, %arg2: memref<1x128xf32, #tpu.memory_space<vmem>>, %arg3: memref<512x128xf32, #tpu.memory_space<vmem>>) attributes {dimension_semantics = [], scalar_prefetch = 0 : i64, scratch_operands = 0 : i64, tpu.core_type = #tpu.core_type<tc>} {
    %c0 = arith.constant 0 : index
    %c0_0 = arith.constant 0 : index
    %0 = vector.load %arg0[%c0, %c0_0] : memref<512x128xf32, #tpu.memory_space<vmem>>, vector<512x128xf32>
    %cst = arith.constant dense<0.000000e+00> : vector<128xf32>
    %1 = vector.multi_reduction <add>, %0, %cst [0] : vector<512x128xf32> to vector<128xf32>
    %2 = vector.shape_cast %1 : vector<128xf32> to vector<1x128xf32>
    %cst_1 = arith.constant 5.120000e+02 : f32
    %3 = vector.broadcast %cst_1 : f32 to vector<1x128xf32>
    %4 = arith.divf %2, %3 : vector<1x128xf32>
    %5 = vector.broadcast %4 : vector<1x128xf32> to vector<512x128xf32>
    %6 = arith.subf %0, %5 : vector<512x128xf32>
    %7 = arith.mulf %6, %6 : vector<512x128xf32>
    %cst_2 = arith.constant dense<0.000000e+00> : vector<128xf32>
    %8 = vector.multi_reduction <add>, %7, %cst_2 [0] : vector<512x128xf32> to vector<128xf32>
    %9 = vector.shape_cast %8 : vector<128xf32> to vector<1x128xf32>
    %cst_3 = arith.constant 5.120000e+02 : f32
    %10 = vector.broadcast %cst_3 : f32 to vector<1x128xf32>
    %11 = arith.divf %9, %10 : vector<1x128xf32>
    %cst_4 = arith.constant 9.99999974E-6 : f32
    %12 = vector.broadcast %cst_4 : f32 to vector<1x128xf32>
    %13 = arith.addf %11, %12 : vector<1x128xf32>
    %14 = math.rsqrt %13 : vector<1x128xf32>
    %c0_5 = arith.constant 0 : index
    %c0_6 = arith.constant 0 : index
    %15 = vector.load %arg1[%c0_5, %c0_6] : memref<1x128xf32, #tpu.memory_space<vmem>>, vector<1x128xf32>
    %16 = arith.mulf %15, %14 : vector<1x128xf32>
    %17 = vector.broadcast %16 : vector<1x128xf32> to vector<512x128xf32>
    %18 = arith.mulf %6, %17 : vector<512x128xf32>
    %c0_7 = arith.constant 0 : index
    %c0_8 = arith.constant 0 : index
    %19 = vector.load %arg2[%c0_7, %c0_8] : memref<1x128xf32, #tpu.memory_space<vmem>>, vector<1x128xf32>
    %20 = vector.broadcast %19 : vector<1x128xf32> to vector<512x128xf32>
    %21 = arith.addf %18, %20 : vector<512x128xf32>
    %cst_9 = arith.constant 0.000000e+00 : f32
    %22 = vector.broadcast %cst_9 : f32 to vector<512x128xf32>
    %23 = arith.maximumf %21, %22 : vector<512x128xf32>
    %c0_10 = arith.constant 0 : index
    %c0_11 = arith.constant 0 : index
    %24 = vector.load %arg3[%c0_10, %c0_11] : memref<512x128xf32, #tpu.memory_space<vmem>>, vector<512x128xf32>
    tpu.vector_store %arg3[%c0_10, %c0_11], %23 {strides = array<i32>} : memref<512x128xf32, #tpu.memory_space<vmem>>, vector<512x128xf32>,
    return
  }
}

module attributes {stable_mosaic.version = 11 : i64} {
  func.func @_bmm_kernel(%arg0: i32, %arg1: i32, %arg2: i32, %arg3: i32, %arg4: memref<1x16x512xbf16, #tpu.memory_space<vmem>>, %arg5: memref<1x512x256xbf16, #tpu.memory_space<vmem>>, %arg6: memref<1x16x256xf32, #tpu.memory_space<vmem>>, %arg7: memref<16x256xf32, #tpu.memory_space<vmem>>) attributes {dimension_semantics = [#tpu.dimension_semantics<parallel>, #tpu.dimension_semantics<parallel>, #tpu.dimension_semantics<parallel>, #tpu.dimension_semantics<arbitrary>], iteration_bounds = array<i64: 4, 1, 2, 1>, scalar_prefetch = 0 : i64, scratch_operands = 1 : i64, tpu.core_type = #tpu.core_type<tc>, window_params = [{transform_indices = @transform_0, window_bounds = array<i64: 1, 16, 512>}, {transform_indices = @transform_1, window_bounds = array<i64: 1, 512, 256>}, {transform_indices = @transform_2, window_bounds = array<i64: 1, 16, 256>}]} {
    %c0_i32 = arith.constant 0 : i32
    %0 = arith.cmpi eq, %arg3, %c0_i32 : i32
    %1 = arith.extui %0 : i1 to i32
    %c0_i32_0 = arith.constant 0 : i32
    %2 = arith.cmpi ne, %1, %c0_i32_0 : i32
    scf.if %2 {
      %cst_12 = arith.constant 0.000000e+00 : f32
      %14 = vector.broadcast %cst_12 : f32 to vector<16x256xf32>
      %c0_13 = arith.constant 0 : index
      %c0_14 = arith.constant 0 : index
      %15 = vector.load %arg7[%c0_13, %c0_14] : memref<16x256xf32, #tpu.memory_space<vmem>>, vector<16x256xf32>
      tpu.vector_store %arg7[%c0_13, %c0_14], %14 {strides = array<i32>} : memref<16x256xf32, #tpu.memory_space<vmem>>, vector<16x256xf32>,
    } else {
    }
    %c0 = arith.constant 0 : index
    %c0_1 = arith.constant 0 : index
    %3 = vector.load %arg7[%c0, %c0_1] : memref<16x256xf32, #tpu.memory_space<vmem>>, vector<16x256xf32>
    %c0_2 = arith.constant 0 : index
    %c0_3 = arith.constant 0 : index
    %c0_4 = arith.constant 0 : index
    %4 = vector.load %arg4[%c0_2, %c0_3, %c0_4] : memref<1x16x512xbf16, #tpu.memory_space<vmem>>, vector<1x16x512xbf16>
    %5 = vector.shape_cast %4 : vector<1x16x512xbf16> to vector<16x512xbf16>
    %c0_5 = arith.constant 0 : index
    %c0_6 = arith.constant 0 : index
    %c0_7 = arith.constant 0 : index
    %6 = vector.load %arg5[%c0_5, %c0_6, %c0_7] : memref<1x512x256xbf16, #tpu.memory_space<vmem>>, vector<1x512x256xbf16>
    %7 = vector.shape_cast %6 : vector<1x512x256xbf16> to vector<512x256xbf16>
    %cst = arith.constant dense<0.000000e+00> : vector<16x256xf32>
    %8 = tpu.matmul %5, %7, %cst {dimension_numbers = #tpu.dot_dimension_numbers<[1], [0], [0], [1], [0, 0, 1, 1], [], []>} : vector<16x512xbf16>, vector<512x256xbf16>, vector<16x256xf32> -> vector<16x256xf32>
    %9 = arith.addf %3, %8 : vector<16x256xf32>
    %c0_8 = arith.constant 0 : index
    %c0_9 = arith.constant 0 : index
    %10 = vector.load %arg7[%c0_8, %c0_9] : memref<16x256xf32, #tpu.memory_space<vmem>>, vector<16x256xf32>
    tpu.vector_store %arg7[%c0_8, %c0_9], %9 {strides = array<i32>} : memref<16x256xf32, #tpu.memory_space<vmem>>, vector<16x256xf32>,
    %c0_i32_10 = arith.constant 0 : i32
    %11 = arith.cmpi eq, %arg3, %c0_i32_10 : i32
    %12 = arith.extui %11 : i1 to i32
    %c0_i32_11 = arith.constant 0 : i32
    %13 = arith.cmpi ne, %12, %c0_i32_11 : i32
    scf.if %13 {
      %c0_12 = arith.constant 0 : index
      %c0_13 = arith.constant 0 : index
      %14 = vector.load %arg7[%c0_12, %c0_13] : memref<16x256xf32, #tpu.memory_space<vmem>>, vector<16x256xf32>
      %15 = math.tanh %14 : vector<16x256xf32>
      %c0_14 = arith.constant 0 : index
      %c0_15 = arith.constant 0 : index
      %c0_16 = arith.constant 0 : index
      %16 = vector.load %arg6[%c0_14, %c0_15, %c0_16] : memref<1x16x256xf32, #tpu.memory_space<vmem>>, vector<1x16x256xf32>
      %17 = vector.shape_cast %16 : vector<1x16x256xf32> to vector<16x256xf32>
      %18 = vector.shape_cast %15 : vector<16x256xf32> to vector<1x16x256xf32>
      tpu.vector_store %arg6[%c0_14, %c0_15, %c0_16], %18 {strides = array<i32>} : memref<1x16x256xf32, #tpu.memory_space<vmem>>, vector<1x16x256xf32>,
    } else {
    }
    return
  }
  func.func @transform_0(%arg0: i32, %arg1: i32, %arg2: i32, %arg3: i32) -> (i32, i32, i32) {
    %c0_i32 = arith.constant 0 : i32
    return %arg0, %arg1, %arg3 : i32, i32, i32
  }
  func.func @transform_1(%arg0: i32, %arg1: i32, %arg2: i32, %arg3: i32) -> (i32, i32, i32) {
    %c0_i32 = arith.constant 0 : i32
    return %arg0, %arg3, %arg2 : i32, i32, i32
  }
  func.func @transform_2(%arg0: i32, %arg1: i32, %arg2: i32, %arg3: i32) -> (i32, i32, i32) {
    %c0_i32 = arith.constant 0 : i32
    return %arg0, %arg1, %arg2 : i32, i32, i32
  }
}

</mosaic_0001>

<llo_original>
// kernel: generator_forward.7
$region0: #{generator_forward.7}
  #allocation0 [shape = 'u32[]', space=smem, size = 0x4, offset = 0x4, fixed_abs, tag = 'smem constant byte address 0x4 - core index']
  #allocation1 [shape = 'u32[144,128]{1,0:T(1,128)}', space=vmem, size = 0x12000, scoped, tag = 'internal scratch']
  #allocation2 [shape = 'f32[16,256]{1,0:T(8,128)}', space=vmem, size = 0x4000, scoped, tag = 'scratch operand']
  %s0 = inlined_call_operand.vmem [shape: bf16[1,16,128], index: 0, kind: input, shape index: {}]
  %s1 = inlined_call_operand.vmem [shape: bf16[1,128,8192], index: 1, kind: input, shape index: {}]
  %s2 = inlined_call_operand.vmem [shape: f32[1,16,8192], index: 2, kind: output, shape index: {}]
  %s3 = sld [smem:[#allocation0]]
  $region106: #{generator_forward.7} parent=0
    _
  %s5 = ssub.s32 1, %s3
  %s6 = scalar_select 0, %s5, %s3
  $region1: #{generator_forward.7} parent=0
    #allocation3 [shape = 'u8[131072]{0}', space=vmem, size = 0x20000, scoped, tag = 'input window, operand 1']
    #allocation4 [shape = 'u8[32768]{0}', space=vmem, size = 0x8000, scoped, tag = 'output window, operand 0']
    loop: start=0, step=1, limit=34
    $region2: #{generator_forward.7} parent=1 // loop_pre_header
      _
    $region3: #{generator_forward.7} parent=1 // loop_header
      %s8 = sphi 0, %s12
      %p9 = scmp.ge.s32.totalorder %s8, 34
      %s15 = sphi 0, %s41
      %s16 = sphi 0, %s37
      %s17 = sphi 0, %s33
      %s18 = sphi 0, %s29
      %s19 = sphi 0, %s15
      %s20 = sphi 0, %s16
      %s21 = sphi 0, %s17
      %s22 = sphi 0, %s18
      %s23 = sphi 0, %s19
      %s24 = sphi 0, %s20
      %s25 = sphi 0, %s21
      %s26 = sphi 0, %s22
      %s48 = sphi 0, %s50
      %s51 = sphi 0, %s48
      %s52 = sphi 0, %s51
      %s68 = sphi 0, %s52
      %s78 = sphi 0, %s80
      %s81 = sphi 0, %s78
      %s82 = sphi 0, %s81
      %s98 = sphi 0, %s82
      %s108 = sphi 0, %s110
      %s111 = sphi 0, %s108
      %s112 = sphi 0, %s111
      %s128 = sphi 0, %s112
    $region4: #{generator_forward.7} parent=1 // loop_header_branch
      %11 = sbr.rel (%p9) target = $region8
    $region5: #{generator_forward.7} parent=1 // loop_body
      %s13 = ssub.s32 %s8, 1
      %s14 = ssub.s32 %s8, 2
      %s27 = sadd.s32 1, %s18
      %p28 = scmp.ge.s32.totalorder %s27, 1
      %s29 = scalar_select %p28, 0, %s27
      %s30 = sadd.s32 1, %s17
      %s31 = scalar_select %p28, %s30, %s17
      %p32 = scmp.ge.s32.totalorder %s31, 32
      %s33 = scalar_select %p32, 0, %s31
      %s34 = sadd.s32 1, %s16
      %s35 = scalar_select %p32, %s34, %s16
      %p36 = scmp.ge.s32.totalorder %s35, 1
      %s37 = scalar_select %p36, 0, %s35
      %s38 = sadd.s32 1, %s15
      %s39 = scalar_select %p36, %s38, %s15
      %p40 = scmp.ge.s32.totalorder %s39, 1
      %s41 = scalar_select %p40, 0, %s39
      %s42 = ssub.s32 %s15, %s41
      %s43 = ssub.s32 %s16, %s37
      %s44 = sor.u32 %s42, %s43
      %s45 = ssub.s32 %s18, %s29
      %s46 = sor.u32 %s44, %s45
      %p47 = scmp.eq.s32.totalorder %s46, 0
      %s49 = sadd.s32 %s48, 1
      %s50 = scalar_select %p47, %s48, %s49
      %p53 = pneg %p47
      %p54 = scmp.eq.s32.totalorder %s8, 31
      %p55 = por %p53, %p54
      %p56 = scmp.ne.s32.totalorder %s48, %s51
      %p57 = scmp.eq.s32.totalorder %s8, 0
      %p58 = por %p56, %p57
      %p59 = scmp.ne.s32.totalorder %s48, %s51
      %p60 = scmp.eq.s32.totalorder %s13, 31
      %p61 = por %p59, %p60
      %p62 = scmp.ne.s32.totalorder %s51, %s52
      %p63 = scmp.eq.s32.totalorder %s13, 0
      %p64 = por %p62, %p63
      %p65 = scmp.ne.s32.totalorder %s51, %s52
      %p66 = scmp.eq.s32.totalorder %s14, 31
      %p67 = por %p65, %p66
      %p69 = scmp.ne.s32.totalorder %s52, %s68
      %p70 = scmp.eq.s32.totalorder %s14, 0
      %p71 = por %p69, %p70
      %s72 = ssub.s32 %s15, %s41
      %s73 = ssub.s32 %s18, %s29
      %s74 = sor.u32 %s72, %s73
      %s75 = ssub.s32 %s17, %s33
      %s76 = sor.u32 %s74, %s75
      %p77 = scmp.eq.s32.totalorder %s76, 0
      %s79 = sadd.s32 %s78, 1
      %s80 = scalar_select %p77, %s78, %s79
      %p83 = pneg %p77
      %p84 = scmp.eq.s32.totalorder %s8, 31
      %p85 = por %p83, %p84
      %p86 = scmp.ne.s32.totalorder %s78, %s81
      %p87 = scmp.eq.s32.totalorder %s8, 0
      %p88 = por %p86, %p87
      %p89 = scmp.ne.s32.totalorder %s78, %s81
      %p90 = scmp.eq.s32.totalorder %s13, 31
      %p91 = por %p89, %p90
      %p92 = scmp.ne.s32.totalorder %s81, %s82
      %p93 = scmp.eq.s32.totalorder %s13, 0
      %p94 = por %p92, %p93
      %p95 = scmp.ne.s32.totalorder %s81, %s82
      %p96 = scmp.eq.s32.totalorder %s14, 31
      %p97 = por %p95, %p96
      %p99 = scmp.ne.s32.totalorder %s82, %s98
      %p100 = scmp.eq.s32.totalorder %s14, 0
      %p101 = por %p99, %p100
      %s102 = ssub.s32 %s15, %s41
      %s103 = ssub.s32 %s16, %s37
      %s104 = sor.u32 %s102, %s103
      %s105 = ssub.s32 %s17, %s33
      %s106 = sor.u32 %s104, %s105
      %p107 = scmp.eq.s32.totalorder %s106, 0
      %s109 = sadd.s32 %s108, 1
      %s110 = scalar_select %p107, %s108, %s109
      %p113 = pneg %p107
      %p114 = scmp.eq.s32.totalorder %s8, 31
      %p115 = por %p113, %p114
      %p116 = scmp.ne.s32.totalorder %s108, %s111
      %p117 = scmp.eq.s32.totalorder %s8, 0
      %p118 = por %p116, %p117
      %p119 = scmp.ne.s32.totalorder %s108, %s111
      %p120 = scmp.eq.s32.totalorder %s13, 31
      %p121 = por %p119, %p120
      %p122 = scmp.ne.s32.totalorder %s111, %s112
      %p123 = scmp.eq.s32.totalorder %s13, 0
      %p124 = por %p122, %p123
      %p125 = scmp.ne.s32.totalorder %s111, %s112
      %p126 = scmp.eq.s32.totalorder %s14, 31
      %p127 = por %p125, %p126
      %p129 = scmp.ne.s32.totalorder %s112, %s128
      %p130 = scmp.eq.s32.totalorder %s14, 0
      %p131 = por %p129, %p130
      %p132 = scmp.le.s32.totalorder 1, %s8
      %p133 = scmp.lt.s32.totalorder %s8, 33
      %p134 = pnand %p132, %p133
      %p135 = pneg %p134
      // Predicated region
      $region9: #{generator_forward.7} parent=5 // pred_check
        _
      $region10: #{generator_forward.7} parent=5 // pred_check_branch
        %137 = sbr.rel (%p134) target = $region12
      $region11: #{generator_forward.7} parent=5 // pred_region
        %s138 = ssub.s32 %s8, 1
        // Predicated region
        $region13: #{generator_forward.7} parent=11 // pred_check
          %p139 = pneg %p64
        $region14: #{generator_forward.7} parent=11 // pred_check_branch
          %141 = sbr.rel (%p139) target = $region16
        $region15: #{generator_forward.7} parent=11 // pred_region
          %s142 = smul.u32 2, %s20
          %p143 = scmp.lt.s32.totalorder %s19, 0
          %s144 = scalar_select %p143, %s19, 0
          %p145 = scmp.lt.s32.totalorder %s142, 1
          %s146 = scalar_select %p145, %s142, 1
          %p147 = scmp.lt.s32.totalorder %s22, 0
          %s148 = scalar_select %p147, %s22, 0
          %s149 = sadd.s32 %s148, %s146
          %s150 = smul.addr %s144, 2
          %s151 = sadd.s32 %s149, %s150
          %s152 = smul.addr %s151, 4
          %s153 = scalar_lea.vmem %s0, %s152
          %s154 = smul.u32 2, %s20
        $region16: #{generator_forward.7} parent=11 // pred_fallthru
          _
      $region12: #{generator_forward.7} parent=5 // pred_fallthru
        _
      %p155 = scmp.lt.s32.totalorder %s8, 32
      // Predicated region
      $region17: #{generator_forward.7} parent=5 // pred_check
        %p156 = pneg %p155
      $region18: #{generator_forward.7} parent=5 // pred_check_branch
        %158 = sbr.rel (%p156) target = $region20
      $region19: #{generator_forward.7} parent=5 // pred_region
        // Predicated region
        $region21: #{generator_forward.7} parent=19 // pred_check
          %p159 = pneg %p88
        $region22: #{generator_forward.7} parent=19 // pred_check_branch
          %161 = sbr.rel (%p159) target = $region24
        $region23: #{generator_forward.7} parent=19 // pred_region
          %s162 = sand.u32 %s78, 1
          %s163 = sand.u32 %s78, 1
          %s164 = smul.addr %s163, 128
          %s165 = scalar_lea.vmem [#allocation3], %s164
          %s166 = smul.u32 16, %s18
          %s167 = smul.u32 2, %s17
          %s168 = smul.addr %s166, 64
          %s169 = sadd.s32 %s167, %s168
          %s170 = smul.addr %s15, 1024
          %s171 = sadd.s32 %s169, %s170
          %s172 = smul.addr %s171, 4
          %s173 = scalar_lea.vmem %s1, %s172
          // Predicated region
          $region25: #{generator_forward.7} parent=23 // pred_check
            _
          $region26: #{generator_forward.7} parent=23 // pred_check_branch
            %175 = sbr.rel (0) target = $region28
          $region27: #{generator_forward.7} parent=23 // pred_region
            // Predicated region
            $region29: #{generator_forward.7} parent=27 // pred_check
              _
            $region30: #{generator_forward.7} parent=27 // pred_check_branch
              %177 = sbr.rel (0) target = $region32
            $region31: #{generator_forward.7} parent=27 // pred_region
              // Predicated region
              $region44: #{generator_forward.7} parent=31 // pred_check
                _
              $region45: #{generator_forward.7} parent=31 // pred_check_branch
                %222 = sbr.rel (0) target = $region47
              $region46: #{generator_forward.7} parent=31 // pred_region
                loop: start=0, step=1, limit=1
                $region48: #{generator_forward.7} parent=46 // loop_pre_header
                  _
                $region49: #{generator_forward.7} parent=46 // loop_header
                  %s224 = sphi 0, %s228
                  %p225 = scmp.ge.s32.totalorder %s224, 1
                  %s229 = sphi %s173, %s173
                  %s230 = sphi %s165, %s165
                $region50: #{generator_forward.7} parent=46 // loop_header_branch
                  %227 = sbr.rel (%p225) target = $region54
                $region51: #{generator_forward.7} parent=46 // loop_body
                  %v231 = vld [vmem:[%s229] sm:$0xff]
                  %232 = vst [vmem:[%s230] sm:$0xff] %v231
                  %v233 = vld [vmem:[%s229 + $0x100] sm:$0xff]
                  %234 = vst [vmem:[%s230 + $0x8] sm:$0xff] %v233
                  %v235 = vld [vmem:[%s229 + $0x200] sm:$0xff]
                  %236 = vst [vmem:[%s230 + $0x10] sm:$0xff] %v235
                  %v237 = vld [vmem:[%s229 + $0x300] sm:$0xff]
                  %238 = vst [vmem:[%s230 + $0x18] sm:$0xff] %v237
                  %v239 = vld [vmem:[%s229 + $0x400] sm:$0xff]
                  %240 = vst [vmem:[%s230 + $0x20] sm:$0xff] %v239
                  %v241 = vld [vmem:[%s229 + $0x500] sm:$0xff]
                  %242 = vst [vmem:[%s230 + $0x28] sm:$0xff] %v241
                  %v243 = vld [vmem:[%s229 + $0x600] sm:$0xff]
                  %244 = vst [vmem:[%s230 + $0x30] sm:$0xff] %v243
                  %v245 = vld [vmem:[%s229 + $0x700] sm:$0xff]
                  %246 = vst [vmem:[%s230 + $0x38] sm:$0xff] %v245
                  %v247 = vld [vmem:[%s229 + $0x800] sm:$0xff]
                  %248 = vst [vmem:[%s230 + $0x40] sm:$0xff] %v247
                  %v249 = vld [vmem:[%s229 + $0x900] sm:$0xff]
                  %250 = vst [vmem:[%s230 + $0x48] sm:$0xff] %v249
                  %v251 = vld [vmem:[%s229 + $0xa00] sm:$0xff]
                  %252 = vst [vmem:[%s230 + $0x50] sm:$0xff] %v251
                  %v253 = vld [vmem:[%s229 + $0xb00] sm:$0xff]
                  %254 = vst [vmem:[%s230 + $0x58] sm:$0xff] %v253
                  %v255 = vld [vmem:[%s229 + $0xc00] sm:$0xff]
                  %256 = vst [vmem:[%s230 + $0x60] sm:$0xff] %v255
                  %v257 = vld [vmem:[%s229 + $0xd00] sm:$0xff]
                  %258 = vst [vmem:[%s230 + $0x68] sm:$0xff] %v257
                  %v259 = vld [vmem:[%s229 + $0xe00] sm:$0xff]
                  %260 = vst [vmem:[%s230 + $0x70] sm:$0xff] %v259
                  %v261 = vld [vmem:[%s229 + $0xf00] sm:$0xff]
                  %262 = vst [vmem:[%s230 + $0x78] sm:$0xff] %v261
                $region52: #{generator_forward.7} parent=46 // loop_footer
                  %s228 = sadd.s32 1, %s224
                $region53: #{generator_forward.7} parent=46 // loop_footer_branch
                  %223 = sbr.rel target = $region49
                $region54: #{generator_forward.7} parent=46 // loop_exit
                  _
              $region47: #{generator_forward.7} parent=31 // pred_fallthru
                _
              // Predicated region
              $region55: #{generator_forward.7} parent=31 // pred_check
                _
              $region56: #{generator_forward.7} parent=31 // pred_check_branch
                %264 = sbr.rel target = $region58
              $region57: #{generator_forward.7} parent=31 // pred_region
                _
              $region58: #{generator_forward.7} parent=31 // pred_fallthru
                _
            $region32: #{generator_forward.7} parent=27 // pred_fallthru
              _
            // Predicated region
            $region33: #{generator_forward.7} parent=27 // pred_check
              _
            $region34: #{generator_forward.7} parent=27 // pred_check_branch
              %179 = sbr.rel target = $region36
            $region35: #{generator_forward.7} parent=27 // pred_region
              loop: start=0, step=1, limit=1
              $region37: #{generator_forward.7} parent=35 // loop_pre_header
                _
              $region38: #{generator_forward.7} parent=35 // loop_header
                %s182 = sphi 0, %s186
                %p183 = scmp.ge.s32.totalorder %s182, 1
                %s187 = sphi %s173, %s173
                %s188 = sphi %s165, %s165
              $region39: #{generator_forward.7} parent=35 // loop_header_branch
                %185 = sbr.rel (%p183) target = $region43
              $region40: #{generator_forward.7} parent=35 // loop_body
                %v189 = vld [vmem:[%s187] sm:$0xff]
                %190 = vst [vmem:[%s188] sm:$0xff] %v189
                %v191 = vld [vmem:[%s187 + $0x100] sm:$0xff]
                %192 = vst [vmem:[%s188 + $0x8] sm:$0xff] %v191
                %v193 = vld [vmem:[%s187 + $0x200] sm:$0xff]
                %194 = vst [vmem:[%s188 + $0x10] sm:$0xff] %v193
                %v195 = vld [vmem:[%s187 + $0x300] sm:$0xff]
                %196 = vst [vmem:[%s188 + $0x18] sm:$0xff] %v195
                %v197 = vld [vmem:[%s187 + $0x400] sm:$0xff]
                %198 = vst [vmem:[%s188 + $0x20] sm:$0xff] %v197
                %v199 = vld [vmem:[%s187 + $0x500] sm:$0xff]
                %200 = vst [vmem:[%s188 + $0x28] sm:$0xff] %v199
                %v201 = vld [vmem:[%s187 + $0x600] sm:$0xff]
                %202 = vst [vmem:[%s188 + $0x30] sm:$0xff] %v201
                %v203 = vld [vmem:[%s187 + $0x700] sm:$0xff]
                %204 = vst [vmem:[%s188 + $0x38] sm:$0xff] %v203
                %v205 = vld [vmem:[%s187 + $0x800] sm:$0xff]
                %206 = vst [vmem:[%s188 + $0x40] sm:$0xff] %v205
                %v207 = vld [vmem:[%s187 + $0x900] sm:$0xff]
                %208 = vst [vmem:[%s188 + $0x48] sm:$0xff] %v207
                %v209 = vld [vmem:[%s187 + $0xa00] sm:$0xff]
                %210 = vst [vmem:[%s188 + $0x50] sm:$0xff] %v209
                %v211 = vld [vmem:[%s187 + $0xb00] sm:$0xff]
                %212 = vst [vmem:[%s188 + $0x58] sm:$0xff] %v211
                %v213 = vld [vmem:[%s187 + $0xc00] sm:$0xff]
                %214 = vst [vmem:[%s188 + $0x60] sm:$0xff] %v213
                %v215 = vld [vmem:[%s187 + $0xd00] sm:$0xff]
                %216 = vst [vmem:[%s188 + $0x68] sm:$0xff] %v215
                %v217 = vld [vmem:[%s187 + $0xe00] sm:$0xff]
                %218 = vst [vmem:[%s188 + $0x70] sm:$0xff] %v217
                %v219 = vld [vmem:[%s187 + $0xf00] sm:$0xff]
                %220 = vst [vmem:[%s188 + $0x78] sm:$0xff] %v219
              $region41: #{generator_forward.7} parent=35 // loop_footer
                %s186 = sadd.s32 1, %s182
              $region42: #{generator_forward.7} parent=35 // loop_footer_branch
                %181 = sbr.rel target = $region38
              $region43: #{generator_forward.7} parent=35 // loop_exit
                _
            $region36: #{generator_forward.7} parent=27 // pred_fallthru
              _
          $region28: #{generator_forward.7} parent=23 // pred_fallthru
            _
          %265 = vnop
        $region24: #{generator_forward.7} parent=19 // pred_fallthru
          _
      $region20: #{generator_forward.7} parent=5 // pred_fallthru
        _
      %p266 = scmp.le.s32.totalorder 1, %s8
      %p267 = scmp.lt.s32.totalorder %s8, 33
      %p268 = pnand %p266, %p267
      %p269 = pneg %p268
      // Predicated region
      $region59: #{generator_forward.7} parent=5 // pred_check
        _
      $region60: #{generator_forward.7} parent=5 // pred_check_branch
        %271 = sbr.rel (%p268) target = $region62
      $region61: #{generator_forward.7} parent=5 // pred_region
        %s272 = ssub.s32 %s8, 1
        %s273 = sand.u32 %s81, 1
        %s274 = sand.u32 %s81, 1
        %s275 = smul.addr %s274, 128
        %s276 = scalar_lea.vmem [#allocation3], %s275
        // Predicated region
        $region63: #{generator_forward.7} parent=61 // pred_check
          %p277 = pneg %p94
        $region64: #{generator_forward.7} parent=61 // pred_check_branch
          %279 = sbr.rel (%p277) target = $region66
        $region65: #{generator_forward.7} parent=61 // pred_region
          _
        $region66: #{generator_forward.7} parent=61 // pred_fallthru
          _
        %s280 = smul.u32 2, %s20
        %p281 = scmp.lt.s32.totalorder %s19, 0
        %s282 = scalar_select %p281, %s19, 0
        %p283 = scmp.lt.s32.totalorder %s280, 1
        %s284 = scalar_select %p283, %s280, 1
        %p285 = scmp.lt.s32.totalorder %s22, 0
        %s286 = scalar_select %p285, %s22, 0
        %s287 = sadd.s32 %s286, %s284
        %s288 = smul.addr %s282, 2
        %s289 = sadd.s32 %s287, %s288
        %s290 = smul.addr %s289, 4
        %s291 = scalar_lea.vmem %s0, %s290
        %p292 = pneg %p64
        %p293 = pneg %p61
        %s294 = sand.u32 %s81, 1
        %s295 = sand.u32 %s81, 1
        %s296 = smul.addr %s295, 128
        %s297 = scalar_lea.vmem [#allocation3], %s296
        %p298 = pneg %p94
        %p299 = pneg %p91
        %p300 = pneg %p124
        %p301 = pneg %p121
        %s302 = sand.u32 %s111, 1
        %s303 = sand.u32 %s111, 1
        %s304 = smul.addr %s303, 32
        %s305 = scalar_lea.vmem [#allocation4], %s304
        %s306 = smul.u32 2, %s20
        %p307 = scmp.lt.s32.totalorder %s19, 0
        %s308 = scalar_select %p307, %s19, 0
        %p309 = scmp.lt.s32.totalorder %s306, 1
        %s310 = scalar_select %p309, %s306, 1
        %p311 = scmp.lt.s32.totalorder %s22, 0
        %s312 = scalar_select %p311, %s22, 0
        %s313 = sadd.s32 %s312, %s310
        %s314 = smul.addr %s308, 2
        %s315 = sadd.s32 %s313, %s314
        %s316 = smul.addr %s315, 4
        %s317 = scalar_lea.vmem %s0, %s316
        %s318 = smul.u32 2, %s20
        %s319 = smul.u32 16, %s22
        %s320 = smul.u32 2, %s21
        %s321 = smul.u32 2, %s20
        %s322 = smul.u32 2, %s21
        %p324 = scmp.eq.s32.totalorder %s22, 0
        // Predicated region
        $region67: #{generator_forward.7} parent=61 // pred_check
          %p325 = pneg %p324
        $region68: #{generator_forward.7} parent=61 // pred_check_branch
          %327 = sbr.rel (%p325) target = $region70
        $region69: #{generator_forward.7} parent=61 // pred_region
          %328 = vst [vmem:[#allocation2] sm:$0xff] 0.0
          %329 = vst [vmem:[#allocation2 + $0x8] sm:$0xff] 0.0
          %330 = vst [vmem:[#allocation2 + $0x10] sm:$0xff] 0.0
          %331 = vst [vmem:[#allocation2 + $0x18] sm:$0xff] 0.0
        $region70: #{generator_forward.7} parent=61 // pred_fallthru
          _
        %v332 = vld [vmem:[#allocation2] sm:$0xff]
        %v333 = vld [vmem:[#allocation2 + $0x8] sm:$0xff]
        %v334 = vld [vmem:[#allocation2 + $0x10] sm:$0xff]
        %v335 = vld [vmem:[#allocation2 + $0x18] sm:$0xff]
        %v336 = vld [vmem:[%s317] sm:$0xf]
        %v337 = vld [vmem:[%s317 + $0x4] sm:$0xf]
        %v338 = vld [vmem:[%s276] sm:$0xff]
        %v339 = vld [vmem:[%s276 + $0x8] sm:$0xff]
        %v340 = vld [vmem:[%s276 + $0x10] sm:$0xff]
        %v341 = vld [vmem:[%s276 + $0x18] sm:$0xff]
        %v342 = vld [vmem:[%s276 + $0x20] sm:$0xff]
        %v343 = vld [vmem:[%s276 + $0x28] sm:$0xff]
        %v344 = vld [vmem:[%s276 + $0x30] sm:$0xff]
        %v345 = vld [vmem:[%s276 + $0x38] sm:$0xff]
        %v346 = vld [vmem:[%s276 + $0x40] sm:$0xff]
        %v347 = vld [vmem:[%s276 + $0x48] sm:$0xff]
        %v348 = vld [vmem:[%s276 + $0x50] sm:$0xff]
        %v349 = vld [vmem:[%s276 + $0x58] sm:$0xff]
        %v350 = vld [vmem:[%s276 + $0x60] sm:$0xff]
        %v351 = vld [vmem:[%s276 + $0x68] sm:$0xff]
        %v352 = vld [vmem:[%s276 + $0x70] sm:$0xff]
        %v353 = vld [vmem:[%s276 + $0x78] sm:$0xff]
        %v356 = vunpack.c.l.b16 %v336
        %v357 = vunpack.c.l.b16 %v337
        %v358 = vpack.c.b16 %v357, %v356
        %v376 = vunpack.c.l.b16 %v338
        %v377 = vunpack.c.h.b16 %v338
        %v378 = vunpack.c.l.b16 %v339
        %v379 = vunpack.c.h.b16 %v339
        %v380 = vunpack.c.l.b16 %v340
        %v381 = vunpack.c.h.b16 %v340
        %v382 = vunpack.c.l.b16 %v341
        %v383 = vunpack.c.h.b16 %v341
        %v384 = vunpack.c.l.b16 %v342
        %v385 = vunpack.c.h.b16 %v342
        %v386 = vunpack.c.l.b16 %v343
        %v387 = vunpack.c.h.b16 %v343
        %v388 = vunpack.c.l.b16 %v344
        %v389 = vunpack.c.h.b16 %v344
        %v390 = vunpack.c.l.b16 %v345
        %v391 = vunpack.c.h.b16 %v345
        %v392 = vunpack.c.l.b16 %v346
        %v393 = vunpack.c.h.b16 %v346
        %v394 = vunpack.c.l.b16 %v347
        %v395 = vunpack.c.h.b16 %v347
        %v396 = vunpack.c.l.b16 %v348
        %v397 = vunpack.c.h.b16 %v348
        %v398 = vunpack.c.l.b16 %v349
        %v399 = vunpack.c.h.b16 %v349
        %v400 = vunpack.c.l.b16 %v350
        %v401 = vunpack.c.h.b16 %v350
        %v402 = vunpack.c.l.b16 %v351
        %v403 = vunpack.c.h.b16 %v351
        %v404 = vunpack.c.l.b16 %v352
        %v405 = vunpack.c.h.b16 %v352
        %v406 = vunpack.c.l.b16 %v353
        %v407 = vunpack.c.h.b16 %v353
        %v408 = vpack.c.b16 %v378, %v376
        %v409 = vpack.c.b16 %v379, %v377
        %v410 = vpack.c.b16 %v382, %v380
        %v411 = vpack.c.b16 %v383, %v381
        %v412 = vpack.c.b16 %v386, %v384
        %v413 = vpack.c.b16 %v387, %v385
        %v414 = vpack.c.b16 %v390, %v388
        %v415 = vpack.c.b16 %v391, %v389
        %v416 = vpack.c.b16 %v394, %v392
        %v417 = vpack.c.b16 %v395, %v393
        %v418 = vpack.c.b16 %v398, %v396
        %v419 = vpack.c.b16 %v399, %v397
        %v420 = vpack.c.b16 %v402, %v400
        %v421 = vpack.c.b16 %v403, %v401
        %v422 = vpack.c.b16 %v406, %v404
        %v423 = vpack.c.b16 %v407, %v405
        %440 = vmatprep.subr.bf16.mxu0 %v409
        %441 = vmatpush1.bf16.msra.mxu0 %v408
        %442 = vmatprep.subr.bf16.mxu0 %v411
        %443 = vmatpush1.bf16.msra.mxu0 %v410
        %444 = vmatprep.subr.bf16.mxu0 %v413
        %445 = vmatpush1.bf16.msra.mxu0 %v412
        %446 = vmatprep.subr.bf16.mxu0 %v415
        %447 = vmatpush1.bf16.msra.mxu0 %v414
        %448 = vmatprep.subr.bf16.mxu0 %v417
        %449 = vmatpush1.bf16.msra.mxu0 %v416
        %450 = vmatprep.subr.bf16.mxu0 %v419
        %451 = vmatpush1.bf16.msra.mxu0 %v418
        %452 = vmatprep.subr.bf16.mxu0 %v421
        %453 = vmatpush1.bf16.msra.mxu0 %v420
        %454 = vmatprep.subr.bf16.mxu0 %v423
        %455 = vmatpush1.bf16.msra.mxu0 %v422
        %456 = vmatprep.subr.bf16.mxu0 0
        %457 = vmatpush1.bf16.msra.mxu0 0
        %458 = vmatprep.subr.bf16.mxu0 0
        %459 = vmatpush1.bf16.msra.mxu0 0
        %460 = vmatprep.subr.bf16.mxu0 0
        %461 = vmatpush1.bf16.msra.mxu0 0
        %462 = vmatprep.subr.bf16.mxu0 0
        %463 = vmatpush1.bf16.msra.mxu0 0
        %464 = vmatprep.subr.bf16.mxu0 0
        %465 = vmatpush1.bf16.msra.mxu0 0
        %466 = vmatprep.subr.bf16.mxu0 0
        %467 = vmatpush1.bf16.msra.mxu0 0
        %468 = vmatprep.subr.bf16.mxu0 0
        %469 = vmatpush1.bf16.msra.mxu0 0
        %470 = vmatprep.subr.bf16.mxu0 0
        %471 = vmatpush1.bf16.msra.mxu0 0
        %472 = vmatprep.mubr.bf16.mxu0 0
        %473 = vmatmul.mubr.bf16.gmra.mrb[0].mxu0 %v358
        %v474 = vpop.f32.mrb[0].mxu0
        %v475 = vadd.f32 0.0, %v474
        %v476 = vpop.f32.mrb[0].mxu0
        %v477 = vadd.f32 0.0, %v476
        %v478 = vpop.f32.mrb[0].mxu0
        %v479 = vadd.f32 0.0, %v478
        %v480 = vpop.f32.mrb[0].mxu0
        %v481 = vadd.f32 0.0, %v480
        %482 = vdwg.mxu0
        %v483 = vadd.f32 %v332, %v475
        %v484 = vadd.f32 %v333, %v477
        %v485 = vadd.f32 %v334, %v479
        %v486 = vadd.f32 %v335, %v481
        %487 = vst [vmem:[#allocation2] sm:$0xff] %v483
        %488 = vst [vmem:[#allocation2 + $0x8] sm:$0xff] %v484
        %489 = vst [vmem:[#allocation2 + $0x10] sm:$0xff] %v485
        %490 = vst [vmem:[#allocation2 + $0x18] sm:$0xff] %v486
        // Predicated region
        $region71: #{generator_forward.7} parent=61 // pred_check
          %p491 = pneg %p324
        $region72: #{generator_forward.7} parent=61 // pred_check_branch
          %493 = sbr.rel (%p491) target = $region74
        $region73: #{generator_forward.7} parent=61 // pred_region
          %v494 = vld [vmem:[#allocation2] sm:$0xff]
          %v495 = vld [vmem:[#allocation2 + $0x8] sm:$0xff]
          %v496 = vld [vmem:[#allocation2 + $0x10] sm:$0xff]
          %v497 = vld [vmem:[#allocation2 + $0x18] sm:$0xff]
          %498 = vst [vmem:[%s305] sm:$0xff] %v494
          %499 = vst [vmem:[%s305 + $0x8] sm:$0xff] %v495
          %500 = vst [vmem:[%s305 + $0x10] sm:$0xff] %v496
          %501 = vst [vmem:[%s305 + $0x18] sm:$0xff] %v497
        $region74: #{generator_forward.7} parent=61 // pred_fallthru
          _
        %s502 = sand.u32 %s111, 1
        %s503 = sand.u32 %s111, 1
        %s504 = smul.addr %s503, 32
        %s505 = scalar_lea.vmem [#allocation4], %s504
        // Predicated region
        $region75: #{generator_forward.7} parent=61 // pred_check
          %p506 = pneg %p121
        $region76: #{generator_forward.7} parent=61 // pred_check_branch
          %508 = sbr.rel (%p506) target = $region78
        $region77: #{generator_forward.7} parent=61 // pred_region
          %s509 = smul.u32 2, %s20
          %s510 = smul.u32 2, %s21
          %s511 = smul.addr %s509, 64
          %s512 = sadd.s32 %s510, %s511
          %s513 = smul.addr %s19, 128
          %s514 = sadd.s32 %s512, %s513
          %s515 = smul.addr %s514, 8
          %s516 = scalar_lea.vmem %s2, %s515
          // Predicated region
          $region79: #{generator_forward.7} parent=77 // pred_check
            _
          $region80: #{generator_forward.7} parent=77 // pred_check_branch
            %518 = sbr.rel (0) target = $region82
          $region81: #{generator_forward.7} parent=77 // pred_region
            // Predicated region
            $region83: #{generator_forward.7} parent=81 // pred_check
              _
            $region84: #{generator_forward.7} parent=81 // pred_check_branch
              %520 = sbr.rel (0) target = $region86
            $region85: #{generator_forward.7} parent=81 // pred_region
              loop: start=0, step=1, limit=1
              $region87: #{generator_forward.7} parent=85 // loop_pre_header
                _
              $region88: #{generator_forward.7} parent=85 // loop_header
                %s522 = sphi 0, %s526
                %p523 = scmp.ge.s32.totalorder %s522, 1
                %s527 = sphi %s505, %s505
                %s528 = sphi %s516, %s516
              $region89: #{generator_forward.7} parent=85 // loop_header_branch
                %525 = sbr.rel (%p523) target = $region93
              $region90: #{generator_forward.7} parent=85 // loop_body
                %v529 = vld [vmem:[%s527] sm:$0xff]
                %530 = vst [vmem:[%s528] sm:$0xff] %v529
                %v531 = vld [vmem:[%s527 + $0x8] sm:$0xff]
                %532 = vst [vmem:[%s528 + $0x8] sm:$0xff] %v531
                %v533 = vld [vmem:[%s527 + $0x10] sm:$0xff]
                %534 = vst [vmem:[%s528 + $0x200] sm:$0xff] %v533
                %v535 = vld [vmem:[%s527 + $0x18] sm:$0xff]
                %536 = vst [vmem:[%s528 + $0x208] sm:$0xff] %v535
              $region91: #{generator_forward.7} parent=85 // loop_footer
                %s526 = sadd.s32 1, %s522
              $region92: #{generator_forward.7} parent=85 // loop_footer_branch
                %521 = sbr.rel target = $region88
              $region93: #{generator_forward.7} parent=85 // loop_exit
                _
            $region86: #{generator_forward.7} parent=81 // pred_fallthru
              _
            // Predicated region
            $region94: #{generator_forward.7} parent=81 // pred_check
              _
            $region95: #{generator_forward.7} parent=81 // pred_check_branch
              %538 = sbr.rel target = $region97
            $region96: #{generator_forward.7} parent=81 // pred_region
              _
            $region97: #{generator_forward.7} parent=81 // pred_fallthru
              _
          $region82: #{generator_forward.7} parent=77 // pred_fallthru
            _
          %539 = vnop
        $region78: #{generator_forward.7} parent=61 // pred_fallthru
          _
      $region62: #{generator_forward.7} parent=5 // pred_fallthru
        _
      %p540 = scmp.le.s32.totalorder 2, %s8
      // Predicated region
      $region98: #{generator_forward.7} parent=5 // pred_check
        %p541 = pneg %p540
      $region99: #{generator_forward.7} parent=5 // pred_check_branch
        %543 = sbr.rel (%p541) target = $region101
      $region100: #{generator_forward.7} parent=5 // pred_region
        %s544 = ssub.s32 %s8, 2
        // Predicated region
        $region102: #{generator_forward.7} parent=100 // pred_check
          %p545 = pneg %p127
        $region103: #{generator_forward.7} parent=100 // pred_check_branch
          %547 = sbr.rel (%p545) target = $region105
        $region104: #{generator_forward.7} parent=100 // pred_region
          %s548 = sand.u32 %s112, 1
          %s549 = sand.u32 %s112, 1
          %s550 = smul.addr %s549, 32
          %s551 = scalar_lea.vmem [#allocation4], %s550
        $region105: #{generator_forward.7} parent=100 // pred_fallthru
          _
      $region101: #{generator_forward.7} parent=5 // pred_fallthru
        _
    $region6: #{generator_forward.7} parent=1 // loop_footer
      %s12 = sadd.s32 1, %s8
    $region7: #{generator_forward.7} parent=1 // loop_footer_branch
      %7 = sbr.rel target = $region3
    $region8: #{generator_forward.7} parent=1 // loop_exit
      _

// kernel: squeeze.51
$region0: #{squeeze.51}
  %s0 = inlined_call_operand.vmem [shape: f32[1,2,8192], index: 0, kind: input, shape index: {}]
  %s1 = inlined_call_operand.vmem [shape: f32[32,512], index: 1, kind: output, shape index: {}]
  $region1: #{squeeze.51} parent=0
    #allocation0 [shape = 'u8[262144]{0}', space=vmem, size = 0x40000, scoped, tag = 'scoped mem for input reshape']
    %s3 = sshllo.u32 0, 2
    %s4 = smul.addr 2, 63
    %s5 = scalar_lea.vmem %s0, %s4
    %v6 = vld [vmem:[%s5] sm:%s3]
    %s7 = scalar_lea.vmem [#allocation0], 504
    %8 = vst [vmem:[%s7] sm:%s3] %v6
    %s9 = smul.addr 2, 62
    %s10 = scalar_lea.vmem %s0, %s9
    %v11 = vld [vmem:[%s10] sm:%s3]
    %s12 = scalar_lea.vmem [#allocation0], 496
    %13 = vst [vmem:[%s12] sm:%s3] %v11
    %s14 = smul.addr 2, 61
    %s15 = scalar_lea.vmem %s0, %s14
    %v16 = vld [vmem:[%s15] sm:%s3]
    %s17 = scalar_lea.vmem [#allocation0], 488
    %18 = vst [vmem:[%s17] sm:%s3] %v16
    %s19 = smul.addr 2, 60
    %s20 = scalar_lea.vmem %s0, %s19
    %v21 = vld [vmem:[%s20] sm:%s3]
    %s22 = scalar_lea.vmem [#allocation0], 480
    %23 = vst [vmem:[%s22] sm:%s3] %v21
    %s24 = smul.addr 2, 59
    %s25 = scalar_lea.vmem %s0, %s24
    %v26 = vld [vmem:[%s25] sm:%s3]
    %s27 = scalar_lea.vmem [#allocation0], 472
    %28 = vst [vmem:[%s27] sm:%s3] %v26
    %s29 = smul.addr 2, 58
    %s30 = scalar_lea.vmem %s0, %s29
    %v31 = vld [vmem:[%s30] sm:%s3]
    %s32 = scalar_lea.vmem [#allocation0], 464
    %33 = vst [vmem:[%s32] sm:%s3] %v31
    %s34 = smul.addr 2, 57
    %s35 = scalar_lea.vmem %s0, %s34
    %v36 = vld [vmem:[%s35] sm:%s3]
    %s37 = scalar_lea.vmem [#allocation0], 456
    %38 = vst [vmem:[%s37] sm:%s3] %v36
    %s39 = smul.addr 2, 56
    %s40 = scalar_lea.vmem %s0, %s39
    %v41 = vld [vmem:[%s40] sm:%s3]
    %s42 = scalar_lea.vmem [#allocation0], 448
    %43 = vst [vmem:[%s42] sm:%s3] %v41
    %s44 = smul.addr 2, 55
    %s45 = scalar_lea.vmem %s0, %s44
    %v46 = vld [vmem:[%s45] sm:%s3]
    %s47 = scalar_lea.vmem [#allocation0], 440
    %48 = vst [vmem:[%s47] sm:%s3] %v46
    %s49 = smul.addr 2, 54
    %s50 = scalar_lea.vmem %s0, %s49
    %v51 = vld [vmem:[%s50] sm:%s3]
    %s52 = scalar_lea.vmem [#allocation0], 432
    %53 = vst [vmem:[%s52] sm:%s3] %v51
    %s54 = smul.addr 2, 53
    %s55 = scalar_lea.vmem %s0, %s54
    %v56 = vld [vmem:[%s55] sm:%s3]
    %s57 = scalar_lea.vmem [#allocation0], 424
    %58 = vst [vmem:[%s57] sm:%s3] %v56
    %s59 = smul.addr 2, 52
    %s60 = scalar_lea.vmem %s0, %s59
    %v61 = vld [vmem:[%s60] sm:%s3]
    %s62 = scalar_lea.vmem [#allocation0], 416
    %63 = vst [vmem:[%s62] sm:%s3] %v61
    %s64 = smul.addr 2, 51
    %s65 = scalar_lea.vmem %s0, %s64
    %v66 = vld [vmem:[%s65] sm:%s3]
    %s67 = scalar_lea.vmem [#allocation0], 408
    %68 = vst [vmem:[%s67] sm:%s3] %v66
    %s69 = smul.addr 2, 50
    %s70 = scalar_lea.vmem %s0, %s69
    %v71 = vld [vmem:[%s70] sm:%s3]
    %s72 = scalar_lea.vmem [#allocation0], 400
    %73 = vst [vmem:[%s72] sm:%s3] %v71
    %s74 = smul.addr 2, 49
    %s75 = scalar_lea.vmem %s0, %s74
    %v76 = vld [vmem:[%s75] sm:%s3]
    %s77 = scalar_lea.vmem [#allocation0], 392
    %78 = vst [vmem:[%s77] sm:%s3] %v76
    %s79 = smul.addr 2, 48
    %s80 = scalar_lea.vmem %s0, %s79
    %v81 = vld [vmem:[%s80] sm:%s3]
    %s82 = scalar_lea.vmem [#allocation0], 384
    %83 = vst [vmem:[%s82] sm:%s3] %v81
    %s84 = smul.addr 2, 47
    %s85 = scalar_lea.vmem %s0, %s84
    %v86 = vld [vmem:[%s85] sm:%s3]
    %s87 = scalar_lea.vmem [#allocation0], 376
    %88 = vst [vmem:[%s87] sm:%s3] %v86
    %s89 = smul.addr 2, 46
    %s90 = scalar_lea.vmem %s0, %s89
    %v91 = vld [vmem:[%s90] sm:%s3]
    %s92 = scalar_lea.vmem [#allocation0], 368
    %93 = vst [vmem:[%s92] sm:%s3] %v91
    %s94 = smul.addr 2, 45
    %s95 = scalar_lea.vmem %s0, %s94
    %v96 = vld [vmem:[%s95] sm:%s3]
    %s97 = scalar_lea.vmem [#allocation0], 360
    %98 = vst [vmem:[%s97] sm:%s3] %v96
    %s99 = smul.addr 2, 44
    %s100 = scalar_lea.vmem %s0, %s99
    %v101 = vld [vmem:[%s100] sm:%s3]
    %s102 = scalar_lea.vmem [#allocation0], 352
    %103 = vst [vmem:[%s102] sm:%s3] %v101
    %s104 = smul.addr 2, 43
    %s105 = scalar_lea.vmem %s0, %s104
    %v106 = vld [vmem:[%s105] sm:%s3]
    %s107 = scalar_lea.vmem [#allocation0], 344
    %108 = vst [vmem:[%s107] sm:%s3] %v106
    %s109 = smul.addr 2, 42
    %s110 = scalar_lea.vmem %s0, %s109
    %v111 = vld [vmem:[%s110] sm:%s3]
    %s112 = scalar_lea.vmem [#allocation0], 336
    %113 = vst [vmem:[%s112] sm:%s3] %v111
    %s114 = smul.addr 2, 41
    %s115 = scalar_lea.vmem %s0, %s114
    %v116 = vld [vmem:[%s115] sm:%s3]
    %s117 = scalar_lea.vmem [#allocation0], 328
    %118 = vst [vmem:[%s117] sm:%s3] %v116
    %s119 = smul.addr 2, 40
    %s120 = scalar_lea.vmem %s0, %s119
    %v121 = vld [vmem:[%s120] sm:%s3]
    %s122 = scalar_lea.vmem [#allocation0], 320
    %123 = vst [vmem:[%s122] sm:%s3] %v121
    %s124 = smul.addr 2, 39
    %s125 = scalar_lea.vmem %s0, %s124
    %v126 = vld [vmem:[%s125] sm:%s3]
    %s127 = scalar_lea.vmem [#allocation0], 312
    %128 = vst [vmem:[%s127] sm:%s3] %v126
    %s129 = smul.addr 2, 38
    %s130 = scalar_lea.vmem %s0, %s129
    %v131 = vld [vmem:[%s130] sm:%s3]
    %s132 = scalar_lea.vmem [#allocation0], 304
    %133 = vst [vmem:[%s132] sm:%s3] %v131
    %s134 = smul.addr 2, 37
    %s135 = scalar_lea.vmem %s0, %s134
    %v136 = vld [vmem:[%s135] sm:%s3]
    %s137 = scalar_lea.vmem [#allocation0], 296
    %138 = vst [vmem:[%s137] sm:%s3] %v136
    %s139 = smul.addr 2, 36
    %s140 = scalar_lea.vmem %s0, %s139
    %v141 = vld [vmem:[%s140] sm:%s3]
    %s142 = scalar_lea.vmem [#allocation0], 288
    %143 = vst [vmem:[%s142] sm:%s3] %v141
    %s144 = smul.addr 2, 35
    %s145 = scalar_lea.vmem %s0, %s144
    %v146 = vld [vmem:[%s145] sm:%s3]
    %s147 = scalar_lea.vmem [#allocation0], 280
    %148 = vst [vmem:[%s147] sm:%s3] %v146
    %s149 = smul.addr 2, 34
    %s150 = scalar_lea.vmem %s0, %s149
    %v151 = vld [vmem:[%s150] sm:%s3]
    %s152 = scalar_lea.vmem [#allocation0], 272
    %153 = vst [vmem:[%s152] sm:%s3] %v151
    %s154 = smul.addr 2, 33
    %s155 = scalar_lea.vmem %s0, %s154
    %v156 = vld [vmem:[%s155] sm:%s3]
    %s157 = scalar_lea.vmem [#allocation0], 264
    %158 = vst [vmem:[%s157] sm:%s3] %v156
    %s159 = smul.addr 2, 32
    %s160 = scalar_lea.vmem %s0, %s159
    %v161 = vld [vmem:[%s160] sm:%s3]
    %s162 = scalar_lea.vmem [#allocation0], 256
    %163 = vst [vmem:[%s162] sm:%s3] %v161
    %s164 = smul.addr 2, 31
    %s165 = scalar_lea.vmem %s0, %s164
    %v166 = vld [vmem:[%s165] sm:%s3]
    %s167 = scalar_lea.vmem [#allocation0], 248
    %168 = vst [vmem:[%s167] sm:%s3] %v166
    %s169 = smul.addr 2, 30
    %s170 = scalar_lea.vmem %s0, %s169
    %v171 = vld [vmem:[%s170] sm:%s3]
    %s172 = scalar_lea.vmem [#allocation0], 240
    %173 = vst [vmem:[%s172] sm:%s3] %v171
    %s174 = smul.addr 2, 29
    %s175 = scalar_lea.vmem %s0, %s174
    %v176 = vld [vmem:[%s175] sm:%s3]
    %s177 = scalar_lea.vmem [#allocation0], 232
    %178 = vst [vmem:[%s177] sm:%s3] %v176
    %s179 = smul.addr 2, 28
    %s180 = scalar_lea.vmem %s0, %s179
    %v181 = vld [vmem:[%s180] sm:%s3]
    %s182 = scalar_lea.vmem [#allocation0], 224
    %183 = vst [vmem:[%s182] sm:%s3] %v181
    %s184 = smul.addr 2, 27
    %s185 = scalar_lea.vmem %s0, %s184
    %v186 = vld [vmem:[%s185] sm:%s3]
    %s187 = scalar_lea.vmem [#allocation0], 216
    %188 = vst [vmem:[%s187] sm:%s3] %v186
    %s189 = smul.addr 2, 26
    %s190 = scalar_lea.vmem %s0, %s189
    %v191 = vld [vmem:[%s190] sm:%s3]
    %s192 = scalar_lea.vmem [#allocation0], 208
    %193 = vst [vmem:[%s192] sm:%s3] %v191
    %s194 = smul.addr 2, 25
    %s195 = scalar_lea.vmem %s0, %s194
    %v196 = vld [vmem:[%s195] sm:%s3]
    %s197 = scalar_lea.vmem [#allocation0], 200
    %198 = vst [vmem:[%s197] sm:%s3] %v196
    %s199 = smul.addr 2, 24
    %s200 = scalar_lea.vmem %s0, %s199
    %v201 = vld [vmem:[%s200] sm:%s3]
    %s202 = scalar_lea.vmem [#allocation0], 192
    %203 = vst [vmem:[%s202] sm:%s3] %v201
    %s204 = smul.addr 2, 23
    %s205 = scalar_lea.vmem %s0, %s204
    %v206 = vld [vmem:[%s205] sm:%s3]
    %s207 = scalar_lea.vmem [#allocation0], 184
    %208 = vst [vmem:[%s207] sm:%s3] %v206
    %s209 = smul.addr 2, 22
    %s210 = scalar_lea.vmem %s0, %s209
    %v211 = vld [vmem:[%s210] sm:%s3]
    %s212 = scalar_lea.vmem [#allocation0], 176
    %213 = vst [vmem:[%s212] sm:%s3] %v211
    %s214 = smul.addr 2, 21
    %s215 = scalar_lea.vmem %s0, %s214
    %v216 = vld [vmem:[%s215] sm:%s3]
    %s217 = scalar_lea.vmem [#allocation0], 168
    %218 = vst [vmem:[%s217] sm:%s3] %v216
    %s219 = smul.addr 2, 20
    %s220 = scalar_lea.vmem %s0, %s219
    %v221 = vld [vmem:[%s220] sm:%s3]
    %s222 = scalar_lea.vmem [#allocation0], 160
    %223 = vst [vmem:[%s222] sm:%s3] %v221
    %s224 = smul.addr 2, 19
    %s225 = scalar_lea.vmem %s0, %s224
    %v226 = vld [vmem:[%s225] sm:%s3]
    %s227 = scalar_lea.vmem [#allocation0], 152
    %228 = vst [vmem:[%s227] sm:%s3] %v226
    %s229 = smul.addr 2, 18
    %s230 = scalar_lea.vmem %s0, %s229
    %v231 = vld [vmem:[%s230] sm:%s3]
    %s232 = scalar_lea.vmem [#allocation0], 144
    %233 = vst [vmem:[%s232] sm:%s3] %v231
    %s234 = smul.addr 2, 17
    %s235 = scalar_lea.vmem %s0, %s234
    %v236 = vld [vmem:[%s235] sm:%s3]
    %s237 = scalar_lea.vmem [#allocation0], 136
    %238 = vst [vmem:[%s237] sm:%s3] %v236
    %s239 = smul.addr 2, 16
    %s240 = scalar_lea.vmem %s0, %s239
    %v241 = vld [vmem:[%s240] sm:%s3]
    %s242 = scalar_lea.vmem [#allocation0], 128
    %243 = vst [vmem:[%s242] sm:%s3] %v241
    %s244 = smul.addr 2, 15
    %s245 = scalar_lea.vmem %s0, %s244
    %v246 = vld [vmem:[%s245] sm:%s3]
    %s247 = scalar_lea.vmem [#allocation0], 120
    %248 = vst [vmem:[%s247] sm:%s3] %v246
    %s249 = smul.addr 2, 14
    %s250 = scalar_lea.vmem %s0, %s249
    %v251 = vld [vmem:[%s250] sm:%s3]
    %s252 = scalar_lea.vmem [#allocation0], 112
    %253 = vst [vmem:[%s252] sm:%s3] %v251
    %s254 = smul.addr 2, 13
    %s255 = scalar_lea.vmem %s0, %s254
    %v256 = vld [vmem:[%s255] sm:%s3]
    %s257 = scalar_lea.vmem [#allocation0], 104
    %258 = vst [vmem:[%s257] sm:%s3] %v256
    %s259 = smul.addr 2, 12
    %s260 = scalar_lea.vmem %s0, %s259
    %v261 = vld [vmem:[%s260] sm:%s3]
    %s262 = scalar_lea.vmem [#allocation0], 96
    %263 = vst [vmem:[%s262] sm:%s3] %v261
    %s264 = smul.addr 2, 11
    %s265 = scalar_lea.vmem %s0, %s264
    %v266 = vld [vmem:[%s265] sm:%s3]
    %s267 = scalar_lea.vmem [#allocation0], 88
    %268 = vst [vmem:[%s267] sm:%s3] %v266
    %s269 = smul.addr 2, 10
    %s270 = scalar_lea.vmem %s0, %s269
    %v271 = vld [vmem:[%s270] sm:%s3]
    %s272 = scalar_lea.vmem [#allocation0], 80
    %273 = vst [vmem:[%s272] sm:%s3] %v271
    %s274 = smul.addr 2, 9
    %s275 = scalar_lea.vmem %s0, %s274
    %v276 = vld [vmem:[%s275] sm:%s3]
    %s277 = scalar_lea.vmem [#allocation0], 72
    %278 = vst [vmem:[%s277] sm:%s3] %v276
    %s279 = smul.addr 2, 8
    %s280 = scalar_lea.vmem %s0, %s279
    %v281 = vld [vmem:[%s280] sm:%s3]
    %s282 = scalar_lea.vmem [#allocation0], 64
    %283 = vst [vmem:[%s282] sm:%s3] %v281
    %s284 = smul.addr 2, 7
    %s285 = scalar_lea.vmem %s0, %s284
    %v286 = vld [vmem:[%s285] sm:%s3]
    %s287 = scalar_lea.vmem [#allocation0], 56
    %288 = vst [vmem:[%s287] sm:%s3] %v286
    %s289 = smul.addr 2, 6
    %s290 = scalar_lea.vmem %s0, %s289
    %v291 = vld [vmem:[%s290] sm:%s3]
    %s292 = scalar_lea.vmem [#allocation0], 48
    %293 = vst [vmem:[%s292] sm:%s3] %v291
    %s294 = smul.addr 2, 5
    %s295 = scalar_lea.vmem %s0, %s294
    %v296 = vld [vmem:[%s295] sm:%s3]
    %s297 = scalar_lea.vmem [#allocation0], 40
    %298 = vst [vmem:[%s297] sm:%s3] %v296
    %s299 = smul.addr 2, 4
    %s300 = scalar_lea.vmem %s0, %s299
    %v301 = vld [vmem:[%s300] sm:%s3]
    %s302 = scalar_lea.vmem [#allocation0], 32
    %303 = vst [vmem:[%s302] sm:%s3] %v301
    %s304 = smul.addr 2, 3
    %s305 = scalar_lea.vmem %s0, %s304
    %v306 = vld [vmem:[%s305] sm:%s3]
    %s307 = scalar_lea.vmem [#allocation0], 24
    %308 = vst [vmem:[%s307] sm:%s3] %v306
    %s309 = smul.addr 2, 2
    %s310 = scalar_lea.vmem %s0, %s309
    %v311 = vld [vmem:[%s310] sm:%s3]
    %s312 = scalar_lea.vmem [#allocation0], 16
    %313 = vst [vmem:[%s312] sm:%s3] %v311
    %s314 = scalar_lea.vmem %s0, 2
    %v315 = vld [vmem:[%s314] sm:%s3]
    %s316 = scalar_lea.vmem [#allocation0], 8
    %317 = vst [vmem:[%s316] sm:%s3] %v315
    %v318 = vld [vmem:[%s0] sm:%s3]
    %319 = vst [vmem:[#allocation0] sm:%s3] %v318
    %v320 = vld [vmem:[#allocation0] sm:$0x3]
    %321 = vst [vmem:[%s1] sm:$0x1] %v320
    %s322 = scalar_lea.vmem %s1, 63
    %323 = vst [vmem:[%s322] sm:$0x2] %v320
    %s324 = scalar_lea.vmem [#allocation0], 8
    %v325 = vld [vmem:[%s324] sm:$0x3]
    %s326 = scalar_lea.vmem %s1, 8
    %327 = vst [vmem:[%s326] sm:$0x1] %v325
    %s328 = scalar_lea.vmem %s1, 71
    %329 = vst [vmem:[%s328] sm:$0x2] %v325
    %s330 = scalar_lea.vmem [#allocation0], 16
    %v331 = vld [vmem:[%s330] sm:$0x3]
    %s332 = scalar_lea.vmem %s1, 16
    %333 = vst [vmem:[%s332] sm:$0x1] %v331
    %s334 = scalar_lea.vmem %s1, 79
    %335 = vst [vmem:[%s334] sm:$0x2] %v331
    %s336 = scalar_lea.vmem [#allocation0], 24
    %v337 = vld [vmem:[%s336] sm:$0x3]
    %s338 = scalar_lea.vmem %s1, 24
    %339 = vst [vmem:[%s338] sm:$0x1] %v337
    %s340 = scalar_lea.vmem %s1, 87
    %341 = vst [vmem:[%s340] sm:$0x2] %v337
    %s342 = scalar_lea.vmem [#allocation0], 32
    %v343 = vld [vmem:[%s342] sm:$0x3]
    %s344 = scalar_lea.vmem %s1, 1
    %345 = vst [vmem:[%s344] sm:$0x1] %v343
    %s346 = scalar_lea.vmem %s1, 64
    %347 = vst [vmem:[%s346] sm:$0x2] %v343
    %s348 = scalar_lea.vmem [#allocation0], 40
    %v349 = vld [vmem:[%s348] sm:$0x3]
    %s350 = scalar_lea.vmem %s1, 9
    %351 = vst [vmem:[%s350] sm:$0x1] %v349
    %s352 = scalar_lea.vmem %s1, 72
    %353 = vst [vmem:[%s352] sm:$0x2] %v349
    %s354 = scalar_lea.vmem [#allocation0], 48
    %v355 = vld [vmem:[%s354] sm:$0x3]
    %s356 = scalar_lea.vmem %s1, 17
    %357 = vst [vmem:[%s356] sm:$0x1] %v355
    %s358 = scalar_lea.vmem %s1, 80
    %359 = vst [vmem:[%s358] sm:$0x2] %v355
    %s360 = scalar_lea.vmem [#allocation0], 56
    %v361 = vld [vmem:[%s360] sm:$0x3]
    %s362 = scalar_lea.vmem %s1, 25
    %363 = vst [vmem:[%s362] sm:$0x1] %v361
    %s364 = scalar_lea.vmem %s1, 88
    %365 = vst [vmem:[%s364] sm:$0x2] %v361
    %s366 = scalar_lea.vmem [#allocation0], 64
    %v367 = vld [vmem:[%s366] sm:$0x3]
    %s368 = scalar_lea.vmem %s1, 2
    %369 = vst [vmem:[%s368] sm:$0x1] %v367
    %s370 = scalar_lea.vmem %s1, 65
    %371 = vst [vmem:[%s370] sm:$0x2] %v367
    %s372 = scalar_lea.vmem [#allocation0], 72
    %v373 = vld [vmem:[%s372] sm:$0x3]
    %s374 = scalar_lea.vmem %s1, 10
    %375 = vst [vmem:[%s374] sm:$0x1] %v373
    %s376 = scalar_lea.vmem %s1, 73
    %377 = vst [vmem:[%s376] sm:$0x2] %v373
    %s378 = scalar_lea.vmem [#allocation0], 80
    %v379 = vld [vmem:[%s378] sm:$0x3]
    %s380 = scalar_lea.vmem %s1, 18
    %381 = vst [vmem:[%s380] sm:$0x1] %v379
    %s382 = scalar_lea.vmem %s1, 81
    %383 = vst [vmem:[%s382] sm:$0x2] %v379
    %s384 = scalar_lea.vmem [#allocation0], 88
    %v385 = vld [vmem:[%s384] sm:$0x3]
    %s386 = scalar_lea.vmem %s1, 26
    %387 = vst [vmem:[%s386] sm:$0x1] %v385
    %s388 = scalar_lea.vmem %s1, 89
    %389 = vst [vmem:[%s388] sm:$0x2] %v385
    %s390 = scalar_lea.vmem [#allocation0], 96
    %v391 = vld [vmem:[%s390] sm:$0x3]
    %s392 = scalar_lea.vmem %s1, 3
    %393 = vst [vmem:[%s392] sm:$0x1] %v391
    %s394 = scalar_lea.vmem %s1, 66
    %395 = vst [vmem:[%s394] sm:$0x2] %v391
    %s396 = scalar_lea.vmem [#allocation0], 104
    %v397 = vld [vmem:[%s396] sm:$0x3]
    %s398 = scalar_lea.vmem %s1, 11
    %399 = vst [vmem:[%s398] sm:$0x1] %v397
    %s400 = scalar_lea.vmem %s1, 74
    %401 = vst [vmem:[%s400] sm:$0x2] %v397
    %s402 = scalar_lea.vmem [#allocation0], 112
    %v403 = vld [vmem:[%s402] sm:$0x3]
    %s404 = scalar_lea.vmem %s1, 19
    %405 = vst [vmem:[%s404] sm:$0x1] %v403
    %s406 = scalar_lea.vmem %s1, 82
    %407 = vst [vmem:[%s406] sm:$0x2] %v403
    %s408 = scalar_lea.vmem [#allocation0], 120
    %v409 = vld [vmem:[%s408] sm:$0x3]
    %s410 = scalar_lea.vmem %s1, 27
    %411 = vst [vmem:[%s410] sm:$0x1] %v409
    %s412 = scalar_lea.vmem %s1, 90
    %413 = vst [vmem:[%s412] sm:$0x2] %v409
    %s414 = scalar_lea.vmem [#allocation0], 128
    %v415 = vld [vmem:[%s414] sm:$0x3]
    %s416 = scalar_lea.vmem %s1, 4
    %417 = vst [vmem:[%s416] sm:$0x1] %v415
    %s418 = scalar_lea.vmem %s1, 67
    %419 = vst [vmem:[%s418] sm:$0x2] %v415
    %s420 = scalar_lea.vmem [#allocation0], 136
    %v421 = vld [vmem:[%s420] sm:$0x3]
    %s422 = scalar_lea.vmem %s1, 12
    %423 = vst [vmem:[%s422] sm:$0x1] %v421
    %s424 = scalar_lea.vmem %s1, 75
    %425 = vst [vmem:[%s424] sm:$0x2] %v421
    %s426 = scalar_lea.vmem [#allocation0], 144
    %v427 = vld [vmem:[%s426] sm:$0x3]
    %s428 = scalar_lea.vmem %s1, 20
    %429 = vst [vmem:[%s428] sm:$0x1] %v427
    %s430 = scalar_lea.vmem %s1, 83
    %431 = vst [vmem:[%s430] sm:$0x2] %v427
    %s432 = scalar_lea.vmem [#allocation0], 152
    %v433 = vld [vmem:[%s432] sm:$0x3]
    %s434 = scalar_lea.vmem %s1, 28
    %435 = vst [vmem:[%s434] sm:$0x1] %v433
    %s436 = scalar_lea.vmem %s1, 91
    %437 = vst [vmem:[%s436] sm:$0x2] %v433
    %s438 = scalar_lea.vmem [#allocation0], 160
    %v439 = vld [vmem:[%s438] sm:$0x3]
    %s440 = scalar_lea.vmem %s1, 5
    %441 = vst [vmem:[%s440] sm:$0x1] %v439
    %s442 = scalar_lea.vmem %s1, 68
    %443 = vst [vmem:[%s442] sm:$0x2] %v439
    %s444 = scalar_lea.vmem [#allocation0], 168
    %v445 = vld [vmem:[%s444] sm:$0x3]
    %s446 = scalar_lea.vmem %s1, 13
    %447 = vst [vmem:[%s446] sm:$0x1] %v445
    %s448 = scalar_lea.vmem %s1, 76
    %449 = vst [vmem:[%s448] sm:$0x2] %v445
    %s450 = scalar_lea.vmem [#allocation0], 176
    %v451 = vld [vmem:[%s450] sm:$0x3]
    %s452 = scalar_lea.vmem %s1, 21
    %453 = vst [vmem:[%s452] sm:$0x1] %v451
    %s454 = scalar_lea.vmem %s1, 84
    %455 = vst [vmem:[%s454] sm:$0x2] %v451
    %s456 = scalar_lea.vmem [#allocation0], 184
    %v457 = vld [vmem:[%s456] sm:$0x3]
    %s458 = scalar_lea.vmem %s1, 29
    %459 = vst [vmem:[%s458] sm:$0x1] %v457
    %s460 = scalar_lea.vmem %s1, 92
    %461 = vst [vmem:[%s460] sm:$0x2] %v457
    %s462 = scalar_lea.vmem [#allocation0], 192
    %v463 = vld [vmem:[%s462] sm:$0x3]
    %s464 = scalar_lea.vmem %s1, 6
    %465 = vst [vmem:[%s464] sm:$0x1] %v463
    %s466 = scalar_lea.vmem %s1, 69
    %467 = vst [vmem:[%s466] sm:$0x2] %v463
    %s468 = scalar_lea.vmem [#allocation0], 200
    %v469 = vld [vmem:[%s468] sm:$0x3]
    %s470 = scalar_lea.vmem %s1, 14
    %471 = vst [vmem:[%s470] sm:$0x1] %v469
    %s472 = scalar_lea.vmem %s1, 77
    %473 = vst [vmem:[%s472] sm:$0x2] %v469
    %s474 = scalar_lea.vmem [#allocation0], 208
    %v475 = vld [vmem:[%s474] sm:$0x3]
    %s476 = scalar_lea.vmem %s1, 22
    %477 = vst [vmem:[%s476] sm:$0x1] %v475
    %s478 = scalar_lea.vmem %s1, 85
    %479 = vst [vmem:[%s478] sm:$0x2] %v475
    %s480 = scalar_lea.vmem [#allocation0], 216
    %v481 = vld [vmem:[%s480] sm:$0x3]
    %s482 = scalar_lea.vmem %s1, 30
    %483 = vst [vmem:[%s482] sm:$0x1] %v481
    %s484 = scalar_lea.vmem %s1, 93
    %485 = vst [vmem:[%s484] sm:$0x2] %v481
    %s486 = scalar_lea.vmem [#allocation0], 224
    %v487 = vld [vmem:[%s486] sm:$0x3]
    %s488 = scalar_lea.vmem %s1, 7
    %489 = vst [vmem:[%s488] sm:$0x1] %v487
    %s490 = scalar_lea.vmem %s1, 70
    %491 = vst [vmem:[%s490] sm:$0x2] %v487
    %s492 = scalar_lea.vmem [#allocation0], 232
    %v493 = vld [vmem:[%s492] sm:$0x3]
    %s494 = scalar_lea.vmem %s1, 15
    %495 = vst [vmem:[%s494] sm:$0x1] %v493
    %s496 = scalar_lea.vmem %s1, 78
    %497 = vst [vmem:[%s496] sm:$0x2] %v493
    %s498 = scalar_lea.vmem [#allocation0], 240
    %v499 = vld [vmem:[%s498] sm:$0x3]
    %s500 = scalar_lea.vmem %s1, 23
    %501 = vst [vmem:[%s500] sm:$0x1] %v499
    %s502 = scalar_lea.vmem %s1, 86
    %503 = vst [vmem:[%s502] sm:$0x2] %v499
    %s504 = scalar_lea.vmem [#allocation0], 248
    %v505 = vld [vmem:[%s504] sm:$0x3]
    %s506 = scalar_lea.vmem %s1, 31
    %507 = vst [vmem:[%s506] sm:$0x1] %v505
    %s508 = scalar_lea.vmem %s1, 94
    %509 = vst [vmem:[%s508] sm:$0x2] %v505
    %s510 = scalar_lea.vmem [#allocation0], 256
    %v511 = vld [vmem:[%s510] sm:$0x3]
    %s512 = scalar_lea.vmem %s1, 32
    %513 = vst [vmem:[%s512] sm:$0x1] %v511
    %s514 = scalar_lea.vmem %s1, 95
    %515 = vst [vmem:[%s514] sm:$0x2] %v511
    %s516 = scalar_lea.vmem [#allocation0], 264
    %v517 = vld [vmem:[%s516] sm:$0x3]
    %s518 = scalar_lea.vmem %s1, 40
    %519 = vst [vmem:[%s518] sm:$0x1] %v517
    %s520 = scalar_lea.vmem %s1, 103
    %521 = vst [vmem:[%s520] sm:$0x2] %v517
    %s522 = scalar_lea.vmem [#allocation0], 272
    %v523 = vld [vmem:[%s522] sm:$0x3]
    %s524 = scalar_lea.vmem %s1, 48
    %525 = vst [vmem:[%s524] sm:$0x1] %v523
    %s526 = scalar_lea.vmem %s1, 111
    %527 = vst [vmem:[%s526] sm:$0x2] %v523
    %s528 = scalar_lea.vmem [#allocation0], 280
    %v529 = vld [vmem:[%s528] sm:$0x3]
    %s530 = scalar_lea.vmem %s1, 56
    %531 = vst [vmem:[%s530] sm:$0x1] %v529
    %s532 = scalar_lea.vmem %s1, 119
    %533 = vst [vmem:[%s532] sm:$0x2] %v529
    %s534 = scalar_lea.vmem [#allocation0], 288
    %v535 = vld [vmem:[%s534] sm:$0x3]
    %s536 = scalar_lea.vmem %s1, 33
    %537 = vst [vmem:[%s536] sm:$0x1] %v535
    %s538 = scalar_lea.vmem %s1, 96
    %539 = vst [vmem:[%s538] sm:$0x2] %v535
    %s540 = scalar_lea.vmem [#allocation0], 296
    %v541 = vld [vmem:[%s540] sm:$0x3]
    %s542 = scalar_lea.vmem %s1, 41
    %543 = vst [vmem:[%s542] sm:$0x1] %v541
    %s544 = scalar_lea.vmem %s1, 104
    %545 = vst [vmem:[%s544] sm:$0x2] %v541
    %s546 = scalar_lea.vmem [#allocation0], 304
    %v547 = vld [vmem:[%s546] sm:$0x3]
    %s548 = scalar_lea.vmem %s1, 49
    %549 = vst [vmem:[%s548] sm:$0x1] %v547
    %s550 = scalar_lea.vmem %s1, 112
    %551 = vst [vmem:[%s550] sm:$0x2] %v547
    %s552 = scalar_lea.vmem [#allocation0], 312
    %v553 = vld [vmem:[%s552] sm:$0x3]
    %s554 = scalar_lea.vmem %s1, 57
    %555 = vst [vmem:[%s554] sm:$0x1] %v553
    %s556 = scalar_lea.vmem %s1, 120
    %557 = vst [vmem:[%s556] sm:$0x2] %v553
    %s558 = scalar_lea.vmem [#allocation0], 320
    %v559 = vld [vmem:[%s558] sm:$0x3]
    %s560 = scalar_lea.vmem %s1, 34
    %561 = vst [vmem:[%s560] sm:$0x1] %v559
    %s562 = scalar_lea.vmem %s1, 97
    %563 = vst [vmem:[%s562] sm:$0x2] %v559
    %s564 = scalar_lea.vmem [#allocation0], 328
    %v565 = vld [vmem:[%s564] sm:$0x3]
    %s566 = scalar_lea.vmem %s1, 42
    %567 = vst [vmem:[%s566] sm:$0x1] %v565
    %s568 = scalar_lea.vmem %s1, 105
    %569 = vst [vmem:[%s568] sm:$0x2] %v565
    %s570 = scalar_lea.vmem [#allocation0], 336
    %v571 = vld [vmem:[%s570] sm:$0x3]
    %s572 = scalar_lea.vmem %s1, 50
    %573 = vst [vmem:[%s572] sm:$0x1] %v571
    %s574 = scalar_lea.vmem %s1, 113
    %575 = vst [vmem:[%s574] sm:$0x2] %v571
    %s576 = scalar_lea.vmem [#allocation0], 344
    %v577 = vld [vmem:[%s576] sm:$0x3]
    %s578 = scalar_lea.vmem %s1, 58
    %579 = vst [vmem:[%s578] sm:$0x1] %v577
    %s580 = scalar_lea.vmem %s1, 121
    %581 = vst [vmem:[%s580] sm:$0x2] %v577
    %s582 = scalar_lea.vmem [#allocation0], 352
    %v583 = vld [vmem:[%s582] sm:$0x3]
    %s584 = scalar_lea.vmem %s1, 35
    %585 = vst [vmem:[%s584] sm:$0x1] %v583
    %s586 = scalar_lea.vmem %s1, 98
    %587 = vst [vmem:[%s586] sm:$0x2] %v583
    %s588 = scalar_lea.vmem [#allocation0], 360
    %v589 = vld [vmem:[%s588] sm:$0x3]
    %s590 = scalar_lea.vmem %s1, 43
    %591 = vst [vmem:[%s590] sm:$0x1] %v589
    %s592 = scalar_lea.vmem %s1, 106
    %593 = vst [vmem:[%s592] sm:$0x2] %v589
    %s594 = scalar_lea.vmem [#allocation0], 368
    %v595 = vld [vmem:[%s594] sm:$0x3]
    %s596 = scalar_lea.vmem %s1, 51
    %597 = vst [vmem:[%s596] sm:$0x1] %v595
    %s598 = scalar_lea.vmem %s1, 114
    %599 = vst [vmem:[%s598] sm:$0x2] %v595
    %s600 = scalar_lea.vmem [#allocation0], 376
    %v601 = vld [vmem:[%s600] sm:$0x3]
    %s602 = scalar_lea.vmem %s1, 59
    %603 = vst [vmem:[%s602] sm:$0x1] %v601
    %s604 = scalar_lea.vmem %s1, 122
    %605 = vst [vmem:[%s604] sm:$0x2] %v601
    %s606 = scalar_lea.vmem [#allocation0], 384
    %v607 = vld [vmem:[%s606] sm:$0x3]
    %s608 = scalar_lea.vmem %s1, 36
    %609 = vst [vmem:[%s608] sm:$0x1] %v607
    %s610 = scalar_lea.vmem %s1, 99
    %611 = vst [vmem:[%s610] sm:$0x2] %v607
    %s612 = scalar_lea.vmem [#allocation0], 392
    %v613 = vld [vmem:[%s612] sm:$0x3]
    %s614 = scalar_lea.vmem %s1, 44
    %615 = vst [vmem:[%s614] sm:$0x1] %v613
    %s616 = scalar_lea.vmem %s1, 107
    %617 = vst [vmem:[%s616] sm:$0x2] %v613
    %s618 = scalar_lea.vmem [#allocation0], 400
    %v619 = vld [vmem:[%s618] sm:$0x3]
    %s620 = scalar_lea.vmem %s1, 52
    %621 = vst [vmem:[%s620] sm:$0x1] %v619
    %s622 = scalar_lea.vmem %s1, 115
    %623 = vst [vmem:[%s622] sm:$0x2] %v619
    %s624 = scalar_lea.vmem [#allocation0], 408
    %v625 = vld [vmem:[%s624] sm:$0x3]
    %s626 = scalar_lea.vmem %s1, 60
    %627 = vst [vmem:[%s626] sm:$0x1] %v625
    %s628 = scalar_lea.vmem %s1, 123
    %629 = vst [vmem:[%s628] sm:$0x2] %v625
    %s630 = scalar_lea.vmem [#allocation0], 416
    %v631 = vld [vmem:[%s630] sm:$0x3]
    %s632 = scalar_lea.vmem %s1, 37
    %633 = vst [vmem:[%s632] sm:$0x1] %v631
    %s634 = scalar_lea.vmem %s1, 100
    %635 = vst [vmem:[%s634] sm:$0x2] %v631
    %s636 = scalar_lea.vmem [#allocation0], 424
    %v637 = vld [vmem:[%s636] sm:$0x3]
    %s638 = scalar_lea.vmem %s1, 45
    %639 = vst [vmem:[%s638] sm:$0x1] %v637
    %s640 = scalar_lea.vmem %s1, 108
    %641 = vst [vmem:[%s640] sm:$0x2] %v637
    %s642 = scalar_lea.vmem [#allocation0], 432
    %v643 = vld [vmem:[%s642] sm:$0x3]
    %s644 = scalar_lea.vmem %s1, 53
    %645 = vst [vmem:[%s644] sm:$0x1] %v643
    %s646 = scalar_lea.vmem %s1, 116
    %647 = vst [vmem:[%s646] sm:$0x2] %v643
    %s648 = scalar_lea.vmem [#allocation0], 440
    %v649 = vld [vmem:[%s648] sm:$0x3]
    %s650 = scalar_lea.vmem %s1, 61
    %651 = vst [vmem:[%s650] sm:$0x1] %v649
    %s652 = scalar_lea.vmem %s1, 124
    %653 = vst [vmem:[%s652] sm:$0x2] %v649
    %s654 = scalar_lea.vmem [#allocation0], 448
    %v655 = vld [vmem:[%s654] sm:$0x3]
    %s656 = scalar_lea.vmem %s1, 38
    %657 = vst [vmem:[%s656] sm:$0x1] %v655
    %s658 = scalar_lea.vmem %s1, 101
    %659 = vst [vmem:[%s658] sm:$0x2] %v655
    %s660 = scalar_lea.vmem [#allocation0], 456
    %v661 = vld [vmem:[%s660] sm:$0x3]
    %s662 = scalar_lea.vmem %s1, 46
    %663 = vst [vmem:[%s662] sm:$0x1] %v661
    %s664 = scalar_lea.vmem %s1, 109
    %665 = vst [vmem:[%s664] sm:$0x2] %v661
    %s666 = scalar_lea.vmem [#allocation0], 464
    %v667 = vld [vmem:[%s666] sm:$0x3]
    %s668 = scalar_lea.vmem %s1, 54
    %669 = vst [vmem:[%s668] sm:$0x1] %v667
    %s670 = scalar_lea.vmem %s1, 117
    %671 = vst [vmem:[%s670] sm:$0x2] %v667
    %s672 = scalar_lea.vmem [#allocation0], 472
    %v673 = vld [vmem:[%s672] sm:$0x3]
    %s674 = scalar_lea.vmem %s1, 62
    %675 = vst [vmem:[%s674] sm:$0x1] %v673
    %s676 = scalar_lea.vmem %s1, 125
    %677 = vst [vmem:[%s676] sm:$0x2] %v673
    %s678 = scalar_lea.vmem [#allocation0], 480
    %v679 = vld [vmem:[%s678] sm:$0x3]
    %s680 = scalar_lea.vmem %s1, 39
    %681 = vst [vmem:[%s680] sm:$0x1] %v679
    %s682 = scalar_lea.vmem %s1, 102
    %683 = vst [vmem:[%s682] sm:$0x2] %v679
    %s684 = scalar_lea.vmem [#allocation0], 488
    %v685 = vld [vmem:[%s684] sm:$0x3]
    %s686 = scalar_lea.vmem %s1, 47
    %687 = vst [vmem:[%s686] sm:$0x1] %v685
    %s688 = scalar_lea.vmem %s1, 110
    %689 = vst [vmem:[%s688] sm:$0x2] %v685
    %s690 = scalar_lea.vmem [#allocation0], 496
    %v691 = vld [vmem:[%s690] sm:$0x3]
    %s692 = scalar_lea.vmem %s1, 55
    %693 = vst [vmem:[%s692] sm:$0x1] %v691
    %s694 = scalar_lea.vmem %s1, 118
    %695 = vst [vmem:[%s694] sm:$0x2] %v691
    %s696 = scalar_lea.vmem [#allocation0], 504
    %v697 = vld [vmem:[%s696] sm:$0x3]
    %s698 = scalar_lea.vmem %s1, 63
    %699 = vst [vmem:[%s698] sm:$0x1] %v697
    %s700 = scalar_lea.vmem %s1, 126
    %701 = vst [vmem:[%s700] sm:$0x2] %v697

// kernel: generator_forward.8
$region0: #{generator_forward.8}
  #allocation0 [shape = 'u32[]', space=smem, size = 0x4, offset = 0x4, fixed_abs, tag = 'smem constant byte address 0x4 - core index']
  #allocation1 [shape = 'u32[144,128]{1,0:T(1,128)}', space=vmem, size = 0x12000, scoped, tag = 'internal scratch']
  %s0 = inlined_call_operand.vmem [shape: f32[32,512], index: 0, kind: input, shape index: {}]
  %s1 = inlined_call_operand.vmem [shape: f32[1,512], index: 1, kind: input, shape index: {}]
  %s2 = inlined_call_operand.vmem [shape: f32[1,512], index: 2, kind: input, shape index: {}]
  %s3 = inlined_call_operand.vmem [shape: f32[32,512], index: 3, kind: output, shape index: {}]
  %s4 = sld [smem:[#allocation0]]
  $region22: #{generator_forward.8} parent=0
    _
  %s6 = ssub.s32 1, %s4
  %s7 = scalar_select 0, %s6, %s4
  // Predicated region
  $region2: #{generator_forward.8} parent=0 // pred_check
    _
  $region3: #{generator_forward.8} parent=0 // pred_check_branch
    %9 = sbr.rel (0) target = $region5
  $region4: #{generator_forward.8} parent=0 // pred_region
    _
  $region5: #{generator_forward.8} parent=0 // pred_fallthru
    _
  // Predicated region
  $region6: #{generator_forward.8} parent=0 // pred_check
    _
  $region7: #{generator_forward.8} parent=0 // pred_check_branch
    %11 = sbr.rel (0) target = $region9
  $region8: #{generator_forward.8} parent=0 // pred_region
    _
  $region9: #{generator_forward.8} parent=0 // pred_fallthru
    _
  // Predicated region
  $region10: #{generator_forward.8} parent=0 // pred_check
    _
  $region11: #{generator_forward.8} parent=0 // pred_check_branch
    %13 = sbr.rel (0) target = $region13
  $region12: #{generator_forward.8} parent=0 // pred_region
    _
  $region13: #{generator_forward.8} parent=0 // pred_fallthru
    _
  %v14 = vld [vmem:[%s0] sm:$0xff]
  %v15 = vld [vmem:[%s0 + $0x8] sm:$0xff]
  %v16 = vld [vmem:[%s0 + $0x10] sm:$0xff]
  %v17 = vld [vmem:[%s0 + $0x18] sm:$0xff]
  %v18 = vld [vmem:[%s0 + $0x20] sm:$0xff]
  %v19 = vld [vmem:[%s0 + $0x28] sm:$0xff]
  %v20 = vld [vmem:[%s0 + $0x30] sm:$0xff]
  %v21 = vld [vmem:[%s0 + $0x38] sm:$0xff]
  %v22 = vld [vmem:[%s0 + $0x40] sm:$0xff]
  %v23 = vld [vmem:[%s0 + $0x48] sm:$0xff]
  %v24 = vld [vmem:[%s0 + $0x50] sm:$0xff]
  %v25 = vld [vmem:[%s0 + $0x58] sm:$0xff]
  %v26 = vld [vmem:[%s0 + $0x60] sm:$0xff]
  %v27 = vld [vmem:[%s0 + $0x68] sm:$0xff]
  %v28 = vld [vmem:[%s0 + $0x70] sm:$0xff]
  %v29 = vld [vmem:[%s0 + $0x78] sm:$0xff]
  %v30 = vadd.f32 %v14, %v18
  %v31 = vadd.f32 %v30, %v22
  %v32 = vadd.f32 %v31, %v26
  %v33 = vrot.slane %v32, 4
  %v34 = vadd.f32 %v32, %v33
  %v35 = vrot.slane %v34, 2
  %v36 = vadd.f32 %v34, %v35
  %v37 = vrot.slane %v36, 1
  %v38 = vadd.f32 %v36, %v37
  %v39 = vadd.f32 %v15, %v19
  %v40 = vadd.f32 %v39, %v23
  %v41 = vadd.f32 %v40, %v27
  %v42 = vrot.slane %v41, 4
  %v43 = vadd.f32 %v41, %v42
  %v44 = vrot.slane %v43, 2
  %v45 = vadd.f32 %v43, %v44
  %v46 = vrot.slane %v45, 1
  %v47 = vadd.f32 %v45, %v46
  %v48 = vadd.f32 %v16, %v20
  %v49 = vadd.f32 %v48, %v24
  %v50 = vadd.f32 %v49, %v28
  %v51 = vrot.slane %v50, 4
  %v52 = vadd.f32 %v50, %v51
  %v53 = vrot.slane %v52, 2
  %v54 = vadd.f32 %v52, %v53
  %v55 = vrot.slane %v54, 1
  %v56 = vadd.f32 %v54, %v55
  %v57 = vadd.f32 %v17, %v21
  %v58 = vadd.f32 %v57, %v25
  %v59 = vadd.f32 %v58, %v29
  %v60 = vrot.slane %v59, 4
  %v61 = vadd.f32 %v59, %v60
  %v62 = vrot.slane %v61, 2
  %v63 = vadd.f32 %v61, %v62
  %v64 = vrot.slane %v63, 1
  %v65 = vadd.f32 %v63, %v64
  %v66 = vrcp.pop 32.0
  %v67 = vmul.f32 %v38, %v66
  %v68 = vmul.f32 %v47, %v66
  %v69 = vmul.f32 %v56, %v66
  %v70 = vmul.f32 %v65, %v66
  %v71 = vsub.f32 %v14, %v67
  %v72 = vsub.f32 %v15, %v68
  %v73 = vsub.f32 %v16, %v69
  %v74 = vsub.f32 %v17, %v70
  %v75 = vsub.f32 %v18, %v67
  %v76 = vsub.f32 %v19, %v68
  %v77 = vsub.f32 %v20, %v69
  %v78 = vsub.f32 %v21, %v70
  %v79 = vsub.f32 %v22, %v67
  %v80 = vsub.f32 %v23, %v68
  %v81 = vsub.f32 %v24, %v69
  %v82 = vsub.f32 %v25, %v70
  %v83 = vsub.f32 %v26, %v67
  %v84 = vsub.f32 %v27, %v68
  %v85 = vsub.f32 %v28, %v69
  %v86 = vsub.f32 %v29, %v70
  %v87 = vmul.f32 %v71, %v71
  %v88 = vmul.f32 %v72, %v72
  %v89 = vmul.f32 %v73, %v73
  %v90 = vmul.f32 %v74, %v74
  %v91 = vmul.f32 %v75, %v75
  %v92 = vmul.f32 %v76, %v76
  %v93 = vmul.f32 %v77, %v77
  %v94 = vmul.f32 %v78, %v78
  %v95 = vmul.f32 %v79, %v79
  %v96 = vmul.f32 %v80, %v80
  %v97 = vmul.f32 %v81, %v81
  %v98 = vmul.f32 %v82, %v82
  %v99 = vmul.f32 %v83, %v83
  %v100 = vmul.f32 %v84, %v84
  %v101 = vmul.f32 %v85, %v85
  %v102 = vmul.f32 %v86, %v86
  %v103 = vadd.f32 %v87, %v91
  %v104 = vadd.f32 %v103, %v95
  %v105 = vadd.f32 %v104, %v99
  %v106 = vrot.slane %v105, 4
  %v107 = vadd.f32 %v105, %v106
  %v108 = vrot.slane %v107, 2
  %v109 = vadd.f32 %v107, %v108
  %v110 = vrot.slane %v109, 1
  %v111 = vadd.f32 %v109, %v110
  %v112 = vadd.f32 %v88, %v92
  %v113 = vadd.f32 %v112, %v96
  %v114 = vadd.f32 %v113, %v100
  %v115 = vrot.slane %v114, 4
  %v116 = vadd.f32 %v114, %v115
  %v117 = vrot.slane %v116, 2
  %v118 = vadd.f32 %v116, %v117
  %v119 = vrot.slane %v118, 1
  %v120 = vadd.f32 %v118, %v119
  %v121 = vadd.f32 %v89, %v93
  %v122 = vadd.f32 %v121, %v97
  %v123 = vadd.f32 %v122, %v101
  %v124 = vrot.slane %v123, 4
  %v125 = vadd.f32 %v123, %v124
  %v126 = vrot.slane %v125, 2
  %v127 = vadd.f32 %v125, %v126
  %v128 = vrot.slane %v127, 1
  %v129 = vadd.f32 %v127, %v128
  %v130 = vadd.f32 %v90, %v94
  %v131 = vadd.f32 %v130, %v98
  %v132 = vadd.f32 %v131, %v102
  %v133 = vrot.slane %v132, 4
  %v134 = vadd.f32 %v132, %v133
  %v135 = vrot.slane %v134, 2
  %v136 = vadd.f32 %v134, %v135
  %v137 = vrot.slane %v136, 1
  %v138 = vadd.f32 %v136, %v137
  %v139 = vmul.f32 %v111, %v66
  %v140 = vmul.f32 %v120, %v66
  %v141 = vmul.f32 %v129, %v66
  %v142 = vmul.f32 %v138, %v66
  %v143 = vadd.f32 %v139, 1e-05
  %v144 = vadd.f32 %v140, 1e-05
  %v145 = vadd.f32 %v141, 1e-05
  %v146 = vadd.f32 %v142, 1e-05
  %v147 = vrsqrt.pop %v143
  %v148 = vrsqrt.pop %v144
  %v149 = vrsqrt.pop %v145
  %v150 = vrsqrt.pop %v146
  %v151 = vld [vmem:[%s1] sm:$0xf]
  %v156 = vcombine.low %v147, %v148
  %v157 = vcombine.low %v149, %v150
  %v159 = vunpack.c.l.s4 1966171168
  %v160 = vunpack.c.0.s8 %v159
  %v161 = vlaneseq
  %v162 = vshrl.u32 %v161, 7
  %v163 = vsub.s32 %v160, %v162
  %v164 = vrot.slane %v156, %v163
  %v166 = vunpack.c.l.s4 1966171168
  %v167 = vunpack.c.0.s8 %v166
  %v168 = vlaneseq
  %v169 = vshrl.u32 %v168, 7
  %v170 = vsub.s32 %v167, %v169
  %v171 = vrot.slane %v157, %v170
  %v172 = vcombine.low %v164, %v171
  %v174 = vunpack.c.l.s4 1966171168
  %v175 = vunpack.c.0.s8 %v174
  %v176 = vlaneseq
  %v177 = vshrl.u32 %v176, 7
  %v178 = vsub.s32 %v175, %v177
  %v179 = vrot.slane %v172, %v178
  %v181 = vmul.f32 %v151, %v179
  %v183 = vlaneseq
  %v184 = vshrl.u32 %v183, 7
  %v185 = vsub.s32 0, %v184
  %v186 = vrot.slane %v181, %v185
  %v187 = vlaneseq
  %v188 = vshrl.u32 %v187, 7
  %v189 = vsub.s32 1, %v188
  %v190 = vrot.slane %v181, %v189
  %v191 = vlaneseq
  %v192 = vshrl.u32 %v191, 7
  %v193 = vsub.s32 2, %v192
  %v194 = vrot.slane %v181, %v193
  %v195 = vlaneseq
  %v196 = vshrl.u32 %v195, 7
  %v197 = vsub.s32 3, %v196
  %v198 = vrot.slane %v181, %v197
  %v203 = vmul.f32 %v71, %v186
  %v204 = vmul.f32 %v72, %v190
  %v205 = vmul.f32 %v73, %v194
  %v206 = vmul.f32 %v74, %v198
  %v207 = vmul.f32 %v75, %v186
  %v208 = vmul.f32 %v76, %v190
  %v209 = vmul.f32 %v77, %v194
  %v210 = vmul.f32 %v78, %v198
  %v211 = vmul.f32 %v79, %v186
  %v212 = vmul.f32 %v80, %v190
  %v213 = vmul.f32 %v81, %v194
  %v214 = vmul.f32 %v82, %v198
  %v215 = vmul.f32 %v83, %v186
  %v216 = vmul.f32 %v84, %v190
  %v217 = vmul.f32 %v85, %v194
  %v218 = vmul.f32 %v86, %v198
  %v219 = vld [vmem:[%s2] sm:$0xf]
  %v221 = vlaneseq
  %v222 = vshrl.u32 %v221, 7
  %v223 = vsub.s32 0, %v222
  %v224 = vrot.slane %v219, %v223
  %v225 = vlaneseq
  %v226 = vshrl.u32 %v225, 7
  %v227 = vsub.s32 1, %v226
  %v228 = vrot.slane %v219, %v227
  %v229 = vlaneseq
  %v230 = vshrl.u32 %v229, 7
  %v231 = vsub.s32 2, %v230
  %v232 = vrot.slane %v219, %v231
  %v233 = vlaneseq
  %v234 = vshrl.u32 %v233, 7
  %v235 = vsub.s32 3, %v234
  %v236 = vrot.slane %v219, %v235
  %v241 = vadd.f32 %v203, %v224
  %v242 = vadd.f32 %v204, %v228
  %v243 = vadd.f32 %v205, %v232
  %v244 = vadd.f32 %v206, %v236
  %v245 = vadd.f32 %v207, %v224
  %v246 = vadd.f32 %v208, %v228
  %v247 = vadd.f32 %v209, %v232
  %v248 = vadd.f32 %v210, %v236
  %v249 = vadd.f32 %v211, %v224
  %v250 = vadd.f32 %v212, %v228
  %v251 = vadd.f32 %v213, %v232
  %v252 = vadd.f32 %v214, %v236
  %v253 = vadd.f32 %v215, %v224
  %v254 = vadd.f32 %v216, %v228
  %v255 = vadd.f32 %v217, %v232
  %v256 = vadd.f32 %v218, %v236
  %v257 = vmax.f32 %v241, 0.0
  %v258 = vmax.f32 %v242, 0.0
  %v259 = vmax.f32 %v243, 0.0
  %v260 = vmax.f32 %v244, 0.0
  %v261 = vmax.f32 %v245, 0.0
  %v262 = vmax.f32 %v246, 0.0
  %v263 = vmax.f32 %v247, 0.0
  %v264 = vmax.f32 %v248, 0.0
  %v265 = vmax.f32 %v249, 0.0
  %v266 = vmax.f32 %v250, 0.0
  %v267 = vmax.f32 %v251, 0.0
  %v268 = vmax.f32 %v252, 0.0
  %v269 = vmax.f32 %v253, 0.0
  %v270 = vmax.f32 %v254, 0.0
  %v271 = vmax.f32 %v255, 0.0
  %v272 = vmax.f32 %v256, 0.0
  %273 = vst [vmem:[%s3] sm:$0xff] %v257
  %274 = vst [vmem:[%s3 + $0x8] sm:$0xff] %v258
  %275 = vst [vmem:[%s3 + $0x10] sm:$0xff] %v259
  %276 = vst [vmem:[%s3 + $0x18] sm:$0xff] %v260
  %277 = vst [vmem:[%s3 + $0x20] sm:$0xff] %v261
  %278 = vst [vmem:[%s3 + $0x28] sm:$0xff] %v262
  %279 = vst [vmem:[%s3 + $0x30] sm:$0xff] %v263
  %280 = vst [vmem:[%s3 + $0x38] sm:$0xff] %v264
  %281 = vst [vmem:[%s3 + $0x40] sm:$0xff] %v265
  %282 = vst [vmem:[%s3 + $0x48] sm:$0xff] %v266
  %283 = vst [vmem:[%s3 + $0x50] sm:$0xff] %v267
  %284 = vst [vmem:[%s3 + $0x58] sm:$0xff] %v268
  %285 = vst [vmem:[%s3 + $0x60] sm:$0xff] %v269
  %286 = vst [vmem:[%s3 + $0x68] sm:$0xff] %v270
  %287 = vst [vmem:[%s3 + $0x70] sm:$0xff] %v271
  %288 = vst [vmem:[%s3 + $0x78] sm:$0xff] %v272
  // Predicated region
  $region14: #{generator_forward.8} parent=0 // pred_check
    _
  $region15: #{generator_forward.8} parent=0 // pred_check_branch
    %290 = sbr.rel (0) target = $region17
  $region16: #{generator_forward.8} parent=0 // pred_region
    _
  $region17: #{generator_forward.8} parent=0 // pred_fallthru
    _
  // Predicated region
  $region18: #{generator_forward.8} parent=0 // pred_check
    _
  $region19: #{generator_forward.8} parent=0 // pred_check_branch
    %292 = sbr.rel (0) target = $region21
  $region20: #{generator_forward.8} parent=0 // pred_region
    _
  $region21: #{generator_forward.8} parent=0 // pred_fallthru
    _

// kernel: generator_forward.9
$region0: #{generator_forward.9}
  #allocation0 [shape = 'u32[]', space=smem, size = 0x4, offset = 0x4, fixed_abs, tag = 'smem constant byte address 0x4 - core index']
  #allocation1 [shape = 'u32[144,128]{1,0:T(1,128)}', space=vmem, size = 0x12000, scoped, tag = 'internal scratch']
  #allocation2 [shape = 'f32[32,256]{1,0:T(8,128)}', space=vmem, size = 0x8000, scoped, tag = 'scratch operand']
  %s0 = inlined_call_operand.vmem [shape: bf16[4,32,2048], index: 0, kind: input, shape index: {}]
  %s1 = inlined_call_operand.vmem [shape: bf16[4,2048,256], index: 1, kind: input, shape index: {}]
  %s2 = inlined_call_operand.vmem [shape: f32[4,32,256], index: 2, kind: output, shape index: {}]
  %s3 = sld [smem:[#allocation0]]
  $region49: #{generator_forward.9} parent=0
    _
  %s5 = ssub.s32 1, %s3
  %s6 = scalar_select 0, %s5, %s3
  loop: start=0, step=1, limit=6
  $region2: #{generator_forward.9} parent=0 // loop_pre_header
    _
  $region3: #{generator_forward.9} parent=0 // loop_header
    %s8 = sphi 0, %s12
    %p9 = scmp.ge.s32.totalorder %s8, 6
    %s15 = sphi 0, %s41
    %s16 = sphi 0, %s37
    %s17 = sphi 0, %s33
    %s18 = sphi 0, %s29
    %s19 = sphi 0, %s15
    %s20 = sphi 0, %s16
    %s21 = sphi 0, %s17
    %s22 = sphi 0, %s18
    %s23 = sphi 0, %s19
    %s24 = sphi 0, %s20
    %s25 = sphi 0, %s21
    %s26 = sphi 0, %s22
    %s48 = sphi 0, %s50
    %s51 = sphi 0, %s48
    %s52 = sphi 0, %s51
    %s68 = sphi 0, %s52
    %s78 = sphi 0, %s80
    %s81 = sphi 0, %s78
    %s82 = sphi 0, %s81
    %s98 = sphi 0, %s82
    %s108 = sphi 0, %s110
    %s111 = sphi 0, %s108
    %s112 = sphi 0, %s111
    %s128 = sphi 0, %s112
  $region4: #{generator_forward.9} parent=0 // loop_header_branch
    %11 = sbr.rel (%p9) target = $region8
  $region5: #{generator_forward.9} parent=0 // loop_body
    %s13 = ssub.s32 %s8, 1
    %s14 = ssub.s32 %s8, 2
    %s27 = sadd.s32 1, %s18
    %p28 = scmp.ge.s32.totalorder %s27, 1
    %s29 = scalar_select %p28, 0, %s27
    %s30 = sadd.s32 1, %s17
    %s31 = scalar_select %p28, %s30, %s17
    %p32 = scmp.ge.s32.totalorder %s31, 1
    %s33 = scalar_select %p32, 0, %s31
    %s34 = sadd.s32 1, %s16
    %s35 = scalar_select %p32, %s34, %s16
    %p36 = scmp.ge.s32.totalorder %s35, 1
    %s37 = scalar_select %p36, 0, %s35
    %s38 = sadd.s32 1, %s15
    %s39 = scalar_select %p36, %s38, %s15
    %p40 = scmp.ge.s32.totalorder %s39, 4
    %s41 = scalar_select %p40, 0, %s39
    %s42 = ssub.s32 %s15, %s41
    %s43 = ssub.s32 %s16, %s37
    %s44 = sor.u32 %s42, %s43
    %s45 = ssub.s32 %s18, %s29
    %s46 = sor.u32 %s44, %s45
    %p47 = scmp.eq.s32.totalorder %s46, 0
    %s49 = sadd.s32 %s48, 1
    %s50 = scalar_select %p47, %s48, %s49
    %p53 = pneg %p47
    %p54 = scmp.eq.s32.totalorder %s8, 3
    %p55 = por %p53, %p54
    %p56 = scmp.ne.s32.totalorder %s48, %s51
    %p57 = scmp.eq.s32.totalorder %s8, 0
    %p58 = por %p56, %p57
    %p59 = scmp.ne.s32.totalorder %s48, %s51
    %p60 = scmp.eq.s32.totalorder %s13, 3
    %p61 = por %p59, %p60
    %p62 = scmp.ne.s32.totalorder %s51, %s52
    %p63 = scmp.eq.s32.totalorder %s13, 0
    %p64 = por %p62, %p63
    %p65 = scmp.ne.s32.totalorder %s51, %s52
    %p66 = scmp.eq.s32.totalorder %s14, 3
    %p67 = por %p65, %p66
    %p69 = scmp.ne.s32.totalorder %s52, %s68
    %p70 = scmp.eq.s32.totalorder %s14, 0
    %p71 = por %p69, %p70
    %s72 = ssub.s32 %s15, %s41
    %s73 = ssub.s32 %s18, %s29
    %s74 = sor.u32 %s72, %s73
    %s75 = ssub.s32 %s17, %s33
    %s76 = sor.u32 %s74, %s75
    %p77 = scmp.eq.s32.totalorder %s76, 0
    %s79 = sadd.s32 %s78, 1
    %s80 = scalar_select %p77, %s78, %s79
    %p83 = pneg %p77
    %p84 = scmp.eq.s32.totalorder %s8, 3
    %p85 = por %p83, %p84
    %p86 = scmp.ne.s32.totalorder %s78, %s81
    %p87 = scmp.eq.s32.totalorder %s8, 0
    %p88 = por %p86, %p87
    %p89 = scmp.ne.s32.totalorder %s78, %s81
    %p90 = scmp.eq.s32.totalorder %s13, 3
    %p91 = por %p89, %p90
    %p92 = scmp.ne.s32.totalorder %s81, %s82
    %p93 = scmp.eq.s32.totalorder %s13, 0
    %p94 = por %p92, %p93
    %p95 = scmp.ne.s32.totalorder %s81, %s82
    %p96 = scmp.eq.s32.totalorder %s14, 3
    %p97 = por %p95, %p96
    %p99 = scmp.ne.s32.totalorder %s82, %s98
    %p100 = scmp.eq.s32.totalorder %s14, 0
    %p101 = por %p99, %p100
    %s102 = ssub.s32 %s15, %s41
    %s103 = ssub.s32 %s16, %s37
    %s104 = sor.u32 %s102, %s103
    %s105 = ssub.s32 %s17, %s33
    %s106 = sor.u32 %s104, %s105
    %p107 = scmp.eq.s32.totalorder %s106, 0
    %s109 = sadd.s32 %s108, 1
    %s110 = scalar_select %p107, %s108, %s109
    %p113 = pneg %p107
    %p114 = scmp.eq.s32.totalorder %s8, 3
    %p115 = por %p113, %p114
    %p116 = scmp.ne.s32.totalorder %s108, %s111
    %p117 = scmp.eq.s32.totalorder %s8, 0
    %p118 = por %p116, %p117
    %p119 = scmp.ne.s32.totalorder %s108, %s111
    %p120 = scmp.eq.s32.totalorder %s13, 3
    %p121 = por %p119, %p120
    %p122 = scmp.ne.s32.totalorder %s111, %s112
    %p123 = scmp.eq.s32.totalorder %s13, 0
    %p124 = por %p122, %p123
    %p125 = scmp.ne.s32.totalorder %s111, %s112
    %p126 = scmp.eq.s32.totalorder %s14, 3
    %p127 = por %p125, %p126
    %p129 = scmp.ne.s32.totalorder %s112, %s128
    %p130 = scmp.eq.s32.totalorder %s14, 0
    %p131 = por %p129, %p130
    %p132 = scmp.le.s32.totalorder 1, %s8
    %p133 = scmp.lt.s32.totalorder %s8, 5
    %p134 = pnand %p132, %p133
    %p135 = pneg %p134
    // Predicated region
    $region9: #{generator_forward.9} parent=5 // pred_check
      _
    $region10: #{generator_forward.9} parent=5 // pred_check_branch
      %137 = sbr.rel (%p134) target = $region12
    $region11: #{generator_forward.9} parent=5 // pred_region
      %s138 = ssub.s32 %s8, 1
    $region12: #{generator_forward.9} parent=5 // pred_fallthru
      _
    %p139 = scmp.lt.s32.totalorder %s8, 4
    // Predicated region
    $region13: #{generator_forward.9} parent=5 // pred_check
      %p140 = pneg %p139
    $region14: #{generator_forward.9} parent=5 // pred_check_branch
      %142 = sbr.rel (%p140) target = $region16
    $region15: #{generator_forward.9} parent=5 // pred_region
      // Predicated region
      $region17: #{generator_forward.9} parent=15 // pred_check
        %p143 = pneg %p58
      $region18: #{generator_forward.9} parent=15 // pred_check_branch
        %145 = sbr.rel (%p143) target = $region20
      $region19: #{generator_forward.9} parent=15 // pred_region
        %s146 = smul.u32 4, %s16
        %s147 = smul.u32 16, %s18
        %p148 = scmp.lt.s32.totalorder %s15, 3
        %s149 = scalar_select %p148, %s15, 3
        %p150 = scmp.lt.s32.totalorder %s146, 3
        %s151 = scalar_select %p150, %s146, 3
        %p152 = scmp.lt.s32.totalorder %s147, 15
        %s153 = scalar_select %p152, %s147, 15
        %s154 = smul.addr %s151, 16
        %s155 = sadd.s32 %s153, %s154
        %s156 = smul.addr %s149, 64
        %s157 = sadd.s32 %s155, %s156
        %s158 = smul.addr %s157, 4
        %s159 = scalar_lea.vmem %s0, %s158
        %s160 = smul.u32 4, %s16
        %s161 = smul.u32 16, %s18
      $region20: #{generator_forward.9} parent=15 // pred_fallthru
        _
      // Predicated region
      $region21: #{generator_forward.9} parent=15 // pred_check
        %p162 = pneg %p88
      $region22: #{generator_forward.9} parent=15 // pred_check_branch
        %164 = sbr.rel (%p162) target = $region24
      $region23: #{generator_forward.9} parent=15 // pred_region
        %s165 = smul.u32 256, %s18
        %s166 = smul.u32 2, %s17
        %p167 = scmp.lt.s32.totalorder %s15, 3
        %s168 = scalar_select %p167, %s15, 3
        %p169 = scmp.lt.s32.totalorder %s165, 255
        %s170 = scalar_select %p169, %s165, 255
        %p171 = scmp.lt.s32.totalorder %s166, 1
        %s172 = scalar_select %p171, %s166, 1
        %s173 = smul.addr %s170, 2
        %s174 = sadd.s32 %s172, %s173
        %s175 = smul.addr %s168, 512
        %s176 = sadd.s32 %s174, %s175
        %s177 = smul.addr %s176, 4
        %s178 = scalar_lea.vmem %s1, %s177
        %s179 = smul.u32 256, %s18
        %s180 = smul.u32 2, %s17
      $region24: #{generator_forward.9} parent=15 // pred_fallthru
        _
    $region16: #{generator_forward.9} parent=5 // pred_fallthru
      _
    %p181 = scmp.le.s32.totalorder 1, %s8
    %p182 = scmp.lt.s32.totalorder %s8, 5
    %p183 = pnand %p181, %p182
    %p184 = pneg %p183
    // Predicated region
    $region25: #{generator_forward.9} parent=5 // pred_check
      _
    $region26: #{generator_forward.9} parent=5 // pred_check_branch
      %186 = sbr.rel (%p183) target = $region28
    $region27: #{generator_forward.9} parent=5 // pred_region
      %s187 = ssub.s32 %s8, 1
      %s188 = smul.u32 4, %s20
      %s189 = smul.u32 16, %s22
      %p190 = scmp.lt.s32.totalorder %s19, 3
      %s191 = scalar_select %p190, %s19, 3
      %p192 = scmp.lt.s32.totalorder %s188, 3
      %s193 = scalar_select %p192, %s188, 3
      %p194 = scmp.lt.s32.totalorder %s189, 15
      %s195 = scalar_select %p194, %s189, 15
      %s196 = smul.addr %s193, 16
      %s197 = sadd.s32 %s195, %s196
      %s198 = smul.addr %s191, 64
      %s199 = sadd.s32 %s197, %s198
      %s200 = smul.addr %s199, 4
      %s201 = scalar_lea.vmem %s0, %s200
      %p202 = pneg %p64
      %p203 = pneg %p61
      %s204 = smul.u32 256, %s22
      %s205 = smul.u32 2, %s21
      %p206 = scmp.lt.s32.totalorder %s19, 3
      %s207 = scalar_select %p206, %s19, 3
      %p208 = scmp.lt.s32.totalorder %s204, 255
      %s209 = scalar_select %p208, %s204, 255
      %p210 = scmp.lt.s32.totalorder %s205, 1
      %s211 = scalar_select %p210, %s205, 1
      %s212 = smul.addr %s209, 2
      %s213 = sadd.s32 %s211, %s212
      %s214 = smul.addr %s207, 512
      %s215 = sadd.s32 %s213, %s214
      %s216 = smul.addr %s215, 4
      %s217 = scalar_lea.vmem %s1, %s216
      %p218 = pneg %p94
      %p219 = pneg %p91
      %p220 = pneg %p124
      %p221 = pneg %p121
      %s222 = smul.u32 4, %s20
      %s223 = smul.u32 2, %s21
      %p224 = scmp.lt.s32.totalorder %s19, 3
      %s225 = scalar_select %p224, %s19, 3
      %p226 = scmp.lt.s32.totalorder %s222, 3
      %s227 = scalar_select %p226, %s222, 3
      %p228 = scmp.lt.s32.totalorder %s223, 1
      %s229 = scalar_select %p228, %s223, 1
      %s230 = smul.addr %s227, 2
      %s231 = sadd.s32 %s229, %s230
      %s232 = smul.addr %s225, 8
      %s233 = sadd.s32 %s231, %s232
      %s234 = smul.addr %s233, 8
      %s235 = scalar_lea.vmem %s2, %s234
      %s236 = smul.u32 4, %s20
      %s237 = smul.u32 16, %s22
      %p238 = scmp.lt.s32.totalorder %s19, 3
      %s239 = scalar_select %p238, %s19, 3
      %p240 = scmp.lt.s32.totalorder %s236, 3
      %s241 = scalar_select %p240, %s236, 3
      %p242 = scmp.lt.s32.totalorder %s237, 15
      %s243 = scalar_select %p242, %s237, 15
      %s244 = smul.addr %s241, 16
      %s245 = sadd.s32 %s243, %s244
      %s246 = smul.addr %s239, 64
      %s247 = sadd.s32 %s245, %s246
      %s248 = smul.addr %s247, 4
      %s249 = scalar_lea.vmem %s0, %s248
      %s250 = smul.u32 4, %s20
      %s251 = smul.u32 16, %s22
      %s252 = smul.u32 256, %s22
      %s253 = smul.u32 2, %s21
      %p254 = scmp.lt.s32.totalorder %s19, 3
      %s255 = scalar_select %p254, %s19, 3
      %p256 = scmp.lt.s32.totalorder %s252, 255
      %s257 = scalar_select %p256, %s252, 255
      %p258 = scmp.lt.s32.totalorder %s253, 1
      %s259 = scalar_select %p258, %s253, 1
      %s260 = smul.addr %s257, 2
      %s261 = sadd.s32 %s259, %s260
      %s262 = smul.addr %s255, 512
      %s263 = sadd.s32 %s261, %s262
      %s264 = smul.addr %s263, 4
      %s265 = scalar_lea.vmem %s1, %s264
      %s266 = smul.u32 256, %s22
      %s267 = smul.u32 2, %s21
      %s268 = smul.u32 4, %s20
      %s269 = smul.u32 2, %s21
      %p270 = scmp.lt.s32.totalorder %s19, 3
      %s271 = scalar_select %p270, %s19, 3
      %p272 = scmp.lt.s32.totalorder %s268, 3
      %s273 = scalar_select %p272, %s268, 3
      %p274 = scmp.lt.s32.totalorder %s269, 1
      %s275 = scalar_select %p274, %s269, 1
      %s276 = smul.addr %s273, 2
      %s277 = sadd.s32 %s275, %s276
      %s278 = smul.addr %s271, 8
      %s279 = sadd.s32 %s277, %s278
      %s280 = smul.addr %s279, 8
      %s281 = scalar_lea.vmem %s2, %s280
      %s282 = smul.u32 4, %s20
      %s283 = smul.u32 2, %s21
      %p284 = scmp.eq.s32.totalorder %s22, 0
      // Predicated region
      $region29: #{generator_forward.9} parent=27 // pred_check
        %p285 = pneg %p284
      $region30: #{generator_forward.9} parent=27 // pred_check_branch
        %287 = sbr.rel (%p285) target = $region32
      $region31: #{generator_forward.9} parent=27 // pred_region
        %288 = vst [vmem:[#allocation2] sm:$0xff] 0.0
        %289 = vst [vmem:[#allocation2 + $0x8] sm:$0xff] 0.0
        %290 = vst [vmem:[#allocation2 + $0x10] sm:$0xff] 0.0
        %291 = vst [vmem:[#allocation2 + $0x18] sm:$0xff] 0.0
        %292 = vst [vmem:[#allocation2 + $0x20] sm:$0xff] 0.0
        %293 = vst [vmem:[#allocation2 + $0x28] sm:$0xff] 0.0
        %294 = vst [vmem:[#allocation2 + $0x30] sm:$0xff] 0.0
        %295 = vst [vmem:[#allocation2 + $0x38] sm:$0xff] 0.0
      $region32: #{generator_forward.9} parent=27 // pred_fallthru
        _
      %v296 = vld [vmem:[#allocation2] sm:$0xff]
      %v297 = vld [vmem:[#allocation2 + $0x8] sm:$0xff]
      %v298 = vld [vmem:[#allocation2 + $0x10] sm:$0xff]
      %v299 = vld [vmem:[#allocation2 + $0x18] sm:$0xff]
      %v300 = vld [vmem:[#allocation2 + $0x20] sm:$0xff]
      %v301 = vld [vmem:[#allocation2 + $0x28] sm:$0xff]
      %v302 = vld [vmem:[#allocation2 + $0x30] sm:$0xff]
      %v303 = vld [vmem:[#allocation2 + $0x38] sm:$0xff]
      %v304 = vld [vmem:[%s249] sm:$0xff]
      %v305 = vld [vmem:[%s249 + $0x8] sm:$0xff]
      %v306 = vld [vmem:[%s249 + $0x10] sm:$0xff]
      %v307 = vld [vmem:[%s249 + $0x18] sm:$0xff]
      %v308 = vld [vmem:[%s249 + $0x20] sm:$0xff]
      %v309 = vld [vmem:[%s249 + $0x28] sm:$0xff]
      %v310 = vld [vmem:[%s249 + $0x30] sm:$0xff]
      %v311 = vld [vmem:[%s249 + $0x38] sm:$0xff]
      %v312 = vld [vmem:[%s249 + $0x40] sm:$0xff]
      %v313 = vld [vmem:[%s249 + $0x48] sm:$0xff]
      %v314 = vld [vmem:[%s249 + $0x50] sm:$0xff]
      %v315 = vld [vmem:[%s249 + $0x58] sm:$0xff]
      %v316 = vld [vmem:[%s249 + $0x60] sm:$0xff]
      %v317 = vld [vmem:[%s249 + $0x68] sm:$0xff]
      %v318 = vld [vmem:[%s249 + $0x70] sm:$0xff]
      %v319 = vld [vmem:[%s249 + $0x78] sm:$0xff]
      %v320 = vld [vmem:[%s249 + $0x80] sm:$0xff]
      %v321 = vld [vmem:[%s249 + $0x88] sm:$0xff]
      %v322 = vld [vmem:[%s249 + $0x90] sm:$0xff]
      %v323 = vld [vmem:[%s249 + $0x98] sm:$0xff]
      %v324 = vld [vmem:[%s249 + $0xa0] sm:$0xff]
      %v325 = vld [vmem:[%s249 + $0xa8] sm:$0xff]
      %v326 = vld [vmem:[%s249 + $0xb0] sm:$0xff]
      %v327 = vld [vmem:[%s249 + $0xb8] sm:$0xff]
      %v328 = vld [vmem:[%s249 + $0xc0] sm:$0xff]
      %v329 = vld [vmem:[%s249 + $0xc8] sm:$0xff]
      %v330 = vld [vmem:[%s249 + $0xd0] sm:$0xff]
      %v331 = vld [vmem:[%s249 + $0xd8] sm:$0xff]
      %v332 = vld [vmem:[%s249 + $0xe0] sm:$0xff]
      %v333 = vld [vmem:[%s249 + $0xe8] sm:$0xff]
      %v334 = vld [vmem:[%s249 + $0xf0] sm:$0xff]
      %v335 = vld [vmem:[%s249 + $0xf8] sm:$0xff]
      %v336 = vld [vmem:[%s265] sm:$0xff]
      %v337 = vld [vmem:[%s265 + $0x8] sm:$0xff]
      %v338 = vld [vmem:[%s265 + $0x10] sm:$0xff]
      %v339 = vld [vmem:[%s265 + $0x18] sm:$0xff]
      %v340 = vld [vmem:[%s265 + $0x20] sm:$0xff]
      %v341 = vld [vmem:[%s265 + $0x28] sm:$0xff]
      %v342 = vld [vmem:[%s265 + $0x30] sm:$0xff]
      %v343 = vld [vmem:[%s265 + $0x38] sm:$0xff]
      %v344 = vld [vmem:[%s265 + $0x40] sm:$0xff]
      %v345 = vld [vmem:[%s265 + $0x48] sm:$0xff]
      %v346 = vld [vmem:[%s265 + $0x50] sm:$0xff]
      %v347 = vld [vmem:[%s265 + $0x58] sm:$0xff]
      %v348 = vld [vmem:[%s265 + $0x60] sm:$0xff]
      %v349 = vld [vmem:[%s265 + $0x68] sm:$0xff]
      %v350 = vld [vmem:[%s265 + $0x70] sm:$0xff]
      %v351 = vld [vmem:[%s265 + $0x78] sm:$0xff]
      %v352 = vld [vmem:[%s265 + $0x80] sm:$0xff]
      %v353 = vld [vmem:[%s265 + $0x88] sm:$0xff]
      %v354 = vld [vmem:[%s265 + $0x90] sm:$0xff]
      %v355 = vld [vmem:[%s265 + $0x98] sm:$0xff]
      %v356 = vld [vmem:[%s265 + $0xa0] sm:$0xff]
      %v357 = vld [vmem:[%s265 + $0xa8] sm:$0xff]
      %v358 = vld [vmem:[%s265 + $0xb0] sm:$0xff]
      %v359 = vld [vmem:[%s265 + $0xb8] sm:$0xff]
      %v360 = vld [vmem:[%s265 + $0xc0] sm:$0xff]
      %v361 = vld [vmem:[%s265 + $0xc8] sm:$0xff]
      %v362 = vld [vmem:[%s265 + $0xd0] sm:$0xff]
      %v363 = vld [vmem:[%s265 + $0xd8] sm:$0xff]
      %v364 = vld [vmem:[%s265 + $0xe0] sm:$0xff]
      %v365 = vld [vmem:[%s265 + $0xe8] sm:$0xff]
      %v366 = vld [vmem:[%s265 + $0xf0] sm:$0xff]
      %v367 = vld [vmem:[%s265 + $0xf8] sm:$0xff]
      %v368 = vld [vmem:[%s265 + $0x100] sm:$0xff]
      %v369 = vld [vmem:[%s265 + $0x108] sm:$0xff]
      %v370 = vld [vmem:[%s265 + $0x110] sm:$0xff]
      %v371 = vld [vmem:[%s265 + $0x118] sm:$0xff]
      %v372 = vld [vmem:[%s265 + $0x120] sm:$0xff]
      %v373 = vld [vmem:[%s265 + $0x128] sm:$0xff]
      %v374 = vld [vmem:[%s265 + $0x130] sm:$0xff]
      %v375 = vld [vmem:[%s265 + $0x138] sm:$0xff]
      %v376 = vld [vmem:[%s265 + $0x140] sm:$0xff]
      %v377 = vld [vmem:[%s265 + $0x148] sm:$0xff]
      %v378 = vld [vmem:[%s265 + $0x150] sm:$0xff]
      %v379 = vld [vmem:[%s265 + $0x158] sm:$0xff]
      %v380 = vld [vmem:[%s265 + $0x160] sm:$0xff]
      %v381 = vld [vmem:[%s265 + $0x168] sm:$0xff]
      %v382 = vld [vmem:[%s265 + $0x170] sm:$0xff]
      %v383 = vld [vmem:[%s265 + $0x178] sm:$0xff]
      %v384 = vld [vmem:[%s265 + $0x180] sm:$0xff]
      %v385 = vld [vmem:[%s265 + $0x188] sm:$0xff]
      %v386 = vld [vmem:[%s265 + $0x190] sm:$0xff]
      %v387 = vld [vmem:[%s265 + $0x198] sm:$0xff]
      %v388 = vld [vmem:[%s265 + $0x1a0] sm:$0xff]
      %v389 = vld [vmem:[%s265 + $0x1a8] sm:$0xff]
      %v390 = vld [vmem:[%s265 + $0x1b0] sm:$0xff]
      %v391 = vld [vmem:[%s265 + $0x1b8] sm:$0xff]
      %v392 = vld [vmem:[%s265 + $0x1c0] sm:$0xff]
      %v393 = vld [vmem:[%s265 + $0x1c8] sm:$0xff]
      %v394 = vld [vmem:[%s265 + $0x1d0] sm:$0xff]
      %v395 = vld [vmem:[%s265 + $0x1d8] sm:$0xff]
      %v396 = vld [vmem:[%s265 + $0x1e0] sm:$0xff]
      %v397 = vld [vmem:[%s265 + $0x1e8] sm:$0xff]
      %v398 = vld [vmem:[%s265 + $0x1f0] sm:$0xff]
      %v399 = vld [vmem:[%s265 + $0x1f8] sm:$0xff]
      %v400 = vld [vmem:[%s265 + $0x200] sm:$0xff]
      %v401 = vld [vmem:[%s265 + $0x208] sm:$0xff]
      %v402 = vld [vmem:[%s265 + $0x210] sm:$0xff]
      %v403 = vld [vmem:[%s265 + $0x218] sm:$0xff]
      %v404 = vld [vmem:[%s265 + $0x220] sm:$0xff]
      %v405 = vld [vmem:[%s265 + $0x228] sm:$0xff]
      %v406 = vld [vmem:[%s265 + $0x230] sm:$0xff]
      %v407 = vld [vmem:[%s265 + $0x238] sm:$0xff]
      %v408 = vld [vmem:[%s265 + $0x240] sm:$0xff]
      %v409 = vld [vmem:[%s265 + $0x248] sm:$0xff]
      %v410 = vld [vmem:[%s265 + $0x250] sm:$0xff]
      %v411 = vld [vmem:[%s265 + $0x258] sm:$0xff]
      %v412 = vld [vmem:[%s265 + $0x260] sm:$0xff]
      %v413 = vld [vmem:[%s265 + $0x268] sm:$0xff]
      %v414 = vld [vmem:[%s265 + $0x270] sm:$0xff]
      %v415 = vld [vmem:[%s265 + $0x278] sm:$0xff]
      %v416 = vld [vmem:[%s265 + $0x280] sm:$0xff]
      %v417 = vld [vmem:[%s265 + $0x288] sm:$0xff]
      %v418 = vld [vmem:[%s265 + $0x290] sm:$0xff]
      %v419 = vld [vmem:[%s265 + $0x298] sm:$0xff]
      %v420 = vld [vmem:[%s265 + $0x2a0] sm:$0xff]
      %v421 = vld [vmem:[%s265 + $0x2a8] sm:$0xff]
      %v422 = vld [vmem:[%s265 + $0x2b0] sm:$0xff]
      %v423 = vld [vmem:[%s265 + $0x2b8] sm:$0xff]
      %v424 = vld [vmem:[%s265 + $0x2c0] sm:$0xff]
      %v425 = vld [vmem:[%s265 + $0x2c8] sm:$0xff]
      %v426 = vld [vmem:[%s265 + $0x2d0] sm:$0xff]
      %v427 = vld [vmem:[%s265 + $0x2d8] sm:$0xff]
      %v428 = vld [vmem:[%s265 + $0x2e0] sm:$0xff]
      %v429 = vld [vmem:[%s265 + $0x2e8] sm:$0xff]
      %v430 = vld [vmem:[%s265 + $0x2f0] sm:$0xff]
      %v431 = vld [vmem:[%s265 + $0x2f8] sm:$0xff]
      %v432 = vld [vmem:[%s265 + $0x300] sm:$0xff]
      %v433 = vld [vmem:[%s265 + $0x308] sm:$0xff]
      %v434 = vld [vmem:[%s265 + $0x310] sm:$0xff]
      %v435 = vld [vmem:[%s265 + $0x318] sm:$0xff]
      %v436 = vld [vmem:[%s265 + $0x320] sm:$0xff]
      %v437 = vld [vmem:[%s265 + $0x328] sm:$0xff]
      %v438 = vld [vmem:[%s265 + $0x330] sm:$0xff]
      %v439 = vld [vmem:[%s265 + $0x338] sm:$0xff]
      %v440 = vld [vmem:[%s265 + $0x340] sm:$0xff]
      %v441 = vld [vmem:[%s265 + $0x348] sm:$0xff]
      %v442 = vld [vmem:[%s265 + $0x350] sm:$0xff]
      %v443 = vld [vmem:[%s265 + $0x358] sm:$0xff]
      %v444 = vld [vmem:[%s265 + $0x360] sm:$0xff]
      %v445 = vld [vmem:[%s265 + $0x368] sm:$0xff]
      %v446 = vld [vmem:[%s265 + $0x370] sm:$0xff]
      %v447 = vld [vmem:[%s265 + $0x378] sm:$0xff]
      %v448 = vld [vmem:[%s265 + $0x380] sm:$0xff]
      %v449 = vld [vmem:[%s265 + $0x388] sm:$0xff]
      %v450 = vld [vmem:[%s265 + $0x390] sm:$0xff]
      %v451 = vld [vmem:[%s265 + $0x398] sm:$0xff]
      %v452 = vld [vmem:[%s265 + $0x3a0] sm:$0xff]
      %v453 = vld [vmem:[%s265 + $0x3a8] sm:$0xff]
      %v454 = vld [vmem:[%s265 + $0x3b0] sm:$0xff]
      %v455 = vld [vmem:[%s265 + $0x3b8] sm:$0xff]
      %v456 = vld [vmem:[%s265 + $0x3c0] sm:$0xff]
      %v457 = vld [vmem:[%s265 + $0x3c8] sm:$0xff]
      %v458 = vld [vmem:[%s265 + $0x3d0] sm:$0xff]
      %v459 = vld [vmem:[%s265 + $0x3d8] sm:$0xff]
      %v460 = vld [vmem:[%s265 + $0x3e0] sm:$0xff]
      %v461 = vld [vmem:[%s265 + $0x3e8] sm:$0xff]
      %v462 = vld [vmem:[%s265 + $0x3f0] sm:$0xff]
      %v463 = vld [vmem:[%s265 + $0x3f8] sm:$0xff]
      %v464 = vld [vmem:[%s265 + $0x400] sm:$0xff]
      %v465 = vld [vmem:[%s265 + $0x408] sm:$0xff]
      %v466 = vld [vmem:[%s265 + $0x410] sm:$0xff]
      %v467 = vld [vmem:[%s265 + $0x418] sm:$0xff]
      %v468 = vld [vmem:[%s265 + $0x420] sm:$0xff]
      %v469 = vld [vmem:[%s265 + $0x428] sm:$0xff]
      %v470 = vld [vmem:[%s265 + $0x430] sm:$0xff]
      %v471 = vld [vmem:[%s265 + $0x438] sm:$0xff]
      %v472 = vld [vmem:[%s265 + $0x440] sm:$0xff]
      %v473 = vld [vmem:[%s265 + $0x448] sm:$0xff]
      %v474 = vld [vmem:[%s265 + $0x450] sm:$0xff]
      %v475 = vld [vmem:[%s265 + $0x458] sm:$0xff]
      %v476 = vld [vmem:[%s265 + $0x460] sm:$0xff]
      %v477 = vld [vmem:[%s265 + $0x468] sm:$0xff]
      %v478 = vld [vmem:[%s265 + $0x470] sm:$0xff]
      %v479 = vld [vmem:[%s265 + $0x478] sm:$0xff]
      %v480 = vld [vmem:[%s265 + $0x480] sm:$0xff]
      %v481 = vld [vmem:[%s265 + $0x488] sm:$0xff]
      %v482 = vld [vmem:[%s265 + $0x490] sm:$0xff]
      %v483 = vld [vmem:[%s265 + $0x498] sm:$0xff]
      %v484 = vld [vmem:[%s265 + $0x4a0] sm:$0xff]
      %v485 = vld [vmem:[%s265 + $0x4a8] sm:$0xff]
      %v486 = vld [vmem:[%s265 + $0x4b0] sm:$0xff]
      %v487 = vld [vmem:[%s265 + $0x4b8] sm:$0xff]
      %v488 = vld [vmem:[%s265 + $0x4c0] sm:$0xff]
      %v489 = vld [vmem:[%s265 + $0x4c8] sm:$0xff]
      %v490 = vld [vmem:[%s265 + $0x4d0] sm:$0xff]
      %v491 = vld [vmem:[%s265 + $0x4d8] sm:$0xff]
      %v492 = vld [vmem:[%s265 + $0x4e0] sm:$0xff]
      %v493 = vld [vmem:[%s265 + $0x4e8] sm:$0xff]
      %v494 = vld [vmem:[%s265 + $0x4f0] sm:$0xff]
      %v495 = vld [vmem:[%s265 + $0x4f8] sm:$0xff]
      %v496 = vld [vmem:[%s265 + $0x500] sm:$0xff]
      %v497 = vld [vmem:[%s265 + $0x508] sm:$0xff]
      %v498 = vld [vmem:[%s265 + $0x510] sm:$0xff]
      %v499 = vld [vmem:[%s265 + $0x518] sm:$0xff]
      %v500 = vld [vmem:[%s265 + $0x520] sm:$0xff]
      %v501 = vld [vmem:[%s265 + $0x528] sm:$0xff]
      %v502 = vld [vmem:[%s265 + $0x530] sm:$0xff]
      %v503 = vld [vmem:[%s265 + $0x538] sm:$0xff]
      %v504 = vld [vmem:[%s265 + $0x540] sm:$0xff]
      %v505 = vld [vmem:[%s265 + $0x548] sm:$0xff]
      %v506 = vld [vmem:[%s265 + $0x550] sm:$0xff]
      %v507 = vld [vmem:[%s265 + $0x558] sm:$0xff]
      %v508 = vld [vmem:[%s265 + $0x560] sm:$0xff]
      %v509 = vld [vmem:[%s265 + $0x568] sm:$0xff]
      %v510 = vld [vmem:[%s265 + $0x570] sm:$0xff]
      %v511 = vld [vmem:[%s265 + $0x578] sm:$0xff]
      %v512 = vld [vmem:[%s265 + $0x580] sm:$0xff]
      %v513 = vld [vmem:[%s265 + $0x588] sm:$0xff]
      %v514 = vld [vmem:[%s265 + $0x590] sm:$0xff]
      %v515 = vld [vmem:[%s265 + $0x598] sm:$0xff]
      %v516 = vld [vmem:[%s265 + $0x5a0] sm:$0xff]
      %v517 = vld [vmem:[%s265 + $0x5a8] sm:$0xff]
      %v518 = vld [vmem:[%s265 + $0x5b0] sm:$0xff]
      %v519 = vld [vmem:[%s265 + $0x5b8] sm:$0xff]
      %v520 = vld [vmem:[%s265 + $0x5c0] sm:$0xff]
      %v521 = vld [vmem:[%s265 + $0x5c8] sm:$0xff]
      %v522 = vld [vmem:[%s265 + $0x5d0] sm:$0xff]
      %v523 = vld [vmem:[%s265 + $0x5d8] sm:$0xff]
      %v524 = vld [vmem:[%s265 + $0x5e0] sm:$0xff]
      %v525 = vld [vmem:[%s265 + $0x5e8] sm:$0xff]
      %v526 = vld [vmem:[%s265 + $0x5f0] sm:$0xff]
      %v527 = vld [vmem:[%s265 + $0x5f8] sm:$0xff]
      %v528 = vld [vmem:[%s265 + $0x600] sm:$0xff]
      %v529 = vld [vmem:[%s265 + $0x608] sm:$0xff]
      %v530 = vld [vmem:[%s265 + $0x610] sm:$0xff]
      %v531 = vld [vmem:[%s265 + $0x618] sm:$0xff]
      %v532 = vld [vmem:[%s265 + $0x620] sm:$0xff]
      %v533 = vld [vmem:[%s265 + $0x628] sm:$0xff]
      %v534 = vld [vmem:[%s265 + $0x630] sm:$0xff]
      %v535 = vld [vmem:[%s265 + $0x638] sm:$0xff]
      %v536 = vld [vmem:[%s265 + $0x640] sm:$0xff]
      %v537 = vld [vmem:[%s265 + $0x648] sm:$0xff]
      %v538 = vld [vmem:[%s265 + $0x650] sm:$0xff]
      %v539 = vld [vmem:[%s265 + $0x658] sm:$0xff]
      %v540 = vld [vmem:[%s265 + $0x660] sm:$0xff]
      %v541 = vld [vmem:[%s265 + $0x668] sm:$0xff]
      %v542 = vld [vmem:[%s265 + $0x670] sm:$0xff]
      %v543 = vld [vmem:[%s265 + $0x678] sm:$0xff]
      %v544 = vld [vmem:[%s265 + $0x680] sm:$0xff]
      %v545 = vld [vmem:[%s265 + $0x688] sm:$0xff]
      %v546 = vld [vmem:[%s265 + $0x690] sm:$0xff]
      %v547 = vld [vmem:[%s265 + $0x698] sm:$0xff]
      %v548 = vld [vmem:[%s265 + $0x6a0] sm:$0xff]
      %v549 = vld [vmem:[%s265 + $0x6a8] sm:$0xff]
      %v550 = vld [vmem:[%s265 + $0x6b0] sm:$0xff]
      %v551 = vld [vmem:[%s265 + $0x6b8] sm:$0xff]
      %v552 = vld [vmem:[%s265 + $0x6c0] sm:$0xff]
      %v553 = vld [vmem:[%s265 + $0x6c8] sm:$0xff]
      %v554 = vld [vmem:[%s265 + $0x6d0] sm:$0xff]
      %v555 = vld [vmem:[%s265 + $0x6d8] sm:$0xff]
      %v556 = vld [vmem:[%s265 + $0x6e0] sm:$0xff]
      %v557 = vld [vmem:[%s265 + $0x6e8] sm:$0xff]
      %v558 = vld [vmem:[%s265 + $0x6f0] sm:$0xff]
      %v559 = vld [vmem:[%s265 + $0x6f8] sm:$0xff]
      %v560 = vld [vmem:[%s265 + $0x700] sm:$0xff]
      %v561 = vld [vmem:[%s265 + $0x708] sm:$0xff]
      %v562 = vld [vmem:[%s265 + $0x710] sm:$0xff]
      %v563 = vld [vmem:[%s265 + $0x718] sm:$0xff]
      %v564 = vld [vmem:[%s265 + $0x720] sm:$0xff]
      %v565 = vld [vmem:[%s265 + $0x728] sm:$0xff]
      %v566 = vld [vmem:[%s265 + $0x730] sm:$0xff]
      %v567 = vld [vmem:[%s265 + $0x738] sm:$0xff]
      %v568 = vld [vmem:[%s265 + $0x740] sm:$0xff]
      %v569 = vld [vmem:[%s265 + $0x748] sm:$0xff]
      %v570 = vld [vmem:[%s265 + $0x750] sm:$0xff]
      %v571 = vld [vmem:[%s265 + $0x758] sm:$0xff]
      %v572 = vld [vmem:[%s265 + $0x760] sm:$0xff]
      %v573 = vld [vmem:[%s265 + $0x768] sm:$0xff]
      %v574 = vld [vmem:[%s265 + $0x770] sm:$0xff]
      %v575 = vld [vmem:[%s265 + $0x778] sm:$0xff]
      %v576 = vld [vmem:[%s265 + $0x780] sm:$0xff]
      %v577 = vld [vmem:[%s265 + $0x788] sm:$0xff]
      %v578 = vld [vmem:[%s265 + $0x790] sm:$0xff]
      %v579 = vld [vmem:[%s265 + $0x798] sm:$0xff]
      %v580 = vld [vmem:[%s265 + $0x7a0] sm:$0xff]
      %v581 = vld [vmem:[%s265 + $0x7a8] sm:$0xff]
      %v582 = vld [vmem:[%s265 + $0x7b0] sm:$0xff]
      %v583 = vld [vmem:[%s265 + $0x7b8] sm:$0xff]
      %v584 = vld [vmem:[%s265 + $0x7c0] sm:$0xff]
      %v585 = vld [vmem:[%s265 + $0x7c8] sm:$0xff]
      %v586 = vld [vmem:[%s265 + $0x7d0] sm:$0xff]
      %v587 = vld [vmem:[%s265 + $0x7d8] sm:$0xff]
      %v588 = vld [vmem:[%s265 + $0x7e0] sm:$0xff]
      %v589 = vld [vmem:[%s265 + $0x7e8] sm:$0xff]
      %v590 = vld [vmem:[%s265 + $0x7f0] sm:$0xff]
      %v591 = vld [vmem:[%s265 + $0x7f8] sm:$0xff]
      %v624 = vunpack.c.l.b16 %v304
      %v625 = vunpack.c.h.b16 %v304
      %v626 = vunpack.c.l.b16 %v305
      %v627 = vunpack.c.h.b16 %v305
      %v628 = vunpack.c.l.b16 %v306
      %v629 = vunpack.c.h.b16 %v306
      %v630 = vunpack.c.l.b16 %v307
      %v631 = vunpack.c.h.b16 %v307
      %v632 = vunpack.c.l.b16 %v308
      %v633 = vunpack.c.h.b16 %v308
      %v634 = vunpack.c.l.b16 %v309
      %v635 = vunpack.c.h.b16 %v309
      %v636 = vunpack.c.l.b16 %v310
      %v637 = vunpack.c.h.b16 %v310
      %v638 = vunpack.c.l.b16 %v311
      %v639 = vunpack.c.h.b16 %v311
      %v640 = vunpack.c.l.b16 %v312
      %v641 = vunpack.c.h.b16 %v312
      %v642 = vunpack.c.l.b16 %v313
      %v643 = vunpack.c.h.b16 %v313
      %v644 = vunpack.c.l.b16 %v314
      %v645 = vunpack.c.h.b16 %v314
      %v646 = vunpack.c.l.b16 %v315
      %v647 = vunpack.c.h.b16 %v315
      %v648 = vunpack.c.l.b16 %v316
      %v649 = vunpack.c.h.b16 %v316
      %v650 = vunpack.c.l.b16 %v317
      %v651 = vunpack.c.h.b16 %v317
      %v652 = vunpack.c.l.b16 %v318
      %v653 = vunpack.c.h.b16 %v318
      %v654 = vunpack.c.l.b16 %v319
      %v655 = vunpack.c.h.b16 %v319
      %v656 = vunpack.c.l.b16 %v320
      %v657 = vunpack.c.h.b16 %v320
      %v658 = vunpack.c.l.b16 %v321
      %v659 = vunpack.c.h.b16 %v321
      %v660 = vunpack.c.l.b16 %v322
      %v661 = vunpack.c.h.b16 %v322
      %v662 = vunpack.c.l.b16 %v323
      %v663 = vunpack.c.h.b16 %v323
      %v664 = vunpack.c.l.b16 %v324
      %v665 = vunpack.c.h.b16 %v324
      %v666 = vunpack.c.l.b16 %v325
      %v667 = vunpack.c.h.b16 %v325
      %v668 = vunpack.c.l.b16 %v326
      %v669 = vunpack.c.h.b16 %v326
      %v670 = vunpack.c.l.b16 %v327
      %v671 = vunpack.c.h.b16 %v327
      %v672 = vunpack.c.l.b16 %v328
      %v673 = vunpack.c.h.b16 %v328
      %v674 = vunpack.c.l.b16 %v329
      %v675 = vunpack.c.h.b16 %v329
      %v676 = vunpack.c.l.b16 %v330
      %v677 = vunpack.c.h.b16 %v330
      %v678 = vunpack.c.l.b16 %v331
      %v679 = vunpack.c.h.b16 %v331
      %v680 = vunpack.c.l.b16 %v332
      %v681 = vunpack.c.h.b16 %v332
      %v682 = vunpack.c.l.b16 %v333
      %v683 = vunpack.c.h.b16 %v333
      %v684 = vunpack.c.l.b16 %v334
      %v685 = vunpack.c.h.b16 %v334
      %v686 = vunpack.c.l.b16 %v335
      %v687 = vunpack.c.h.b16 %v335
      %v688 = vpack.c.b16 %v640, %v624
      %v689 = vpack.c.b16 %v641, %v625
      %v690 = vpack.c.b16 %v642, %v626
      %v691 = vpack.c.b16 %v643, %v627
      %v692 = vpack.c.b16 %v644, %v628
      %v693 = vpack.c.b16 %v645, %v629
      %v694 = vpack.c.b16 %v646, %v630
      %v695 = vpack.c.b16 %v647, %v631
      %v696 = vpack.c.b16 %v648, %v632
      %v697 = vpack.c.b16 %v649, %v633
      %v698 = vpack.c.b16 %v650, %v634
      %v699 = vpack.c.b16 %v651, %v635
      %v700 = vpack.c.b16 %v652, %v636
      %v701 = vpack.c.b16 %v653, %v637
      %v702 = vpack.c.b16 %v654, %v638
      %v703 = vpack.c.b16 %v655, %v639
      %v704 = vpack.c.b16 %v672, %v656
      %v705 = vpack.c.b16 %v673, %v657
      %v706 = vpack.c.b16 %v674, %v658
      %v707 = vpack.c.b16 %v675, %v659
      %v708 = vpack.c.b16 %v676, %v660
      %v709 = vpack.c.b16 %v677, %v661
      %v710 = vpack.c.b16 %v678, %v662
      %v711 = vpack.c.b16 %v679, %v663
      %v712 = vpack.c.b16 %v680, %v664
      %v713 = vpack.c.b16 %v681, %v665
      %v714 = vpack.c.b16 %v682, %v666
      %v715 = vpack.c.b16 %v683, %v667
      %v716 = vpack.c.b16 %v684, %v668
      %v717 = vpack.c.b16 %v685, %v669
      %v718 = vpack.c.b16 %v686, %v670
      %v719 = vpack.c.b16 %v687, %v671
      %v1008 = vunpack.c.l.b16 %v336
      %v1009 = vunpack.c.h.b16 %v336
      %v1010 = vunpack.c.l.b16 %v337
      %v1011 = vunpack.c.h.b16 %v337
      %v1012 = vunpack.c.l.b16 %v338
      %v1013 = vunpack.c.h.b16 %v338
      %v1014 = vunpack.c.l.b16 %v339
      %v1015 = vunpack.c.h.b16 %v339
      %v1016 = vunpack.c.l.b16 %v340
      %v1017 = vunpack.c.h.b16 %v340
      %v1018 = vunpack.c.l.b16 %v341
      %v1019 = vunpack.c.h.b16 %v341
      %v1020 = vunpack.c.l.b16 %v342
      %v1021 = vunpack.c.h.b16 %v342
      %v1022 = vunpack.c.l.b16 %v343
      %v1023 = vunpack.c.h.b16 %v343
      %v1024 = vunpack.c.l.b16 %v344
      %v1025 = vunpack.c.h.b16 %v344
      %v1026 = vunpack.c.l.b16 %v345
      %v1027 = vunpack.c.h.b16 %v345
      %v1028 = vunpack.c.l.b16 %v346
      %v1029 = vunpack.c.h.b16 %v346
      %v1030 = vunpack.c.l.b16 %v347
      %v1031 = vunpack.c.h.b16 %v347
      %v1032 = vunpack.c.l.b16 %v348
      %v1033 = vunpack.c.h.b16 %v348
      %v1034 = vunpack.c.l.b16 %v349
      %v1035 = vunpack.c.h.b16 %v349
      %v1036 = vunpack.c.l.b16 %v350
      %v1037 = vunpack.c.h.b16 %v350
      %v1038 = vunpack.c.l.b16 %v351
      %v1039 = vunpack.c.h.b16 %v351
      %v1040 = vunpack.c.l.b16 %v352
      %v1041 = vunpack.c.h.b16 %v352
      %v1042 = vunpack.c.l.b16 %v353
      %v1043 = vunpack.c.h.b16 %v353
      %v1044 = vunpack.c.l.b16 %v354
      %v1045 = vunpack.c.h.b16 %v354
      %v1046 = vunpack.c.l.b16 %v355
      %v1047 = vunpack.c.h.b16 %v355
      %v1048 = vunpack.c.l.b16 %v356
      %v1049 = vunpack.c.h.b16 %v356
      %v1050 = vunpack.c.l.b16 %v357
      %v1051 = vunpack.c.h.b16 %v357
      %v1052 = vunpack.c.l.b16 %v358
      %v1053 = vunpack.c.h.b16 %v358
      %v1054 = vunpack.c.l.b16 %v359
      %v1055 = vunpack.c.h.b16 %v359
      %v1056 = vunpack.c.l.b16 %v360
      %v1057 = vunpack.c.h.b16 %v360
      %v1058 = vunpack.c.l.b16 %v361
      %v1059 = vunpack.c.h.b16 %v361
      %v1060 = vunpack.c.l.b16 %v362
      %v1061 = vunpack.c.h.b16 %v362
      %v1062 = vunpack.c.l.b16 %v363
      %v1063 = vunpack.c.h.b16 %v363
      %v1064 = vunpack.c.l.b16 %v364
      %v1065 = vunpack.c.h.b16 %v364
      %v1066 = vunpack.c.l.b16 %v365
      %v1067 = vunpack.c.h.b16 %v365
      %v1068 = vunpack.c.l.b16 %v366
      %v1069 = vunpack.c.h.b16 %v366
      %v1070 = vunpack.c.l.b16 %v367
      %v1071 = vunpack.c.h.b16 %v367
      %v1072 = vunpack.c.l.b16 %v368
      %v1073 = vunpack.c.h.b16 %v368
      %v1074 = vunpack.c.l.b16 %v369
      %v1075 = vunpack.c.h.b16 %v369
      %v1076 = vunpack.c.l.b16 %v370
      %v1077 = vunpack.c.h.b16 %v370
      %v1078 = vunpack.c.l.b16 %v371
      %v1079 = vunpack.c.h.b16 %v371
      %v1080 = vunpack.c.l.b16 %v372
      %v1081 = vunpack.c.h.b16 %v372
      %v1082 = vunpack.c.l.b16 %v373
      %v1083 = vunpack.c.h.b16 %v373
      %v1084 = vunpack.c.l.b16 %v374
      %v1085 = vunpack.c.h.b16 %v374
      %v1086 = vunpack.c.l.b16 %v375
      %v1087 = vunpack.c.h.b16 %v375
      %v1088 = vunpack.c.l.b16 %v376
      %v1089 = vunpack.c.h.b16 %v376
      %v1090 = vunpack.c.l.b16 %v377
      %v1091 = vunpack.c.h.b16 %v377
      %v1092 = vunpack.c.l.b16 %v378
      %v1093 = vunpack.c.h.b16 %v378
      %v1094 = vunpack.c.l.b16 %v379
      %v1095 = vunpack.c.h.b16 %v379
      %v1096 = vunpack.c.l.b16 %v380
      %v1097 = vunpack.c.h.b16 %v380
      %v1098 = vunpack.c.l.b16 %v381
      %v1099 = vunpack.c.h.b16 %v381
      %v1100 = vunpack.c.l.b16 %v382
      %v1101 = vunpack.c.h.b16 %v382
      %v1102 = vunpack.c.l.b16 %v383
      %v1103 = vunpack.c.h.b16 %v383
      %v1104 = vunpack.c.l.b16 %v384
      %v1105 = vunpack.c.h.b16 %v384
      %v1106 = vunpack.c.l.b16 %v385
      %v1107 = vunpack.c.h.b16 %v385
      %v1108 = vunpack.c.l.b16 %v386
      %v1109 = vunpack.c.h.b16 %v386
      %v1110 = vunpack.c.l.b16 %v387
      %v1111 = vunpack.c.h.b16 %v387
      %v1112 = vunpack.c.l.b16 %v388
      %v1113 = vunpack.c.h.b16 %v388
      %v1114 = vunpack.c.l.b16 %v389
      %v1115 = vunpack.c.h.b16 %v389
      %v1116 = vunpack.c.l.b16 %v390
      %v1117 = vunpack.c.h.b16 %v390
      %v1118 = vunpack.c.l.b16 %v391
      %v1119 = vunpack.c.h.b16 %v391
      %v1120 = vunpack.c.l.b16 %v392
      %v1121 = vunpack.c.h.b16 %v392
      %v1122 = vunpack.c.l.b16 %v393
      %v1123 = vunpack.c.h.b16 %v393
      %v1124 = vunpack.c.l.b16 %v394
      %v1125 = vunpack.c.h.b16 %v394
      %v1126 = vunpack.c.l.b16 %v395
      %v1127 = vunpack.c.h.b16 %v395
      %v1128 = vunpack.c.l.b16 %v396
      %v1129 = vunpack.c.h.b16 %v396
      %v1130 = vunpack.c.l.b16 %v397
      %v1131 = vunpack.c.h.b16 %v397
      %v1132 = vunpack.c.l.b16 %v398
      %v1133 = vunpack.c.h.b16 %v398
      %v1134 = vunpack.c.l.b16 %v399
      %v1135 = vunpack.c.h.b16 %v399
      %v1136 = vunpack.c.l.b16 %v400
      %v1137 = vunpack.c.h.b16 %v400
      %v1138 = vunpack.c.l.b16 %v401
      %v1139 = vunpack.c.h.b16 %v401
      %v1140 = vunpack.c.l.b16 %v402
      %v1141 = vunpack.c.h.b16 %v402
      %v1142 = vunpack.c.l.b16 %v403
      %v1143 = vunpack.c.h.b16 %v403
      %v1144 = vunpack.c.l.b16 %v404
      %v1145 = vunpack.c.h.b16 %v404
      %v1146 = vunpack.c.l.b16 %v405
      %v1147 = vunpack.c.h.b16 %v405
      %v1148 = vunpack.c.l.b16 %v406
      %v1149 = vunpack.c.h.b16 %v406
      %v1150 = vunpack.c.l.b16 %v407
      %v1151 = vunpack.c.h.b16 %v407
      %v1152 = vunpack.c.l.b16 %v408
      %v1153 = vunpack.c.h.b16 %v408
      %v1154 = vunpack.c.l.b16 %v409
      %v1155 = vunpack.c.h.b16 %v409
      %v1156 = vunpack.c.l.b16 %v410
      %v1157 = vunpack.c.h.b16 %v410
      %v1158 = vunpack.c.l.b16 %v411
      %v1159 = vunpack.c.h.b16 %v411
      %v1160 = vunpack.c.l.b16 %v412
      %v1161 = vunpack.c.h.b16 %v412
      %v1162 = vunpack.c.l.b16 %v413
      %v1163 = vunpack.c.h.b16 %v413
      %v1164 = vunpack.c.l.b16 %v414
      %v1165 = vunpack.c.h.b16 %v414
      %v1166 = vunpack.c.l.b16 %v415
      %v1167 = vunpack.c.h.b16 %v415
      %v1168 = vunpack.c.l.b16 %v416
      %v1169 = vunpack.c.h.b16 %v416
      %v1170 = vunpack.c.l.b16 %v417
      %v1171 = vunpack.c.h.b16 %v417
      %v1172 = vunpack.c.l.b16 %v418
      %v1173 = vunpack.c.h.b16 %v418
      %v1174 = vunpack.c.l.b16 %v419
      %v1175 = vunpack.c.h.b16 %v419
      %v1176 = vunpack.c.l.b16 %v420
      %v1177 = vunpack.c.h.b16 %v420
      %v1178 = vunpack.c.l.b16 %v421
      %v1179 = vunpack.c.h.b16 %v421
      %v1180 = vunpack.c.l.b16 %v422
      %v1181 = vunpack.c.h.b16 %v422
      %v1182 = vunpack.c.l.b16 %v423
      %v1183 = vunpack.c.h.b16 %v423
      %v1184 = vunpack.c.l.b16 %v424
      %v1185 = vunpack.c.h.b16 %v424
      %v1186 = vunpack.c.l.b16 %v425
      %v1187 = vunpack.c.h.b16 %v425
      %v1188 = vunpack.c.l.b16 %v426
      %v1189 = vunpack.c.h.b16 %v426
      %v1190 = vunpack.c.l.b16 %v427
      %v1191 = vunpack.c.h.b16 %v427
      %v1192 = vunpack.c.l.b16 %v428
      %v1193 = vunpack.c.h.b16 %v428
      %v1194 = vunpack.c.l.b16 %v429
      %v1195 = vunpack.c.h.b16 %v429
      %v1196 = vunpack.c.l.b16 %v430
      %v1197 = vunpack.c.h.b16 %v430
      %v1198 = vunpack.c.l.b16 %v431
      %v1199 = vunpack.c.h.b16 %v431
      %v1200 = vunpack.c.l.b16 %v432
      %v1201 = vunpack.c.h.b16 %v432
      %v1202 = vunpack.c.l.b16 %v433
      %v1203 = vunpack.c.h.b16 %v433
      %v1204 = vunpack.c.l.b16 %v434
      %v1205 = vunpack.c.h.b16 %v434
      %v1206 = vunpack.c.l.b16 %v435
      %v1207 = vunpack.c.h.b16 %v435
      %v1208 = vunpack.c.l.b16 %v436
      %v1209 = vunpack.c.h.b16 %v436
      %v1210 = vunpack.c.l.b16 %v437
      %v1211 = vunpack.c.h.b16 %v437
      %v1212 = vunpack.c.l.b16 %v438
      %v1213 = vunpack.c.h.b16 %v438
      %v1214 = vunpack.c.l.b16 %v439
      %v1215 = vunpack.c.h.b16 %v439
      %v1216 = vunpack.c.l.b16 %v440
      %v1217 = vunpack.c.h.b16 %v440
      %v1218 = vunpack.c.l.b16 %v441
      %v1219 = vunpack.c.h.b16 %v441
      %v1220 = vunpack.c.l.b16 %v442
      %v1221 = vunpack.c.h.b16 %v442
      %v1222 = vunpack.c.l.b16 %v443
      %v1223 = vunpack.c.h.b16 %v443
      %v1224 = vunpack.c.l.b16 %v444
      %v1225 = vunpack.c.h.b16 %v444
      %v1226 = vunpack.c.l.b16 %v445
      %v1227 = vunpack.c.h.b16 %v445
      %v1228 = vunpack.c.l.b16 %v446
      %v1229 = vunpack.c.h.b16 %v446
      %v1230 = vunpack.c.l.b16 %v447
      %v1231 = vunpack.c.h.b16 %v447
      %v1232 = vunpack.c.l.b16 %v448
      %v1233 = vunpack.c.h.b16 %v448
      %v1234 = vunpack.c.l.b16 %v449
      %v1235 = vunpack.c.h.b16 %v449
      %v1236 = vunpack.c.l.b16 %v450
      %v1237 = vunpack.c.h.b16 %v450
      %v1238 = vunpack.c.l.b16 %v451
      %v1239 = vunpack.c.h.b16 %v451
      %v1240 = vunpack.c.l.b16 %v452
      %v1241 = vunpack.c.h.b16 %v452
      %v1242 = vunpack.c.l.b16 %v453
      %v1243 = vunpack.c.h.b16 %v453
      %v1244 = vunpack.c.l.b16 %v454
      %v1245 = vunpack.c.h.b16 %v454
      %v1246 = vunpack.c.l.b16 %v455
      %v1247 = vunpack.c.h.b16 %v455
      %v1248 = vunpack.c.l.b16 %v456
      %v1249 = vunpack.c.h.b16 %v456
      %v1250 = vunpack.c.l.b16 %v457
      %v1251 = vunpack.c.h.b16 %v457
      %v1252 = vunpack.c.l.b16 %v458
      %v1253 = vunpack.c.h.b16 %v458
      %v1254 = vunpack.c.l.b16 %v459
      %v1255 = vunpack.c.h.b16 %v459
      %v1256 = vunpack.c.l.b16 %v460
      %v1257 = vunpack.c.h.b16 %v460
      %v1258 = vunpack.c.l.b16 %v461
      %v1259 = vunpack.c.h.b16 %v461
      %v1260 = vunpack.c.l.b16 %v462
      %v1261 = vunpack.c.h.b16 %v462
      %v1262 = vunpack.c.l.b16 %v463
      %v1263 = vunpack.c.h.b16 %v463
      %v1264 = vunpack.c.l.b16 %v464
      %v1265 = vunpack.c.h.b16 %v464
      %v1266 = vunpack.c.l.b16 %v465
      %v1267 = vunpack.c.h.b16 %v465
      %v1268 = vunpack.c.l.b16 %v466
      %v1269 = vunpack.c.h.b16 %v466
      %v1270 = vunpack.c.l.b16 %v467
      %v1271 = vunpack.c.h.b16 %v467
      %v1272 = vunpack.c.l.b16 %v468
      %v1273 = vunpack.c.h.b16 %v468
      %v1274 = vunpack.c.l.b16 %v469
      %v1275 = vunpack.c.h.b16 %v469
      %v1276 = vunpack.c.l.b16 %v470
      %v1277 = vunpack.c.h.b16 %v470
      %v1278 = vunpack.c.l.b16 %v471
      %v1279 = vunpack.c.h.b16 %v471
      %v1280 = vunpack.c.l.b16 %v472
      %v1281 = vunpack.c.h.b16 %v472
      %v1282 = vunpack.c.l.b16 %v473
      %v1283 = vunpack.c.h.b16 %v473
      %v1284 = vunpack.c.l.b16 %v474
      %v1285 = vunpack.c.h.b16 %v474
      %v1286 = vunpack.c.l.b16 %v475
      %v1287 = vunpack.c.h.b16 %v475
      %v1288 = vunpack.c.l.b16 %v476
      %v1289 = vunpack.c.h.b16 %v476
      %v1290 = vunpack.c.l.b16 %v477
      %v1291 = vunpack.c.h.b16 %v477
      %v1292 = vunpack.c.l.b16 %v478
      %v1293 = vunpack.c.h.b16 %v478
      %v1294 = vunpack.c.l.b16 %v479
      %v1295 = vunpack.c.h.b16 %v479
      %v1296 = vunpack.c.l.b16 %v480
      %v1297 = vunpack.c.h.b16 %v480
      %v1298 = vunpack.c.l.b16 %v481
      %v1299 = vunpack.c.h.b16 %v481
      %v1300 = vunpack.c.l.b16 %v482
      %v1301 = vunpack.c.h.b16 %v482
      %v1302 = vunpack.c.l.b16 %v483
      %v1303 = vunpack.c.h.b16 %v483
      %v1304 = vunpack.c.l.b16 %v484
      %v1305 = vunpack.c.h.b16 %v484
      %v1306 = vunpack.c.l.b16 %v485
      %v1307 = vunpack.c.h.b16 %v485
      %v1308 = vunpack.c.l.b16 %v486
      %v1309 = vunpack.c.h.b16 %v486
      %v1310 = vunpack.c.l.b16 %v487
      %v1311 = vunpack.c.h.b16 %v487
      %v1312 = vunpack.c.l.b16 %v488
      %v1313 = vunpack.c.h.b16 %v488
      %v1314 = vunpack.c.l.b16 %v489
      %v1315 = vunpack.c.h.b16 %v489
      %v1316 = vunpack.c.l.b16 %v490
      %v1317 = vunpack.c.h.b16 %v490
      %v1318 = vunpack.c.l.b16 %v491
      %v1319 = vunpack.c.h.b16 %v491
      %v1320 = vunpack.c.l.b16 %v492
      %v1321 = vunpack.c.h.b16 %v492
      %v1322 = vunpack.c.l.b16 %v493
      %v1323 = vunpack.c.h.b16 %v493
      %v1324 = vunpack.c.l.b16 %v494
      %v1325 = vunpack.c.h.b16 %v494
      %v1326 = vunpack.c.l.b16 %v495
      %v1327 = vunpack.c.h.b16 %v495
      %v1328 = vunpack.c.l.b16 %v496
      %v1329 = vunpack.c.h.b16 %v496
      %v1330 = vunpack.c.l.b16 %v497
      %v1331 = vunpack.c.h.b16 %v497
      %v1332 = vunpack.c.l.b16 %v498
      %v1333 = vunpack.c.h.b16 %v498
      %v1334 = vunpack.c.l.b16 %v499
      %v1335 = vunpack.c.h.b16 %v499
      %v1336 = vunpack.c.l.b16 %v500
      %v1337 = vunpack.c.h.b16 %v500
      %v1338 = vunpack.c.l.b16 %v501
      %v1339 = vunpack.c.h.b16 %v501
      %v1340 = vunpack.c.l.b16 %v502
      %v1341 = vunpack.c.h.b16 %v502
      %v1342 = vunpack.c.l.b16 %v503
      %v1343 = vunpack.c.h.b16 %v503
      %v1344 = vunpack.c.l.b16 %v504
      %v1345 = vunpack.c.h.b16 %v504
      %v1346 = vunpack.c.l.b16 %v505
      %v1347 = vunpack.c.h.b16 %v505
      %v1348 = vunpack.c.l.b16 %v506
      %v1349 = vunpack.c.h.b16 %v506
      %v1350 = vunpack.c.l.b16 %v507
      %v1351 = vunpack.c.h.b16 %v507
      %v1352 = vunpack.c.l.b16 %v508
      %v1353 = vunpack.c.h.b16 %v508
      %v1354 = vunpack.c.l.b16 %v509
      %v1355 = vunpack.c.h.b16 %v509
      %v1356 = vunpack.c.l.b16 %v510
      %v1357 = vunpack.c.h.b16 %v510
      %v1358 = vunpack.c.l.b16 %v511
      %v1359 = vunpack.c.h.b16 %v511
      %v1360 = vunpack.c.l.b16 %v512
      %v1361 = vunpack.c.h.b16 %v512
      %v1362 = vunpack.c.l.b16 %v513
      %v1363 = vunpack.c.h.b16 %v513
      %v1364 = vunpack.c.l.b16 %v514
      %v1365 = vunpack.c.h.b16 %v514
      %v1366 = vunpack.c.l.b16 %v515
      %v1367 = vunpack.c.h.b16 %v515
      %v1368 = vunpack.c.l.b16 %v516
      %v1369 = vunpack.c.h.b16 %v516
      %v1370 = vunpack.c.l.b16 %v517
      %v1371 = vunpack.c.h.b16 %v517
      %v1372 = vunpack.c.l.b16 %v518
      %v1373 = vunpack.c.h.b16 %v518
      %v1374 = vunpack.c.l.b16 %v519
      %v1375 = vunpack.c.h.b16 %v519
      %v1376 = vunpack.c.l.b16 %v520
      %v1377 = vunpack.c.h.b16 %v520
      %v1378 = vunpack.c.l.b16 %v521
      %v1379 = vunpack.c.h.b16 %v521
      %v1380 = vunpack.c.l.b16 %v522
      %v1381 = vunpack.c.h.b16 %v522
      %v1382 = vunpack.c.l.b16 %v523
      %v1383 = vunpack.c.h.b16 %v523
      %v1384 = vunpack.c.l.b16 %v524
      %v1385 = vunpack.c.h.b16 %v524
      %v1386 = vunpack.c.l.b16 %v525
      %v1387 = vunpack.c.h.b16 %v525
      %v1388 = vunpack.c.l.b16 %v526
      %v1389 = vunpack.c.h.b16 %v526
      %v1390 = vunpack.c.l.b16 %v527
      %v1391 = vunpack.c.h.b16 %v527
      %v1392 = vunpack.c.l.b16 %v528
      %v1393 = vunpack.c.h.b16 %v528
      %v1394 = vunpack.c.l.b16 %v529
      %v1395 = vunpack.c.h.b16 %v529
      %v1396 = vunpack.c.l.b16 %v530
      %v1397 = vunpack.c.h.b16 %v530
      %v1398 = vunpack.c.l.b16 %v531
      %v1399 = vunpack.c.h.b16 %v531
      %v1400 = vunpack.c.l.b16 %v532
      %v1401 = vunpack.c.h.b16 %v532
      %v1402 = vunpack.c.l.b16 %v533
      %v1403 = vunpack.c.h.b16 %v533
      %v1404 = vunpack.c.l.b16 %v534
      %v1405 = vunpack.c.h.b16 %v534
      %v1406 = vunpack.c.l.b16 %v535
      %v1407 = vunpack.c.h.b16 %v535
      %v1408 = vunpack.c.l.b16 %v536
      %v1409 = vunpack.c.h.b16 %v536
      %v1410 = vunpack.c.l.b16 %v537
      %v1411 = vunpack.c.h.b16 %v537
      %v1412 = vunpack.c.l.b16 %v538
      %v1413 = vunpack.c.h.b16 %v538
      %v1414 = vunpack.c.l.b16 %v539
      %v1415 = vunpack.c.h.b16 %v539
      %v1416 = vunpack.c.l.b16 %v540
      %v1417 = vunpack.c.h.b16 %v540
      %v1418 = vunpack.c.l.b16 %v541
      %v1419 = vunpack.c.h.b16 %v541
      %v1420 = vunpack.c.l.b16 %v542
      %v1421 = vunpack.c.h.b16 %v542
      %v1422 = vunpack.c.l.b16 %v543
      %v1423 = vunpack.c.h.b16 %v543
      %v1424 = vunpack.c.l.b16 %v544
      %v1425 = vunpack.c.h.b16 %v544
      %v1426 = vunpack.c.l.b16 %v545
      %v1427 = vunpack.c.h.b16 %v545
      %v1428 = vunpack.c.l.b16 %v546
      %v1429 = vunpack.c.h.b16 %v546
      %v1430 = vunpack.c.l.b16 %v547
      %v1431 = vunpack.c.h.b16 %v547
      %v1432 = vunpack.c.l.b16 %v548
      %v1433 = vunpack.c.h.b16 %v548
      %v1434 = vunpack.c.l.b16 %v549
      %v1435 = vunpack.c.h.b16 %v549
      %v1436 = vunpack.c.l.b16 %v550
      %v1437 = vunpack.c.h.b16 %v550
      %v1438 = vunpack.c.l.b16 %v551
      %v1439 = vunpack.c.h.b16 %v551
      %v1440 = vunpack.c.l.b16 %v552
      %v1441 = vunpack.c.h.b16 %v552
      %v1442 = vunpack.c.l.b16 %v553
      %v1443 = vunpack.c.h.b16 %v553
      %v1444 = vunpack.c.l.b16 %v554
      %v1445 = vunpack.c.h.b16 %v554
      %v1446 = vunpack.c.l.b16 %v555
      %v1447 = vunpack.c.h.b16 %v555
      %v1448 = vunpack.c.l.b16 %v556
      %v1449 = vunpack.c.h.b16 %v556
      %v1450 = vunpack.c.l.b16 %v557
      %v1451 = vunpack.c.h.b16 %v557
      %v1452 = vunpack.c.l.b16 %v558
      %v1453 = vunpack.c.h.b16 %v558
      %v1454 = vunpack.c.l.b16 %v559
      %v1455 = vunpack.c.h.b16 %v559
      %v1456 = vunpack.c.l.b16 %v560
      %v1457 = vunpack.c.h.b16 %v560
      %v1458 = vunpack.c.l.b16 %v561
      %v1459 = vunpack.c.h.b16 %v561
      %v1460 = vunpack.c.l.b16 %v562
      %v1461 = vunpack.c.h.b16 %v562
      %v1462 = vunpack.c.l.b16 %v563
      %v1463 = vunpack.c.h.b16 %v563
      %v1464 = vunpack.c.l.b16 %v564
      %v1465 = vunpack.c.h.b16 %v564
      %v1466 = vunpack.c.l.b16 %v565
      %v1467 = vunpack.c.h.b16 %v565
      %v1468 = vunpack.c.l.b16 %v566
      %v1469 = vunpack.c.h.b16 %v566
      %v1470 = vunpack.c.l.b16 %v567
      %v1471 = vunpack.c.h.b16 %v567
      %v1472 = vunpack.c.l.b16 %v568
      %v1473 = vunpack.c.h.b16 %v568
      %v1474 = vunpack.c.l.b16 %v569
      %v1475 = vunpack.c.h.b16 %v569
      %v1476 = vunpack.c.l.b16 %v570
      %v1477 = vunpack.c.h.b16 %v570
      %v1478 = vunpack.c.l.b16 %v571
      %v1479 = vunpack.c.h.b16 %v571
      %v1480 = vunpack.c.l.b16 %v572
      %v1481 = vunpack.c.h.b16 %v572
      %v1482 = vunpack.c.l.b16 %v573
      %v1483 = vunpack.c.h.b16 %v573
      %v1484 = vunpack.c.l.b16 %v574
      %v1485 = vunpack.c.h.b16 %v574
      %v1486 = vunpack.c.l.b16 %v575
      %v1487 = vunpack.c.h.b16 %v575
      %v1488 = vunpack.c.l.b16 %v576
      %v1489 = vunpack.c.h.b16 %v576
      %v1490 = vunpack.c.l.b16 %v577
      %v1491 = vunpack.c.h.b16 %v577
      %v1492 = vunpack.c.l.b16 %v578
      %v1493 = vunpack.c.h.b16 %v578
      %v1494 = vunpack.c.l.b16 %v579
      %v1495 = vunpack.c.h.b16 %v579
      %v1496 = vunpack.c.l.b16 %v580
      %v1497 = vunpack.c.h.b16 %v580
      %v1498 = vunpack.c.l.b16 %v581
      %v1499 = vunpack.c.h.b16 %v581
      %v1500 = vunpack.c.l.b16 %v582
      %v1501 = vunpack.c.h.b16 %v582
      %v1502 = vunpack.c.l.b16 %v583
      %v1503 = vunpack.c.h.b16 %v583
      %v1504 = vunpack.c.l.b16 %v584
      %v1505 = vunpack.c.h.b16 %v584
      %v1506 = vunpack.c.l.b16 %v585
      %v1507 = vunpack.c.h.b16 %v585
      %v1508 = vunpack.c.l.b16 %v586
      %v1509 = vunpack.c.h.b16 %v586
      %v1510 = vunpack.c.l.b16 %v587
      %v1511 = vunpack.c.h.b16 %v587
      %v1512 = vunpack.c.l.b16 %v588
      %v1513 = vunpack.c.h.b16 %v588
      %v1514 = vunpack.c.l.b16 %v589
      %v1515 = vunpack.c.h.b16 %v589
      %v1516 = vunpack.c.l.b16 %v590
      %v1517 = vunpack.c.h.b16 %v590
      %v1518 = vunpack.c.l.b16 %v591
      %v1519 = vunpack.c.h.b16 %v591
      %v1520 = vpack.c.b16 %v1010, %v1008
      %v1521 = vpack.c.b16 %v1011, %v1009
      %v1522 = vpack.c.b16 %v1014, %v1012
      %v1523 = vpack.c.b16 %v1015, %v1013
      %v1524 = vpack.c.b16 %v1018, %v1016
      %v1525 = vpack.c.b16 %v1019, %v1017
      %v1526 = vpack.c.b16 %v1022, %v1020
      %v1527 = vpack.c.b16 %v1023, %v1021
      %v1528 = vpack.c.b16 %v1026, %v1024
      %v1529 = vpack.c.b16 %v1027, %v1025
      %v1530 = vpack.c.b16 %v1030, %v1028
      %v1531 = vpack.c.b16 %v1031, %v1029
      %v1532 = vpack.c.b16 %v1034, %v1032
      %v1533 = vpack.c.b16 %v1035, %v1033
      %v1534 = vpack.c.b16 %v1038, %v1036
      %v1535 = vpack.c.b16 %v1039, %v1037
      %v1536 = vpack.c.b16 %v1042, %v1040
      %v1537 = vpack.c.b16 %v1043, %v1041
      %v1538 = vpack.c.b16 %v1046, %v1044
      %v1539 = vpack.c.b16 %v1047, %v1045
      %v1540 = vpack.c.b16 %v1050, %v1048
      %v1541 = vpack.c.b16 %v1051, %v1049
      %v1542 = vpack.c.b16 %v1054, %v1052
      %v1543 = vpack.c.b16 %v1055, %v1053
      %v1544 = vpack.c.b16 %v1058, %v1056
      %v1545 = vpack.c.b16 %v1059, %v1057
      %v1546 = vpack.c.b16 %v1062, %v1060
      %v1547 = vpack.c.b16 %v1063, %v1061
      %v1548 = vpack.c.b16 %v1066, %v1064
      %v1549 = vpack.c.b16 %v1067, %v1065
      %v1550 = vpack.c.b16 %v1070, %v1068
      %v1551 = vpack.c.b16 %v1071, %v1069
      %v1552 = vpack.c.b16 %v1074, %v1072
      %v1553 = vpack.c.b16 %v1075, %v1073
      %v1554 = vpack.c.b16 %v1078, %v1076
      %v1555 = vpack.c.b16 %v1079, %v1077
      %v1556 = vpack.c.b16 %v1082, %v1080
      %v1557 = vpack.c.b16 %v1083, %v1081
      %v1558 = vpack.c.b16 %v1086, %v1084
      %v1559 = vpack.c.b16 %v1087, %v1085
      %v1560 = vpack.c.b16 %v1090, %v1088
      %v1561 = vpack.c.b16 %v1091, %v1089
      %v1562 = vpack.c.b16 %v1094, %v1092
      %v1563 = vpack.c.b16 %v1095, %v1093
      %v1564 = vpack.c.b16 %v1098, %v1096
      %v1565 = vpack.c.b16 %v1099, %v1097
      %v1566 = vpack.c.b16 %v1102, %v1100
      %v1567 = vpack.c.b16 %v1103, %v1101
      %v1568 = vpack.c.b16 %v1106, %v1104
      %v1569 = vpack.c.b16 %v1107, %v1105
      %v1570 = vpack.c.b16 %v1110, %v1108
      %v1571 = vpack.c.b16 %v1111, %v1109
      %v1572 = vpack.c.b16 %v1114, %v1112
      %v1573 = vpack.c.b16 %v1115, %v1113
      %v1574 = vpack.c.b16 %v1118, %v1116
      %v1575 = vpack.c.b16 %v1119, %v1117
      %v1576 = vpack.c.b16 %v1122, %v1120
      %v1577 = vpack.c.b16 %v1123, %v1121
      %v1578 = vpack.c.b16 %v1126, %v1124
      %v1579 = vpack.c.b16 %v1127, %v1125
      %v1580 = vpack.c.b16 %v1130, %v1128
      %v1581 = vpack.c.b16 %v1131, %v1129
      %v1582 = vpack.c.b16 %v1134, %v1132
      %v1583 = vpack.c.b16 %v1135, %v1133
      %v1584 = vpack.c.b16 %v1138, %v1136
      %v1585 = vpack.c.b16 %v1139, %v1137
      %v1586 = vpack.c.b16 %v1142, %v1140
      %v1587 = vpack.c.b16 %v1143, %v1141
      %v1588 = vpack.c.b16 %v1146, %v1144
      %v1589 = vpack.c.b16 %v1147, %v1145
      %v1590 = vpack.c.b16 %v1150, %v1148
      %v1591 = vpack.c.b16 %v1151, %v1149
      %v1592 = vpack.c.b16 %v1154, %v1152
      %v1593 = vpack.c.b16 %v1155, %v1153
      %v1594 = vpack.c.b16 %v1158, %v1156
      %v1595 = vpack.c.b16 %v1159, %v1157
      %v1596 = vpack.c.b16 %v1162, %v1160
      %v1597 = vpack.c.b16 %v1163, %v1161
      %v1598 = vpack.c.b16 %v1166, %v1164
      %v1599 = vpack.c.b16 %v1167, %v1165
      %v1600 = vpack.c.b16 %v1170, %v1168
      %v1601 = vpack.c.b16 %v1171, %v1169
      %v1602 = vpack.c.b16 %v1174, %v1172
      %v1603 = vpack.c.b16 %v1175, %v1173
      %v1604 = vpack.c.b16 %v1178, %v1176
      %v1605 = vpack.c.b16 %v1179, %v1177
      %v1606 = vpack.c.b16 %v1182, %v1180
      %v1607 = vpack.c.b16 %v1183, %v1181
      %v1608 = vpack.c.b16 %v1186, %v1184
      %v1609 = vpack.c.b16 %v1187, %v1185
      %v1610 = vpack.c.b16 %v1190, %v1188
      %v1611 = vpack.c.b16 %v1191, %v1189
      %v1612 = vpack.c.b16 %v1194, %v1192
      %v1613 = vpack.c.b16 %v1195, %v1193
      %v1614 = vpack.c.b16 %v1198, %v1196
      %v1615 = vpack.c.b16 %v1199, %v1197
      %v1616 = vpack.c.b16 %v1202, %v1200
      %v1617 = vpack.c.b16 %v1203, %v1201
      %v1618 = vpack.c.b16 %v1206, %v1204
      %v1619 = vpack.c.b16 %v1207, %v1205
      %v1620 = vpack.c.b16 %v1210, %v1208
      %v1621 = vpack.c.b16 %v1211, %v1209
      %v1622 = vpack.c.b16 %v1214, %v1212
      %v1623 = vpack.c.b16 %v1215, %v1213
      %v1624 = vpack.c.b16 %v1218, %v1216
      %v1625 = vpack.c.b16 %v1219, %v1217
      %v1626 = vpack.c.b16 %v1222, %v1220
      %v1627 = vpack.c.b16 %v1223, %v1221
      %v1628 = vpack.c.b16 %v1226, %v1224
      %v1629 = vpack.c.b16 %v1227, %v1225
      %v1630 = vpack.c.b16 %v1230, %v1228
      %v1631 = vpack.c.b16 %v1231, %v1229
      %v1632 = vpack.c.b16 %v1234, %v1232
      %v1633 = vpack.c.b16 %v1235, %v1233
      %v1634 = vpack.c.b16 %v1238, %v1236
      %v1635 = vpack.c.b16 %v1239, %v1237
      %v1636 = vpack.c.b16 %v1242, %v1240
      %v1637 = vpack.c.b16 %v1243, %v1241
      %v1638 = vpack.c.b16 %v1246, %v1244
      %v1639 = vpack.c.b16 %v1247, %v1245
      %v1640 = vpack.c.b16 %v1250, %v1248
      %v1641 = vpack.c.b16 %v1251, %v1249
      %v1642 = vpack.c.b16 %v1254, %v1252
      %v1643 = vpack.c.b16 %v1255, %v1253
      %v1644 = vpack.c.b16 %v1258, %v1256
      %v1645 = vpack.c.b16 %v1259, %v1257
      %v1646 = vpack.c.b16 %v1262, %v1260
      %v1647 = vpack.c.b16 %v1263, %v1261
      %v1648 = vpack.c.b16 %v1266, %v1264
      %v1649 = vpack.c.b16 %v1267, %v1265
      %v1650 = vpack.c.b16 %v1270, %v1268
      %v1651 = vpack.c.b16 %v1271, %v1269
      %v1652 = vpack.c.b16 %v1274, %v1272
      %v1653 = vpack.c.b16 %v1275, %v1273
      %v1654 = vpack.c.b16 %v1278, %v1276
      %v1655 = vpack.c.b16 %v1279, %v1277
      %v1656 = vpack.c.b16 %v1282, %v1280
      %v1657 = vpack.c.b16 %v1283, %v1281
      %v1658 = vpack.c.b16 %v1286, %v1284
      %v1659 = vpack.c.b16 %v1287, %v1285
      %v1660 = vpack.c.b16 %v1290, %v1288
      %v1661 = vpack.c.b16 %v1291, %v1289
      %v1662 = vpack.c.b16 %v1294, %v1292
      %v1663 = vpack.c.b16 %v1295, %v1293
      %v1664 = vpack.c.b16 %v1298, %v1296
      %v1665 = vpack.c.b16 %v1299, %v1297
      %v1666 = vpack.c.b16 %v1302, %v1300
      %v1667 = vpack.c.b16 %v1303, %v1301
      %v1668 = vpack.c.b16 %v1306, %v1304
      %v1669 = vpack.c.b16 %v1307, %v1305
      %v1670 = vpack.c.b16 %v1310, %v1308
      %v1671 = vpack.c.b16 %v1311, %v1309
      %v1672 = vpack.c.b16 %v1314, %v1312
      %v1673 = vpack.c.b16 %v1315, %v1313
      %v1674 = vpack.c.b16 %v1318, %v1316
      %v1675 = vpack.c.b16 %v1319, %v1317
      %v1676 = vpack.c.b16 %v1322, %v1320
      %v1677 = vpack.c.b16 %v1323, %v1321
      %v1678 = vpack.c.b16 %v1326, %v1324
      %v1679 = vpack.c.b16 %v1327, %v1325
      %v1680 = vpack.c.b16 %v1330, %v1328
      %v1681 = vpack.c.b16 %v1331, %v1329
      %v1682 = vpack.c.b16 %v1334, %v1332
      %v1683 = vpack.c.b16 %v1335, %v1333
      %v1684 = vpack.c.b16 %v1338, %v1336
      %v1685 = vpack.c.b16 %v1339, %v1337
      %v1686 = vpack.c.b16 %v1342, %v1340
      %v1687 = vpack.c.b16 %v1343, %v1341
      %v1688 = vpack.c.b16 %v1346, %v1344
      %v1689 = vpack.c.b16 %v1347, %v1345
      %v1690 = vpack.c.b16 %v1350, %v1348
      %v1691 = vpack.c.b16 %v1351, %v1349
      %v1692 = vpack.c.b16 %v1354, %v1352
      %v1693 = vpack.c.b16 %v1355, %v1353
      %v1694 = vpack.c.b16 %v1358, %v1356
      %v1695 = vpack.c.b16 %v1359, %v1357
      %v1696 = vpack.c.b16 %v1362, %v1360
      %v1697 = vpack.c.b16 %v1363, %v1361
      %v1698 = vpack.c.b16 %v1366, %v1364
      %v1699 = vpack.c.b16 %v1367, %v1365
      %v1700 = vpack.c.b16 %v1370, %v1368
      %v1701 = vpack.c.b16 %v1371, %v1369
      %v1702 = vpack.c.b16 %v1374, %v1372
      %v1703 = vpack.c.b16 %v1375, %v1373
      %v1704 = vpack.c.b16 %v1378, %v1376
      %v1705 = vpack.c.b16 %v1379, %v1377
      %v1706 = vpack.c.b16 %v1382, %v1380
      %v1707 = vpack.c.b16 %v1383, %v1381
      %v1708 = vpack.c.b16 %v1386, %v1384
      %v1709 = vpack.c.b16 %v1387, %v1385
      %v1710 = vpack.c.b16 %v1390, %v1388
      %v1711 = vpack.c.b16 %v1391, %v1389
      %v1712 = vpack.c.b16 %v1394, %v1392
      %v1713 = vpack.c.b16 %v1395, %v1393
      %v1714 = vpack.c.b16 %v1398, %v1396
      %v1715 = vpack.c.b16 %v1399, %v1397
      %v1716 = vpack.c.b16 %v1402, %v1400
      %v1717 = vpack.c.b16 %v1403, %v1401
      %v1718 = vpack.c.b16 %v1406, %v1404
      %v1719 = vpack.c.b16 %v1407, %v1405
      %v1720 = vpack.c.b16 %v1410, %v1408
      %v1721 = vpack.c.b16 %v1411, %v1409
      %v1722 = vpack.c.b16 %v1414, %v1412
      %v1723 = vpack.c.b16 %v1415, %v1413
      %v1724 = vpack.c.b16 %v1418, %v1416
      %v1725 = vpack.c.b16 %v1419, %v1417
      %v1726 = vpack.c.b16 %v1422, %v1420
      %v1727 = vpack.c.b16 %v1423, %v1421
      %v1728 = vpack.c.b16 %v1426, %v1424
      %v1729 = vpack.c.b16 %v1427, %v1425
      %v1730 = vpack.c.b16 %v1430, %v1428
      %v1731 = vpack.c.b16 %v1431, %v1429
      %v1732 = vpack.c.b16 %v1434, %v1432
      %v1733 = vpack.c.b16 %v1435, %v1433
      %v1734 = vpack.c.b16 %v1438, %v1436
      %v1735 = vpack.c.b16 %v1439, %v1437
      %v1736 = vpack.c.b16 %v1442, %v1440
      %v1737 = vpack.c.b16 %v1443, %v1441
      %v1738 = vpack.c.b16 %v1446, %v1444
      %v1739 = vpack.c.b16 %v1447, %v1445
      %v1740 = vpack.c.b16 %v1450, %v1448
      %v1741 = vpack.c.b16 %v1451, %v1449
      %v1742 = vpack.c.b16 %v1454, %v1452
      %v1743 = vpack.c.b16 %v1455, %v1453
      %v1744 = vpack.c.b16 %v1458, %v1456
      %v1745 = vpack.c.b16 %v1459, %v1457
      %v1746 = vpack.c.b16 %v1462, %v1460
      %v1747 = vpack.c.b16 %v1463, %v1461
      %v1748 = vpack.c.b16 %v1466, %v1464
      %v1749 = vpack.c.b16 %v1467, %v1465
      %v1750 = vpack.c.b16 %v1470, %v1468
      %v1751 = vpack.c.b16 %v1471, %v1469
      %v1752 = vpack.c.b16 %v1474, %v1472
      %v1753 = vpack.c.b16 %v1475, %v1473
      %v1754 = vpack.c.b16 %v1478, %v1476
      %v1755 = vpack.c.b16 %v1479, %v1477
      %v1756 = vpack.c.b16 %v1482, %v1480
      %v1757 = vpack.c.b16 %v1483, %v1481
      %v1758 = vpack.c.b16 %v1486, %v1484
      %v1759 = vpack.c.b16 %v1487, %v1485
      %v1760 = vpack.c.b16 %v1490, %v1488
      %v1761 = vpack.c.b16 %v1491, %v1489
      %v1762 = vpack.c.b16 %v1494, %v1492
      %v1763 = vpack.c.b16 %v1495, %v1493
      %v1764 = vpack.c.b16 %v1498, %v1496
      %v1765 = vpack.c.b16 %v1499, %v1497
      %v1766 = vpack.c.b16 %v1502, %v1500
      %v1767 = vpack.c.b16 %v1503, %v1501
      %v1768 = vpack.c.b16 %v1506, %v1504
      %v1769 = vpack.c.b16 %v1507, %v1505
      %v1770 = vpack.c.b16 %v1510, %v1508
      %v1771 = vpack.c.b16 %v1511, %v1509
      %v1772 = vpack.c.b16 %v1514, %v1512
      %v1773 = vpack.c.b16 %v1515, %v1513
      %v1774 = vpack.c.b16 %v1518, %v1516
      %v1775 = vpack.c.b16 %v1519, %v1517
      %2032 = vmatprep.subr.bf16.mxu0 %v1521
      %2033 = vmatpush1.bf16.msra.mxu0 %v1520
      %2034 = vmatprep.subr.bf16.mxu0 %v1523
      %2035 = vmatpush1.bf16.msra.mxu0 %v1522
      %2036 = vmatprep.subr.bf16.mxu0 %v1525
      %2037 = vmatpush1.bf16.msra.mxu0 %v1524
      %2038 = vmatprep.subr.bf16.mxu0 %v1527
      %2039 = vmatpush1.bf16.msra.mxu0 %v1526
      %2040 = vmatprep.subr.bf16.mxu0 %v1529
      %2041 = vmatpush1.bf16.msra.mxu0 %v1528
      %2042 = vmatprep.subr.bf16.mxu0 %v1531
      %2043 = vmatpush1.bf16.msra.mxu0 %v1530
      %2044 = vmatprep.subr.bf16.mxu0 %v1533
      %2045 = vmatpush1.bf16.msra.mxu0 %v1532
      %2046 = vmatprep.subr.bf16.mxu0 %v1535
      %2047 = vmatpush1.bf16.msra.mxu0 %v1534
      %2048 = vmatprep.subr.bf16.mxu0 %v1537
      %2049 = vmatpush1.bf16.msra.mxu0 %v1536
      %2050 = vmatprep.subr.bf16.mxu0 %v1539
      %2051 = vmatpush1.bf16.msra.mxu0 %v1538
      %2052 = vmatprep.subr.bf16.mxu0 %v1541
      %2053 = vmatpush1.bf16.msra.mxu0 %v1540
      %2054 = vmatprep.subr.bf16.mxu0 %v1543
      %2055 = vmatpush1.bf16.msra.mxu0 %v1542
      %2056 = vmatprep.subr.bf16.mxu0 %v1545
      %2057 = vmatpush1.bf16.msra.mxu0 %v1544
      %2058 = vmatprep.subr.bf16.mxu0 %v1547
      %2059 = vmatpush1.bf16.msra.mxu0 %v1546
      %2060 = vmatprep.subr.bf16.mxu0 %v1549
      %2061 = vmatpush1.bf16.msra.mxu0 %v1548
      %2062 = vmatprep.subr.bf16.mxu0 %v1551
      %2063 = vmatpush1.bf16.msra.mxu0 %v1550
      %2064 = vmatprep.mubr.bf16.mxu0 %v689
      %2065 = vmatmul.mubr.bf16.gmra.mrb[0].mxu0 %v688
      %v2066 = vpop.f32.mrb[0].mxu0
      %v2067 = vadd.f32 0.0, %v2066
      %v2068 = vpop.f32.mrb[0].mxu0
      %v2069 = vadd.f32 0.0, %v2068
      %v2070 = vpop.f32.mrb[0].mxu0
      %v2071 = vadd.f32 0.0, %v2070
      %v2072 = vpop.f32.mrb[0].mxu0
      %v2073 = vadd.f32 0.0, %v2072
      %2074 = vmatprep.mubr.bf16.mxu0 %v705
      %2075 = vmatmul.mubr.bf16.gmra.mrb[0].mxu0 %v704
      %v2076 = vpop.f32.mrb[0].mxu0
      %v2077 = vadd.f32 0.0, %v2076
      %v2078 = vpop.f32.mrb[0].mxu0
      %v2079 = vadd.f32 0.0, %v2078
      %v2080 = vpop.f32.mrb[0].mxu0
      %v2081 = vadd.f32 0.0, %v2080
      %v2082 = vpop.f32.mrb[0].mxu0
      %v2083 = vadd.f32 0.0, %v2082
      %2084 = vdwg.mxu0
      %2085 = vmatprep.subr.bf16.mxu0 %v1553
      %2086 = vmatpush1.bf16.msra.mxu0 %v1552
      %2087 = vmatprep.subr.bf16.mxu0 %v1555
      %2088 = vmatpush1.bf16.msra.mxu0 %v1554
      %2089 = vmatprep.subr.bf16.mxu0 %v1557
      %2090 = vmatpush1.bf16.msra.mxu0 %v1556
      %2091 = vmatprep.subr.bf16.mxu0 %v1559
      %2092 = vmatpush1.bf16.msra.mxu0 %v1558
      %2093 = vmatprep.subr.bf16.mxu0 %v1561
      %2094 = vmatpush1.bf16.msra.mxu0 %v1560
      %2095 = vmatprep.subr.bf16.mxu0 %v1563
      %2096 = vmatpush1.bf16.msra.mxu0 %v1562
      %2097 = vmatprep.subr.bf16.mxu0 %v1565
      %2098 = vmatpush1.bf16.msra.mxu0 %v1564
      %2099 = vmatprep.subr.bf16.mxu0 %v1567
      %2100 = vmatpush1.bf16.msra.mxu0 %v1566
      %2101 = vmatprep.subr.bf16.mxu0 %v1569
      %2102 = vmatpush1.bf16.msra.mxu0 %v1568
      %2103 = vmatprep.subr.bf16.mxu0 %v1571
      %2104 = vmatpush1.bf16.msra.mxu0 %v1570
      %2105 = vmatprep.subr.bf16.mxu0 %v1573
      %2106 = vmatpush1.bf16.msra.mxu0 %v1572
      %2107 = vmatprep.subr.bf16.mxu0 %v1575
      %2108 = vmatpush1.bf16.msra.mxu0 %v1574
      %2109 = vmatprep.subr.bf16.mxu0 %v1577
      %2110 = vmatpush1.bf16.msra.mxu0 %v1576
      %2111 = vmatprep.subr.bf16.mxu0 %v1579
      %2112 = vmatpush1.bf16.msra.mxu0 %v1578
      %2113 = vmatprep.subr.bf16.mxu0 %v1581
      %2114 = vmatpush1.bf16.msra.mxu0 %v1580
      %2115 = vmatprep.subr.bf16.mxu0 %v1583
      %2116 = vmatpush1.bf16.msra.mxu0 %v1582
      %2117 = vmatprep.mubr.bf16.mxu0 %v691
      %2118 = vmatmul.mubr.bf16.gmra.mrb[0].mxu0 %v690
      %v2119 = vpop.f32.mrb[0].mxu0
      %v2120 = vadd.f32 %v2067, %v2119
      %v2121 = vpop.f32.mrb[0].mxu0
      %v2122 = vadd.f32 %v2069, %v2121
      %v2123 = vpop.f32.mrb[0].mxu0
      %v2124 = vadd.f32 %v2071, %v2123
      %v2125 = vpop.f32.mrb[0].mxu0
      %v2126 = vadd.f32 %v2073, %v2125
      %2127 = vmatprep.mubr.bf16.mxu0 %v707
      %2128 = vmatmul.mubr.bf16.gmra.mrb[0].mxu0 %v706
      %v2129 = vpop.f32.mrb[0].mxu0
      %v2130 = vadd.f32 %v2077, %v2129
      %v2131 = vpop.f32.mrb[0].mxu0
      %v2132 = vadd.f32 %v2079, %v2131
      %v2133 = vpop.f32.mrb[0].mxu0
      %v2134 = vadd.f32 %v2081, %v2133
      %v2135 = vpop.f32.mrb[0].mxu0
      %v2136 = vadd.f32 %v2083, %v2135
      %2137 = vdwg.mxu0
      %2138 = vmatprep.subr.bf16.mxu0 %v1585
      %2139 = vmatpush1.bf16.msra.mxu0 %v1584
      %2140 = vmatprep.subr.bf16.mxu0 %v1587
      %2141 = vmatpush1.bf16.msra.mxu0 %v1586
      %2142 = vmatprep.subr.bf16.mxu0 %v1589
      %2143 = vmatpush1.bf16.msra.mxu0 %v1588
      %2144 = vmatprep.subr.bf16.mxu0 %v1591
      %2145 = vmatpush1.bf16.msra.mxu0 %v1590
      %2146 = vmatprep.subr.bf16.mxu0 %v1593
      %2147 = vmatpush1.bf16.msra.mxu0 %v1592
      %2148 = vmatprep.subr.bf16.mxu0 %v1595
      %2149 = vmatpush1.bf16.msra.mxu0 %v1594
      %2150 = vmatprep.subr.bf16.mxu0 %v1597
      %2151 = vmatpush1.bf16.msra.mxu0 %v1596
      %2152 = vmatprep.subr.bf16.mxu0 %v1599
      %2153 = vmatpush1.bf16.msra.mxu0 %v1598
      %2154 = vmatprep.subr.bf16.mxu0 %v1601
      %2155 = vmatpush1.bf16.msra.mxu0 %v1600
      %2156 = vmatprep.subr.bf16.mxu0 %v1603
      %2157 = vmatpush1.bf16.msra.mxu0 %v1602
      %2158 = vmatprep.subr.bf16.mxu0 %v1605
      %2159 = vmatpush1.bf16.msra.mxu0 %v1604
      %2160 = vmatprep.subr.bf16.mxu0 %v1607
      %2161 = vmatpush1.bf16.msra.mxu0 %v1606
      %2162 = vmatprep.subr.bf16.mxu0 %v1609
      %2163 = vmatpush1.bf16.msra.mxu0 %v1608
      %2164 = vmatprep.subr.bf16.mxu0 %v1611
      %2165 = vmatpush1.bf16.msra.mxu0 %v1610
      %2166 = vmatprep.subr.bf16.mxu0 %v1613
      %2167 = vmatpush1.bf16.msra.mxu0 %v1612
      %2168 = vmatprep.subr.bf16.mxu0 %v1615
      %2169 = vmatpush1.bf16.msra.mxu0 %v1614
      %2170 = vmatprep.mubr.bf16.mxu0 %v693
      %2171 = vmatmul.mubr.bf16.gmra.mrb[0].mxu0 %v692
      %v2172 = vpop.f32.mrb[0].mxu0
      %v2173 = vadd.f32 %v2120, %v2172
      %v2174 = vpop.f32.mrb[0].mxu0
      %v2175 = vadd.f32 %v2122, %v2174
      %v2176 = vpop.f32.mrb[0].mxu0
      %v2177 = vadd.f32 %v2124, %v2176
      %v2178 = vpop.f32.mrb[0].mxu0
      %v2179 = vadd.f32 %v2126, %v2178
      %2180 = vmatprep.mubr.bf16.mxu0 %v709
      %2181 = vmatmul.mubr.bf16.gmra.mrb[0].mxu0 %v708
      %v2182 = vpop.f32.mrb[0].mxu0
      %v2183 = vadd.f32 %v2130, %v2182
      %v2184 = vpop.f32.mrb[0].mxu0
      %v2185 = vadd.f32 %v2132, %v2184
      %v2186 = vpop.f32.mrb[0].mxu0
      %v2187 = vadd.f32 %v2134, %v2186
      %v2188 = vpop.f32.mrb[0].mxu0
      %v2189 = vadd.f32 %v2136, %v2188
      %2190 = vdwg.mxu0
      %2191 = vmatprep.subr.bf16.mxu0 %v1617
      %2192 = vmatpush1.bf16.msra.mxu0 %v1616
      %2193 = vmatprep.subr.bf16.mxu0 %v1619
      %2194 = vmatpush1.bf16.msra.mxu0 %v1618
      %2195 = vmatprep.subr.bf16.mxu0 %v1621
      %2196 = vmatpush1.bf16.msra.mxu0 %v1620
      %2197 = vmatprep.subr.bf16.mxu0 %v1623
      %2198 = vmatpush1.bf16.msra.mxu0 %v1622
      %2199 = vmatprep.subr.bf16.mxu0 %v1625
      %2200 = vmatpush1.bf16.msra.mxu0 %v1624
      %2201 = vmatprep.subr.bf16.mxu0 %v1627
      %2202 = vmatpush1.bf16.msra.mxu0 %v1626
      %2203 = vmatprep.subr.bf16.mxu0 %v1629
      %2204 = vmatpush1.bf16.msra.mxu0 %v1628
      %2205 = vmatprep.subr.bf16.mxu0 %v1631
      %2206 = vmatpush1.bf16.msra.mxu0 %v1630
      %2207 = vmatprep.subr.bf16.mxu0 %v1633
      %2208 = vmatpush1.bf16.msra.mxu0 %v1632
      %2209 = vmatprep.subr.bf16.mxu0 %v1635
      %2210 = vmatpush1.bf16.msra.mxu0 %v1634
      %2211 = vmatprep.subr.bf16.mxu0 %v1637
      %2212 = vmatpush1.bf16.msra.mxu0 %v1636
      %2213 = vmatprep.subr.bf16.mxu0 %v1639
      %2214 = vmatpush1.bf16.msra.mxu0 %v1638
      %2215 = vmatprep.subr.bf16.mxu0 %v1641
      %2216 = vmatpush1.bf16.msra.mxu0 %v1640
      %2217 = vmatprep.subr.bf16.mxu0 %v1643
      %2218 = vmatpush1.bf16.msra.mxu0 %v1642
      %2219 = vmatprep.subr.bf16.mxu0 %v1645
      %2220 = vmatpush1.bf16.msra.mxu0 %v1644
      %2221 = vmatprep.subr.bf16.mxu0 %v1647
      %2222 = vmatpush1.bf16.msra.mxu0 %v1646
      %2223 = vmatprep.mubr.bf16.mxu0 %v695
      %2224 = vmatmul.mubr.bf16.gmra.mrb[0].mxu0 %v694
      %v2225 = vpop.f32.mrb[0].mxu0
      %v2226 = vadd.f32 %v2173, %v2225
      %v2227 = vpop.f32.mrb[0].mxu0
      %v2228 = vadd.f32 %v2175, %v2227
      %v2229 = vpop.f32.mrb[0].mxu0
      %v2230 = vadd.f32 %v2177, %v2229
      %v2231 = vpop.f32.mrb[0].mxu0
      %v2232 = vadd.f32 %v2179, %v2231
      %2233 = vmatprep.mubr.bf16.mxu0 %v711
      %2234 = vmatmul.mubr.bf16.gmra.mrb[0].mxu0 %v710
      %v2235 = vpop.f32.mrb[0].mxu0
      %v2236 = vadd.f32 %v2183, %v2235
      %v2237 = vpop.f32.mrb[0].mxu0
      %v2238 = vadd.f32 %v2185, %v2237
      %v2239 = vpop.f32.mrb[0].mxu0
      %v2240 = vadd.f32 %v2187, %v2239
      %v2241 = vpop.f32.mrb[0].mxu0
      %v2242 = vadd.f32 %v2189, %v2241
      %2243 = vdwg.mxu0
      %2244 = vmatprep.subr.bf16.mxu0 %v1649
      %2245 = vmatpush1.bf16.msra.mxu0 %v1648
      %2246 = vmatprep.subr.bf16.mxu0 %v1651
      %2247 = vmatpush1.bf16.msra.mxu0 %v1650
      %2248 = vmatprep.subr.bf16.mxu0 %v1653
      %2249 = vmatpush1.bf16.msra.mxu0 %v1652
      %2250 = vmatprep.subr.bf16.mxu0 %v1655
      %2251 = vmatpush1.bf16.msra.mxu0 %v1654
      %2252 = vmatprep.subr.bf16.mxu0 %v1657
      %2253 = vmatpush1.bf16.msra.mxu0 %v1656
      %2254 = vmatprep.subr.bf16.mxu0 %v1659
      %2255 = vmatpush1.bf16.msra.mxu0 %v1658
      %2256 = vmatprep.subr.bf16.mxu0 %v1661
      %2257 = vmatpush1.bf16.msra.mxu0 %v1660
      %2258 = vmatprep.subr.bf16.mxu0 %v1663
      %2259 = vmatpush1.bf16.msra.mxu0 %v1662
      %2260 = vmatprep.subr.bf16.mxu0 %v1665
      %2261 = vmatpush1.bf16.msra.mxu0 %v1664
      %2262 = vmatprep.subr.bf16.mxu0 %v1667
      %2263 = vmatpush1.bf16.msra.mxu0 %v1666
      %2264 = vmatprep.subr.bf16.mxu0 %v1669
      %2265 = vmatpush1.bf16.msra.mxu0 %v1668
      %2266 = vmatprep.subr.bf16.mxu0 %v1671
      %2267 = vmatpush1.bf16.msra.mxu0 %v1670
      %2268 = vmatprep.subr.bf16.mxu0 %v1673
      %2269 = vmatpush1.bf16.msra.mxu0 %v1672
      %2270 = vmatprep.subr.bf16.mxu0 %v1675
      %2271 = vmatpush1.bf16.msra.mxu0 %v1674
      %2272 = vmatprep.subr.bf16.mxu0 %v1677
      %2273 = vmatpush1.bf16.msra.mxu0 %v1676
      %2274 = vmatprep.subr.bf16.mxu0 %v1679
      %2275 = vmatpush1.bf16.msra.mxu0 %v1678
      %2276 = vmatprep.mubr.bf16.mxu0 %v697
      %2277 = vmatmul.mubr.bf16.gmra.mrb[0].mxu0 %v696
      %v2278 = vpop.f32.mrb[0].mxu0
      %v2279 = vadd.f32 %v2226, %v2278
      %v2280 = vpop.f32.mrb[0].mxu0
      %v2281 = vadd.f32 %v2228, %v2280
      %v2282 = vpop.f32.mrb[0].mxu0
      %v2283 = vadd.f32 %v2230, %v2282
      %v2284 = vpop.f32.mrb[0].mxu0
      %v2285 = vadd.f32 %v2232, %v2284
      %2286 = vmatprep.mubr.bf16.mxu0 %v713
      %2287 = vmatmul.mubr.bf16.gmra.mrb[0].mxu0 %v712
      %v2288 = vpop.f32.mrb[0].mxu0
      %v2289 = vadd.f32 %v2236, %v2288
      %v2290 = vpop.f32.mrb[0].mxu0
      %v2291 = vadd.f32 %v2238, %v2290
      %v2292 = vpop.f32.mrb[0].mxu0
      %v2293 = vadd.f32 %v2240, %v2292
      %v2294 = vpop.f32.mrb[0].mxu0
      %v2295 = vadd.f32 %v2242, %v2294
      %2296 = vdwg.mxu0
      %2297 = vmatprep.subr.bf16.mxu0 %v1681
      %2298 = vmatpush1.bf16.msra.mxu0 %v1680
      %2299 = vmatprep.subr.bf16.mxu0 %v1683
      %2300 = vmatpush1.bf16.msra.mxu0 %v1682
      %2301 = vmatprep.subr.bf16.mxu0 %v1685
      %2302 = vmatpush1.bf16.msra.mxu0 %v1684
      %2303 = vmatprep.subr.bf16.mxu0 %v1687
      %2304 = vmatpush1.bf16.msra.mxu0 %v1686
      %2305 = vmatprep.subr.bf16.mxu0 %v1689
      %2306 = vmatpush1.bf16.msra.mxu0 %v1688
      %2307 = vmatprep.subr.bf16.mxu0 %v1691
      %2308 = vmatpush1.bf16.msra.mxu0 %v1690
      %2309 = vmatprep.subr.bf16.mxu0 %v1693
      %2310 = vmatpush1.bf16.msra.mxu0 %v1692
      %2311 = vmatprep.subr.bf16.mxu0 %v1695
      %2312 = vmatpush1.bf16.msra.mxu0 %v1694
      %2313 = vmatprep.subr.bf16.mxu0 %v1697
      %2314 = vmatpush1.bf16.msra.mxu0 %v1696
      %2315 = vmatprep.subr.bf16.mxu0 %v1699
      %2316 = vmatpush1.bf16.msra.mxu0 %v1698
      %2317 = vmatprep.subr.bf16.mxu0 %v1701
      %2318 = vmatpush1.bf16.msra.mxu0 %v1700
      %2319 = vmatprep.subr.bf16.mxu0 %v1703
      %2320 = vmatpush1.bf16.msra.mxu0 %v1702
      %2321 = vmatprep.subr.bf16.mxu0 %v1705
      %2322 = vmatpush1.bf16.msra.mxu0 %v1704
      %2323 = vmatprep.subr.bf16.mxu0 %v1707
      %2324 = vmatpush1.bf16.msra.mxu0 %v1706
      %2325 = vmatprep.subr.bf16.mxu0 %v1709
      %2326 = vmatpush1.bf16.msra.mxu0 %v1708
      %2327 = vmatprep.subr.bf16.mxu0 %v1711
      %2328 = vmatpush1.bf16.msra.mxu0 %v1710
      %2329 = vmatprep.mubr.bf16.mxu0 %v699
      %2330 = vmatmul.mubr.bf16.gmra.mrb[0].mxu0 %v698
      %v2331 = vpop.f32.mrb[0].mxu0
      %v2332 = vadd.f32 %v2279, %v2331
      %v2333 = vpop.f32.mrb[0].mxu0
      %v2334 = vadd.f32 %v2281, %v2333
      %v2335 = vpop.f32.mrb[0].mxu0
      %v2336 = vadd.f32 %v2283, %v2335
      %v2337 = vpop.f32.mrb[0].mxu0
      %v2338 = vadd.f32 %v2285, %v2337
      %2339 = vmatprep.mubr.bf16.mxu0 %v715
      %2340 = vmatmul.mubr.bf16.gmra.mrb[0].mxu0 %v714
      %v2341 = vpop.f32.mrb[0].mxu0
      %v2342 = vadd.f32 %v2289, %v2341
      %v2343 = vpop.f32.mrb[0].mxu0
      %v2344 = vadd.f32 %v2291, %v2343
      %v2345 = vpop.f32.mrb[0].mxu0
      %v2346 = vadd.f32 %v2293, %v2345
      %v2347 = vpop.f32.mrb[0].mxu0
      %v2348 = vadd.f32 %v2295, %v2347
      %2349 = vdwg.mxu0
      %2350 = vmatprep.subr.bf16.mxu0 %v1713
      %2351 = vmatpush1.bf16.msra.mxu0 %v1712
      %2352 = vmatprep.subr.bf16.mxu0 %v1715
      %2353 = vmatpush1.bf16.msra.mxu0 %v1714
      %2354 = vmatprep.subr.bf16.mxu0 %v1717
      %2355 = vmatpush1.bf16.msra.mxu0 %v1716
      %2356 = vmatprep.subr.bf16.mxu0 %v1719
      %2357 = vmatpush1.bf16.msra.mxu0 %v1718
      %2358 = vmatprep.subr.bf16.mxu0 %v1721
      %2359 = vmatpush1.bf16.msra.mxu0 %v1720
      %2360 = vmatprep.subr.bf16.mxu0 %v1723
      %2361 = vmatpush1.bf16.msra.mxu0 %v1722
      %2362 = vmatprep.subr.bf16.mxu0 %v1725
      %2363 = vmatpush1.bf16.msra.mxu0 %v1724
      %2364 = vmatprep.subr.bf16.mxu0 %v1727
      %2365 = vmatpush1.bf16.msra.mxu0 %v1726
      %2366 = vmatprep.subr.bf16.mxu0 %v1729
      %2367 = vmatpush1.bf16.msra.mxu0 %v1728
      %2368 = vmatprep.subr.bf16.mxu0 %v1731
      %2369 = vmatpush1.bf16.msra.mxu0 %v1730
      %2370 = vmatprep.subr.bf16.mxu0 %v1733
      %2371 = vmatpush1.bf16.msra.mxu0 %v1732
      %2372 = vmatprep.subr.bf16.mxu0 %v1735
      %2373 = vmatpush1.bf16.msra.mxu0 %v1734
      %2374 = vmatprep.subr.bf16.mxu0 %v1737
      %2375 = vmatpush1.bf16.msra.mxu0 %v1736
      %2376 = vmatprep.subr.bf16.mxu0 %v1739
      %2377 = vmatpush1.bf16.msra.mxu0 %v1738
      %2378 = vmatprep.subr.bf16.mxu0 %v1741
      %2379 = vmatpush1.bf16.msra.mxu0 %v1740
      %2380 = vmatprep.subr.bf16.mxu0 %v1743
      %2381 = vmatpush1.bf16.msra.mxu0 %v1742
      %2382 = vmatprep.mubr.bf16.mxu0 %v701
      %2383 = vmatmul.mubr.bf16.gmra.mrb[0].mxu0 %v700
      %v2384 = vpop.f32.mrb[0].mxu0
      %v2385 = vadd.f32 %v2332, %v2384
      %v2386 = vpop.f32.mrb[0].mxu0
      %v2387 = vadd.f32 %v2334, %v2386
      %v2388 = vpop.f32.mrb[0].mxu0
      %v2389 = vadd.f32 %v2336, %v2388
      %v2390 = vpop.f32.mrb[0].mxu0
      %v2391 = vadd.f32 %v2338, %v2390
      %2392 = vmatprep.mubr.bf16.mxu0 %v717
      %2393 = vmatmul.mubr.bf16.gmra.mrb[0].mxu0 %v716
      %v2394 = vpop.f32.mrb[0].mxu0
      %v2395 = vadd.f32 %v2342, %v2394
      %v2396 = vpop.f32.mrb[0].mxu0
      %v2397 = vadd.f32 %v2344, %v2396
      %v2398 = vpop.f32.mrb[0].mxu0
      %v2399 = vadd.f32 %v2346, %v2398
      %v2400 = vpop.f32.mrb[0].mxu0
      %v2401 = vadd.f32 %v2348, %v2400
      %2402 = vdwg.mxu0
      %2403 = vmatprep.subr.bf16.mxu0 %v1745
      %2404 = vmatpush1.bf16.msra.mxu0 %v1744
      %2405 = vmatprep.subr.bf16.mxu0 %v1747
      %2406 = vmatpush1.bf16.msra.mxu0 %v1746
      %2407 = vmatprep.subr.bf16.mxu0 %v1749
      %2408 = vmatpush1.bf16.msra.mxu0 %v1748
      %2409 = vmatprep.subr.bf16.mxu0 %v1751
      %2410 = vmatpush1.bf16.msra.mxu0 %v1750
      %2411 = vmatprep.subr.bf16.mxu0 %v1753
      %2412 = vmatpush1.bf16.msra.mxu0 %v1752
      %2413 = vmatprep.subr.bf16.mxu0 %v1755
      %2414 = vmatpush1.bf16.msra.mxu0 %v1754
      %2415 = vmatprep.subr.bf16.mxu0 %v1757
      %2416 = vmatpush1.bf16.msra.mxu0 %v1756
      %2417 = vmatprep.subr.bf16.mxu0 %v1759
      %2418 = vmatpush1.bf16.msra.mxu0 %v1758
      %2419 = vmatprep.subr.bf16.mxu0 %v1761
      %2420 = vmatpush1.bf16.msra.mxu0 %v1760
      %2421 = vmatprep.subr.bf16.mxu0 %v1763
      %2422 = vmatpush1.bf16.msra.mxu0 %v1762
      %2423 = vmatprep.subr.bf16.mxu0 %v1765
      %2424 = vmatpush1.bf16.msra.mxu0 %v1764
      %2425 = vmatprep.subr.bf16.mxu0 %v1767
      %2426 = vmatpush1.bf16.msra.mxu0 %v1766
      %2427 = vmatprep.subr.bf16.mxu0 %v1769
      %2428 = vmatpush1.bf16.msra.mxu0 %v1768
      %2429 = vmatprep.subr.bf16.mxu0 %v1771
      %2430 = vmatpush1.bf16.msra.mxu0 %v1770
      %2431 = vmatprep.subr.bf16.mxu0 %v1773
      %2432 = vmatpush1.bf16.msra.mxu0 %v1772
      %2433 = vmatprep.subr.bf16.mxu0 %v1775
      %2434 = vmatpush1.bf16.msra.mxu0 %v1774
      %2435 = vmatprep.mubr.bf16.mxu0 %v703
      %2436 = vmatmul.mubr.bf16.gmra.mrb[0].mxu0 %v702
      %v2437 = vpop.f32.mrb[0].mxu0
      %v2438 = vadd.f32 %v2385, %v2437
      %v2439 = vpop.f32.mrb[0].mxu0
      %v2440 = vadd.f32 %v2387, %v2439
      %v2441 = vpop.f32.mrb[0].mxu0
      %v2442 = vadd.f32 %v2389, %v2441
      %v2443 = vpop.f32.mrb[0].mxu0
      %v2444 = vadd.f32 %v2391, %v2443
      %2445 = vmatprep.mubr.bf16.mxu0 %v719
      %2446 = vmatmul.mubr.bf16.gmra.mrb[0].mxu0 %v718
      %v2447 = vpop.f32.mrb[0].mxu0
      %v2448 = vadd.f32 %v2395, %v2447
      %v2449 = vpop.f32.mrb[0].mxu0
      %v2450 = vadd.f32 %v2397, %v2449
      %v2451 = vpop.f32.mrb[0].mxu0
      %v2452 = vadd.f32 %v2399, %v2451
      %v2453 = vpop.f32.mrb[0].mxu0
      %v2454 = vadd.f32 %v2401, %v2453
      %2455 = vdwg.mxu0
      %v2456 = vadd.f32 %v296, %v2438
      %v2457 = vadd.f32 %v297, %v2440
      %v2458 = vadd.f32 %v298, %v2442
      %v2459 = vadd.f32 %v299, %v2444
      %v2460 = vadd.f32 %v300, %v2448
      %v2461 = vadd.f32 %v301, %v2450
      %v2462 = vadd.f32 %v302, %v2452
      %v2463 = vadd.f32 %v303, %v2454
      %2464 = vst [vmem:[#allocation2] sm:$0xff] %v2456
      %2465 = vst [vmem:[#allocation2 + $0x8] sm:$0xff] %v2457
      %2466 = vst [vmem:[#allocation2 + $0x10] sm:$0xff] %v2458
      %2467 = vst [vmem:[#allocation2 + $0x18] sm:$0xff] %v2459
      %2468 = vst [vmem:[#allocation2 + $0x20] sm:$0xff] %v2460
      %2469 = vst [vmem:[#allocation2 + $0x28] sm:$0xff] %v2461
      %2470 = vst [vmem:[#allocation2 + $0x30] sm:$0xff] %v2462
      %2471 = vst [vmem:[#allocation2 + $0x38] sm:$0xff] %v2463
      // Predicated region
      $region33: #{generator_forward.9} parent=27 // pred_check
        %p2472 = pneg %p284
      $region34: #{generator_forward.9} parent=27 // pred_check_branch
        %2474 = sbr.rel (%p2472) target = $region36
      $region35: #{generator_forward.9} parent=27 // pred_region
        %v2475 = vld [vmem:[#allocation2] sm:$0xff]
        %v2476 = vld [vmem:[#allocation2 + $0x8] sm:$0xff]
        %v2477 = vld [vmem:[#allocation2 + $0x10] sm:$0xff]
        %v2478 = vld [vmem:[#allocation2 + $0x18] sm:$0xff]
        %v2479 = vld [vmem:[#allocation2 + $0x20] sm:$0xff]
        %v2480 = vld [vmem:[#allocation2 + $0x28] sm:$0xff]
        %v2481 = vld [vmem:[#allocation2 + $0x30] sm:$0xff]
        %v2482 = vld [vmem:[#allocation2 + $0x38] sm:$0xff]
        %2483 = vst [vmem:[%s281] sm:$0xff] %v2475
        %2484 = vst [vmem:[%s281 + $0x8] sm:$0xff] %v2476
        %2485 = vst [vmem:[%s281 + $0x10] sm:$0xff] %v2477
        %2486 = vst [vmem:[%s281 + $0x18] sm:$0xff] %v2478
        %2487 = vst [vmem:[%s281 + $0x20] sm:$0xff] %v2479
        %2488 = vst [vmem:[%s281 + $0x28] sm:$0xff] %v2480
        %2489 = vst [vmem:[%s281 + $0x30] sm:$0xff] %v2481
        %2490 = vst [vmem:[%s281 + $0x38] sm:$0xff] %v2482
      $region36: #{generator_forward.9} parent=27 // pred_fallthru
        _
      %s2491 = smul.u32 4, %s20
      %s2492 = smul.u32 2, %s21
      %p2493 = scmp.lt.s32.totalorder %s19, 3
      %s2494 = scalar_select %p2493, %s19, 3
      %p2495 = scmp.lt.s32.totalorder %s2491, 3
      %s2496 = scalar_select %p2495, %s2491, 3
      %p2497 = scmp.lt.s32.totalorder %s2492, 1
      %s2498 = scalar_select %p2497, %s2492, 1
      %s2499 = smul.addr %s2496, 2
      %s2500 = sadd.s32 %s2498, %s2499
      %s2501 = smul.addr %s2494, 8
      %s2502 = sadd.s32 %s2500, %s2501
      %s2503 = smul.addr %s2502, 8
      %s2504 = scalar_lea.vmem %s2, %s2503
      // Predicated region
      $region37: #{generator_forward.9} parent=27 // pred_check
        %p2505 = pneg %p121
      $region38: #{generator_forward.9} parent=27 // pred_check_branch
        %2507 = sbr.rel (%p2505) target = $region40
      $region39: #{generator_forward.9} parent=27 // pred_region
        %s2508 = smul.u32 4, %s20
        %s2509 = smul.u32 2, %s21
      $region40: #{generator_forward.9} parent=27 // pred_fallthru
        _
    $region28: #{generator_forward.9} parent=5 // pred_fallthru
      _
    %p2510 = scmp.le.s32.totalorder 2, %s8
    // Predicated region
    $region41: #{generator_forward.9} parent=5 // pred_check
      %p2511 = pneg %p2510
    $region42: #{generator_forward.9} parent=5 // pred_check_branch
      %2513 = sbr.rel (%p2511) target = $region44
    $region43: #{generator_forward.9} parent=5 // pred_region
      %s2514 = ssub.s32 %s8, 2
      // Predicated region
      $region45: #{generator_forward.9} parent=43 // pred_check
        %p2515 = pneg %p127
      $region46: #{generator_forward.9} parent=43 // pred_check_branch
        %2517 = sbr.rel (%p2515) target = $region48
      $region47: #{generator_forward.9} parent=43 // pred_region
        %s2518 = smul.u32 4, %s24
        %s2519 = smul.u32 2, %s25
        %p2520 = scmp.lt.s32.totalorder %s23, 3
        %s2521 = scalar_select %p2520, %s23, 3
        %p2522 = scmp.lt.s32.totalorder %s2518, 3
        %s2523 = scalar_select %p2522, %s2518, 3
        %p2524 = scmp.lt.s32.totalorder %s2519, 1
        %s2525 = scalar_select %p2524, %s2519, 1
        %s2526 = smul.addr %s2523, 2
        %s2527 = sadd.s32 %s2525, %s2526
        %s2528 = smul.addr %s2521, 8
        %s2529 = sadd.s32 %s2527, %s2528
        %s2530 = smul.addr %s2529, 8
        %s2531 = scalar_lea.vmem %s2, %s2530
      $region48: #{generator_forward.9} parent=43 // pred_fallthru
        _
    $region44: #{generator_forward.9} parent=5 // pred_fallthru
      _
  $region6: #{generator_forward.9} parent=0 // loop_footer
    %s12 = sadd.s32 1, %s8
  $region7: #{generator_forward.9} parent=0 // loop_footer_branch
    %7 = sbr.rel target = $region3
  $region8: #{generator_forward.9} parent=0 // loop_exit
    _

// kernel: generator_forward.10
$region0: #{generator_forward.10}
  #allocation0 [shape = 'u32[]', space=smem, size = 0x4, offset = 0x4, fixed_abs, tag = 'smem constant byte address 0x4 - core index']
  #allocation1 [shape = 'u32[144,128]{1,0:T(1,128)}', space=vmem, size = 0x12000, scoped, tag = 'internal scratch']
  %s0 = inlined_call_operand.vmem [shape: f32[128,256], index: 0, kind: input, shape index: {}]
  %s1 = inlined_call_operand.vmem [shape: f32[1,256], index: 1, kind: input, shape index: {}]
  %s2 = inlined_call_operand.vmem [shape: f32[1,256], index: 2, kind: input, shape index: {}]
  %s3 = inlined_call_operand.vmem [shape: f32[128,256], index: 3, kind: output, shape index: {}]
  %s4 = sld [smem:[#allocation0]]
  $region22: #{generator_forward.10} parent=0
    _
  %s6 = ssub.s32 1, %s4
  %s7 = scalar_select 0, %s6, %s4
  // Predicated region
  $region2: #{generator_forward.10} parent=0 // pred_check
    _
  $region3: #{generator_forward.10} parent=0 // pred_check_branch
    %9 = sbr.rel (0) target = $region5
  $region4: #{generator_forward.10} parent=0 // pred_region
    _
  $region5: #{generator_forward.10} parent=0 // pred_fallthru
    _
  // Predicated region
  $region6: #{generator_forward.10} parent=0 // pred_check
    _
  $region7: #{generator_forward.10} parent=0 // pred_check_branch
    %11 = sbr.rel (0) target = $region9
  $region8: #{generator_forward.10} parent=0 // pred_region
    _
  $region9: #{generator_forward.10} parent=0 // pred_fallthru
    _
  // Predicated region
  $region10: #{generator_forward.10} parent=0 // pred_check
    _
  $region11: #{generator_forward.10} parent=0 // pred_check_branch
    %13 = sbr.rel (0) target = $region13
  $region12: #{generator_forward.10} parent=0 // pred_region
    _
  $region13: #{generator_forward.10} parent=0 // pred_fallthru
    _
  %v14 = vld [vmem:[%s0] sm:$0xff]
  %v15 = vld [vmem:[%s0 + $0x8] sm:$0xff]
  %v16 = vld [vmem:[%s0 + $0x10] sm:$0xff]
  %v17 = vld [vmem:[%s0 + $0x18] sm:$0xff]
  %v18 = vld [vmem:[%s0 + $0x20] sm:$0xff]
  %v19 = vld [vmem:[%s0 + $0x28] sm:$0xff]
  %v20 = vld [vmem:[%s0 + $0x30] sm:$0xff]
  %v21 = vld [vmem:[%s0 + $0x38] sm:$0xff]
  %v22 = vld [vmem:[%s0 + $0x40] sm:$0xff]
  %v23 = vld [vmem:[%s0 + $0x48] sm:$0xff]
  %v24 = vld [vmem:[%s0 + $0x50] sm:$0xff]
  %v25 = vld [vmem:[%s0 + $0x58] sm:$0xff]
  %v26 = vld [vmem:[%s0 + $0x60] sm:$0xff]
  %v27 = vld [vmem:[%s0 + $0x68] sm:$0xff]
  %v28 = vld [vmem:[%s0 + $0x70] sm:$0xff]
  %v29 = vld [vmem:[%s0 + $0x78] sm:$0xff]
  %v30 = vld [vmem:[%s0 + $0x80] sm:$0xff]
  %v31 = vld [vmem:[%s0 + $0x88] sm:$0xff]
  %v32 = vld [vmem:[%s0 + $0x90] sm:$0xff]
  %v33 = vld [vmem:[%s0 + $0x98] sm:$0xff]
  %v34 = vld [vmem:[%s0 + $0xa0] sm:$0xff]
  %v35 = vld [vmem:[%s0 + $0xa8] sm:$0xff]
  %v36 = vld [vmem:[%s0 + $0xb0] sm:$0xff]
  %v37 = vld [vmem:[%s0 + $0xb8] sm:$0xff]
  %v38 = vld [vmem:[%s0 + $0xc0] sm:$0xff]
  %v39 = vld [vmem:[%s0 + $0xc8] sm:$0xff]
  %v40 = vld [vmem:[%s0 + $0xd0] sm:$0xff]
  %v41 = vld [vmem:[%s0 + $0xd8] sm:$0xff]
  %v42 = vld [vmem:[%s0 + $0xe0] sm:$0xff]
  %v43 = vld [vmem:[%s0 + $0xe8] sm:$0xff]
  %v44 = vld [vmem:[%s0 + $0xf0] sm:$0xff]
  %v45 = vld [vmem:[%s0 + $0xf8] sm:$0xff]
  %v46 = vadd.f32 %v14, %v16
  %v47 = vadd.f32 %v46, %v18
  %v48 = vadd.f32 %v47, %v20
  %v49 = vadd.f32 %v48, %v22
  %v50 = vadd.f32 %v49, %v24
  %v51 = vadd.f32 %v50, %v26
  %v52 = vadd.f32 %v51, %v28
  %v53 = vadd.f32 %v52, %v30
  %v54 = vadd.f32 %v53, %v32
  %v55 = vadd.f32 %v54, %v34
  %v56 = vadd.f32 %v55, %v36
  %v57 = vadd.f32 %v56, %v38
  %v58 = vadd.f32 %v57, %v40
  %v59 = vadd.f32 %v58, %v42
  %v60 = vadd.f32 %v59, %v44
  %v61 = vrot.slane %v60, 4
  %v62 = vadd.f32 %v60, %v61
  %v63 = vrot.slane %v62, 2
  %v64 = vadd.f32 %v62, %v63
  %v65 = vrot.slane %v64, 1
  %v66 = vadd.f32 %v64, %v65
  %v67 = vadd.f32 %v15, %v17
  %v68 = vadd.f32 %v67, %v19
  %v69 = vadd.f32 %v68, %v21
  %v70 = vadd.f32 %v69, %v23
  %v71 = vadd.f32 %v70, %v25
  %v72 = vadd.f32 %v71, %v27
  %v73 = vadd.f32 %v72, %v29
  %v74 = vadd.f32 %v73, %v31
  %v75 = vadd.f32 %v74, %v33
  %v76 = vadd.f32 %v75, %v35
  %v77 = vadd.f32 %v76, %v37
  %v78 = vadd.f32 %v77, %v39
  %v79 = vadd.f32 %v78, %v41
  %v80 = vadd.f32 %v79, %v43
  %v81 = vadd.f32 %v80, %v45
  %v82 = vrot.slane %v81, 4
  %v83 = vadd.f32 %v81, %v82
  %v84 = vrot.slane %v83, 2
  %v85 = vadd.f32 %v83, %v84
  %v86 = vrot.slane %v85, 1
  %v87 = vadd.f32 %v85, %v86
  %v88 = vrcp.pop 128.0
  %v89 = vmul.f32 %v66, %v88
  %v90 = vmul.f32 %v87, %v88
  %v91 = vsub.f32 %v14, %v89
  %v92 = vsub.f32 %v15, %v90
  %v93 = vsub.f32 %v16, %v89
  %v94 = vsub.f32 %v17, %v90
  %v95 = vsub.f32 %v18, %v89
  %v96 = vsub.f32 %v19, %v90
  %v97 = vsub.f32 %v20, %v89
  %v98 = vsub.f32 %v21, %v90
  %v99 = vsub.f32 %v22, %v89
  %v100 = vsub.f32 %v23, %v90
  %v101 = vsub.f32 %v24, %v89
  %v102 = vsub.f32 %v25, %v90
  %v103 = vsub.f32 %v26, %v89
  %v104 = vsub.f32 %v27, %v90
  %v105 = vsub.f32 %v28, %v89
  %v106 = vsub.f32 %v29, %v90
  %v107 = vsub.f32 %v30, %v89
  %v108 = vsub.f32 %v31, %v90
  %v109 = vsub.f32 %v32, %v89
  %v110 = vsub.f32 %v33, %v90
  %v111 = vsub.f32 %v34, %v89
  %v112 = vsub.f32 %v35, %v90
  %v113 = vsub.f32 %v36, %v89
  %v114 = vsub.f32 %v37, %v90
  %v115 = vsub.f32 %v38, %v89
  %v116 = vsub.f32 %v39, %v90
  %v117 = vsub.f32 %v40, %v89
  %v118 = vsub.f32 %v41, %v90
  %v119 = vsub.f32 %v42, %v89
  %v120 = vsub.f32 %v43, %v90
  %v121 = vsub.f32 %v44, %v89
  %v122 = vsub.f32 %v45, %v90
  %v123 = vmul.f32 %v91, %v91
  %v124 = vmul.f32 %v92, %v92
  %v125 = vmul.f32 %v93, %v93
  %v126 = vmul.f32 %v94, %v94
  %v127 = vmul.f32 %v95, %v95
  %v128 = vmul.f32 %v96, %v96
  %v129 = vmul.f32 %v97, %v97
  %v130 = vmul.f32 %v98, %v98
  %v131 = vmul.f32 %v99, %v99
  %v132 = vmul.f32 %v100, %v100
  %v133 = vmul.f32 %v101, %v101
  %v134 = vmul.f32 %v102, %v102
  %v135 = vmul.f32 %v103, %v103
  %v136 = vmul.f32 %v104, %v104
  %v137 = vmul.f32 %v105, %v105
  %v138 = vmul.f32 %v106, %v106
  %v139 = vmul.f32 %v107, %v107
  %v140 = vmul.f32 %v108, %v108
  %v141 = vmul.f32 %v109, %v109
  %v142 = vmul.f32 %v110, %v110
  %v143 = vmul.f32 %v111, %v111
  %v144 = vmul.f32 %v112, %v112
  %v145 = vmul.f32 %v113, %v113
  %v146 = vmul.f32 %v114, %v114
  %v147 = vmul.f32 %v115, %v115
  %v148 = vmul.f32 %v116, %v116
  %v149 = vmul.f32 %v117, %v117
  %v150 = vmul.f32 %v118, %v118
  %v151 = vmul.f32 %v119, %v119
  %v152 = vmul.f32 %v120, %v120
  %v153 = vmul.f32 %v121, %v121
  %v154 = vmul.f32 %v122, %v122
  %v155 = vadd.f32 %v123, %v125
  %v156 = vadd.f32 %v155, %v127
  %v157 = vadd.f32 %v156, %v129
  %v158 = vadd.f32 %v157, %v131
  %v159 = vadd.f32 %v158, %v133
  %v160 = vadd.f32 %v159, %v135
  %v161 = vadd.f32 %v160, %v137
  %v162 = vadd.f32 %v161, %v139
  %v163 = vadd.f32 %v162, %v141
  %v164 = vadd.f32 %v163, %v143
  %v165 = vadd.f32 %v164, %v145
  %v166 = vadd.f32 %v165, %v147
  %v167 = vadd.f32 %v166, %v149
  %v168 = vadd.f32 %v167, %v151
  %v169 = vadd.f32 %v168, %v153
  %v170 = vrot.slane %v169, 4
  %v171 = vadd.f32 %v169, %v170
  %v172 = vrot.slane %v171, 2
  %v173 = vadd.f32 %v171, %v172
  %v174 = vrot.slane %v173, 1
  %v175 = vadd.f32 %v173, %v174
  %v176 = vadd.f32 %v124, %v126
  %v177 = vadd.f32 %v176, %v128
  %v178 = vadd.f32 %v177, %v130
  %v179 = vadd.f32 %v178, %v132
  %v180 = vadd.f32 %v179, %v134
  %v181 = vadd.f32 %v180, %v136
  %v182 = vadd.f32 %v181, %v138
  %v183 = vadd.f32 %v182, %v140
  %v184 = vadd.f32 %v183, %v142
  %v185 = vadd.f32 %v184, %v144
  %v186 = vadd.f32 %v185, %v146
  %v187 = vadd.f32 %v186, %v148
  %v188 = vadd.f32 %v187, %v150
  %v189 = vadd.f32 %v188, %v152
  %v190 = vadd.f32 %v189, %v154
  %v191 = vrot.slane %v190, 4
  %v192 = vadd.f32 %v190, %v191
  %v193 = vrot.slane %v192, 2
  %v194 = vadd.f32 %v192, %v193
  %v195 = vrot.slane %v194, 1
  %v196 = vadd.f32 %v194, %v195
  %v197 = vmul.f32 %v175, %v88
  %v198 = vmul.f32 %v196, %v88
  %v199 = vadd.f32 %v197, 1e-05
  %v200 = vadd.f32 %v198, 1e-05
  %v201 = vrsqrt.pop %v199
  %v202 = vrsqrt.pop %v200
  %v203 = vld [vmem:[%s1] sm:$0x3]
  %v206 = vcombine.low %v201, %v202
  %v208 = vunpack.c.l.s4 1966171168
  %v209 = vunpack.c.0.s8 %v208
  %v210 = vlaneseq
  %v211 = vshrl.u32 %v210, 7
  %v212 = vsub.s32 %v209, %v211
  %v213 = vrot.slane %v206, %v212
  %v215 = vunpack.c.l.s4 1966171168
  %v216 = vunpack.c.0.s8 %v215
  %v217 = vlaneseq
  %v218 = vshrl.u32 %v217, 7
  %v219 = vsub.s32 %v216, %v218
  %v220 = vrot.slane %v213, %v219
  %v222 = vmul.f32 %v203, %v220
  %v224 = vlaneseq
  %v225 = vshrl.u32 %v224, 7
  %v226 = vsub.s32 0, %v225
  %v227 = vrot.slane %v222, %v226
  %v228 = vlaneseq
  %v229 = vshrl.u32 %v228, 7
  %v230 = vsub.s32 1, %v229
  %v231 = vrot.slane %v222, %v230
  %v234 = vmul.f32 %v91, %v227
  %v235 = vmul.f32 %v92, %v231
  %v236 = vmul.f32 %v93, %v227
  %v237 = vmul.f32 %v94, %v231
  %v238 = vmul.f32 %v95, %v227
  %v239 = vmul.f32 %v96, %v231
  %v240 = vmul.f32 %v97, %v227
  %v241 = vmul.f32 %v98, %v231
  %v242 = vmul.f32 %v99, %v227
  %v243 = vmul.f32 %v100, %v231
  %v244 = vmul.f32 %v101, %v227
  %v245 = vmul.f32 %v102, %v231
  %v246 = vmul.f32 %v103, %v227
  %v247 = vmul.f32 %v104, %v231
  %v248 = vmul.f32 %v105, %v227
  %v249 = vmul.f32 %v106, %v231
  %v250 = vmul.f32 %v107, %v227
  %v251 = vmul.f32 %v108, %v231
  %v252 = vmul.f32 %v109, %v227
  %v253 = vmul.f32 %v110, %v231
  %v254 = vmul.f32 %v111, %v227
  %v255 = vmul.f32 %v112, %v231
  %v256 = vmul.f32 %v113, %v227
  %v257 = vmul.f32 %v114, %v231
  %v258 = vmul.f32 %v115, %v227
  %v259 = vmul.f32 %v116, %v231
  %v260 = vmul.f32 %v117, %v227
  %v261 = vmul.f32 %v118, %v231
  %v262 = vmul.f32 %v119, %v227
  %v263 = vmul.f32 %v120, %v231
  %v264 = vmul.f32 %v121, %v227
  %v265 = vmul.f32 %v122, %v231
  %v266 = vld [vmem:[%s2] sm:$0x3]
  %v268 = vlaneseq
  %v269 = vshrl.u32 %v268, 7
  %v270 = vsub.s32 0, %v269
  %v271 = vrot.slane %v266, %v270
  %v272 = vlaneseq
  %v273 = vshrl.u32 %v272, 7
  %v274 = vsub.s32 1, %v273
  %v275 = vrot.slane %v266, %v274
  %v278 = vadd.f32 %v234, %v271
  %v279 = vadd.f32 %v235, %v275
  %v280 = vadd.f32 %v236, %v271
  %v281 = vadd.f32 %v237, %v275
  %v282 = vadd.f32 %v238, %v271
  %v283 = vadd.f32 %v239, %v275
  %v284 = vadd.f32 %v240, %v271
  %v285 = vadd.f32 %v241, %v275
  %v286 = vadd.f32 %v242, %v271
  %v287 = vadd.f32 %v243, %v275
  %v288 = vadd.f32 %v244, %v271
  %v289 = vadd.f32 %v245, %v275
  %v290 = vadd.f32 %v246, %v271
  %v291 = vadd.f32 %v247, %v275
  %v292 = vadd.f32 %v248, %v271
  %v293 = vadd.f32 %v249, %v275
  %v294 = vadd.f32 %v250, %v271
  %v295 = vadd.f32 %v251, %v275
  %v296 = vadd.f32 %v252, %v271
  %v297 = vadd.f32 %v253, %v275
  %v298 = vadd.f32 %v254, %v271
  %v299 = vadd.f32 %v255, %v275
  %v300 = vadd.f32 %v256, %v271
  %v301 = vadd.f32 %v257, %v275
  %v302 = vadd.f32 %v258, %v271
  %v303 = vadd.f32 %v259, %v275
  %v304 = vadd.f32 %v260, %v271
  %v305 = vadd.f32 %v261, %v275
  %v306 = vadd.f32 %v262, %v271
  %v307 = vadd.f32 %v263, %v275
  %v308 = vadd.f32 %v264, %v271
  %v309 = vadd.f32 %v265, %v275
  %v310 = vmax.f32 %v278, 0.0
  %v311 = vmax.f32 %v279, 0.0
  %v312 = vmax.f32 %v280, 0.0
  %v313 = vmax.f32 %v281, 0.0
  %v314 = vmax.f32 %v282, 0.0
  %v315 = vmax.f32 %v283, 0.0
  %v316 = vmax.f32 %v284, 0.0
  %v317 = vmax.f32 %v285, 0.0
  %v318 = vmax.f32 %v286, 0.0
  %v319 = vmax.f32 %v287, 0.0
  %v320 = vmax.f32 %v288, 0.0
  %v321 = vmax.f32 %v289, 0.0
  %v322 = vmax.f32 %v290, 0.0
  %v323 = vmax.f32 %v291, 0.0
  %v324 = vmax.f32 %v292, 0.0
  %v325 = vmax.f32 %v293, 0.0
  %v326 = vmax.f32 %v294, 0.0
  %v327 = vmax.f32 %v295, 0.0
  %v328 = vmax.f32 %v296, 0.0
  %v329 = vmax.f32 %v297, 0.0
  %v330 = vmax.f32 %v298, 0.0
  %v331 = vmax.f32 %v299, 0.0
  %v332 = vmax.f32 %v300, 0.0
  %v333 = vmax.f32 %v301, 0.0
  %v334 = vmax.f32 %v302, 0.0
  %v335 = vmax.f32 %v303, 0.0
  %v336 = vmax.f32 %v304, 0.0
  %v337 = vmax.f32 %v305, 0.0
  %v338 = vmax.f32 %v306, 0.0
  %v339 = vmax.f32 %v307, 0.0
  %v340 = vmax.f32 %v308, 0.0
  %v341 = vmax.f32 %v309, 0.0
  %342 = vst [vmem:[%s3] sm:$0xff] %v310
  %343 = vst [vmem:[%s3 + $0x8] sm:$0xff] %v311
  %344 = vst [vmem:[%s3 + $0x10] sm:$0xff] %v312
  %345 = vst [vmem:[%s3 + $0x18] sm:$0xff] %v313
  %346 = vst [vmem:[%s3 + $0x20] sm:$0xff] %v314
  %347 = vst [vmem:[%s3 + $0x28] sm:$0xff] %v315
  %348 = vst [vmem:[%s3 + $0x30] sm:$0xff] %v316
  %349 = vst [vmem:[%s3 + $0x38] sm:$0xff] %v317
  %350 = vst [vmem:[%s3 + $0x40] sm:$0xff] %v318
  %351 = vst [vmem:[%s3 + $0x48] sm:$0xff] %v319
  %352 = vst [vmem:[%s3 + $0x50] sm:$0xff] %v320
  %353 = vst [vmem:[%s3 + $0x58] sm:$0xff] %v321
  %354 = vst [vmem:[%s3 + $0x60] sm:$0xff] %v322
  %355 = vst [vmem:[%s3 + $0x68] sm:$0xff] %v323
  %356 = vst [vmem:[%s3 + $0x70] sm:$0xff] %v324
  %357 = vst [vmem:[%s3 + $0x78] sm:$0xff] %v325
  %358 = vst [vmem:[%s3 + $0x80] sm:$0xff] %v326
  %359 = vst [vmem:[%s3 + $0x88] sm:$0xff] %v327
  %360 = vst [vmem:[%s3 + $0x90] sm:$0xff] %v328
  %361 = vst [vmem:[%s3 + $0x98] sm:$0xff] %v329
  %362 = vst [vmem:[%s3 + $0xa0] sm:$0xff] %v330
  %363 = vst [vmem:[%s3 + $0xa8] sm:$0xff] %v331
  %364 = vst [vmem:[%s3 + $0xb0] sm:$0xff] %v332
  %365 = vst [vmem:[%s3 + $0xb8] sm:$0xff] %v333
  %366 = vst [vmem:[%s3 + $0xc0] sm:$0xff] %v334
  %367 = vst [vmem:[%s3 + $0xc8] sm:$0xff] %v335
  %368 = vst [vmem:[%s3 + $0xd0] sm:$0xff] %v336
  %369 = vst [vmem:[%s3 + $0xd8] sm:$0xff] %v337
  %370 = vst [vmem:[%s3 + $0xe0] sm:$0xff] %v338
  %371 = vst [vmem:[%s3 + $0xe8] sm:$0xff] %v339
  %372 = vst [vmem:[%s3 + $0xf0] sm:$0xff] %v340
  %373 = vst [vmem:[%s3 + $0xf8] sm:$0xff] %v341
  // Predicated region
  $region14: #{generator_forward.10} parent=0 // pred_check
    _
  $region15: #{generator_forward.10} parent=0 // pred_check_branch
    %375 = sbr.rel (0) target = $region17
  $region16: #{generator_forward.10} parent=0 // pred_region
    _
  $region17: #{generator_forward.10} parent=0 // pred_fallthru
    _
  // Predicated region
  $region18: #{generator_forward.10} parent=0 // pred_check
    _
  $region19: #{generator_forward.10} parent=0 // pred_check_branch
    %377 = sbr.rel (0) target = $region21
  $region20: #{generator_forward.10} parent=0 // pred_region
    _
  $region21: #{generator_forward.10} parent=0 // pred_fallthru
    _

// kernel: generator_forward.11
$region0: #{generator_forward.11}
  #allocation0 [shape = 'u32[]', space=smem, size = 0x4, offset = 0x4, fixed_abs, tag = 'smem constant byte address 0x4 - core index']
  #allocation1 [shape = 'u32[144,128]{1,0:T(1,128)}', space=vmem, size = 0x12000, scoped, tag = 'internal scratch']
  #allocation2 [shape = 'f32[128,128]{1,0:T(8,128)}', space=vmem, size = 0x10000, scoped, tag = 'scratch operand']
  %s0 = inlined_call_operand.vmem [shape: bf16[4,128,1024], index: 0, kind: input, shape index: {}]
  %s1 = inlined_call_operand.vmem [shape: bf16[4,1024,128], index: 1, kind: input, shape index: {}]
  %s2 = inlined_call_operand.vmem [shape: f32[4,128,128], index: 2, kind: output, shape index: {}]
  %s3 = sld [smem:[#allocation0]]
  $region49: #{generator_forward.11} parent=0
    _
  %s5 = ssub.s32 1, %s3
  %s6 = scalar_select 0, %s5, %s3
  loop: start=0, step=1, limit=6
  $region2: #{generator_forward.11} parent=0 // loop_pre_header
    _
  $region3: #{generator_forward.11} parent=0 // loop_header
    %s8 = sphi 0, %s12
    %p9 = scmp.ge.s32.totalorder %s8, 6
    %s15 = sphi 0, %s41
    %s16 = sphi 0, %s37
    %s17 = sphi 0, %s33
    %s18 = sphi 0, %s29
    %s19 = sphi 0, %s15
    %s20 = sphi 0, %s16
    %s21 = sphi 0, %s17
    %s22 = sphi 0, %s18
    %s23 = sphi 0, %s19
    %s24 = sphi 0, %s20
    %s25 = sphi 0, %s21
    %s26 = sphi 0, %s22
    %s48 = sphi 0, %s50
    %s51 = sphi 0, %s48
    %s52 = sphi 0, %s51
    %s68 = sphi 0, %s52
    %s78 = sphi 0, %s80
    %s81 = sphi 0, %s78
    %s82 = sphi 0, %s81
    %s98 = sphi 0, %s82
    %s108 = sphi 0, %s110
    %s111 = sphi 0, %s108
    %s112 = sphi 0, %s111
    %s128 = sphi 0, %s112
  $region4: #{generator_forward.11} parent=0 // loop_header_branch
    %11 = sbr.rel (%p9) target = $region8
  $region5: #{generator_forward.11} parent=0 // loop_body
    %s13 = ssub.s32 %s8, 1
    %s14 = ssub.s32 %s8, 2
    %s27 = sadd.s32 1, %s18
    %p28 = scmp.ge.s32.totalorder %s27, 1
    %s29 = scalar_select %p28, 0, %s27
    %s30 = sadd.s32 1, %s17
    %s31 = scalar_select %p28, %s30, %s17
    %p32 = scmp.ge.s32.totalorder %s31, 1
    %s33 = scalar_select %p32, 0, %s31
    %s34 = sadd.s32 1, %s16
    %s35 = scalar_select %p32, %s34, %s16
    %p36 = scmp.ge.s32.totalorder %s35, 1
    %s37 = scalar_select %p36, 0, %s35
    %s38 = sadd.s32 1, %s15
    %s39 = scalar_select %p36, %s38, %s15
    %p40 = scmp.ge.s32.totalorder %s39, 4
    %s41 = scalar_select %p40, 0, %s39
    %s42 = ssub.s32 %s15, %s41
    %s43 = ssub.s32 %s16, %s37
    %s44 = sor.u32 %s42, %s43
    %s45 = ssub.s32 %s18, %s29
    %s46 = sor.u32 %s44, %s45
    %p47 = scmp.eq.s32.totalorder %s46, 0
    %s49 = sadd.s32 %s48, 1
    %s50 = scalar_select %p47, %s48, %s49
    %p53 = pneg %p47
    %p54 = scmp.eq.s32.totalorder %s8, 3
    %p55 = por %p53, %p54
    %p56 = scmp.ne.s32.totalorder %s48, %s51
    %p57 = scmp.eq.s32.totalorder %s8, 0
    %p58 = por %p56, %p57
    %p59 = scmp.ne.s32.totalorder %s48, %s51
    %p60 = scmp.eq.s32.totalorder %s13, 3
    %p61 = por %p59, %p60
    %p62 = scmp.ne.s32.totalorder %s51, %s52
    %p63 = scmp.eq.s32.totalorder %s13, 0
    %p64 = por %p62, %p63
    %p65 = scmp.ne.s32.totalorder %s51, %s52
    %p66 = scmp.eq.s32.totalorder %s14, 3
    %p67 = por %p65, %p66
    %p69 = scmp.ne.s32.totalorder %s52, %s68
    %p70 = scmp.eq.s32.totalorder %s14, 0
    %p71 = por %p69, %p70
    %s72 = ssub.s32 %s15, %s41
    %s73 = ssub.s32 %s18, %s29
    %s74 = sor.u32 %s72, %s73
    %s75 = ssub.s32 %s17, %s33
    %s76 = sor.u32 %s74, %s75
    %p77 = scmp.eq.s32.totalorder %s76, 0
    %s79 = sadd.s32 %s78, 1
    %s80 = scalar_select %p77, %s78, %s79
    %p83 = pneg %p77
    %p84 = scmp.eq.s32.totalorder %s8, 3
    %p85 = por %p83, %p84
    %p86 = scmp.ne.s32.totalorder %s78, %s81
    %p87 = scmp.eq.s32.totalorder %s8, 0
    %p88 = por %p86, %p87
    %p89 = scmp.ne.s32.totalorder %s78, %s81
    %p90 = scmp.eq.s32.totalorder %s13, 3
    %p91 = por %p89, %p90
    %p92 = scmp.ne.s32.totalorder %s81, %s82
    %p93 = scmp.eq.s32.totalorder %s13, 0
    %p94 = por %p92, %p93
    %p95 = scmp.ne.s32.totalorder %s81, %s82
    %p96 = scmp.eq.s32.totalorder %s14, 3
    %p97 = por %p95, %p96
    %p99 = scmp.ne.s32.totalorder %s82, %s98
    %p100 = scmp.eq.s32.totalorder %s14, 0
    %p101 = por %p99, %p100
    %s102 = ssub.s32 %s15, %s41
    %s103 = ssub.s32 %s16, %s37
    %s104 = sor.u32 %s102, %s103
    %s105 = ssub.s32 %s17, %s33
    %s106 = sor.u32 %s104, %s105
    %p107 = scmp.eq.s32.totalorder %s106, 0
    %s109 = sadd.s32 %s108, 1
    %s110 = scalar_select %p107, %s108, %s109
    %p113 = pneg %p107
    %p114 = scmp.eq.s32.totalorder %s8, 3
    %p115 = por %p113, %p114
    %p116 = scmp.ne.s32.totalorder %s108, %s111
    %p117 = scmp.eq.s32.totalorder %s8, 0
    %p118 = por %p116, %p117
    %p119 = scmp.ne.s32.totalorder %s108, %s111
    %p120 = scmp.eq.s32.totalorder %s13, 3
    %p121 = por %p119, %p120
    %p122 = scmp.ne.s32.totalorder %s111, %s112
    %p123 = scmp.eq.s32.totalorder %s13, 0
    %p124 = por %p122, %p123
    %p125 = scmp.ne.s32.totalorder %s111, %s112
    %p126 = scmp.eq.s32.totalorder %s14, 3
    %p127 = por %p125, %p126
    %p129 = scmp.ne.s32.totalorder %s112, %s128
    %p130 = scmp.eq.s32.totalorder %s14, 0
    %p131 = por %p129, %p130
    %p132 = scmp.le.s32.totalorder 1, %s8
    %p133 = scmp.lt.s32.totalorder %s8, 5
    %p134 = pnand %p132, %p133
    %p135 = pneg %p134
    // Predicated region
    $region9: #{generator_forward.11} parent=5 // pred_check
      _
    $region10: #{generator_forward.11} parent=5 // pred_check_branch
      %137 = sbr.rel (%p134) target = $region12
    $region11: #{generator_forward.11} parent=5 // pred_region
      %s138 = ssub.s32 %s8, 1
    $region12: #{generator_forward.11} parent=5 // pred_fallthru
      _
    %p139 = scmp.lt.s32.totalorder %s8, 4
    // Predicated region
    $region13: #{generator_forward.11} parent=5 // pred_check
      %p140 = pneg %p139
    $region14: #{generator_forward.11} parent=5 // pred_check_branch
      %142 = sbr.rel (%p140) target = $region16
    $region15: #{generator_forward.11} parent=5 // pred_region
      // Predicated region
      $region17: #{generator_forward.11} parent=15 // pred_check
        %p143 = pneg %p58
      $region18: #{generator_forward.11} parent=15 // pred_check_branch
        %145 = sbr.rel (%p143) target = $region20
      $region19: #{generator_forward.11} parent=15 // pred_region
        %s146 = smul.u32 16, %s16
        %s147 = smul.u32 8, %s18
        %p148 = scmp.lt.s32.totalorder %s15, 3
        %s149 = scalar_select %p148, %s15, 3
        %p150 = scmp.lt.s32.totalorder %s146, 15
        %s151 = scalar_select %p150, %s146, 15
        %p152 = scmp.lt.s32.totalorder %s147, 7
        %s153 = scalar_select %p152, %s147, 7
        %s154 = smul.addr %s151, 8
        %s155 = sadd.s32 %s153, %s154
        %s156 = smul.addr %s149, 128
        %s157 = sadd.s32 %s155, %s156
        %s158 = smul.addr %s157, 4
        %s159 = scalar_lea.vmem %s0, %s158
        %s160 = smul.u32 16, %s16
        %s161 = smul.u32 8, %s18
      $region20: #{generator_forward.11} parent=15 // pred_fallthru
        _
      // Predicated region
      $region21: #{generator_forward.11} parent=15 // pred_check
        %p162 = pneg %p88
      $region22: #{generator_forward.11} parent=15 // pred_check_branch
        %164 = sbr.rel (%p162) target = $region24
      $region23: #{generator_forward.11} parent=15 // pred_region
        %s165 = smul.u32 128, %s18
        %p166 = scmp.lt.s32.totalorder %s15, 3
        %s167 = scalar_select %p166, %s15, 3
        %p168 = scmp.lt.s32.totalorder %s165, 127
        %s169 = scalar_select %p168, %s165, 127
        %p170 = scmp.lt.s32.totalorder %s17, 0
        %s171 = scalar_select %p170, %s17, 0
        %s172 = sadd.s32 %s171, %s169
        %s173 = smul.addr %s167, 128
        %s174 = sadd.s32 %s172, %s173
        %s175 = smul.addr %s174, 4
        %s176 = scalar_lea.vmem %s1, %s175
        %s177 = smul.u32 128, %s18
      $region24: #{generator_forward.11} parent=15 // pred_fallthru
        _
    $region16: #{generator_forward.11} parent=5 // pred_fallthru
      _
    %p178 = scmp.le.s32.totalorder 1, %s8
    %p179 = scmp.lt.s32.totalorder %s8, 5
    %p180 = pnand %p178, %p179
    %p181 = pneg %p180
    // Predicated region
    $region25: #{generator_forward.11} parent=5 // pred_check
      _
    $region26: #{generator_forward.11} parent=5 // pred_check_branch
      %183 = sbr.rel (%p180) target = $region28
    $region27: #{generator_forward.11} parent=5 // pred_region
      %s184 = ssub.s32 %s8, 1
      %s185 = smul.u32 16, %s20
      %s186 = smul.u32 8, %s22
      %p187 = scmp.lt.s32.totalorder %s19, 3
      %s188 = scalar_select %p187, %s19, 3
      %p189 = scmp.lt.s32.totalorder %s185, 15
      %s190 = scalar_select %p189, %s185, 15
      %p191 = scmp.lt.s32.totalorder %s186, 7
      %s192 = scalar_select %p191, %s186, 7
      %s193 = smul.addr %s190, 8
      %s194 = sadd.s32 %s192, %s193
      %s195 = smul.addr %s188, 128
      %s196 = sadd.s32 %s194, %s195
      %s197 = smul.addr %s196, 4
      %s198 = scalar_lea.vmem %s0, %s197
      %p199 = pneg %p64
      %p200 = pneg %p61
      %s201 = smul.u32 128, %s22
      %p202 = scmp.lt.s32.totalorder %s19, 3
      %s203 = scalar_select %p202, %s19, 3
      %p204 = scmp.lt.s32.totalorder %s201, 127
      %s205 = scalar_select %p204, %s201, 127
      %p206 = scmp.lt.s32.totalorder %s21, 0
      %s207 = scalar_select %p206, %s21, 0
      %s208 = sadd.s32 %s207, %s205
      %s209 = smul.addr %s203, 128
      %s210 = sadd.s32 %s208, %s209
      %s211 = smul.addr %s210, 4
      %s212 = scalar_lea.vmem %s1, %s211
      %p213 = pneg %p94
      %p214 = pneg %p91
      %p215 = pneg %p124
      %p216 = pneg %p121
      %s217 = smul.u32 16, %s20
      %p218 = scmp.lt.s32.totalorder %s19, 3
      %s219 = scalar_select %p218, %s19, 3
      %p220 = scmp.lt.s32.totalorder %s217, 15
      %s221 = scalar_select %p220, %s217, 15
      %p222 = scmp.lt.s32.totalorder %s21, 0
      %s223 = scalar_select %p222, %s21, 0
      %s224 = sadd.s32 %s223, %s221
      %s225 = smul.addr %s219, 16
      %s226 = sadd.s32 %s224, %s225
      %s227 = smul.addr %s226, 8
      %s228 = scalar_lea.vmem %s2, %s227
      %s229 = smul.u32 16, %s20
      %s230 = smul.u32 8, %s22
      %p231 = scmp.lt.s32.totalorder %s19, 3
      %s232 = scalar_select %p231, %s19, 3
      %p233 = scmp.lt.s32.totalorder %s229, 15
      %s234 = scalar_select %p233, %s229, 15
      %p235 = scmp.lt.s32.totalorder %s230, 7
      %s236 = scalar_select %p235, %s230, 7
      %s237 = smul.addr %s234, 8
      %s238 = sadd.s32 %s236, %s237
      %s239 = smul.addr %s232, 128
      %s240 = sadd.s32 %s238, %s239
      %s241 = smul.addr %s240, 4
      %s242 = scalar_lea.vmem %s0, %s241
      %s243 = smul.u32 16, %s20
      %s244 = smul.u32 8, %s22
      %s245 = smul.u32 128, %s22
      %p246 = scmp.lt.s32.totalorder %s19, 3
      %s247 = scalar_select %p246, %s19, 3
      %p248 = scmp.lt.s32.totalorder %s245, 127
      %s249 = scalar_select %p248, %s245, 127
      %p250 = scmp.lt.s32.totalorder %s21, 0
      %s251 = scalar_select %p250, %s21, 0
      %s252 = sadd.s32 %s251, %s249
      %s253 = smul.addr %s247, 128
      %s254 = sadd.s32 %s252, %s253
      %s255 = smul.addr %s254, 4
      %s256 = scalar_lea.vmem %s1, %s255
      %s257 = smul.u32 128, %s22
      %s258 = smul.u32 16, %s20
      %p259 = scmp.lt.s32.totalorder %s19, 3
      %s260 = scalar_select %p259, %s19, 3
      %p261 = scmp.lt.s32.totalorder %s258, 15
      %s262 = scalar_select %p261, %s258, 15
      %p263 = scmp.lt.s32.totalorder %s21, 0
      %s264 = scalar_select %p263, %s21, 0
      %s265 = sadd.s32 %s264, %s262
      %s266 = smul.addr %s260, 16
      %s267 = sadd.s32 %s265, %s266
      %s268 = smul.addr %s267, 8
      %s269 = scalar_lea.vmem %s2, %s268
      %s270 = smul.u32 16, %s20
      %p272 = scmp.eq.s32.totalorder %s22, 0
      // Predicated region
      $region29: #{generator_forward.11} parent=27 // pred_check
        %p273 = pneg %p272
      $region30: #{generator_forward.11} parent=27 // pred_check_branch
        %275 = sbr.rel (%p273) target = $region32
      $region31: #{generator_forward.11} parent=27 // pred_region
        %276 = vst [vmem:[#allocation2] sm:$0xff] 0.0
        %277 = vst [vmem:[#allocation2 + $0x8] sm:$0xff] 0.0
        %278 = vst [vmem:[#allocation2 + $0x10] sm:$0xff] 0.0
        %279 = vst [vmem:[#allocation2 + $0x18] sm:$0xff] 0.0
        %280 = vst [vmem:[#allocation2 + $0x20] sm:$0xff] 0.0
        %281 = vst [vmem:[#allocation2 + $0x28] sm:$0xff] 0.0
        %282 = vst [vmem:[#allocation2 + $0x30] sm:$0xff] 0.0
        %283 = vst [vmem:[#allocation2 + $0x38] sm:$0xff] 0.0
        %284 = vst [vmem:[#allocation2 + $0x40] sm:$0xff] 0.0
        %285 = vst [vmem:[#allocation2 + $0x48] sm:$0xff] 0.0
        %286 = vst [vmem:[#allocation2 + $0x50] sm:$0xff] 0.0
        %287 = vst [vmem:[#allocation2 + $0x58] sm:$0xff] 0.0
        %288 = vst [vmem:[#allocation2 + $0x60] sm:$0xff] 0.0
        %289 = vst [vmem:[#allocation2 + $0x68] sm:$0xff] 0.0
        %290 = vst [vmem:[#allocation2 + $0x70] sm:$0xff] 0.0
        %291 = vst [vmem:[#allocation2 + $0x78] sm:$0xff] 0.0
      $region32: #{generator_forward.11} parent=27 // pred_fallthru
        _
      %v292 = vld [vmem:[#allocation2] sm:$0xff]
      %v293 = vld [vmem:[#allocation2 + $0x8] sm:$0xff]
      %v294 = vld [vmem:[#allocation2 + $0x10] sm:$0xff]
      %v295 = vld [vmem:[#allocation2 + $0x18] sm:$0xff]
      %v296 = vld [vmem:[#allocation2 + $0x20] sm:$0xff]
      %v297 = vld [vmem:[#allocation2 + $0x28] sm:$0xff]
      %v298 = vld [vmem:[#allocation2 + $0x30] sm:$0xff]
      %v299 = vld [vmem:[#allocation2 + $0x38] sm:$0xff]
      %v300 = vld [vmem:[#allocation2 + $0x40] sm:$0xff]
      %v301 = vld [vmem:[#allocation2 + $0x48] sm:$0xff]
      %v302 = vld [vmem:[#allocation2 + $0x50] sm:$0xff]
      %v303 = vld [vmem:[#allocation2 + $0x58] sm:$0xff]
      %v304 = vld [vmem:[#allocation2 + $0x60] sm:$0xff]
      %v305 = vld [vmem:[#allocation2 + $0x68] sm:$0xff]
      %v306 = vld [vmem:[#allocation2 + $0x70] sm:$0xff]
      %v307 = vld [vmem:[#allocation2 + $0x78] sm:$0xff]
      %v308 = vld [vmem:[%s242] sm:$0xff]
      %v309 = vld [vmem:[%s242 + $0x8] sm:$0xff]
      %v310 = vld [vmem:[%s242 + $0x10] sm:$0xff]
      %v311 = vld [vmem:[%s242 + $0x18] sm:$0xff]
      %v312 = vld [vmem:[%s242 + $0x20] sm:$0xff]
      %v313 = vld [vmem:[%s242 + $0x28] sm:$0xff]
      %v314 = vld [vmem:[%s242 + $0x30] sm:$0xff]
      %v315 = vld [vmem:[%s242 + $0x38] sm:$0xff]
      %v316 = vld [vmem:[%s242 + $0x40] sm:$0xff]
      %v317 = vld [vmem:[%s242 + $0x48] sm:$0xff]
      %v318 = vld [vmem:[%s242 + $0x50] sm:$0xff]
      %v319 = vld [vmem:[%s242 + $0x58] sm:$0xff]
      %v320 = vld [vmem:[%s242 + $0x60] sm:$0xff]
      %v321 = vld [vmem:[%s242 + $0x68] sm:$0xff]
      %v322 = vld [vmem:[%s242 + $0x70] sm:$0xff]
      %v323 = vld [vmem:[%s242 + $0x78] sm:$0xff]
      %v324 = vld [vmem:[%s242 + $0x80] sm:$0xff]
      %v325 = vld [vmem:[%s242 + $0x88] sm:$0xff]
      %v326 = vld [vmem:[%s242 + $0x90] sm:$0xff]
      %v327 = vld [vmem:[%s242 + $0x98] sm:$0xff]
      %v328 = vld [vmem:[%s242 + $0xa0] sm:$0xff]
      %v329 = vld [vmem:[%s242 + $0xa8] sm:$0xff]
      %v330 = vld [vmem:[%s242 + $0xb0] sm:$0xff]
      %v331 = vld [vmem:[%s242 + $0xb8] sm:$0xff]
      %v332 = vld [vmem:[%s242 + $0xc0] sm:$0xff]
      %v333 = vld [vmem:[%s242 + $0xc8] sm:$0xff]
      %v334 = vld [vmem:[%s242 + $0xd0] sm:$0xff]
      %v335 = vld [vmem:[%s242 + $0xd8] sm:$0xff]
      %v336 = vld [vmem:[%s242 + $0xe0] sm:$0xff]
      %v337 = vld [vmem:[%s242 + $0xe8] sm:$0xff]
      %v338 = vld [vmem:[%s242 + $0xf0] sm:$0xff]
      %v339 = vld [vmem:[%s242 + $0xf8] sm:$0xff]
      %v340 = vld [vmem:[%s242 + $0x100] sm:$0xff]
      %v341 = vld [vmem:[%s242 + $0x108] sm:$0xff]
      %v342 = vld [vmem:[%s242 + $0x110] sm:$0xff]
      %v343 = vld [vmem:[%s242 + $0x118] sm:$0xff]
      %v344 = vld [vmem:[%s242 + $0x120] sm:$0xff]
      %v345 = vld [vmem:[%s242 + $0x128] sm:$0xff]
      %v346 = vld [vmem:[%s242 + $0x130] sm:$0xff]
      %v347 = vld [vmem:[%s242 + $0x138] sm:$0xff]
      %v348 = vld [vmem:[%s242 + $0x140] sm:$0xff]
      %v349 = vld [vmem:[%s242 + $0x148] sm:$0xff]
      %v350 = vld [vmem:[%s242 + $0x150] sm:$0xff]
      %v351 = vld [vmem:[%s242 + $0x158] sm:$0xff]
      %v352 = vld [vmem:[%s242 + $0x160] sm:$0xff]
      %v353 = vld [vmem:[%s242 + $0x168] sm:$0xff]
      %v354 = vld [vmem:[%s242 + $0x170] sm:$0xff]
      %v355 = vld [vmem:[%s242 + $0x178] sm:$0xff]
      %v356 = vld [vmem:[%s242 + $0x180] sm:$0xff]
      %v357 = vld [vmem:[%s242 + $0x188] sm:$0xff]
      %v358 = vld [vmem:[%s242 + $0x190] sm:$0xff]
      %v359 = vld [vmem:[%s242 + $0x198] sm:$0xff]
      %v360 = vld [vmem:[%s242 + $0x1a0] sm:$0xff]
      %v361 = vld [vmem:[%s242 + $0x1a8] sm:$0xff]
      %v362 = vld [vmem:[%s242 + $0x1b0] sm:$0xff]
      %v363 = vld [vmem:[%s242 + $0x1b8] sm:$0xff]
      %v364 = vld [vmem:[%s242 + $0x1c0] sm:$0xff]
      %v365 = vld [vmem:[%s242 + $0x1c8] sm:$0xff]
      %v366 = vld [vmem:[%s242 + $0x1d0] sm:$0xff]
      %v367 = vld [vmem:[%s242 + $0x1d8] sm:$0xff]
      %v368 = vld [vmem:[%s242 + $0x1e0] sm:$0xff]
      %v369 = vld [vmem:[%s242 + $0x1e8] sm:$0xff]
      %v370 = vld [vmem:[%s242 + $0x1f0] sm:$0xff]
      %v371 = vld [vmem:[%s242 + $0x1f8] sm:$0xff]
      %v372 = vld [vmem:[%s256] sm:$0xf]
      %v373 = vld [vmem:[%s256 + $0x4] sm:$0xf]
      %v374 = vld [vmem:[%s256 + $0x8] sm:$0xf]
      %v375 = vld [vmem:[%s256 + $0xc] sm:$0xf]
      %v376 = vld [vmem:[%s256 + $0x10] sm:$0xf]
      %v377 = vld [vmem:[%s256 + $0x14] sm:$0xf]
      %v378 = vld [vmem:[%s256 + $0x18] sm:$0xf]
      %v379 = vld [vmem:[%s256 + $0x1c] sm:$0xf]
      %v380 = vld [vmem:[%s256 + $0x20] sm:$0xf]
      %v381 = vld [vmem:[%s256 + $0x24] sm:$0xf]
      %v382 = vld [vmem:[%s256 + $0x28] sm:$0xf]
      %v383 = vld [vmem:[%s256 + $0x2c] sm:$0xf]
      %v384 = vld [vmem:[%s256 + $0x30] sm:$0xf]
      %v385 = vld [vmem:[%s256 + $0x34] sm:$0xf]
      %v386 = vld [vmem:[%s256 + $0x38] sm:$0xf]
      %v387 = vld [vmem:[%s256 + $0x3c] sm:$0xf]
      %v388 = vld [vmem:[%s256 + $0x40] sm:$0xf]
      %v389 = vld [vmem:[%s256 + $0x44] sm:$0xf]
      %v390 = vld [vmem:[%s256 + $0x48] sm:$0xf]
      %v391 = vld [vmem:[%s256 + $0x4c] sm:$0xf]
      %v392 = vld [vmem:[%s256 + $0x50] sm:$0xf]
      %v393 = vld [vmem:[%s256 + $0x54] sm:$0xf]
      %v394 = vld [vmem:[%s256 + $0x58] sm:$0xf]
      %v395 = vld [vmem:[%s256 + $0x5c] sm:$0xf]
      %v396 = vld [vmem:[%s256 + $0x60] sm:$0xf]
      %v397 = vld [vmem:[%s256 + $0x64] sm:$0xf]
      %v398 = vld [vmem:[%s256 + $0x68] sm:$0xf]
      %v399 = vld [vmem:[%s256 + $0x6c] sm:$0xf]
      %v400 = vld [vmem:[%s256 + $0x70] sm:$0xf]
      %v401 = vld [vmem:[%s256 + $0x74] sm:$0xf]
      %v402 = vld [vmem:[%s256 + $0x78] sm:$0xf]
      %v403 = vld [vmem:[%s256 + $0x7c] sm:$0xf]
      %v404 = vld [vmem:[%s256 + $0x80] sm:$0xf]
      %v405 = vld [vmem:[%s256 + $0x84] sm:$0xf]
      %v406 = vld [vmem:[%s256 + $0x88] sm:$0xf]
      %v407 = vld [vmem:[%s256 + $0x8c] sm:$0xf]
      %v408 = vld [vmem:[%s256 + $0x90] sm:$0xf]
      %v409 = vld [vmem:[%s256 + $0x94] sm:$0xf]
      %v410 = vld [vmem:[%s256 + $0x98] sm:$0xf]
      %v411 = vld [vmem:[%s256 + $0x9c] sm:$0xf]
      %v412 = vld [vmem:[%s256 + $0xa0] sm:$0xf]
      %v413 = vld [vmem:[%s256 + $0xa4] sm:$0xf]
      %v414 = vld [vmem:[%s256 + $0xa8] sm:$0xf]
      %v415 = vld [vmem:[%s256 + $0xac] sm:$0xf]
      %v416 = vld [vmem:[%s256 + $0xb0] sm:$0xf]
      %v417 = vld [vmem:[%s256 + $0xb4] sm:$0xf]
      %v418 = vld [vmem:[%s256 + $0xb8] sm:$0xf]
      %v419 = vld [vmem:[%s256 + $0xbc] sm:$0xf]
      %v420 = vld [vmem:[%s256 + $0xc0] sm:$0xf]
      %v421 = vld [vmem:[%s256 + $0xc4] sm:$0xf]
      %v422 = vld [vmem:[%s256 + $0xc8] sm:$0xf]
      %v423 = vld [vmem:[%s256 + $0xcc] sm:$0xf]
      %v424 = vld [vmem:[%s256 + $0xd0] sm:$0xf]
      %v425 = vld [vmem:[%s256 + $0xd4] sm:$0xf]
      %v426 = vld [vmem:[%s256 + $0xd8] sm:$0xf]
      %v427 = vld [vmem:[%s256 + $0xdc] sm:$0xf]
      %v428 = vld [vmem:[%s256 + $0xe0] sm:$0xf]
      %v429 = vld [vmem:[%s256 + $0xe4] sm:$0xf]
      %v430 = vld [vmem:[%s256 + $0xe8] sm:$0xf]
      %v431 = vld [vmem:[%s256 + $0xec] sm:$0xf]
      %v432 = vld [vmem:[%s256 + $0xf0] sm:$0xf]
      %v433 = vld [vmem:[%s256 + $0xf4] sm:$0xf]
      %v434 = vld [vmem:[%s256 + $0xf8] sm:$0xf]
      %v435 = vld [vmem:[%s256 + $0xfc] sm:$0xf]
      %v436 = vld [vmem:[%s256 + $0x100] sm:$0xf]
      %v437 = vld [vmem:[%s256 + $0x104] sm:$0xf]
      %v438 = vld [vmem:[%s256 + $0x108] sm:$0xf]
      %v439 = vld [vmem:[%s256 + $0x10c] sm:$0xf]
      %v440 = vld [vmem:[%s256 + $0x110] sm:$0xf]
      %v441 = vld [vmem:[%s256 + $0x114] sm:$0xf]
      %v442 = vld [vmem:[%s256 + $0x118] sm:$0xf]
      %v443 = vld [vmem:[%s256 + $0x11c] sm:$0xf]
      %v444 = vld [vmem:[%s256 + $0x120] sm:$0xf]
      %v445 = vld [vmem:[%s256 + $0x124] sm:$0xf]
      %v446 = vld [vmem:[%s256 + $0x128] sm:$0xf]
      %v447 = vld [vmem:[%s256 + $0x12c] sm:$0xf]
      %v448 = vld [vmem:[%s256 + $0x130] sm:$0xf]
      %v449 = vld [vmem:[%s256 + $0x134] sm:$0xf]
      %v450 = vld [vmem:[%s256 + $0x138] sm:$0xf]
      %v451 = vld [vmem:[%s256 + $0x13c] sm:$0xf]
      %v452 = vld [vmem:[%s256 + $0x140] sm:$0xf]
      %v453 = vld [vmem:[%s256 + $0x144] sm:$0xf]
      %v454 = vld [vmem:[%s256 + $0x148] sm:$0xf]
      %v455 = vld [vmem:[%s256 + $0x14c] sm:$0xf]
      %v456 = vld [vmem:[%s256 + $0x150] sm:$0xf]
      %v457 = vld [vmem:[%s256 + $0x154] sm:$0xf]
      %v458 = vld [vmem:[%s256 + $0x158] sm:$0xf]
      %v459 = vld [vmem:[%s256 + $0x15c] sm:$0xf]
      %v460 = vld [vmem:[%s256 + $0x160] sm:$0xf]
      %v461 = vld [vmem:[%s256 + $0x164] sm:$0xf]
      %v462 = vld [vmem:[%s256 + $0x168] sm:$0xf]
      %v463 = vld [vmem:[%s256 + $0x16c] sm:$0xf]
      %v464 = vld [vmem:[%s256 + $0x170] sm:$0xf]
      %v465 = vld [vmem:[%s256 + $0x174] sm:$0xf]
      %v466 = vld [vmem:[%s256 + $0x178] sm:$0xf]
      %v467 = vld [vmem:[%s256 + $0x17c] sm:$0xf]
      %v468 = vld [vmem:[%s256 + $0x180] sm:$0xf]
      %v469 = vld [vmem:[%s256 + $0x184] sm:$0xf]
      %v470 = vld [vmem:[%s256 + $0x188] sm:$0xf]
      %v471 = vld [vmem:[%s256 + $0x18c] sm:$0xf]
      %v472 = vld [vmem:[%s256 + $0x190] sm:$0xf]
      %v473 = vld [vmem:[%s256 + $0x194] sm:$0xf]
      %v474 = vld [vmem:[%s256 + $0x198] sm:$0xf]
      %v475 = vld [vmem:[%s256 + $0x19c] sm:$0xf]
      %v476 = vld [vmem:[%s256 + $0x1a0] sm:$0xf]
      %v477 = vld [vmem:[%s256 + $0x1a4] sm:$0xf]
      %v478 = vld [vmem:[%s256 + $0x1a8] sm:$0xf]
      %v479 = vld [vmem:[%s256 + $0x1ac] sm:$0xf]
      %v480 = vld [vmem:[%s256 + $0x1b0] sm:$0xf]
      %v481 = vld [vmem:[%s256 + $0x1b4] sm:$0xf]
      %v482 = vld [vmem:[%s256 + $0x1b8] sm:$0xf]
      %v483 = vld [vmem:[%s256 + $0x1bc] sm:$0xf]
      %v484 = vld [vmem:[%s256 + $0x1c0] sm:$0xf]
      %v485 = vld [vmem:[%s256 + $0x1c4] sm:$0xf]
      %v486 = vld [vmem:[%s256 + $0x1c8] sm:$0xf]
      %v487 = vld [vmem:[%s256 + $0x1cc] sm:$0xf]
      %v488 = vld [vmem:[%s256 + $0x1d0] sm:$0xf]
      %v489 = vld [vmem:[%s256 + $0x1d4] sm:$0xf]
      %v490 = vld [vmem:[%s256 + $0x1d8] sm:$0xf]
      %v491 = vld [vmem:[%s256 + $0x1dc] sm:$0xf]
      %v492 = vld [vmem:[%s256 + $0x1e0] sm:$0xf]
      %v493 = vld [vmem:[%s256 + $0x1e4] sm:$0xf]
      %v494 = vld [vmem:[%s256 + $0x1e8] sm:$0xf]
      %v495 = vld [vmem:[%s256 + $0x1ec] sm:$0xf]
      %v496 = vld [vmem:[%s256 + $0x1f0] sm:$0xf]
      %v497 = vld [vmem:[%s256 + $0x1f4] sm:$0xf]
      %v498 = vld [vmem:[%s256 + $0x1f8] sm:$0xf]
      %v499 = vld [vmem:[%s256 + $0x1fc] sm:$0xf]
      %v564 = vunpack.c.l.b16 %v308
      %v565 = vunpack.c.h.b16 %v308
      %v566 = vunpack.c.l.b16 %v309
      %v567 = vunpack.c.h.b16 %v309
      %v568 = vunpack.c.l.b16 %v310
      %v569 = vunpack.c.h.b16 %v310
      %v570 = vunpack.c.l.b16 %v311
      %v571 = vunpack.c.h.b16 %v311
      %v572 = vunpack.c.l.b16 %v312
      %v573 = vunpack.c.h.b16 %v312
      %v574 = vunpack.c.l.b16 %v313
      %v575 = vunpack.c.h.b16 %v313
      %v576 = vunpack.c.l.b16 %v314
      %v577 = vunpack.c.h.b16 %v314
      %v578 = vunpack.c.l.b16 %v315
      %v579 = vunpack.c.h.b16 %v315
      %v580 = vunpack.c.l.b16 %v316
      %v581 = vunpack.c.h.b16 %v316
      %v582 = vunpack.c.l.b16 %v317
      %v583 = vunpack.c.h.b16 %v317
      %v584 = vunpack.c.l.b16 %v318
      %v585 = vunpack.c.h.b16 %v318
      %v586 = vunpack.c.l.b16 %v319
      %v587 = vunpack.c.h.b16 %v319
      %v588 = vunpack.c.l.b16 %v320
      %v589 = vunpack.c.h.b16 %v320
      %v590 = vunpack.c.l.b16 %v321
      %v591 = vunpack.c.h.b16 %v321
      %v592 = vunpack.c.l.b16 %v322
      %v593 = vunpack.c.h.b16 %v322
      %v594 = vunpack.c.l.b16 %v323
      %v595 = vunpack.c.h.b16 %v323
      %v596 = vunpack.c.l.b16 %v324
      %v597 = vunpack.c.h.b16 %v324
      %v598 = vunpack.c.l.b16 %v325
      %v599 = vunpack.c.h.b16 %v325
      %v600 = vunpack.c.l.b16 %v326
      %v601 = vunpack.c.h.b16 %v326
      %v602 = vunpack.c.l.b16 %v327
      %v603 = vunpack.c.h.b16 %v327
      %v604 = vunpack.c.l.b16 %v328
      %v605 = vunpack.c.h.b16 %v328
      %v606 = vunpack.c.l.b16 %v329
      %v607 = vunpack.c.h.b16 %v329
      %v608 = vunpack.c.l.b16 %v330
      %v609 = vunpack.c.h.b16 %v330
      %v610 = vunpack.c.l.b16 %v331
      %v611 = vunpack.c.h.b16 %v331
      %v612 = vunpack.c.l.b16 %v332
      %v613 = vunpack.c.h.b16 %v332
      %v614 = vunpack.c.l.b16 %v333
      %v615 = vunpack.c.h.b16 %v333
      %v616 = vunpack.c.l.b16 %v334
      %v617 = vunpack.c.h.b16 %v334
      %v618 = vunpack.c.l.b16 %v335
      %v619 = vunpack.c.h.b16 %v335
      %v620 = vunpack.c.l.b16 %v336
      %v621 = vunpack.c.h.b16 %v336
      %v622 = vunpack.c.l.b16 %v337
      %v623 = vunpack.c.h.b16 %v337
      %v624 = vunpack.c.l.b16 %v338
      %v625 = vunpack.c.h.b16 %v338
      %v626 = vunpack.c.l.b16 %v339
      %v627 = vunpack.c.h.b16 %v339
      %v628 = vunpack.c.l.b16 %v340
      %v629 = vunpack.c.h.b16 %v340
      %v630 = vunpack.c.l.b16 %v341
      %v631 = vunpack.c.h.b16 %v341
      %v632 = vunpack.c.l.b16 %v342
      %v633 = vunpack.c.h.b16 %v342
      %v634 = vunpack.c.l.b16 %v343
      %v635 = vunpack.c.h.b16 %v343
      %v636 = vunpack.c.l.b16 %v344
      %v637 = vunpack.c.h.b16 %v344
      %v638 = vunpack.c.l.b16 %v345
      %v639 = vunpack.c.h.b16 %v345
      %v640 = vunpack.c.l.b16 %v346
      %v641 = vunpack.c.h.b16 %v346
      %v642 = vunpack.c.l.b16 %v347
      %v643 = vunpack.c.h.b16 %v347
      %v644 = vunpack.c.l.b16 %v348
      %v645 = vunpack.c.h.b16 %v348
      %v646 = vunpack.c.l.b16 %v349
      %v647 = vunpack.c.h.b16 %v349
      %v648 = vunpack.c.l.b16 %v350
      %v649 = vunpack.c.h.b16 %v350
      %v650 = vunpack.c.l.b16 %v351
      %v651 = vunpack.c.h.b16 %v351
      %v652 = vunpack.c.l.b16 %v352
      %v653 = vunpack.c.h.b16 %v352
      %v654 = vunpack.c.l.b16 %v353
      %v655 = vunpack.c.h.b16 %v353
      %v656 = vunpack.c.l.b16 %v354
      %v657 = vunpack.c.h.b16 %v354
      %v658 = vunpack.c.l.b16 %v355
      %v659 = vunpack.c.h.b16 %v355
      %v660 = vunpack.c.l.b16 %v356
      %v661 = vunpack.c.h.b16 %v356
      %v662 = vunpack.c.l.b16 %v357
      %v663 = vunpack.c.h.b16 %v357
      %v664 = vunpack.c.l.b16 %v358
      %v665 = vunpack.c.h.b16 %v358
      %v666 = vunpack.c.l.b16 %v359
      %v667 = vunpack.c.h.b16 %v359
      %v668 = vunpack.c.l.b16 %v360
      %v669 = vunpack.c.h.b16 %v360
      %v670 = vunpack.c.l.b16 %v361
      %v671 = vunpack.c.h.b16 %v361
      %v672 = vunpack.c.l.b16 %v362
      %v673 = vunpack.c.h.b16 %v362
      %v674 = vunpack.c.l.b16 %v363
      %v675 = vunpack.c.h.b16 %v363
      %v676 = vunpack.c.l.b16 %v364
      %v677 = vunpack.c.h.b16 %v364
      %v678 = vunpack.c.l.b16 %v365
      %v679 = vunpack.c.h.b16 %v365
      %v680 = vunpack.c.l.b16 %v366
      %v681 = vunpack.c.h.b16 %v366
      %v682 = vunpack.c.l.b16 %v367
      %v683 = vunpack.c.h.b16 %v367
      %v684 = vunpack.c.l.b16 %v368
      %v685 = vunpack.c.h.b16 %v368
      %v686 = vunpack.c.l.b16 %v369
      %v687 = vunpack.c.h.b16 %v369
      %v688 = vunpack.c.l.b16 %v370
      %v689 = vunpack.c.h.b16 %v370
      %v690 = vunpack.c.l.b16 %v371
      %v691 = vunpack.c.h.b16 %v371
      %v692 = vpack.c.b16 %v572, %v564
      %v693 = vpack.c.b16 %v573, %v565
      %v694 = vpack.c.b16 %v574, %v566
      %v695 = vpack.c.b16 %v575, %v567
      %v696 = vpack.c.b16 %v576, %v568
      %v697 = vpack.c.b16 %v577, %v569
      %v698 = vpack.c.b16 %v578, %v570
      %v699 = vpack.c.b16 %v579, %v571
      %v700 = vpack.c.b16 %v588, %v580
      %v701 = vpack.c.b16 %v589, %v581
      %v702 = vpack.c.b16 %v590, %v582
      %v703 = vpack.c.b16 %v591, %v583
      %v704 = vpack.c.b16 %v592, %v584
      %v705 = vpack.c.b16 %v593, %v585
      %v706 = vpack.c.b16 %v594, %v586
      %v707 = vpack.c.b16 %v595, %v587
      %v708 = vpack.c.b16 %v604, %v596
      %v709 = vpack.c.b16 %v605, %v597
      %v710 = vpack.c.b16 %v606, %v598
      %v711 = vpack.c.b16 %v607, %v599
      %v712 = vpack.c.b16 %v608, %v600
      %v713 = vpack.c.b16 %v609, %v601
      %v714 = vpack.c.b16 %v610, %v602
      %v715 = vpack.c.b16 %v611, %v603
      %v716 = vpack.c.b16 %v620, %v612
      %v717 = vpack.c.b16 %v621, %v613
      %v718 = vpack.c.b16 %v622, %v614
      %v719 = vpack.c.b16 %v623, %v615
      %v720 = vpack.c.b16 %v624, %v616
      %v721 = vpack.c.b16 %v625, %v617
      %v722 = vpack.c.b16 %v626, %v618
      %v723 = vpack.c.b16 %v627, %v619
      %v724 = vpack.c.b16 %v636, %v628
      %v725 = vpack.c.b16 %v637, %v629
      %v726 = vpack.c.b16 %v638, %v630
      %v727 = vpack.c.b16 %v639, %v631
      %v728 = vpack.c.b16 %v640, %v632
      %v729 = vpack.c.b16 %v641, %v633
      %v730 = vpack.c.b16 %v642, %v634
      %v731 = vpack.c.b16 %v643, %v635
      %v732 = vpack.c.b16 %v652, %v644
      %v733 = vpack.c.b16 %v653, %v645
      %v734 = vpack.c.b16 %v654, %v646
      %v735 = vpack.c.b16 %v655, %v647
      %v736 = vpack.c.b16 %v656, %v648
      %v737 = vpack.c.b16 %v657, %v649
      %v738 = vpack.c.b16 %v658, %v650
      %v739 = vpack.c.b16 %v659, %v651
      %v740 = vpack.c.b16 %v668, %v660
      %v741 = vpack.c.b16 %v669, %v661
      %v742 = vpack.c.b16 %v670, %v662
      %v743 = vpack.c.b16 %v671, %v663
      %v744 = vpack.c.b16 %v672, %v664
      %v745 = vpack.c.b16 %v673, %v665
      %v746 = vpack.c.b16 %v674, %v666
      %v747 = vpack.c.b16 %v675, %v667
      %v748 = vpack.c.b16 %v684, %v676
      %v749 = vpack.c.b16 %v685, %v677
      %v750 = vpack.c.b16 %v686, %v678
      %v751 = vpack.c.b16 %v687, %v679
      %v752 = vpack.c.b16 %v688, %v680
      %v753 = vpack.c.b16 %v689, %v681
      %v754 = vpack.c.b16 %v690, %v682
      %v755 = vpack.c.b16 %v691, %v683
      %v948 = vunpack.c.l.b16 %v372
      %v949 = vunpack.c.l.b16 %v373
      %v950 = vunpack.c.l.b16 %v374
      %v951 = vunpack.c.l.b16 %v375
      %v952 = vunpack.c.l.b16 %v376
      %v953 = vunpack.c.l.b16 %v377
      %v954 = vunpack.c.l.b16 %v378
      %v955 = vunpack.c.l.b16 %v379
      %v956 = vunpack.c.l.b16 %v380
      %v957 = vunpack.c.l.b16 %v381
      %v958 = vunpack.c.l.b16 %v382
      %v959 = vunpack.c.l.b16 %v383
      %v960 = vunpack.c.l.b16 %v384
      %v961 = vunpack.c.l.b16 %v385
      %v962 = vunpack.c.l.b16 %v386
      %v963 = vunpack.c.l.b16 %v387
      %v964 = vunpack.c.l.b16 %v388
      %v965 = vunpack.c.l.b16 %v389
      %v966 = vunpack.c.l.b16 %v390
      %v967 = vunpack.c.l.b16 %v391
      %v968 = vunpack.c.l.b16 %v392
      %v969 = vunpack.c.l.b16 %v393
      %v970 = vunpack.c.l.b16 %v394
      %v971 = vunpack.c.l.b16 %v395
      %v972 = vunpack.c.l.b16 %v396
      %v973 = vunpack.c.l.b16 %v397
      %v974 = vunpack.c.l.b16 %v398
      %v975 = vunpack.c.l.b16 %v399
      %v976 = vunpack.c.l.b16 %v400
      %v977 = vunpack.c.l.b16 %v401
      %v978 = vunpack.c.l.b16 %v402
      %v979 = vunpack.c.l.b16 %v403
      %v980 = vunpack.c.l.b16 %v404
      %v981 = vunpack.c.l.b16 %v405
      %v982 = vunpack.c.l.b16 %v406
      %v983 = vunpack.c.l.b16 %v407
      %v984 = vunpack.c.l.b16 %v408
      %v985 = vunpack.c.l.b16 %v409
      %v986 = vunpack.c.l.b16 %v410
      %v987 = vunpack.c.l.b16 %v411
      %v988 = vunpack.c.l.b16 %v412
      %v989 = vunpack.c.l.b16 %v413
      %v990 = vunpack.c.l.b16 %v414
      %v991 = vunpack.c.l.b16 %v415
      %v992 = vunpack.c.l.b16 %v416
      %v993 = vunpack.c.l.b16 %v417
      %v994 = vunpack.c.l.b16 %v418
      %v995 = vunpack.c.l.b16 %v419
      %v996 = vunpack.c.l.b16 %v420
      %v997 = vunpack.c.l.b16 %v421
      %v998 = vunpack.c.l.b16 %v422
      %v999 = vunpack.c.l.b16 %v423
      %v1000 = vunpack.c.l.b16 %v424
      %v1001 = vunpack.c.l.b16 %v425
      %v1002 = vunpack.c.l.b16 %v426
      %v1003 = vunpack.c.l.b16 %v427
      %v1004 = vunpack.c.l.b16 %v428
      %v1005 = vunpack.c.l.b16 %v429
      %v1006 = vunpack.c.l.b16 %v430
      %v1007 = vunpack.c.l.b16 %v431
      %v1008 = vunpack.c.l.b16 %v432
      %v1009 = vunpack.c.l.b16 %v433
      %v1010 = vunpack.c.l.b16 %v434
      %v1011 = vunpack.c.l.b16 %v435
      %v1012 = vunpack.c.l.b16 %v436
      %v1013 = vunpack.c.l.b16 %v437
      %v1014 = vunpack.c.l.b16 %v438
      %v1015 = vunpack.c.l.b16 %v439
      %v1016 = vunpack.c.l.b16 %v440
      %v1017 = vunpack.c.l.b16 %v441
      %v1018 = vunpack.c.l.b16 %v442
      %v1019 = vunpack.c.l.b16 %v443
      %v1020 = vunpack.c.l.b16 %v444
      %v1021 = vunpack.c.l.b16 %v445
      %v1022 = vunpack.c.l.b16 %v446
      %v1023 = vunpack.c.l.b16 %v447
      %v1024 = vunpack.c.l.b16 %v448
      %v1025 = vunpack.c.l.b16 %v449
      %v1026 = vunpack.c.l.b16 %v450
      %v1027 = vunpack.c.l.b16 %v451
      %v1028 = vunpack.c.l.b16 %v452
      %v1029 = vunpack.c.l.b16 %v453
      %v1030 = vunpack.c.l.b16 %v454
      %v1031 = vunpack.c.l.b16 %v455
      %v1032 = vunpack.c.l.b16 %v456
      %v1033 = vunpack.c.l.b16 %v457
      %v1034 = vunpack.c.l.b16 %v458
      %v1035 = vunpack.c.l.b16 %v459
      %v1036 = vunpack.c.l.b16 %v460
      %v1037 = vunpack.c.l.b16 %v461
      %v1038 = vunpack.c.l.b16 %v462
      %v1039 = vunpack.c.l.b16 %v463
      %v1040 = vunpack.c.l.b16 %v464
      %v1041 = vunpack.c.l.b16 %v465
      %v1042 = vunpack.c.l.b16 %v466
      %v1043 = vunpack.c.l.b16 %v467
      %v1044 = vunpack.c.l.b16 %v468
      %v1045 = vunpack.c.l.b16 %v469
      %v1046 = vunpack.c.l.b16 %v470
      %v1047 = vunpack.c.l.b16 %v471
      %v1048 = vunpack.c.l.b16 %v472
      %v1049 = vunpack.c.l.b16 %v473
      %v1050 = vunpack.c.l.b16 %v474
      %v1051 = vunpack.c.l.b16 %v475
      %v1052 = vunpack.c.l.b16 %v476
      %v1053 = vunpack.c.l.b16 %v477
      %v1054 = vunpack.c.l.b16 %v478
      %v1055 = vunpack.c.l.b16 %v479
      %v1056 = vunpack.c.l.b16 %v480
      %v1057 = vunpack.c.l.b16 %v481
      %v1058 = vunpack.c.l.b16 %v482
      %v1059 = vunpack.c.l.b16 %v483
      %v1060 = vunpack.c.l.b16 %v484
      %v1061 = vunpack.c.l.b16 %v485
      %v1062 = vunpack.c.l.b16 %v486
      %v1063 = vunpack.c.l.b16 %v487
      %v1064 = vunpack.c.l.b16 %v488
      %v1065 = vunpack.c.l.b16 %v489
      %v1066 = vunpack.c.l.b16 %v490
      %v1067 = vunpack.c.l.b16 %v491
      %v1068 = vunpack.c.l.b16 %v492
      %v1069 = vunpack.c.l.b16 %v493
      %v1070 = vunpack.c.l.b16 %v494
      %v1071 = vunpack.c.l.b16 %v495
      %v1072 = vunpack.c.l.b16 %v496
      %v1073 = vunpack.c.l.b16 %v497
      %v1074 = vunpack.c.l.b16 %v498
      %v1075 = vunpack.c.l.b16 %v499
      %v1076 = vpack.c.b16 %v949, %v948
      %v1077 = vpack.c.b16 %v951, %v950
      %v1078 = vpack.c.b16 %v953, %v952
      %v1079 = vpack.c.b16 %v955, %v954
      %v1080 = vpack.c.b16 %v957, %v956
      %v1081 = vpack.c.b16 %v959, %v958
      %v1082 = vpack.c.b16 %v961, %v960
      %v1083 = vpack.c.b16 %v963, %v962
      %v1084 = vpack.c.b16 %v965, %v964
      %v1085 = vpack.c.b16 %v967, %v966
      %v1086 = vpack.c.b16 %v969, %v968
      %v1087 = vpack.c.b16 %v971, %v970
      %v1088 = vpack.c.b16 %v973, %v972
      %v1089 = vpack.c.b16 %v975, %v974
      %v1090 = vpack.c.b16 %v977, %v976
      %v1091 = vpack.c.b16 %v979, %v978
      %v1092 = vpack.c.b16 %v981, %v980
      %v1093 = vpack.c.b16 %v983, %v982
      %v1094 = vpack.c.b16 %v985, %v984
      %v1095 = vpack.c.b16 %v987, %v986
      %v1096 = vpack.c.b16 %v989, %v988
      %v1097 = vpack.c.b16 %v991, %v990
      %v1098 = vpack.c.b16 %v993, %v992
      %v1099 = vpack.c.b16 %v995, %v994
      %v1100 = vpack.c.b16 %v997, %v996
      %v1101 = vpack.c.b16 %v999, %v998
      %v1102 = vpack.c.b16 %v1001, %v1000
      %v1103 = vpack.c.b16 %v1003, %v1002
      %v1104 = vpack.c.b16 %v1005, %v1004
      %v1105 = vpack.c.b16 %v1007, %v1006
      %v1106 = vpack.c.b16 %v1009, %v1008
      %v1107 = vpack.c.b16 %v1011, %v1010
      %v1108 = vpack.c.b16 %v1013, %v1012
      %v1109 = vpack.c.b16 %v1015, %v1014
      %v1110 = vpack.c.b16 %v1017, %v1016
      %v1111 = vpack.c.b16 %v1019, %v1018
      %v1112 = vpack.c.b16 %v1021, %v1020
      %v1113 = vpack.c.b16 %v1023, %v1022
      %v1114 = vpack.c.b16 %v1025, %v1024
      %v1115 = vpack.c.b16 %v1027, %v1026
      %v1116 = vpack.c.b16 %v1029, %v1028
      %v1117 = vpack.c.b16 %v1031, %v1030
      %v1118 = vpack.c.b16 %v1033, %v1032
      %v1119 = vpack.c.b16 %v1035, %v1034
      %v1120 = vpack.c.b16 %v1037, %v1036
      %v1121 = vpack.c.b16 %v1039, %v1038
      %v1122 = vpack.c.b16 %v1041, %v1040
      %v1123 = vpack.c.b16 %v1043, %v1042
      %v1124 = vpack.c.b16 %v1045, %v1044
      %v1125 = vpack.c.b16 %v1047, %v1046
      %v1126 = vpack.c.b16 %v1049, %v1048
      %v1127 = vpack.c.b16 %v1051, %v1050
      %v1128 = vpack.c.b16 %v1053, %v1052
      %v1129 = vpack.c.b16 %v1055, %v1054
      %v1130 = vpack.c.b16 %v1057, %v1056
      %v1131 = vpack.c.b16 %v1059, %v1058
      %v1132 = vpack.c.b16 %v1061, %v1060
      %v1133 = vpack.c.b16 %v1063, %v1062
      %v1134 = vpack.c.b16 %v1065, %v1064
      %v1135 = vpack.c.b16 %v1067, %v1066
      %v1136 = vpack.c.b16 %v1069, %v1068
      %v1137 = vpack.c.b16 %v1071, %v1070
      %v1138 = vpack.c.b16 %v1073, %v1072
      %v1139 = vpack.c.b16 %v1075, %v1074
      %1204 = vmatprep.subr.bf16.mxu0 0
      %1205 = vmatpush1.bf16.msra.mxu0 %v1076
      %1206 = vmatprep.subr.bf16.mxu0 0
      %1207 = vmatpush1.bf16.msra.mxu0 %v1077
      %1208 = vmatprep.subr.bf16.mxu0 0
      %1209 = vmatpush1.bf16.msra.mxu0 %v1078
      %1210 = vmatprep.subr.bf16.mxu0 0
      %1211 = vmatpush1.bf16.msra.mxu0 %v1079
      %1212 = vmatprep.subr.bf16.mxu0 0
      %1213 = vmatpush1.bf16.msra.mxu0 %v1080
      %1214 = vmatprep.subr.bf16.mxu0 0
      %1215 = vmatpush1.bf16.msra.mxu0 %v1081
      %1216 = vmatprep.subr.bf16.mxu0 0
      %1217 = vmatpush1.bf16.msra.mxu0 %v1082
      %1218 = vmatprep.subr.bf16.mxu0 0
      %1219 = vmatpush1.bf16.msra.mxu0 %v1083
      %1220 = vmatprep.subr.bf16.mxu0 0
      %1221 = vmatpush1.bf16.msra.mxu0 %v1084
      %1222 = vmatprep.subr.bf16.mxu0 0
      %1223 = vmatpush1.bf16.msra.mxu0 %v1085
      %1224 = vmatprep.subr.bf16.mxu0 0
      %1225 = vmatpush1.bf16.msra.mxu0 %v1086
      %1226 = vmatprep.subr.bf16.mxu0 0
      %1227 = vmatpush1.bf16.msra.mxu0 %v1087
      %1228 = vmatprep.subr.bf16.mxu0 0
      %1229 = vmatpush1.bf16.msra.mxu0 %v1088
      %1230 = vmatprep.subr.bf16.mxu0 0
      %1231 = vmatpush1.bf16.msra.mxu0 %v1089
      %1232 = vmatprep.subr.bf16.mxu0 0
      %1233 = vmatpush1.bf16.msra.mxu0 %v1090
      %1234 = vmatprep.subr.bf16.mxu0 0
      %1235 = vmatpush1.bf16.msra.mxu0 %v1091
      %1236 = vmatprep.mubr.bf16.mxu0 %v693
      %1237 = vmatmul.mubr.bf16.gmra.mrb[0].mxu0 %v692
      %v1238 = vpop.f32.mrb[0].mxu0
      %v1239 = vadd.f32 0.0, %v1238
      %v1240 = vpop.f32.mrb[0].mxu0
      %v1241 = vpop.f32.mrb[0].mxu0
      %v1242 = vadd.f32 0.0, %v1241
      %v1243 = vpop.f32.mrb[0].mxu0
      %1244 = vmatprep.mubr.bf16.mxu0 %v701
      %1245 = vmatmul.mubr.bf16.gmra.mrb[0].mxu0 %v700
      %v1246 = vpop.f32.mrb[0].mxu0
      %v1247 = vadd.f32 0.0, %v1246
      %v1248 = vpop.f32.mrb[0].mxu0
      %v1249 = vpop.f32.mrb[0].mxu0
      %v1250 = vadd.f32 0.0, %v1249
      %v1251 = vpop.f32.mrb[0].mxu0
      %1252 = vmatprep.mubr.bf16.mxu0 %v709
      %1253 = vmatmul.mubr.bf16.gmra.mrb[0].mxu0 %v708
      %v1254 = vpop.f32.mrb[0].mxu0
      %v1255 = vadd.f32 0.0, %v1254
      %v1256 = vpop.f32.mrb[0].mxu0
      %v1257 = vpop.f32.mrb[0].mxu0
      %v1258 = vadd.f32 0.0, %v1257
      %v1259 = vpop.f32.mrb[0].mxu0
      %1260 = vmatprep.mubr.bf16.mxu0 %v717
      %1261 = vmatmul.mubr.bf16.gmra.mrb[0].mxu0 %v716
      %v1262 = vpop.f32.mrb[0].mxu0
      %v1263 = vadd.f32 0.0, %v1262
      %v1264 = vpop.f32.mrb[0].mxu0
      %v1265 = vpop.f32.mrb[0].mxu0
      %v1266 = vadd.f32 0.0, %v1265
      %v1267 = vpop.f32.mrb[0].mxu0
      %1268 = vmatprep.mubr.bf16.mxu0 %v725
      %1269 = vmatmul.mubr.bf16.gmra.mrb[0].mxu0 %v724
      %v1270 = vpop.f32.mrb[0].mxu0
      %v1271 = vadd.f32 0.0, %v1270
      %v1272 = vpop.f32.mrb[0].mxu0
      %v1273 = vpop.f32.mrb[0].mxu0
      %v1274 = vadd.f32 0.0, %v1273
      %v1275 = vpop.f32.mrb[0].mxu0
      %1276 = vmatprep.mubr.bf16.mxu0 %v733
      %1277 = vmatmul.mubr.bf16.gmra.mrb[0].mxu0 %v732
      %v1278 = vpop.f32.mrb[0].mxu0
      %v1279 = vadd.f32 0.0, %v1278
      %v1280 = vpop.f32.mrb[0].mxu0
      %v1281 = vpop.f32.mrb[0].mxu0
      %v1282 = vadd.f32 0.0, %v1281
      %v1283 = vpop.f32.mrb[0].mxu0
      %1284 = vmatprep.mubr.bf16.mxu0 %v741
      %1285 = vmatmul.mubr.bf16.gmra.mrb[0].mxu0 %v740
      %v1286 = vpop.f32.mrb[0].mxu0
      %v1287 = vadd.f32 0.0, %v1286
      %v1288 = vpop.f32.mrb[0].mxu0
      %v1289 = vpop.f32.mrb[0].mxu0
      %v1290 = vadd.f32 0.0, %v1289
      %v1291 = vpop.f32.mrb[0].mxu0
      %1292 = vmatprep.mubr.bf16.mxu0 %v749
      %1293 = vmatmul.mubr.bf16.gmra.mrb[0].mxu0 %v748
      %v1294 = vpop.f32.mrb[0].mxu0
      %v1295 = vadd.f32 0.0, %v1294
      %v1296 = vpop.f32.mrb[0].mxu0
      %v1297 = vpop.f32.mrb[0].mxu0
      %v1298 = vadd.f32 0.0, %v1297
      %v1299 = vpop.f32.mrb[0].mxu0
      %1300 = vdwg.mxu0
      %1301 = vmatprep.subr.bf16.mxu0 0
      %1302 = vmatpush1.bf16.msra.mxu0 %v1092
      %1303 = vmatprep.subr.bf16.mxu0 0
      %1304 = vmatpush1.bf16.msra.mxu0 %v1093
      %1305 = vmatprep.subr.bf16.mxu0 0
      %1306 = vmatpush1.bf16.msra.mxu0 %v1094
      %1307 = vmatprep.subr.bf16.mxu0 0
      %1308 = vmatpush1.bf16.msra.mxu0 %v1095
      %1309 = vmatprep.subr.bf16.mxu0 0
      %1310 = vmatpush1.bf16.msra.mxu0 %v1096
      %1311 = vmatprep.subr.bf16.mxu0 0
      %1312 = vmatpush1.bf16.msra.mxu0 %v1097
      %1313 = vmatprep.subr.bf16.mxu0 0
      %1314 = vmatpush1.bf16.msra.mxu0 %v1098
      %1315 = vmatprep.subr.bf16.mxu0 0
      %1316 = vmatpush1.bf16.msra.mxu0 %v1099
      %1317 = vmatprep.subr.bf16.mxu0 0
      %1318 = vmatpush1.bf16.msra.mxu0 %v1100
      %1319 = vmatprep.subr.bf16.mxu0 0
      %1320 = vmatpush1.bf16.msra.mxu0 %v1101
      %1321 = vmatprep.subr.bf16.mxu0 0
      %1322 = vmatpush1.bf16.msra.mxu0 %v1102
      %1323 = vmatprep.subr.bf16.mxu0 0
      %1324 = vmatpush1.bf16.msra.mxu0 %v1103
      %1325 = vmatprep.subr.bf16.mxu0 0
      %1326 = vmatpush1.bf16.msra.mxu0 %v1104
      %1327 = vmatprep.subr.bf16.mxu0 0
      %1328 = vmatpush1.bf16.msra.mxu0 %v1105
      %1329 = vmatprep.subr.bf16.mxu0 0
      %1330 = vmatpush1.bf16.msra.mxu0 %v1106
      %1331 = vmatprep.subr.bf16.mxu0 0
      %1332 = vmatpush1.bf16.msra.mxu0 %v1107
      %1333 = vmatprep.mubr.bf16.mxu0 %v695
      %1334 = vmatmul.mubr.bf16.gmra.mrb[0].mxu0 %v694
      %v1335 = vpop.f32.mrb[0].mxu0
      %v1336 = vadd.f32 %v1239, %v1335
      %v1337 = vpop.f32.mrb[0].mxu0
      %v1338 = vpop.f32.mrb[0].mxu0
      %v1339 = vadd.f32 %v1242, %v1338
      %v1340 = vpop.f32.mrb[0].mxu0
      %1341 = vmatprep.mubr.bf16.mxu0 %v703
      %1342 = vmatmul.mubr.bf16.gmra.mrb[0].mxu0 %v702
      %v1343 = vpop.f32.mrb[0].mxu0
      %v1344 = vadd.f32 %v1247, %v1343
      %v1345 = vpop.f32.mrb[0].mxu0
      %v1346 = vpop.f32.mrb[0].mxu0
      %v1347 = vadd.f32 %v1250, %v1346
      %v1348 = vpop.f32.mrb[0].mxu0
      %1349 = vmatprep.mubr.bf16.mxu0 %v711
      %1350 = vmatmul.mubr.bf16.gmra.mrb[0].mxu0 %v710
      %v1351 = vpop.f32.mrb[0].mxu0
      %v1352 = vadd.f32 %v1255, %v1351
      %v1353 = vpop.f32.mrb[0].mxu0
      %v1354 = vpop.f32.mrb[0].mxu0
      %v1355 = vadd.f32 %v1258, %v1354
      %v1356 = vpop.f32.mrb[0].mxu0
      %1357 = vmatprep.mubr.bf16.mxu0 %v719
      %1358 = vmatmul.mubr.bf16.gmra.mrb[0].mxu0 %v718
      %v1359 = vpop.f32.mrb[0].mxu0
      %v1360 = vadd.f32 %v1263, %v1359
      %v1361 = vpop.f32.mrb[0].mxu0
      %v1362 = vpop.f32.mrb[0].mxu0
      %v1363 = vadd.f32 %v1266, %v1362
      %v1364 = vpop.f32.mrb[0].mxu0
      %1365 = vmatprep.mubr.bf16.mxu0 %v727
      %1366 = vmatmul.mubr.bf16.gmra.mrb[0].mxu0 %v726
      %v1367 = vpop.f32.mrb[0].mxu0
      %v1368 = vadd.f32 %v1271, %v1367
      %v1369 = vpop.f32.mrb[0].mxu0
      %v1370 = vpop.f32.mrb[0].mxu0
      %v1371 = vadd.f32 %v1274, %v1370
      %v1372 = vpop.f32.mrb[0].mxu0
      %1373 = vmatprep.mubr.bf16.mxu0 %v735
      %1374 = vmatmul.mubr.bf16.gmra.mrb[0].mxu0 %v734
      %v1375 = vpop.f32.mrb[0].mxu0
      %v1376 = vadd.f32 %v1279, %v1375
      %v1377 = vpop.f32.mrb[0].mxu0
      %v1378 = vpop.f32.mrb[0].mxu0
      %v1379 = vadd.f32 %v1282, %v1378
      %v1380 = vpop.f32.mrb[0].mxu0
      %1381 = vmatprep.mubr.bf16.mxu0 %v743
      %1382 = vmatmul.mubr.bf16.gmra.mrb[0].mxu0 %v742
      %v1383 = vpop.f32.mrb[0].mxu0
      %v1384 = vadd.f32 %v1287, %v1383
      %v1385 = vpop.f32.mrb[0].mxu0
      %v1386 = vpop.f32.mrb[0].mxu0
      %v1387 = vadd.f32 %v1290, %v1386
      %v1388 = vpop.f32.mrb[0].mxu0
      %1389 = vmatprep.mubr.bf16.mxu0 %v751
      %1390 = vmatmul.mubr.bf16.gmra.mrb[0].mxu0 %v750
      %v1391 = vpop.f32.mrb[0].mxu0
      %v1392 = vadd.f32 %v1295, %v1391
      %v1393 = vpop.f32.mrb[0].mxu0
      %v1394 = vpop.f32.mrb[0].mxu0
      %v1395 = vadd.f32 %v1298, %v1394
      %v1396 = vpop.f32.mrb[0].mxu0
      %1397 = vdwg.mxu0
      %1398 = vmatprep.subr.bf16.mxu0 0
      %1399 = vmatpush1.bf16.msra.mxu0 %v1108
      %1400 = vmatprep.subr.bf16.mxu0 0
      %1401 = vmatpush1.bf16.msra.mxu0 %v1109
      %1402 = vmatprep.subr.bf16.mxu0 0
      %1403 = vmatpush1.bf16.msra.mxu0 %v1110
      %1404 = vmatprep.subr.bf16.mxu0 0
      %1405 = vmatpush1.bf16.msra.mxu0 %v1111
      %1406 = vmatprep.subr.bf16.mxu0 0
      %1407 = vmatpush1.bf16.msra.mxu0 %v1112
      %1408 = vmatprep.subr.bf16.mxu0 0
      %1409 = vmatpush1.bf16.msra.mxu0 %v1113
      %1410 = vmatprep.subr.bf16.mxu0 0
      %1411 = vmatpush1.bf16.msra.mxu0 %v1114
      %1412 = vmatprep.subr.bf16.mxu0 0
      %1413 = vmatpush1.bf16.msra.mxu0 %v1115
      %1414 = vmatprep.subr.bf16.mxu0 0
      %1415 = vmatpush1.bf16.msra.mxu0 %v1116
      %1416 = vmatprep.subr.bf16.mxu0 0
      %1417 = vmatpush1.bf16.msra.mxu0 %v1117
      %1418 = vmatprep.subr.bf16.mxu0 0
      %1419 = vmatpush1.bf16.msra.mxu0 %v1118
      %1420 = vmatprep.subr.bf16.mxu0 0
      %1421 = vmatpush1.bf16.msra.mxu0 %v1119
      %1422 = vmatprep.subr.bf16.mxu0 0
      %1423 = vmatpush1.bf16.msra.mxu0 %v1120
      %1424 = vmatprep.subr.bf16.mxu0 0
      %1425 = vmatpush1.bf16.msra.mxu0 %v1121
      %1426 = vmatprep.subr.bf16.mxu0 0
      %1427 = vmatpush1.bf16.msra.mxu0 %v1122
      %1428 = vmatprep.subr.bf16.mxu0 0
      %1429 = vmatpush1.bf16.msra.mxu0 %v1123
      %1430 = vmatprep.mubr.bf16.mxu0 %v697
      %1431 = vmatmul.mubr.bf16.gmra.mrb[0].mxu0 %v696
      %v1432 = vpop.f32.mrb[0].mxu0
      %v1433 = vadd.f32 %v1336, %v1432
      %v1434 = vpop.f32.mrb[0].mxu0
      %v1435 = vpop.f32.mrb[0].mxu0
      %v1436 = vadd.f32 %v1339, %v1435
      %v1437 = vpop.f32.mrb[0].mxu0
      %1438 = vmatprep.mubr.bf16.mxu0 %v705
      %1439 = vmatmul.mubr.bf16.gmra.mrb[0].mxu0 %v704
      %v1440 = vpop.f32.mrb[0].mxu0
      %v1441 = vadd.f32 %v1344, %v1440
      %v1442 = vpop.f32.mrb[0].mxu0
      %v1443 = vpop.f32.mrb[0].mxu0
      %v1444 = vadd.f32 %v1347, %v1443
      %v1445 = vpop.f32.mrb[0].mxu0
      %1446 = vmatprep.mubr.bf16.mxu0 %v713
      %1447 = vmatmul.mubr.bf16.gmra.mrb[0].mxu0 %v712
      %v1448 = vpop.f32.mrb[0].mxu0
      %v1449 = vadd.f32 %v1352, %v1448
      %v1450 = vpop.f32.mrb[0].mxu0
      %v1451 = vpop.f32.mrb[0].mxu0
      %v1452 = vadd.f32 %v1355, %v1451
      %v1453 = vpop.f32.mrb[0].mxu0
      %1454 = vmatprep.mubr.bf16.mxu0 %v721
      %1455 = vmatmul.mubr.bf16.gmra.mrb[0].mxu0 %v720
      %v1456 = vpop.f32.mrb[0].mxu0
      %v1457 = vadd.f32 %v1360, %v1456
      %v1458 = vpop.f32.mrb[0].mxu0
      %v1459 = vpop.f32.mrb[0].mxu0
      %v1460 = vadd.f32 %v1363, %v1459
      %v1461 = vpop.f32.mrb[0].mxu0
      %1462 = vmatprep.mubr.bf16.mxu0 %v729
      %1463 = vmatmul.mubr.bf16.gmra.mrb[0].mxu0 %v728
      %v1464 = vpop.f32.mrb[0].mxu0
      %v1465 = vadd.f32 %v1368, %v1464
      %v1466 = vpop.f32.mrb[0].mxu0
      %v1467 = vpop.f32.mrb[0].mxu0
      %v1468 = vadd.f32 %v1371, %v1467
      %v1469 = vpop.f32.mrb[0].mxu0
      %1470 = vmatprep.mubr.bf16.mxu0 %v737
      %1471 = vmatmul.mubr.bf16.gmra.mrb[0].mxu0 %v736
      %v1472 = vpop.f32.mrb[0].mxu0
      %v1473 = vadd.f32 %v1376, %v1472
      %v1474 = vpop.f32.mrb[0].mxu0
      %v1475 = vpop.f32.mrb[0].mxu0
      %v1476 = vadd.f32 %v1379, %v1475
      %v1477 = vpop.f32.mrb[0].mxu0
      %1478 = vmatprep.mubr.bf16.mxu0 %v745
      %1479 = vmatmul.mubr.bf16.gmra.mrb[0].mxu0 %v744
      %v1480 = vpop.f32.mrb[0].mxu0
      %v1481 = vadd.f32 %v1384, %v1480
      %v1482 = vpop.f32.mrb[0].mxu0
      %v1483 = vpop.f32.mrb[0].mxu0
      %v1484 = vadd.f32 %v1387, %v1483
      %v1485 = vpop.f32.mrb[0].mxu0
      %1486 = vmatprep.mubr.bf16.mxu0 %v753
      %1487 = vmatmul.mubr.bf16.gmra.mrb[0].mxu0 %v752
      %v1488 = vpop.f32.mrb[0].mxu0
      %v1489 = vadd.f32 %v1392, %v1488
      %v1490 = vpop.f32.mrb[0].mxu0
      %v1491 = vpop.f32.mrb[0].mxu0
      %v1492 = vadd.f32 %v1395, %v1491
      %v1493 = vpop.f32.mrb[0].mxu0
      %1494 = vdwg.mxu0
      %1495 = vmatprep.subr.bf16.mxu0 0
      %1496 = vmatpush1.bf16.msra.mxu0 %v1124
      %1497 = vmatprep.subr.bf16.mxu0 0
      %1498 = vmatpush1.bf16.msra.mxu0 %v1125
      %1499 = vmatprep.subr.bf16.mxu0 0
      %1500 = vmatpush1.bf16.msra.mxu0 %v1126
      %1501 = vmatprep.subr.bf16.mxu0 0
      %1502 = vmatpush1.bf16.msra.mxu0 %v1127
      %1503 = vmatprep.subr.bf16.mxu0 0
      %1504 = vmatpush1.bf16.msra.mxu0 %v1128
      %1505 = vmatprep.subr.bf16.mxu0 0
      %1506 = vmatpush1.bf16.msra.mxu0 %v1129
      %1507 = vmatprep.subr.bf16.mxu0 0
      %1508 = vmatpush1.bf16.msra.mxu0 %v1130
      %1509 = vmatprep.subr.bf16.mxu0 0
      %1510 = vmatpush1.bf16.msra.mxu0 %v1131
      %1511 = vmatprep.subr.bf16.mxu0 0
      %1512 = vmatpush1.bf16.msra.mxu0 %v1132
      %1513 = vmatprep.subr.bf16.mxu0 0
      %1514 = vmatpush1.bf16.msra.mxu0 %v1133
      %1515 = vmatprep.subr.bf16.mxu0 0
      %1516 = vmatpush1.bf16.msra.mxu0 %v1134
      %1517 = vmatprep.subr.bf16.mxu0 0
      %1518 = vmatpush1.bf16.msra.mxu0 %v1135
      %1519 = vmatprep.subr.bf16.mxu0 0
      %1520 = vmatpush1.bf16.msra.mxu0 %v1136
      %1521 = vmatprep.subr.bf16.mxu0 0
      %1522 = vmatpush1.bf16.msra.mxu0 %v1137
      %1523 = vmatprep.subr.bf16.mxu0 0
      %1524 = vmatpush1.bf16.msra.mxu0 %v1138
      %1525 = vmatprep.subr.bf16.mxu0 0
      %1526 = vmatpush1.bf16.msra.mxu0 %v1139
      %1527 = vmatprep.mubr.bf16.mxu0 %v699
      %1528 = vmatmul.mubr.bf16.gmra.mrb[0].mxu0 %v698
      %v1529 = vpop.f32.mrb[0].mxu0
      %v1530 = vadd.f32 %v1433, %v1529
      %v1531 = vpop.f32.mrb[0].mxu0
      %v1532 = vpop.f32.mrb[0].mxu0
      %v1533 = vadd.f32 %v1436, %v1532
      %v1534 = vpop.f32.mrb[0].mxu0
      %1535 = vmatprep.mubr.bf16.mxu0 %v707
      %1536 = vmatmul.mubr.bf16.gmra.mrb[0].mxu0 %v706
      %v1537 = vpop.f32.mrb[0].mxu0
      %v1538 = vadd.f32 %v1441, %v1537
      %v1539 = vpop.f32.mrb[0].mxu0
      %v1540 = vpop.f32.mrb[0].mxu0
      %v1541 = vadd.f32 %v1444, %v1540
      %v1542 = vpop.f32.mrb[0].mxu0
      %1543 = vmatprep.mubr.bf16.mxu0 %v715
      %1544 = vmatmul.mubr.bf16.gmra.mrb[0].mxu0 %v714
      %v1545 = vpop.f32.mrb[0].mxu0
      %v1546 = vadd.f32 %v1449, %v1545
      %v1547 = vpop.f32.mrb[0].mxu0
      %v1548 = vpop.f32.mrb[0].mxu0
      %v1549 = vadd.f32 %v1452, %v1548
      %v1550 = vpop.f32.mrb[0].mxu0
      %1551 = vmatprep.mubr.bf16.mxu0 %v723
      %1552 = vmatmul.mubr.bf16.gmra.mrb[0].mxu0 %v722
      %v1553 = vpop.f32.mrb[0].mxu0
      %v1554 = vadd.f32 %v1457, %v1553
      %v1555 = vpop.f32.mrb[0].mxu0
      %v1556 = vpop.f32.mrb[0].mxu0
      %v1557 = vadd.f32 %v1460, %v1556
      %v1558 = vpop.f32.mrb[0].mxu0
      %1559 = vmatprep.mubr.bf16.mxu0 %v731
      %1560 = vmatmul.mubr.bf16.gmra.mrb[0].mxu0 %v730
      %v1561 = vpop.f32.mrb[0].mxu0
      %v1562 = vadd.f32 %v1465, %v1561
      %v1563 = vpop.f32.mrb[0].mxu0
      %v1564 = vpop.f32.mrb[0].mxu0
      %v1565 = vadd.f32 %v1468, %v1564
      %v1566 = vpop.f32.mrb[0].mxu0
      %1567 = vmatprep.mubr.bf16.mxu0 %v739
      %1568 = vmatmul.mubr.bf16.gmra.mrb[0].mxu0 %v738
      %v1569 = vpop.f32.mrb[0].mxu0
      %v1570 = vadd.f32 %v1473, %v1569
      %v1571 = vpop.f32.mrb[0].mxu0
      %v1572 = vpop.f32.mrb[0].mxu0
      %v1573 = vadd.f32 %v1476, %v1572
      %v1574 = vpop.f32.mrb[0].mxu0
      %1575 = vmatprep.mubr.bf16.mxu0 %v747
      %1576 = vmatmul.mubr.bf16.gmra.mrb[0].mxu0 %v746
      %v1577 = vpop.f32.mrb[0].mxu0
      %v1578 = vadd.f32 %v1481, %v1577
      %v1579 = vpop.f32.mrb[0].mxu0
      %v1580 = vpop.f32.mrb[0].mxu0
      %v1581 = vadd.f32 %v1484, %v1580
      %v1582 = vpop.f32.mrb[0].mxu0
      %1583 = vmatprep.mubr.bf16.mxu0 %v755
      %1584 = vmatmul.mubr.bf16.gmra.mrb[0].mxu0 %v754
      %v1585 = vpop.f32.mrb[0].mxu0
      %v1586 = vadd.f32 %v1489, %v1585
      %v1587 = vpop.f32.mrb[0].mxu0
      %v1588 = vpop.f32.mrb[0].mxu0
      %v1589 = vadd.f32 %v1492, %v1588
      %v1590 = vpop.f32.mrb[0].mxu0
      %1591 = vdwg.mxu0
      %v1592 = vadd.f32 %v292, %v1530
      %v1593 = vadd.f32 %v293, %v1533
      %v1594 = vadd.f32 %v294, %v1538
      %v1595 = vadd.f32 %v295, %v1541
      %v1596 = vadd.f32 %v296, %v1546
      %v1597 = vadd.f32 %v297, %v1549
      %v1598 = vadd.f32 %v298, %v1554
      %v1599 = vadd.f32 %v299, %v1557
      %v1600 = vadd.f32 %v300, %v1562
      %v1601 = vadd.f32 %v301, %v1565
      %v1602 = vadd.f32 %v302, %v1570
      %v1603 = vadd.f32 %v303, %v1573
      %v1604 = vadd.f32 %v304, %v1578
      %v1605 = vadd.f32 %v305, %v1581
      %v1606 = vadd.f32 %v306, %v1586
      %v1607 = vadd.f32 %v307, %v1589
      %1608 = vst [vmem:[#allocation2] sm:$0xff] %v1592
      %1609 = vst [vmem:[#allocation2 + $0x8] sm:$0xff] %v1593
      %1610 = vst [vmem:[#allocation2 + $0x10] sm:$0xff] %v1594
      %1611 = vst [vmem:[#allocation2 + $0x18] sm:$0xff] %v1595
      %1612 = vst [vmem:[#allocation2 + $0x20] sm:$0xff] %v1596
      %1613 = vst [vmem:[#allocation2 + $0x28] sm:$0xff] %v1597
      %1614 = vst [vmem:[#allocation2 + $0x30] sm:$0xff] %v1598
      %1615 = vst [vmem:[#allocation2 + $0x38] sm:$0xff] %v1599
      %1616 = vst [vmem:[#allocation2 + $0x40] sm:$0xff] %v1600
      %1617 = vst [vmem:[#allocation2 + $0x48] sm:$0xff] %v1601
      %1618 = vst [vmem:[#allocation2 + $0x50] sm:$0xff] %v1602
      %1619 = vst [vmem:[#allocation2 + $0x58] sm:$0xff] %v1603
      %1620 = vst [vmem:[#allocation2 + $0x60] sm:$0xff] %v1604
      %1621 = vst [vmem:[#allocation2 + $0x68] sm:$0xff] %v1605
      %1622 = vst [vmem:[#allocation2 + $0x70] sm:$0xff] %v1606
      %1623 = vst [vmem:[#allocation2 + $0x78] sm:$0xff] %v1607
      // Predicated region
      $region33: #{generator_forward.11} parent=27 // pred_check
        %p1624 = pneg %p272
      $region34: #{generator_forward.11} parent=27 // pred_check_branch
        %1626 = sbr.rel (%p1624) target = $region36
      $region35: #{generator_forward.11} parent=27 // pred_region
        %v1627 = vld [vmem:[#allocation2] sm:$0xff]
        %v1628 = vld [vmem:[#allocation2 + $0x8] sm:$0xff]
        %v1629 = vld [vmem:[#allocation2 + $0x10] sm:$0xff]
        %v1630 = vld [vmem:[#allocation2 + $0x18] sm:$0xff]
        %v1631 = vld [vmem:[#allocation2 + $0x20] sm:$0xff]
        %v1632 = vld [vmem:[#allocation2 + $0x28] sm:$0xff]
        %v1633 = vld [vmem:[#allocation2 + $0x30] sm:$0xff]
        %v1634 = vld [vmem:[#allocation2 + $0x38] sm:$0xff]
        %v1635 = vld [vmem:[#allocation2 + $0x40] sm:$0xff]
        %v1636 = vld [vmem:[#allocation2 + $0x48] sm:$0xff]
        %v1637 = vld [vmem:[#allocation2 + $0x50] sm:$0xff]
        %v1638 = vld [vmem:[#allocation2 + $0x58] sm:$0xff]
        %v1639 = vld [vmem:[#allocation2 + $0x60] sm:$0xff]
        %v1640 = vld [vmem:[#allocation2 + $0x68] sm:$0xff]
        %v1641 = vld [vmem:[#allocation2 + $0x70] sm:$0xff]
        %v1642 = vld [vmem:[#allocation2 + $0x78] sm:$0xff]
        %1643 = vst [vmem:[%s269] sm:$0xff] %v1627
        %1644 = vst [vmem:[%s269 + $0x8] sm:$0xff] %v1628
        %1645 = vst [vmem:[%s269 + $0x10] sm:$0xff] %v1629
        %1646 = vst [vmem:[%s269 + $0x18] sm:$0xff] %v1630
        %1647 = vst [vmem:[%s269 + $0x20] sm:$0xff] %v1631
        %1648 = vst [vmem:[%s269 + $0x28] sm:$0xff] %v1632
        %1649 = vst [vmem:[%s269 + $0x30] sm:$0xff] %v1633
        %1650 = vst [vmem:[%s269 + $0x38] sm:$0xff] %v1634
        %1651 = vst [vmem:[%s269 + $0x40] sm:$0xff] %v1635
        %1652 = vst [vmem:[%s269 + $0x48] sm:$0xff] %v1636
        %1653 = vst [vmem:[%s269 + $0x50] sm:$0xff] %v1637
        %1654 = vst [vmem:[%s269 + $0x58] sm:$0xff] %v1638
        %1655 = vst [vmem:[%s269 + $0x60] sm:$0xff] %v1639
        %1656 = vst [vmem:[%s269 + $0x68] sm:$0xff] %v1640
        %1657 = vst [vmem:[%s269 + $0x70] sm:$0xff] %v1641
        %1658 = vst [vmem:[%s269 + $0x78] sm:$0xff] %v1642
      $region36: #{generator_forward.11} parent=27 // pred_fallthru
        _
      %s1659 = smul.u32 16, %s20
      %p1660 = scmp.lt.s32.totalorder %s19, 3
      %s1661 = scalar_select %p1660, %s19, 3
      %p1662 = scmp.lt.s32.totalorder %s1659, 15
      %s1663 = scalar_select %p1662, %s1659, 15
      %p1664 = scmp.lt.s32.totalorder %s21, 0
      %s1665 = scalar_select %p1664, %s21, 0
      %s1666 = sadd.s32 %s1665, %s1663
      %s1667 = smul.addr %s1661, 16
      %s1668 = sadd.s32 %s1666, %s1667
      %s1669 = smul.addr %s1668, 8
      %s1670 = scalar_lea.vmem %s2, %s1669
      // Predicated region
      $region37: #{generator_forward.11} parent=27 // pred_check
        %p1671 = pneg %p121
      $region38: #{generator_forward.11} parent=27 // pred_check_branch
        %1673 = sbr.rel (%p1671) target = $region40
      $region39: #{generator_forward.11} parent=27 // pred_region
        %s1674 = smul.u32 16, %s20
      $region40: #{generator_forward.11} parent=27 // pred_fallthru
        _
    $region28: #{generator_forward.11} parent=5 // pred_fallthru
      _
    %p1675 = scmp.le.s32.totalorder 2, %s8
    // Predicated region
    $region41: #{generator_forward.11} parent=5 // pred_check
      %p1676 = pneg %p1675
    $region42: #{generator_forward.11} parent=5 // pred_check_branch
      %1678 = sbr.rel (%p1676) target = $region44
    $region43: #{generator_forward.11} parent=5 // pred_region
      %s1679 = ssub.s32 %s8, 2
      // Predicated region
      $region45: #{generator_forward.11} parent=43 // pred_check
        %p1680 = pneg %p127
      $region46: #{generator_forward.11} parent=43 // pred_check_branch
        %1682 = sbr.rel (%p1680) target = $region48
      $region47: #{generator_forward.11} parent=43 // pred_region
        %s1683 = smul.u32 16, %s24
        %p1684 = scmp.lt.s32.totalorder %s23, 3
        %s1685 = scalar_select %p1684, %s23, 3
        %p1686 = scmp.lt.s32.totalorder %s1683, 15
        %s1687 = scalar_select %p1686, %s1683, 15
        %p1688 = scmp.lt.s32.totalorder %s25, 0
        %s1689 = scalar_select %p1688, %s25, 0
        %s1690 = sadd.s32 %s1689, %s1687
        %s1691 = smul.addr %s1685, 16
        %s1692 = sadd.s32 %s1690, %s1691
        %s1693 = smul.addr %s1692, 8
        %s1694 = scalar_lea.vmem %s2, %s1693
      $region48: #{generator_forward.11} parent=43 // pred_fallthru
        _
    $region44: #{generator_forward.11} parent=5 // pred_fallthru
      _
  $region6: #{generator_forward.11} parent=0 // loop_footer
    %s12 = sadd.s32 1, %s8
  $region7: #{generator_forward.11} parent=0 // loop_footer_branch
    %7 = sbr.rel target = $region3
  $region8: #{generator_forward.11} parent=0 // loop_exit
    _

// kernel: generator_forward.12
$region0: #{generator_forward.12}
  #allocation0 [shape = 'u32[]', space=smem, size = 0x4, offset = 0x4, fixed_abs, tag = 'smem constant byte address 0x4 - core index']
  #allocation1 [shape = 'u32[144,128]{1,0:T(1,128)}', space=vmem, size = 0x12000, scoped, tag = 'internal scratch']
  %s0 = inlined_call_operand.vmem [shape: f32[512,128], index: 0, kind: input, shape index: {}]
  %s1 = inlined_call_operand.vmem [shape: f32[1,128], index: 1, kind: input, shape index: {}]
  %s2 = inlined_call_operand.vmem [shape: f32[1,128], index: 2, kind: input, shape index: {}]
  %s3 = inlined_call_operand.vmem [shape: f32[512,128], index: 3, kind: output, shape index: {}]
  %s4 = sld [smem:[#allocation0]]
  $region22: #{generator_forward.12} parent=0
    _
  %s6 = ssub.s32 1, %s4
  %s7 = scalar_select 0, %s6, %s4
  // Predicated region
  $region2: #{generator_forward.12} parent=0 // pred_check
    _
  $region3: #{generator_forward.12} parent=0 // pred_check_branch
    %9 = sbr.rel (0) target = $region5
  $region4: #{generator_forward.12} parent=0 // pred_region
    _
  $region5: #{generator_forward.12} parent=0 // pred_fallthru
    _
  // Predicated region
  $region6: #{generator_forward.12} parent=0 // pred_check
    _
  $region7: #{generator_forward.12} parent=0 // pred_check_branch
    %11 = sbr.rel (0) target = $region9
  $region8: #{generator_forward.12} parent=0 // pred_region
    _
  $region9: #{generator_forward.12} parent=0 // pred_fallthru
    _
  // Predicated region
  $region10: #{generator_forward.12} parent=0 // pred_check
    _
  $region11: #{generator_forward.12} parent=0 // pred_check_branch
    %13 = sbr.rel (0) target = $region13
  $region12: #{generator_forward.12} parent=0 // pred_region
    _
  $region13: #{generator_forward.12} parent=0 // pred_fallthru
    _
  %v14 = vld [vmem:[%s0] sm:$0xff]
  %v15 = vld [vmem:[%s0 + $0x8] sm:$0xff]
  %v16 = vld [vmem:[%s0 + $0x10] sm:$0xff]
  %v17 = vld [vmem:[%s0 + $0x18] sm:$0xff]
  %v18 = vld [vmem:[%s0 + $0x20] sm:$0xff]
  %v19 = vld [vmem:[%s0 + $0x28] sm:$0xff]
  %v20 = vld [vmem:[%s0 + $0x30] sm:$0xff]
  %v21 = vld [vmem:[%s0 + $0x38] sm:$0xff]
  %v22 = vld [vmem:[%s0 + $0x40] sm:$0xff]
  %v23 = vld [vmem:[%s0 + $0x48] sm:$0xff]
  %v24 = vld [vmem:[%s0 + $0x50] sm:$0xff]
  %v25 = vld [vmem:[%s0 + $0x58] sm:$0xff]
  %v26 = vld [vmem:[%s0 + $0x60] sm:$0xff]
  %v27 = vld [vmem:[%s0 + $0x68] sm:$0xff]
  %v28 = vld [vmem:[%s0 + $0x70] sm:$0xff]
  %v29 = vld [vmem:[%s0 + $0x78] sm:$0xff]
  %v30 = vld [vmem:[%s0 + $0x80] sm:$0xff]
  %v31 = vld [vmem:[%s0 + $0x88] sm:$0xff]
  %v32 = vld [vmem:[%s0 + $0x90] sm:$0xff]
  %v33 = vld [vmem:[%s0 + $0x98] sm:$0xff]
  %v34 = vld [vmem:[%s0 + $0xa0] sm:$0xff]
  %v35 = vld [vmem:[%s0 + $0xa8] sm:$0xff]
  %v36 = vld [vmem:[%s0 + $0xb0] sm:$0xff]
  %v37 = vld [vmem:[%s0 + $0xb8] sm:$0xff]
  %v38 = vld [vmem:[%s0 + $0xc0] sm:$0xff]
  %v39 = vld [vmem:[%s0 + $0xc8] sm:$0xff]
  %v40 = vld [vmem:[%s0 + $0xd0] sm:$0xff]
  %v41 = vld [vmem:[%s0 + $0xd8] sm:$0xff]
  %v42 = vld [vmem:[%s0 + $0xe0] sm:$0xff]
  %v43 = vld [vmem:[%s0 + $0xe8] sm:$0xff]
  %v44 = vld [vmem:[%s0 + $0xf0] sm:$0xff]
  %v45 = vld [vmem:[%s0 + $0xf8] sm:$0xff]
  %v46 = vld [vmem:[%s0 + $0x100] sm:$0xff]
  %v47 = vld [vmem:[%s0 + $0x108] sm:$0xff]
  %v48 = vld [vmem:[%s0 + $0x110] sm:$0xff]
  %v49 = vld [vmem:[%s0 + $0x118] sm:$0xff]
  %v50 = vld [vmem:[%s0 + $0x120] sm:$0xff]
  %v51 = vld [vmem:[%s0 + $0x128] sm:$0xff]
  %v52 = vld [vmem:[%s0 + $0x130] sm:$0xff]
  %v53 = vld [vmem:[%s0 + $0x138] sm:$0xff]
  %v54 = vld [vmem:[%s0 + $0x140] sm:$0xff]
  %v55 = vld [vmem:[%s0 + $0x148] sm:$0xff]
  %v56 = vld [vmem:[%s0 + $0x150] sm:$0xff]
  %v57 = vld [vmem:[%s0 + $0x158] sm:$0xff]
  %v58 = vld [vmem:[%s0 + $0x160] sm:$0xff]
  %v59 = vld [vmem:[%s0 + $0x168] sm:$0xff]
  %v60 = vld [vmem:[%s0 + $0x170] sm:$0xff]
  %v61 = vld [vmem:[%s0 + $0x178] sm:$0xff]
  %v62 = vld [vmem:[%s0 + $0x180] sm:$0xff]
  %v63 = vld [vmem:[%s0 + $0x188] sm:$0xff]
  %v64 = vld [vmem:[%s0 + $0x190] sm:$0xff]
  %v65 = vld [vmem:[%s0 + $0x198] sm:$0xff]
  %v66 = vld [vmem:[%s0 + $0x1a0] sm:$0xff]
  %v67 = vld [vmem:[%s0 + $0x1a8] sm:$0xff]
  %v68 = vld [vmem:[%s0 + $0x1b0] sm:$0xff]
  %v69 = vld [vmem:[%s0 + $0x1b8] sm:$0xff]
  %v70 = vld [vmem:[%s0 + $0x1c0] sm:$0xff]
  %v71 = vld [vmem:[%s0 + $0x1c8] sm:$0xff]
  %v72 = vld [vmem:[%s0 + $0x1d0] sm:$0xff]
  %v73 = vld [vmem:[%s0 + $0x1d8] sm:$0xff]
  %v74 = vld [vmem:[%s0 + $0x1e0] sm:$0xff]
  %v75 = vld [vmem:[%s0 + $0x1e8] sm:$0xff]
  %v76 = vld [vmem:[%s0 + $0x1f0] sm:$0xff]
  %v77 = vld [vmem:[%s0 + $0x1f8] sm:$0xff]
  %v78 = vadd.f32 %v14, %v15
  %v79 = vadd.f32 %v78, %v16
  %v80 = vadd.f32 %v79, %v17
  %v81 = vadd.f32 %v80, %v18
  %v82 = vadd.f32 %v81, %v19
  %v83 = vadd.f32 %v82, %v20
  %v84 = vadd.f32 %v83, %v21
  %v85 = vadd.f32 %v84, %v22
  %v86 = vadd.f32 %v85, %v23
  %v87 = vadd.f32 %v86, %v24
  %v88 = vadd.f32 %v87, %v25
  %v89 = vadd.f32 %v88, %v26
  %v90 = vadd.f32 %v89, %v27
  %v91 = vadd.f32 %v90, %v28
  %v92 = vadd.f32 %v91, %v29
  %v93 = vadd.f32 %v92, %v30
  %v94 = vadd.f32 %v93, %v31
  %v95 = vadd.f32 %v94, %v32
  %v96 = vadd.f32 %v95, %v33
  %v97 = vadd.f32 %v96, %v34
  %v98 = vadd.f32 %v97, %v35
  %v99 = vadd.f32 %v98, %v36
  %v100 = vadd.f32 %v99, %v37
  %v101 = vadd.f32 %v100, %v38
  %v102 = vadd.f32 %v101, %v39
  %v103 = vadd.f32 %v102, %v40
  %v104 = vadd.f32 %v103, %v41
  %v105 = vadd.f32 %v104, %v42
  %v106 = vadd.f32 %v105, %v43
  %v107 = vadd.f32 %v106, %v44
  %v108 = vadd.f32 %v107, %v45
  %v109 = vadd.f32 %v108, %v46
  %v110 = vadd.f32 %v109, %v47
  %v111 = vadd.f32 %v110, %v48
  %v112 = vadd.f32 %v111, %v49
  %v113 = vadd.f32 %v112, %v50
  %v114 = vadd.f32 %v113, %v51
  %v115 = vadd.f32 %v114, %v52
  %v116 = vadd.f32 %v115, %v53
  %v117 = vadd.f32 %v116, %v54
  %v118 = vadd.f32 %v117, %v55
  %v119 = vadd.f32 %v118, %v56
  %v120 = vadd.f32 %v119, %v57
  %v121 = vadd.f32 %v120, %v58
  %v122 = vadd.f32 %v121, %v59
  %v123 = vadd.f32 %v122, %v60
  %v124 = vadd.f32 %v123, %v61
  %v125 = vadd.f32 %v124, %v62
  %v126 = vadd.f32 %v125, %v63
  %v127 = vadd.f32 %v126, %v64
  %v128 = vadd.f32 %v127, %v65
  %v129 = vadd.f32 %v128, %v66
  %v130 = vadd.f32 %v129, %v67
  %v131 = vadd.f32 %v130, %v68
  %v132 = vadd.f32 %v131, %v69
  %v133 = vadd.f32 %v132, %v70
  %v134 = vadd.f32 %v133, %v71
  %v135 = vadd.f32 %v134, %v72
  %v136 = vadd.f32 %v135, %v73
  %v137 = vadd.f32 %v136, %v74
  %v138 = vadd.f32 %v137, %v75
  %v139 = vadd.f32 %v138, %v76
  %v140 = vadd.f32 %v139, %v77
  %v141 = vrot.slane %v140, 4
  %v142 = vadd.f32 %v140, %v141
  %v143 = vrot.slane %v142, 2
  %v144 = vadd.f32 %v142, %v143
  %v145 = vrot.slane %v144, 1
  %v146 = vadd.f32 %v144, %v145
  %v147 = vrcp.pop 512.0
  %v148 = vmul.f32 %v146, %v147
  %v149 = vsub.f32 %v14, %v148
  %v150 = vsub.f32 %v15, %v148
  %v151 = vsub.f32 %v16, %v148
  %v152 = vsub.f32 %v17, %v148
  %v153 = vsub.f32 %v18, %v148
  %v154 = vsub.f32 %v19, %v148
  %v155 = vsub.f32 %v20, %v148
  %v156 = vsub.f32 %v21, %v148
  %v157 = vsub.f32 %v22, %v148
  %v158 = vsub.f32 %v23, %v148
  %v159 = vsub.f32 %v24, %v148
  %v160 = vsub.f32 %v25, %v148
  %v161 = vsub.f32 %v26, %v148
  %v162 = vsub.f32 %v27, %v148
  %v163 = vsub.f32 %v28, %v148
  %v164 = vsub.f32 %v29, %v148
  %v165 = vsub.f32 %v30, %v148
  %v166 = vsub.f32 %v31, %v148
  %v167 = vsub.f32 %v32, %v148
  %v168 = vsub.f32 %v33, %v148
  %v169 = vsub.f32 %v34, %v148
  %v170 = vsub.f32 %v35, %v148
  %v171 = vsub.f32 %v36, %v148
  %v172 = vsub.f32 %v37, %v148
  %v173 = vsub.f32 %v38, %v148
  %v174 = vsub.f32 %v39, %v148
  %v175 = vsub.f32 %v40, %v148
  %v176 = vsub.f32 %v41, %v148
  %v177 = vsub.f32 %v42, %v148
  %v178 = vsub.f32 %v43, %v148
  %v179 = vsub.f32 %v44, %v148
  %v180 = vsub.f32 %v45, %v148
  %v181 = vsub.f32 %v46, %v148
  %v182 = vsub.f32 %v47, %v148
  %v183 = vsub.f32 %v48, %v148
  %v184 = vsub.f32 %v49, %v148
  %v185 = vsub.f32 %v50, %v148
  %v186 = vsub.f32 %v51, %v148
  %v187 = vsub.f32 %v52, %v148
  %v188 = vsub.f32 %v53, %v148
  %v189 = vsub.f32 %v54, %v148
  %v190 = vsub.f32 %v55, %v148
  %v191 = vsub.f32 %v56, %v148
  %v192 = vsub.f32 %v57, %v148
  %v193 = vsub.f32 %v58, %v148
  %v194 = vsub.f32 %v59, %v148
  %v195 = vsub.f32 %v60, %v148
  %v196 = vsub.f32 %v61, %v148
  %v197 = vsub.f32 %v62, %v148
  %v198 = vsub.f32 %v63, %v148
  %v199 = vsub.f32 %v64, %v148
  %v200 = vsub.f32 %v65, %v148
  %v201 = vsub.f32 %v66, %v148
  %v202 = vsub.f32 %v67, %v148
  %v203 = vsub.f32 %v68, %v148
  %v204 = vsub.f32 %v69, %v148
  %v205 = vsub.f32 %v70, %v148
  %v206 = vsub.f32 %v71, %v148
  %v207 = vsub.f32 %v72, %v148
  %v208 = vsub.f32 %v73, %v148
  %v209 = vsub.f32 %v74, %v148
  %v210 = vsub.f32 %v75, %v148
  %v211 = vsub.f32 %v76, %v148
  %v212 = vsub.f32 %v77, %v148
  %v213 = vmul.f32 %v149, %v149
  %v214 = vmul.f32 %v150, %v150
  %v215 = vmul.f32 %v151, %v151
  %v216 = vmul.f32 %v152, %v152
  %v217 = vmul.f32 %v153, %v153
  %v218 = vmul.f32 %v154, %v154
  %v219 = vmul.f32 %v155, %v155
  %v220 = vmul.f32 %v156, %v156
  %v221 = vmul.f32 %v157, %v157
  %v222 = vmul.f32 %v158, %v158
  %v223 = vmul.f32 %v159, %v159
  %v224 = vmul.f32 %v160, %v160
  %v225 = vmul.f32 %v161, %v161
  %v226 = vmul.f32 %v162, %v162
  %v227 = vmul.f32 %v163, %v163
  %v228 = vmul.f32 %v164, %v164
  %v229 = vmul.f32 %v165, %v165
  %v230 = vmul.f32 %v166, %v166
  %v231 = vmul.f32 %v167, %v167
  %v232 = vmul.f32 %v168, %v168
  %v233 = vmul.f32 %v169, %v169
  %v234 = vmul.f32 %v170, %v170
  %v235 = vmul.f32 %v171, %v171
  %v236 = vmul.f32 %v172, %v172
  %v237 = vmul.f32 %v173, %v173
  %v238 = vmul.f32 %v174, %v174
  %v239 = vmul.f32 %v175, %v175
  %v240 = vmul.f32 %v176, %v176
  %v241 = vmul.f32 %v177, %v177
  %v242 = vmul.f32 %v178, %v178
  %v243 = vmul.f32 %v179, %v179
  %v244 = vmul.f32 %v180, %v180
  %v245 = vmul.f32 %v181, %v181
  %v246 = vmul.f32 %v182, %v182
  %v247 = vmul.f32 %v183, %v183
  %v248 = vmul.f32 %v184, %v184
  %v249 = vmul.f32 %v185, %v185
  %v250 = vmul.f32 %v186, %v186
  %v251 = vmul.f32 %v187, %v187
  %v252 = vmul.f32 %v188, %v188
  %v253 = vmul.f32 %v189, %v189
  %v254 = vmul.f32 %v190, %v190
  %v255 = vmul.f32 %v191, %v191
  %v256 = vmul.f32 %v192, %v192
  %v257 = vmul.f32 %v193, %v193
  %v258 = vmul.f32 %v194, %v194
  %v259 = vmul.f32 %v195, %v195
  %v260 = vmul.f32 %v196, %v196
  %v261 = vmul.f32 %v197, %v197
  %v262 = vmul.f32 %v198, %v198
  %v263 = vmul.f32 %v199, %v199
  %v264 = vmul.f32 %v200, %v200
  %v265 = vmul.f32 %v201, %v201
  %v266 = vmul.f32 %v202, %v202
  %v267 = vmul.f32 %v203, %v203
  %v268 = vmul.f32 %v204, %v204
  %v269 = vmul.f32 %v205, %v205
  %v270 = vmul.f32 %v206, %v206
  %v271 = vmul.f32 %v207, %v207
  %v272 = vmul.f32 %v208, %v208
  %v273 = vmul.f32 %v209, %v209
  %v274 = vmul.f32 %v210, %v210
  %v275 = vmul.f32 %v211, %v211
  %v276 = vmul.f32 %v212, %v212
  %v277 = vadd.f32 %v213, %v214
  %v278 = vadd.f32 %v277, %v215
  %v279 = vadd.f32 %v278, %v216
  %v280 = vadd.f32 %v279, %v217
  %v281 = vadd.f32 %v280, %v218
  %v282 = vadd.f32 %v281, %v219
  %v283 = vadd.f32 %v282, %v220
  %v284 = vadd.f32 %v283, %v221
  %v285 = vadd.f32 %v284, %v222
  %v286 = vadd.f32 %v285, %v223
  %v287 = vadd.f32 %v286, %v224
  %v288 = vadd.f32 %v287, %v225
  %v289 = vadd.f32 %v288, %v226
  %v290 = vadd.f32 %v289, %v227
  %v291 = vadd.f32 %v290, %v228
  %v292 = vadd.f32 %v291, %v229
  %v293 = vadd.f32 %v292, %v230
  %v294 = vadd.f32 %v293, %v231
  %v295 = vadd.f32 %v294, %v232
  %v296 = vadd.f32 %v295, %v233
  %v297 = vadd.f32 %v296, %v234
  %v298 = vadd.f32 %v297, %v235
  %v299 = vadd.f32 %v298, %v236
  %v300 = vadd.f32 %v299, %v237
  %v301 = vadd.f32 %v300, %v238
  %v302 = vadd.f32 %v301, %v239
  %v303 = vadd.f32 %v302, %v240
  %v304 = vadd.f32 %v303, %v241
  %v305 = vadd.f32 %v304, %v242
  %v306 = vadd.f32 %v305, %v243
  %v307 = vadd.f32 %v306, %v244
  %v308 = vadd.f32 %v307, %v245
  %v309 = vadd.f32 %v308, %v246
  %v310 = vadd.f32 %v309, %v247
  %v311 = vadd.f32 %v310, %v248
  %v312 = vadd.f32 %v311, %v249
  %v313 = vadd.f32 %v312, %v250
  %v314 = vadd.f32 %v313, %v251
  %v315 = vadd.f32 %v314, %v252
  %v316 = vadd.f32 %v315, %v253
  %v317 = vadd.f32 %v316, %v254
  %v318 = vadd.f32 %v317, %v255
  %v319 = vadd.f32 %v318, %v256
  %v320 = vadd.f32 %v319, %v257
  %v321 = vadd.f32 %v320, %v258
  %v322 = vadd.f32 %v321, %v259
  %v323 = vadd.f32 %v322, %v260
  %v324 = vadd.f32 %v323, %v261
  %v325 = vadd.f32 %v324, %v262
  %v326 = vadd.f32 %v325, %v263
  %v327 = vadd.f32 %v326, %v264
  %v328 = vadd.f32 %v327, %v265
  %v329 = vadd.f32 %v328, %v266
  %v330 = vadd.f32 %v329, %v267
  %v331 = vadd.f32 %v330, %v268
  %v332 = vadd.f32 %v331, %v269
  %v333 = vadd.f32 %v332, %v270
  %v334 = vadd.f32 %v333, %v271
  %v335 = vadd.f32 %v334, %v272
  %v336 = vadd.f32 %v335, %v273
  %v337 = vadd.f32 %v336, %v274
  %v338 = vadd.f32 %v337, %v275
  %v339 = vadd.f32 %v338, %v276
  %v340 = vrot.slane %v339, 4
  %v341 = vadd.f32 %v339, %v340
  %v342 = vrot.slane %v341, 2
  %v343 = vadd.f32 %v341, %v342
  %v344 = vrot.slane %v343, 1
  %v345 = vadd.f32 %v343, %v344
  %v346 = vmul.f32 %v345, %v147
  %v347 = vadd.f32 %v346, 1e-05
  %v348 = vrsqrt.pop %v347
  %v349 = vld [vmem:[%s1] sm:$0x1]
  %v350 = vmul.f32 %v349, %v348
  %v352 = vlaneseq
  %v353 = vshrl.u32 %v352, 7
  %v354 = vsub.s32 0, %v353
  %v355 = vrot.slane %v350, %v354
  %v357 = vmul.f32 %v149, %v355
  %v358 = vmul.f32 %v150, %v355
  %v359 = vmul.f32 %v151, %v355
  %v360 = vmul.f32 %v152, %v355
  %v361 = vmul.f32 %v153, %v355
  %v362 = vmul.f32 %v154, %v355
  %v363 = vmul.f32 %v155, %v355
  %v364 = vmul.f32 %v156, %v355
  %v365 = vmul.f32 %v157, %v355
  %v366 = vmul.f32 %v158, %v355
  %v367 = vmul.f32 %v159, %v355
  %v368 = vmul.f32 %v160, %v355
  %v369 = vmul.f32 %v161, %v355
  %v370 = vmul.f32 %v162, %v355
  %v371 = vmul.f32 %v163, %v355
  %v372 = vmul.f32 %v164, %v355
  %v373 = vmul.f32 %v165, %v355
  %v374 = vmul.f32 %v166, %v355
  %v375 = vmul.f32 %v167, %v355
  %v376 = vmul.f32 %v168, %v355
  %v377 = vmul.f32 %v169, %v355
  %v378 = vmul.f32 %v170, %v355
  %v379 = vmul.f32 %v171, %v355
  %v380 = vmul.f32 %v172, %v355
  %v381 = vmul.f32 %v173, %v355
  %v382 = vmul.f32 %v174, %v355
  %v383 = vmul.f32 %v175, %v355
  %v384 = vmul.f32 %v176, %v355
  %v385 = vmul.f32 %v177, %v355
  %v386 = vmul.f32 %v178, %v355
  %v387 = vmul.f32 %v179, %v355
  %v388 = vmul.f32 %v180, %v355
  %v389 = vmul.f32 %v181, %v355
  %v390 = vmul.f32 %v182, %v355
  %v391 = vmul.f32 %v183, %v355
  %v392 = vmul.f32 %v184, %v355
  %v393 = vmul.f32 %v185, %v355
  %v394 = vmul.f32 %v186, %v355
  %v395 = vmul.f32 %v187, %v355
  %v396 = vmul.f32 %v188, %v355
  %v397 = vmul.f32 %v189, %v355
  %v398 = vmul.f32 %v190, %v355
  %v399 = vmul.f32 %v191, %v355
  %v400 = vmul.f32 %v192, %v355
  %v401 = vmul.f32 %v193, %v355
  %v402 = vmul.f32 %v194, %v355
  %v403 = vmul.f32 %v195, %v355
  %v404 = vmul.f32 %v196, %v355
  %v405 = vmul.f32 %v197, %v355
  %v406 = vmul.f32 %v198, %v355
  %v407 = vmul.f32 %v199, %v355
  %v408 = vmul.f32 %v200, %v355
  %v409 = vmul.f32 %v201, %v355
  %v410 = vmul.f32 %v202, %v355
  %v411 = vmul.f32 %v203, %v355
  %v412 = vmul.f32 %v204, %v355
  %v413 = vmul.f32 %v205, %v355
  %v414 = vmul.f32 %v206, %v355
  %v415 = vmul.f32 %v207, %v355
  %v416 = vmul.f32 %v208, %v355
  %v417 = vmul.f32 %v209, %v355
  %v418 = vmul.f32 %v210, %v355
  %v419 = vmul.f32 %v211, %v355
  %v420 = vmul.f32 %v212, %v355
  %v421 = vld [vmem:[%s2] sm:$0x1]
  %v423 = vlaneseq
  %v424 = vshrl.u32 %v423, 7
  %v425 = vsub.s32 0, %v424
  %v426 = vrot.slane %v421, %v425
  %v428 = vadd.f32 %v357, %v426
  %v429 = vadd.f32 %v358, %v426
  %v430 = vadd.f32 %v359, %v426
  %v431 = vadd.f32 %v360, %v426
  %v432 = vadd.f32 %v361, %v426
  %v433 = vadd.f32 %v362, %v426
  %v434 = vadd.f32 %v363, %v426
  %v435 = vadd.f32 %v364, %v426
  %v436 = vadd.f32 %v365, %v426
  %v437 = vadd.f32 %v366, %v426
  %v438 = vadd.f32 %v367, %v426
  %v439 = vadd.f32 %v368, %v426
  %v440 = vadd.f32 %v369, %v426
  %v441 = vadd.f32 %v370, %v426
  %v442 = vadd.f32 %v371, %v426
  %v443 = vadd.f32 %v372, %v426
  %v444 = vadd.f32 %v373, %v426
  %v445 = vadd.f32 %v374, %v426
  %v446 = vadd.f32 %v375, %v426
  %v447 = vadd.f32 %v376, %v426
  %v448 = vadd.f32 %v377, %v426
  %v449 = vadd.f32 %v378, %v426
  %v450 = vadd.f32 %v379, %v426
  %v451 = vadd.f32 %v380, %v426
  %v452 = vadd.f32 %v381, %v426
  %v453 = vadd.f32 %v382, %v426
  %v454 = vadd.f32 %v383, %v426
  %v455 = vadd.f32 %v384, %v426
  %v456 = vadd.f32 %v385, %v426
  %v457 = vadd.f32 %v386, %v426
  %v458 = vadd.f32 %v387, %v426
  %v459 = vadd.f32 %v388, %v426
  %v460 = vadd.f32 %v389, %v426
  %v461 = vadd.f32 %v390, %v426
  %v462 = vadd.f32 %v391, %v426
  %v463 = vadd.f32 %v392, %v426
  %v464 = vadd.f32 %v393, %v426
  %v465 = vadd.f32 %v394, %v426
  %v466 = vadd.f32 %v395, %v426
  %v467 = vadd.f32 %v396, %v426
  %v468 = vadd.f32 %v397, %v426
  %v469 = vadd.f32 %v398, %v426
  %v470 = vadd.f32 %v399, %v426
  %v471 = vadd.f32 %v400, %v426
  %v472 = vadd.f32 %v401, %v426
  %v473 = vadd.f32 %v402, %v426
  %v474 = vadd.f32 %v403, %v426
  %v475 = vadd.f32 %v404, %v426
  %v476 = vadd.f32 %v405, %v426
  %v477 = vadd.f32 %v406, %v426
  %v478 = vadd.f32 %v407, %v426
  %v479 = vadd.f32 %v408, %v426
  %v480 = vadd.f32 %v409, %v426
  %v481 = vadd.f32 %v410, %v426
  %v482 = vadd.f32 %v411, %v426
  %v483 = vadd.f32 %v412, %v426
  %v484 = vadd.f32 %v413, %v426
  %v485 = vadd.f32 %v414, %v426
  %v486 = vadd.f32 %v415, %v426
  %v487 = vadd.f32 %v416, %v426
  %v488 = vadd.f32 %v417, %v426
  %v489 = vadd.f32 %v418, %v426
  %v490 = vadd.f32 %v419, %v426
  %v491 = vadd.f32 %v420, %v426
  %v492 = vmax.f32 %v428, 0.0
  %v493 = vmax.f32 %v429, 0.0
  %v494 = vmax.f32 %v430, 0.0
  %v495 = vmax.f32 %v431, 0.0
  %v496 = vmax.f32 %v432, 0.0
  %v497 = vmax.f32 %v433, 0.0
  %v498 = vmax.f32 %v434, 0.0
  %v499 = vmax.f32 %v435, 0.0
  %v500 = vmax.f32 %v436, 0.0
  %v501 = vmax.f32 %v437, 0.0
  %v502 = vmax.f32 %v438, 0.0
  %v503 = vmax.f32 %v439, 0.0
  %v504 = vmax.f32 %v440, 0.0
  %v505 = vmax.f32 %v441, 0.0
  %v506 = vmax.f32 %v442, 0.0
  %v507 = vmax.f32 %v443, 0.0
  %v508 = vmax.f32 %v444, 0.0
  %v509 = vmax.f32 %v445, 0.0
  %v510 = vmax.f32 %v446, 0.0
  %v511 = vmax.f32 %v447, 0.0
  %v512 = vmax.f32 %v448, 0.0
  %v513 = vmax.f32 %v449, 0.0
  %v514 = vmax.f32 %v450, 0.0
  %v515 = vmax.f32 %v451, 0.0
  %v516 = vmax.f32 %v452, 0.0
  %v517 = vmax.f32 %v453, 0.0
  %v518 = vmax.f32 %v454, 0.0
  %v519 = vmax.f32 %v455, 0.0
  %v520 = vmax.f32 %v456, 0.0
  %v521 = vmax.f32 %v457, 0.0
  %v522 = vmax.f32 %v458, 0.0
  %v523 = vmax.f32 %v459, 0.0
  %v524 = vmax.f32 %v460, 0.0
  %v525 = vmax.f32 %v461, 0.0
  %v526 = vmax.f32 %v462, 0.0
  %v527 = vmax.f32 %v463, 0.0
  %v528 = vmax.f32 %v464, 0.0
  %v529 = vmax.f32 %v465, 0.0
  %v530 = vmax.f32 %v466, 0.0
  %v531 = vmax.f32 %v467, 0.0
  %v532 = vmax.f32 %v468, 0.0
  %v533 = vmax.f32 %v469, 0.0
  %v534 = vmax.f32 %v470, 0.0
  %v535 = vmax.f32 %v471, 0.0
  %v536 = vmax.f32 %v472, 0.0
  %v537 = vmax.f32 %v473, 0.0
  %v538 = vmax.f32 %v474, 0.0
  %v539 = vmax.f32 %v475, 0.0
  %v540 = vmax.f32 %v476, 0.0
  %v541 = vmax.f32 %v477, 0.0
  %v542 = vmax.f32 %v478, 0.0
  %v543 = vmax.f32 %v479, 0.0
  %v544 = vmax.f32 %v480, 0.0
  %v545 = vmax.f32 %v481, 0.0
  %v546 = vmax.f32 %v482, 0.0
  %v547 = vmax.f32 %v483, 0.0
  %v548 = vmax.f32 %v484, 0.0
  %v549 = vmax.f32 %v485, 0.0
  %v550 = vmax.f32 %v486, 0.0
  %v551 = vmax.f32 %v487, 0.0
  %v552 = vmax.f32 %v488, 0.0
  %v553 = vmax.f32 %v489, 0.0
  %v554 = vmax.f32 %v490, 0.0
  %v555 = vmax.f32 %v491, 0.0
  %556 = vst [vmem:[%s3] sm:$0xff] %v492
  %557 = vst [vmem:[%s3 + $0x8] sm:$0xff] %v493
  %558 = vst [vmem:[%s3 + $0x10] sm:$0xff] %v494
  %559 = vst [vmem:[%s3 + $0x18] sm:$0xff] %v495
  %560 = vst [vmem:[%s3 + $0x20] sm:$0xff] %v496
  %561 = vst [vmem:[%s3 + $0x28] sm:$0xff] %v497
  %562 = vst [vmem:[%s3 + $0x30] sm:$0xff] %v498
  %563 = vst [vmem:[%s3 + $0x38] sm:$0xff] %v499
  %564 = vst [vmem:[%s3 + $0x40] sm:$0xff] %v500
  %565 = vst [vmem:[%s3 + $0x48] sm:$0xff] %v501
  %566 = vst [vmem:[%s3 + $0x50] sm:$0xff] %v502
  %567 = vst [vmem:[%s3 + $0x58] sm:$0xff] %v503
  %568 = vst [vmem:[%s3 + $0x60] sm:$0xff] %v504
  %569 = vst [vmem:[%s3 + $0x68] sm:$0xff] %v505
  %570 = vst [vmem:[%s3 + $0x70] sm:$0xff] %v506
  %571 = vst [vmem:[%s3 + $0x78] sm:$0xff] %v507
  %572 = vst [vmem:[%s3 + $0x80] sm:$0xff] %v508
  %573 = vst [vmem:[%s3 + $0x88] sm:$0xff] %v509
  %574 = vst [vmem:[%s3 + $0x90] sm:$0xff] %v510
  %575 = vst [vmem:[%s3 + $0x98] sm:$0xff] %v511
  %576 = vst [vmem:[%s3 + $0xa0] sm:$0xff] %v512
  %577 = vst [vmem:[%s3 + $0xa8] sm:$0xff] %v513
  %578 = vst [vmem:[%s3 + $0xb0] sm:$0xff] %v514
  %579 = vst [vmem:[%s3 + $0xb8] sm:$0xff] %v515
  %580 = vst [vmem:[%s3 + $0xc0] sm:$0xff] %v516
  %581 = vst [vmem:[%s3 + $0xc8] sm:$0xff] %v517
  %582 = vst [vmem:[%s3 + $0xd0] sm:$0xff] %v518
  %583 = vst [vmem:[%s3 + $0xd8] sm:$0xff] %v519
  %584 = vst [vmem:[%s3 + $0xe0] sm:$0xff] %v520
  %585 = vst [vmem:[%s3 + $0xe8] sm:$0xff] %v521
  %586 = vst [vmem:[%s3 + $0xf0] sm:$0xff] %v522
  %587 = vst [vmem:[%s3 + $0xf8] sm:$0xff] %v523
  %588 = vst [vmem:[%s3 + $0x100] sm:$0xff] %v524
  %589 = vst [vmem:[%s3 + $0x108] sm:$0xff] %v525
  %590 = vst [vmem:[%s3 + $0x110] sm:$0xff] %v526
  %591 = vst [vmem:[%s3 + $0x118] sm:$0xff] %v527
  %592 = vst [vmem:[%s3 + $0x120] sm:$0xff] %v528
  %593 = vst [vmem:[%s3 + $0x128] sm:$0xff] %v529
  %594 = vst [vmem:[%s3 + $0x130] sm:$0xff] %v530
  %595 = vst [vmem:[%s3 + $0x138] sm:$0xff] %v531
  %596 = vst [vmem:[%s3 + $0x140] sm:$0xff] %v532
  %597 = vst [vmem:[%s3 + $0x148] sm:$0xff] %v533
  %598 = vst [vmem:[%s3 + $0x150] sm:$0xff] %v534
  %599 = vst [vmem:[%s3 + $0x158] sm:$0xff] %v535
  %600 = vst [vmem:[%s3 + $0x160] sm:$0xff] %v536
  %601 = vst [vmem:[%s3 + $0x168] sm:$0xff] %v537
  %602 = vst [vmem:[%s3 + $0x170] sm:$0xff] %v538
  %603 = vst [vmem:[%s3 + $0x178] sm:$0xff] %v539
  %604 = vst [vmem:[%s3 + $0x180] sm:$0xff] %v540
  %605 = vst [vmem:[%s3 + $0x188] sm:$0xff] %v541
  %606 = vst [vmem:[%s3 + $0x190] sm:$0xff] %v542
  %607 = vst [vmem:[%s3 + $0x198] sm:$0xff] %v543
  %608 = vst [vmem:[%s3 + $0x1a0] sm:$0xff] %v544
  %609 = vst [vmem:[%s3 + $0x1a8] sm:$0xff] %v545
  %610 = vst [vmem:[%s3 + $0x1b0] sm:$0xff] %v546
  %611 = vst [vmem:[%s3 + $0x1b8] sm:$0xff] %v547
  %612 = vst [vmem:[%s3 + $0x1c0] sm:$0xff] %v548
  %613 = vst [vmem:[%s3 + $0x1c8] sm:$0xff] %v549
  %614 = vst [vmem:[%s3 + $0x1d0] sm:$0xff] %v550
  %615 = vst [vmem:[%s3 + $0x1d8] sm:$0xff] %v551
  %616 = vst [vmem:[%s3 + $0x1e0] sm:$0xff] %v552
  %617 = vst [vmem:[%s3 + $0x1e8] sm:$0xff] %v553
  %618 = vst [vmem:[%s3 + $0x1f0] sm:$0xff] %v554
  %619 = vst [vmem:[%s3 + $0x1f8] sm:$0xff] %v555
  // Predicated region
  $region14: #{generator_forward.12} parent=0 // pred_check
    _
  $region15: #{generator_forward.12} parent=0 // pred_check_branch
    %621 = sbr.rel (0) target = $region17
  $region16: #{generator_forward.12} parent=0 // pred_region
    _
  $region17: #{generator_forward.12} parent=0 // pred_fallthru
    _
  // Predicated region
  $region18: #{generator_forward.12} parent=0 // pred_check
    _
  $region19: #{generator_forward.12} parent=0 // pred_check_branch
    %623 = sbr.rel (0) target = $region21
  $region20: #{generator_forward.12} parent=0 // pred_region
    _
  $region21: #{generator_forward.12} parent=0 // pred_fallthru
    _

// kernel: generator_forward.13
$region0: #{generator_forward.13}
  #allocation0 [shape = 'u32[]', space=smem, size = 0x4, offset = 0x4, fixed_abs, tag = 'smem constant byte address 0x4 - core index']
  #allocation1 [shape = 'u32[144,128]{1,0:T(1,128)}', space=vmem, size = 0x12000, scoped, tag = 'internal scratch']
  #allocation2 [shape = 'f32[16,256]{1,0:T(8,128)}', space=vmem, size = 0x4000, scoped, tag = 'scratch operand']
  %s0 = inlined_call_operand.vmem [shape: bf16[4,16,512], index: 0, kind: input, shape index: {}]
  %s1 = inlined_call_operand.vmem [shape: bf16[4,512,512], index: 1, kind: input, shape index: {}]
  %s2 = inlined_call_operand.vmem [shape: f32[4,16,512], index: 2, kind: output, shape index: {}]
  %s3 = sld [smem:[#allocation0]]
  $region106: #{generator_forward.13} parent=0
    _
  %s5 = ssub.s32 1, %s3
  %s6 = scalar_select 0, %s5, %s3
  $region1: #{generator_forward.13} parent=0
    #allocation3 [shape = 'u8[524288]{0}', space=vmem, size = 0x80000, scoped, tag = 'input window, operand 1']
    #allocation4 [shape = 'u8[32768]{0}', space=vmem, size = 0x8000, scoped, tag = 'output window, operand 0']
    loop: start=0, step=1, limit=10
    $region2: #{generator_forward.13} parent=1 // loop_pre_header
      _
    $region3: #{generator_forward.13} parent=1 // loop_header
      %s8 = sphi 0, %s12
      %p9 = scmp.ge.s32.totalorder %s8, 10
      %s15 = sphi 0, %s41
      %s16 = sphi 0, %s37
      %s17 = sphi 0, %s33
      %s18 = sphi 0, %s29
      %s19 = sphi 0, %s15
      %s20 = sphi 0, %s16
      %s21 = sphi 0, %s17
      %s22 = sphi 0, %s18
      %s23 = sphi 0, %s19
      %s24 = sphi 0, %s20
      %s25 = sphi 0, %s21
      %s26 = sphi 0, %s22
      %s48 = sphi 0, %s50
      %s51 = sphi 0, %s48
      %s52 = sphi 0, %s51
      %s68 = sphi 0, %s52
      %s78 = sphi 0, %s80
      %s81 = sphi 0, %s78
      %s82 = sphi 0, %s81
      %s98 = sphi 0, %s82
      %s108 = sphi 0, %s110
      %s111 = sphi 0, %s108
      %s112 = sphi 0, %s111
      %s128 = sphi 0, %s112
    $region4: #{generator_forward.13} parent=1 // loop_header_branch
      %11 = sbr.rel (%p9) target = $region8
    $region5: #{generator_forward.13} parent=1 // loop_body
      %s13 = ssub.s32 %s8, 1
      %s14 = ssub.s32 %s8, 2
      %s27 = sadd.s32 1, %s18
      %p28 = scmp.ge.s32.totalorder %s27, 1
      %s29 = scalar_select %p28, 0, %s27
      %s30 = sadd.s32 1, %s17
      %s31 = scalar_select %p28, %s30, %s17
      %p32 = scmp.ge.s32.totalorder %s31, 2
      %s33 = scalar_select %p32, 0, %s31
      %s34 = sadd.s32 1, %s16
      %s35 = scalar_select %p32, %s34, %s16
      %p36 = scmp.ge.s32.totalorder %s35, 1
      %s37 = scalar_select %p36, 0, %s35
      %s38 = sadd.s32 1, %s15
      %s39 = scalar_select %p36, %s38, %s15
      %p40 = scmp.ge.s32.totalorder %s39, 4
      %s41 = scalar_select %p40, 0, %s39
      %s42 = ssub.s32 %s15, %s41
      %s43 = ssub.s32 %s16, %s37
      %s44 = sor.u32 %s42, %s43
      %s45 = ssub.s32 %s18, %s29
      %s46 = sor.u32 %s44, %s45
      %p47 = scmp.eq.s32.totalorder %s46, 0
      %s49 = sadd.s32 %s48, 1
      %s50 = scalar_select %p47, %s48, %s49
      %p53 = pneg %p47
      %p54 = scmp.eq.s32.totalorder %s8, 7
      %p55 = por %p53, %p54
      %p56 = scmp.ne.s32.totalorder %s48, %s51
      %p57 = scmp.eq.s32.totalorder %s8, 0
      %p58 = por %p56, %p57
      %p59 = scmp.ne.s32.totalorder %s48, %s51
      %p60 = scmp.eq.s32.totalorder %s13, 7
      %p61 = por %p59, %p60
      %p62 = scmp.ne.s32.totalorder %s51, %s52
      %p63 = scmp.eq.s32.totalorder %s13, 0
      %p64 = por %p62, %p63
      %p65 = scmp.ne.s32.totalorder %s51, %s52
      %p66 = scmp.eq.s32.totalorder %s14, 7
      %p67 = por %p65, %p66
      %p69 = scmp.ne.s32.totalorder %s52, %s68
      %p70 = scmp.eq.s32.totalorder %s14, 0
      %p71 = por %p69, %p70
      %s72 = ssub.s32 %s15, %s41
      %s73 = ssub.s32 %s18, %s29
      %s74 = sor.u32 %s72, %s73
      %s75 = ssub.s32 %s17, %s33
      %s76 = sor.u32 %s74, %s75
      %p77 = scmp.eq.s32.totalorder %s76, 0
      %s79 = sadd.s32 %s78, 1
      %s80 = scalar_select %p77, %s78, %s79
      %p83 = pneg %p77
      %p84 = scmp.eq.s32.totalorder %s8, 7
      %p85 = por %p83, %p84
      %p86 = scmp.ne.s32.totalorder %s78, %s81
      %p87 = scmp.eq.s32.totalorder %s8, 0
      %p88 = por %p86, %p87
      %p89 = scmp.ne.s32.totalorder %s78, %s81
      %p90 = scmp.eq.s32.totalorder %s13, 7
      %p91 = por %p89, %p90
      %p92 = scmp.ne.s32.totalorder %s81, %s82
      %p93 = scmp.eq.s32.totalorder %s13, 0
      %p94 = por %p92, %p93
      %p95 = scmp.ne.s32.totalorder %s81, %s82
      %p96 = scmp.eq.s32.totalorder %s14, 7
      %p97 = por %p95, %p96
      %p99 = scmp.ne.s32.totalorder %s82, %s98
      %p100 = scmp.eq.s32.totalorder %s14, 0
      %p101 = por %p99, %p100
      %s102 = ssub.s32 %s15, %s41
      %s103 = ssub.s32 %s16, %s37
      %s104 = sor.u32 %s102, %s103
      %s105 = ssub.s32 %s17, %s33
      %s106 = sor.u32 %s104, %s105
      %p107 = scmp.eq.s32.totalorder %s106, 0
      %s109 = sadd.s32 %s108, 1
      %s110 = scalar_select %p107, %s108, %s109
      %p113 = pneg %p107
      %p114 = scmp.eq.s32.totalorder %s8, 7
      %p115 = por %p113, %p114
      %p116 = scmp.ne.s32.totalorder %s108, %s111
      %p117 = scmp.eq.s32.totalorder %s8, 0
      %p118 = por %p116, %p117
      %p119 = scmp.ne.s32.totalorder %s108, %s111
      %p120 = scmp.eq.s32.totalorder %s13, 7
      %p121 = por %p119, %p120
      %p122 = scmp.ne.s32.totalorder %s111, %s112
      %p123 = scmp.eq.s32.totalorder %s13, 0
      %p124 = por %p122, %p123
      %p125 = scmp.ne.s32.totalorder %s111, %s112
      %p126 = scmp.eq.s32.totalorder %s14, 7
      %p127 = por %p125, %p126
      %p129 = scmp.ne.s32.totalorder %s112, %s128
      %p130 = scmp.eq.s32.totalorder %s14, 0
      %p131 = por %p129, %p130
      %p132 = scmp.le.s32.totalorder 1, %s8
      %p133 = scmp.lt.s32.totalorder %s8, 9
      %p134 = pnand %p132, %p133
      %p135 = pneg %p134
      // Predicated region
      $region9: #{generator_forward.13} parent=5 // pred_check
        _
      $region10: #{generator_forward.13} parent=5 // pred_check_branch
        %137 = sbr.rel (%p134) target = $region12
      $region11: #{generator_forward.13} parent=5 // pred_region
        %s138 = ssub.s32 %s8, 1
      $region12: #{generator_forward.13} parent=5 // pred_fallthru
        _
      %p139 = scmp.lt.s32.totalorder %s8, 8
      // Predicated region
      $region13: #{generator_forward.13} parent=5 // pred_check
        %p140 = pneg %p139
      $region14: #{generator_forward.13} parent=5 // pred_check_branch
        %142 = sbr.rel (%p140) target = $region16
      $region15: #{generator_forward.13} parent=5 // pred_region
        // Predicated region
        $region17: #{generator_forward.13} parent=15 // pred_check
          %p143 = pneg %p58
        $region18: #{generator_forward.13} parent=15 // pred_check_branch
          %145 = sbr.rel (%p143) target = $region20
        $region19: #{generator_forward.13} parent=15 // pred_region
          %s146 = smul.u32 2, %s16
          %s147 = smul.u32 4, %s18
          %p148 = scmp.lt.s32.totalorder %s15, 3
          %s149 = scalar_select %p148, %s15, 3
          %p150 = scmp.lt.s32.totalorder %s146, 1
          %s151 = scalar_select %p150, %s146, 1
          %p152 = scmp.lt.s32.totalorder %s147, 3
          %s153 = scalar_select %p152, %s147, 3
          %s154 = smul.addr %s151, 4
          %s155 = sadd.s32 %s153, %s154
          %s156 = smul.addr %s149, 8
          %s157 = sadd.s32 %s155, %s156
          %s158 = smul.addr %s157, 4
          %s159 = scalar_lea.vmem %s0, %s158
          %s160 = smul.u32 2, %s16
          %s161 = smul.u32 4, %s18
        $region20: #{generator_forward.13} parent=15 // pred_fallthru
          _
        // Predicated region
        $region21: #{generator_forward.13} parent=15 // pred_check
          %p162 = pneg %p88
        $region22: #{generator_forward.13} parent=15 // pred_check_branch
          %164 = sbr.rel (%p162) target = $region24
        $region23: #{generator_forward.13} parent=15 // pred_region
          %s165 = sand.u32 %s78, 1
          %s166 = sand.u32 %s78, 1
          %s167 = smul.addr %s166, 512
          %s168 = scalar_lea.vmem [#allocation3], %s167
          %s169 = smul.u32 64, %s18
          %s170 = smul.u32 2, %s17
          %s171 = smul.addr %s169, 4
          %s172 = sadd.s32 %s170, %s171
          %s173 = smul.addr %s15, 256
          %s174 = sadd.s32 %s172, %s173
          %s175 = smul.addr %s174, 4
          %s176 = scalar_lea.vmem %s1, %s175
          // Predicated region
          $region25: #{generator_forward.13} parent=23 // pred_check
            _
          $region26: #{generator_forward.13} parent=23 // pred_check_branch
            %178 = sbr.rel (0) target = $region28
          $region27: #{generator_forward.13} parent=23 // pred_region
            // Predicated region
            $region29: #{generator_forward.13} parent=27 // pred_check
              _
            $region30: #{generator_forward.13} parent=27 // pred_check_branch
              %180 = sbr.rel (0) target = $region32
            $region31: #{generator_forward.13} parent=27 // pred_region
              // Predicated region
              $region44: #{generator_forward.13} parent=31 // pred_check
                _
              $region45: #{generator_forward.13} parent=31 // pred_check_branch
                %321 = sbr.rel (0) target = $region47
              $region46: #{generator_forward.13} parent=31 // pred_region
                loop: start=0, step=1, limit=1
                $region48: #{generator_forward.13} parent=46 // loop_pre_header
                  _
                $region49: #{generator_forward.13} parent=46 // loop_header
                  %s323 = sphi 0, %s327
                  %p324 = scmp.ge.s32.totalorder %s323, 1
                  %s328 = sphi %s176, %s176
                  %s329 = sphi %s168, %s168
                $region50: #{generator_forward.13} parent=46 // loop_header_branch
                  %326 = sbr.rel (%p324) target = $region54
                $region51: #{generator_forward.13} parent=46 // loop_body
                  %v330 = vld [vmem:[%s328] sm:$0xff]
                  %331 = vst [vmem:[%s329] sm:$0xff] %v330
                  %v332 = vld [vmem:[%s328 + $0x10] sm:$0xff]
                  %333 = vst [vmem:[%s329 + $0x8] sm:$0xff] %v332
                  %v334 = vld [vmem:[%s328 + $0x20] sm:$0xff]
                  %335 = vst [vmem:[%s329 + $0x10] sm:$0xff] %v334
                  %v336 = vld [vmem:[%s328 + $0x30] sm:$0xff]
                  %337 = vst [vmem:[%s329 + $0x18] sm:$0xff] %v336
                  %v338 = vld [vmem:[%s328 + $0x40] sm:$0xff]
                  %339 = vst [vmem:[%s329 + $0x20] sm:$0xff] %v338
                  %v340 = vld [vmem:[%s328 + $0x50] sm:$0xff]
                  %341 = vst [vmem:[%s329 + $0x28] sm:$0xff] %v340
                  %v342 = vld [vmem:[%s328 + $0x60] sm:$0xff]
                  %343 = vst [vmem:[%s329 + $0x30] sm:$0xff] %v342
                  %v344 = vld [vmem:[%s328 + $0x70] sm:$0xff]
                  %345 = vst [vmem:[%s329 + $0x38] sm:$0xff] %v344
                  %v346 = vld [vmem:[%s328 + $0x80] sm:$0xff]
                  %347 = vst [vmem:[%s329 + $0x40] sm:$0xff] %v346
                  %v348 = vld [vmem:[%s328 + $0x90] sm:$0xff]
                  %349 = vst [vmem:[%s329 + $0x48] sm:$0xff] %v348
                  %v350 = vld [vmem:[%s328 + $0xa0] sm:$0xff]
                  %351 = vst [vmem:[%s329 + $0x50] sm:$0xff] %v350
                  %v352 = vld [vmem:[%s328 + $0xb0] sm:$0xff]
                  %353 = vst [vmem:[%s329 + $0x58] sm:$0xff] %v352
                  %v354 = vld [vmem:[%s328 + $0xc0] sm:$0xff]
                  %355 = vst [vmem:[%s329 + $0x60] sm:$0xff] %v354
                  %v356 = vld [vmem:[%s328 + $0xd0] sm:$0xff]
                  %357 = vst [vmem:[%s329 + $0x68] sm:$0xff] %v356
                  %v358 = vld [vmem:[%s328 + $0xe0] sm:$0xff]
                  %359 = vst [vmem:[%s329 + $0x70] sm:$0xff] %v358
                  %v360 = vld [vmem:[%s328 + $0xf0] sm:$0xff]
                  %361 = vst [vmem:[%s329 + $0x78] sm:$0xff] %v360
                  %v362 = vld [vmem:[%s328 + $0x100] sm:$0xff]
                  %363 = vst [vmem:[%s329 + $0x80] sm:$0xff] %v362
                  %v364 = vld [vmem:[%s328 + $0x110] sm:$0xff]
                  %365 = vst [vmem:[%s329 + $0x88] sm:$0xff] %v364
                  %v366 = vld [vmem:[%s328 + $0x120] sm:$0xff]
                  %367 = vst [vmem:[%s329 + $0x90] sm:$0xff] %v366
                  %v368 = vld [vmem:[%s328 + $0x130] sm:$0xff]
                  %369 = vst [vmem:[%s329 + $0x98] sm:$0xff] %v368
                  %v370 = vld [vmem:[%s328 + $0x140] sm:$0xff]
                  %371 = vst [vmem:[%s329 + $0xa0] sm:$0xff] %v370
                  %v372 = vld [vmem:[%s328 + $0x150] sm:$0xff]
                  %373 = vst [vmem:[%s329 + $0xa8] sm:$0xff] %v372
                  %v374 = vld [vmem:[%s328 + $0x160] sm:$0xff]
                  %375 = vst [vmem:[%s329 + $0xb0] sm:$0xff] %v374
                  %v376 = vld [vmem:[%s328 + $0x170] sm:$0xff]
                  %377 = vst [vmem:[%s329 + $0xb8] sm:$0xff] %v376
                  %v378 = vld [vmem:[%s328 + $0x180] sm:$0xff]
                  %379 = vst [vmem:[%s329 + $0xc0] sm:$0xff] %v378
                  %v380 = vld [vmem:[%s328 + $0x190] sm:$0xff]
                  %381 = vst [vmem:[%s329 + $0xc8] sm:$0xff] %v380
                  %v382 = vld [vmem:[%s328 + $0x1a0] sm:$0xff]
                  %383 = vst [vmem:[%s329 + $0xd0] sm:$0xff] %v382
                  %v384 = vld [vmem:[%s328 + $0x1b0] sm:$0xff]
                  %385 = vst [vmem:[%s329 + $0xd8] sm:$0xff] %v384
                  %v386 = vld [vmem:[%s328 + $0x1c0] sm:$0xff]
                  %387 = vst [vmem:[%s329 + $0xe0] sm:$0xff] %v386
                  %v388 = vld [vmem:[%s328 + $0x1d0] sm:$0xff]
                  %389 = vst [vmem:[%s329 + $0xe8] sm:$0xff] %v388
                  %v390 = vld [vmem:[%s328 + $0x1e0] sm:$0xff]
                  %391 = vst [vmem:[%s329 + $0xf0] sm:$0xff] %v390
                  %v392 = vld [vmem:[%s328 + $0x1f0] sm:$0xff]
                  %393 = vst [vmem:[%s329 + $0xf8] sm:$0xff] %v392
                  %v394 = vld [vmem:[%s328 + $0x200] sm:$0xff]
                  %395 = vst [vmem:[%s329 + $0x100] sm:$0xff] %v394
                  %v396 = vld [vmem:[%s328 + $0x210] sm:$0xff]
                  %397 = vst [vmem:[%s329 + $0x108] sm:$0xff] %v396
                  %v398 = vld [vmem:[%s328 + $0x220] sm:$0xff]
                  %399 = vst [vmem:[%s329 + $0x110] sm:$0xff] %v398
                  %v400 = vld [vmem:[%s328 + $0x230] sm:$0xff]
                  %401 = vst [vmem:[%s329 + $0x118] sm:$0xff] %v400
                  %v402 = vld [vmem:[%s328 + $0x240] sm:$0xff]
                  %403 = vst [vmem:[%s329 + $0x120] sm:$0xff] %v402
                  %v404 = vld [vmem:[%s328 + $0x250] sm:$0xff]
                  %405 = vst [vmem:[%s329 + $0x128] sm:$0xff] %v404
                  %v406 = vld [vmem:[%s328 + $0x260] sm:$0xff]
                  %407 = vst [vmem:[%s329 + $0x130] sm:$0xff] %v406
                  %v408 = vld [vmem:[%s328 + $0x270] sm:$0xff]
                  %409 = vst [vmem:[%s329 + $0x138] sm:$0xff] %v408
                  %v410 = vld [vmem:[%s328 + $0x280] sm:$0xff]
                  %411 = vst [vmem:[%s329 + $0x140] sm:$0xff] %v410
                  %v412 = vld [vmem:[%s328 + $0x290] sm:$0xff]
                  %413 = vst [vmem:[%s329 + $0x148] sm:$0xff] %v412
                  %v414 = vld [vmem:[%s328 + $0x2a0] sm:$0xff]
                  %415 = vst [vmem:[%s329 + $0x150] sm:$0xff] %v414
                  %v416 = vld [vmem:[%s328 + $0x2b0] sm:$0xff]
                  %417 = vst [vmem:[%s329 + $0x158] sm:$0xff] %v416
                  %v418 = vld [vmem:[%s328 + $0x2c0] sm:$0xff]
                  %419 = vst [vmem:[%s329 + $0x160] sm:$0xff] %v418
                  %v420 = vld [vmem:[%s328 + $0x2d0] sm:$0xff]
                  %421 = vst [vmem:[%s329 + $0x168] sm:$0xff] %v420
                  %v422 = vld [vmem:[%s328 + $0x2e0] sm:$0xff]
                  %423 = vst [vmem:[%s329 + $0x170] sm:$0xff] %v422
                  %v424 = vld [vmem:[%s328 + $0x2f0] sm:$0xff]
                  %425 = vst [vmem:[%s329 + $0x178] sm:$0xff] %v424
                  %v426 = vld [vmem:[%s328 + $0x300] sm:$0xff]
                  %427 = vst [vmem:[%s329 + $0x180] sm:$0xff] %v426
                  %v428 = vld [vmem:[%s328 + $0x310] sm:$0xff]
                  %429 = vst [vmem:[%s329 + $0x188] sm:$0xff] %v428
                  %v430 = vld [vmem:[%s328 + $0x320] sm:$0xff]
                  %431 = vst [vmem:[%s329 + $0x190] sm:$0xff] %v430
                  %v432 = vld [vmem:[%s328 + $0x330] sm:$0xff]
                  %433 = vst [vmem:[%s329 + $0x198] sm:$0xff] %v432
                  %v434 = vld [vmem:[%s328 + $0x340] sm:$0xff]
                  %435 = vst [vmem:[%s329 + $0x1a0] sm:$0xff] %v434
                  %v436 = vld [vmem:[%s328 + $0x350] sm:$0xff]
                  %437 = vst [vmem:[%s329 + $0x1a8] sm:$0xff] %v436
                  %v438 = vld [vmem:[%s328 + $0x360] sm:$0xff]
                  %439 = vst [vmem:[%s329 + $0x1b0] sm:$0xff] %v438
                  %v440 = vld [vmem:[%s328 + $0x370] sm:$0xff]
                  %441 = vst [vmem:[%s329 + $0x1b8] sm:$0xff] %v440
                  %v442 = vld [vmem:[%s328 + $0x380] sm:$0xff]
                  %443 = vst [vmem:[%s329 + $0x1c0] sm:$0xff] %v442
                  %v444 = vld [vmem:[%s328 + $0x390] sm:$0xff]
                  %445 = vst [vmem:[%s329 + $0x1c8] sm:$0xff] %v444
                  %v446 = vld [vmem:[%s328 + $0x3a0] sm:$0xff]
                  %447 = vst [vmem:[%s329 + $0x1d0] sm:$0xff] %v446
                  %v448 = vld [vmem:[%s328 + $0x3b0] sm:$0xff]
                  %449 = vst [vmem:[%s329 + $0x1d8] sm:$0xff] %v448
                  %v450 = vld [vmem:[%s328 + $0x3c0] sm:$0xff]
                  %451 = vst [vmem:[%s329 + $0x1e0] sm:$0xff] %v450
                  %v452 = vld [vmem:[%s328 + $0x3d0] sm:$0xff]
                  %453 = vst [vmem:[%s329 + $0x1e8] sm:$0xff] %v452
                  %v454 = vld [vmem:[%s328 + $0x3e0] sm:$0xff]
                  %455 = vst [vmem:[%s329 + $0x1f0] sm:$0xff] %v454
                  %v456 = vld [vmem:[%s328 + $0x3f0] sm:$0xff]
                  %457 = vst [vmem:[%s329 + $0x1f8] sm:$0xff] %v456
                $region52: #{generator_forward.13} parent=46 // loop_footer
                  %s327 = sadd.s32 1, %s323
                $region53: #{generator_forward.13} parent=46 // loop_footer_branch
                  %322 = sbr.rel target = $region49
                $region54: #{generator_forward.13} parent=46 // loop_exit
                  _
              $region47: #{generator_forward.13} parent=31 // pred_fallthru
                _
              // Predicated region
              $region55: #{generator_forward.13} parent=31 // pred_check
                _
              $region56: #{generator_forward.13} parent=31 // pred_check_branch
                %459 = sbr.rel target = $region58
              $region57: #{generator_forward.13} parent=31 // pred_region
                _
              $region58: #{generator_forward.13} parent=31 // pred_fallthru
                _
            $region32: #{generator_forward.13} parent=27 // pred_fallthru
              _
            // Predicated region
            $region33: #{generator_forward.13} parent=27 // pred_check
              _
            $region34: #{generator_forward.13} parent=27 // pred_check_branch
              %182 = sbr.rel target = $region36
            $region35: #{generator_forward.13} parent=27 // pred_region
              loop: start=0, step=1, limit=1
              $region37: #{generator_forward.13} parent=35 // loop_pre_header
                _
              $region38: #{generator_forward.13} parent=35 // loop_header
                %s185 = sphi 0, %s189
                %p186 = scmp.ge.s32.totalorder %s185, 1
                %s190 = sphi %s176, %s176
                %s191 = sphi %s168, %s168
              $region39: #{generator_forward.13} parent=35 // loop_header_branch
                %188 = sbr.rel (%p186) target = $region43
              $region40: #{generator_forward.13} parent=35 // loop_body
                %v192 = vld [vmem:[%s190] sm:$0xff]
                %193 = vst [vmem:[%s191] sm:$0xff] %v192
                %v194 = vld [vmem:[%s190 + $0x10] sm:$0xff]
                %195 = vst [vmem:[%s191 + $0x8] sm:$0xff] %v194
                %v196 = vld [vmem:[%s190 + $0x20] sm:$0xff]
                %197 = vst [vmem:[%s191 + $0x10] sm:$0xff] %v196
                %v198 = vld [vmem:[%s190 + $0x30] sm:$0xff]
                %199 = vst [vmem:[%s191 + $0x18] sm:$0xff] %v198
                %v200 = vld [vmem:[%s190 + $0x40] sm:$0xff]
                %201 = vst [vmem:[%s191 + $0x20] sm:$0xff] %v200
                %v202 = vld [vmem:[%s190 + $0x50] sm:$0xff]
                %203 = vst [vmem:[%s191 + $0x28] sm:$0xff] %v202
                %v204 = vld [vmem:[%s190 + $0x60] sm:$0xff]
                %205 = vst [vmem:[%s191 + $0x30] sm:$0xff] %v204
                %v206 = vld [vmem:[%s190 + $0x70] sm:$0xff]
                %207 = vst [vmem:[%s191 + $0x38] sm:$0xff] %v206
                %v208 = vld [vmem:[%s190 + $0x80] sm:$0xff]
                %209 = vst [vmem:[%s191 + $0x40] sm:$0xff] %v208
                %v210 = vld [vmem:[%s190 + $0x90] sm:$0xff]
                %211 = vst [vmem:[%s191 + $0x48] sm:$0xff] %v210
                %v212 = vld [vmem:[%s190 + $0xa0] sm:$0xff]
                %213 = vst [vmem:[%s191 + $0x50] sm:$0xff] %v212
                %v214 = vld [vmem:[%s190 + $0xb0] sm:$0xff]
                %215 = vst [vmem:[%s191 + $0x58] sm:$0xff] %v214
                %v216 = vld [vmem:[%s190 + $0xc0] sm:$0xff]
                %217 = vst [vmem:[%s191 + $0x60] sm:$0xff] %v216
                %v218 = vld [vmem:[%s190 + $0xd0] sm:$0xff]
                %219 = vst [vmem:[%s191 + $0x68] sm:$0xff] %v218
                %v220 = vld [vmem:[%s190 + $0xe0] sm:$0xff]
                %221 = vst [vmem:[%s191 + $0x70] sm:$0xff] %v220
                %v222 = vld [vmem:[%s190 + $0xf0] sm:$0xff]
                %223 = vst [vmem:[%s191 + $0x78] sm:$0xff] %v222
                %v224 = vld [vmem:[%s190 + $0x100] sm:$0xff]
                %225 = vst [vmem:[%s191 + $0x80] sm:$0xff] %v224
                %v226 = vld [vmem:[%s190 + $0x110] sm:$0xff]
                %227 = vst [vmem:[%s191 + $0x88] sm:$0xff] %v226
                %v228 = vld [vmem:[%s190 + $0x120] sm:$0xff]
                %229 = vst [vmem:[%s191 + $0x90] sm:$0xff] %v228
                %v230 = vld [vmem:[%s190 + $0x130] sm:$0xff]
                %231 = vst [vmem:[%s191 + $0x98] sm:$0xff] %v230
                %v232 = vld [vmem:[%s190 + $0x140] sm:$0xff]
                %233 = vst [vmem:[%s191 + $0xa0] sm:$0xff] %v232
                %v234 = vld [vmem:[%s190 + $0x150] sm:$0xff]
                %235 = vst [vmem:[%s191 + $0xa8] sm:$0xff] %v234
                %v236 = vld [vmem:[%s190 + $0x160] sm:$0xff]
                %237 = vst [vmem:[%s191 + $0xb0] sm:$0xff] %v236
                %v238 = vld [vmem:[%s190 + $0x170] sm:$0xff]
                %239 = vst [vmem:[%s191 + $0xb8] sm:$0xff] %v238
                %v240 = vld [vmem:[%s190 + $0x180] sm:$0xff]
                %241 = vst [vmem:[%s191 + $0xc0] sm:$0xff] %v240
                %v242 = vld [vmem:[%s190 + $0x190] sm:$0xff]
                %243 = vst [vmem:[%s191 + $0xc8] sm:$0xff] %v242
                %v244 = vld [vmem:[%s190 + $0x1a0] sm:$0xff]
                %245 = vst [vmem:[%s191 + $0xd0] sm:$0xff] %v244
                %v246 = vld [vmem:[%s190 + $0x1b0] sm:$0xff]
                %247 = vst [vmem:[%s191 + $0xd8] sm:$0xff] %v246
                %v248 = vld [vmem:[%s190 + $0x1c0] sm:$0xff]
                %249 = vst [vmem:[%s191 + $0xe0] sm:$0xff] %v248
                %v250 = vld [vmem:[%s190 + $0x1d0] sm:$0xff]
                %251 = vst [vmem:[%s191 + $0xe8] sm:$0xff] %v250
                %v252 = vld [vmem:[%s190 + $0x1e0] sm:$0xff]
                %253 = vst [vmem:[%s191 + $0xf0] sm:$0xff] %v252
                %v254 = vld [vmem:[%s190 + $0x1f0] sm:$0xff]
                %255 = vst [vmem:[%s191 + $0xf8] sm:$0xff] %v254
                %v256 = vld [vmem:[%s190 + $0x200] sm:$0xff]
                %257 = vst [vmem:[%s191 + $0x100] sm:$0xff] %v256
                %v258 = vld [vmem:[%s190 + $0x210] sm:$0xff]
                %259 = vst [vmem:[%s191 + $0x108] sm:$0xff] %v258
                %v260 = vld [vmem:[%s190 + $0x220] sm:$0xff]
                %261 = vst [vmem:[%s191 + $0x110] sm:$0xff] %v260
                %v262 = vld [vmem:[%s190 + $0x230] sm:$0xff]
                %263 = vst [vmem:[%s191 + $0x118] sm:$0xff] %v262
                %v264 = vld [vmem:[%s190 + $0x240] sm:$0xff]
                %265 = vst [vmem:[%s191 + $0x120] sm:$0xff] %v264
                %v266 = vld [vmem:[%s190 + $0x250] sm:$0xff]
                %267 = vst [vmem:[%s191 + $0x128] sm:$0xff] %v266
                %v268 = vld [vmem:[%s190 + $0x260] sm:$0xff]
                %269 = vst [vmem:[%s191 + $0x130] sm:$0xff] %v268
                %v270 = vld [vmem:[%s190 + $0x270] sm:$0xff]
                %271 = vst [vmem:[%s191 + $0x138] sm:$0xff] %v270
                %v272 = vld [vmem:[%s190 + $0x280] sm:$0xff]
                %273 = vst [vmem:[%s191 + $0x140] sm:$0xff] %v272
                %v274 = vld [vmem:[%s190 + $0x290] sm:$0xff]
                %275 = vst [vmem:[%s191 + $0x148] sm:$0xff] %v274
                %v276 = vld [vmem:[%s190 + $0x2a0] sm:$0xff]
                %277 = vst [vmem:[%s191 + $0x150] sm:$0xff] %v276
                %v278 = vld [vmem:[%s190 + $0x2b0] sm:$0xff]
                %279 = vst [vmem:[%s191 + $0x158] sm:$0xff] %v278
                %v280 = vld [vmem:[%s190 + $0x2c0] sm:$0xff]
                %281 = vst [vmem:[%s191 + $0x160] sm:$0xff] %v280
                %v282 = vld [vmem:[%s190 + $0x2d0] sm:$0xff]
                %283 = vst [vmem:[%s191 + $0x168] sm:$0xff] %v282
                %v284 = vld [vmem:[%s190 + $0x2e0] sm:$0xff]
                %285 = vst [vmem:[%s191 + $0x170] sm:$0xff] %v284
                %v286 = vld [vmem:[%s190 + $0x2f0] sm:$0xff]
                %287 = vst [vmem:[%s191 + $0x178] sm:$0xff] %v286
                %v288 = vld [vmem:[%s190 + $0x300] sm:$0xff]
                %289 = vst [vmem:[%s191 + $0x180] sm:$0xff] %v288
                %v290 = vld [vmem:[%s190 + $0x310] sm:$0xff]
                %291 = vst [vmem:[%s191 + $0x188] sm:$0xff] %v290
                %v292 = vld [vmem:[%s190 + $0x320] sm:$0xff]
                %293 = vst [vmem:[%s191 + $0x190] sm:$0xff] %v292
                %v294 = vld [vmem:[%s190 + $0x330] sm:$0xff]
                %295 = vst [vmem:[%s191 + $0x198] sm:$0xff] %v294
                %v296 = vld [vmem:[%s190 + $0x340] sm:$0xff]
                %297 = vst [vmem:[%s191 + $0x1a0] sm:$0xff] %v296
                %v298 = vld [vmem:[%s190 + $0x350] sm:$0xff]
                %299 = vst [vmem:[%s191 + $0x1a8] sm:$0xff] %v298
                %v300 = vld [vmem:[%s190 + $0x360] sm:$0xff]
                %301 = vst [vmem:[%s191 + $0x1b0] sm:$0xff] %v300
                %v302 = vld [vmem:[%s190 + $0x370] sm:$0xff]
                %303 = vst [vmem:[%s191 + $0x1b8] sm:$0xff] %v302
                %v304 = vld [vmem:[%s190 + $0x380] sm:$0xff]
                %305 = vst [vmem:[%s191 + $0x1c0] sm:$0xff] %v304
                %v306 = vld [vmem:[%s190 + $0x390] sm:$0xff]
                %307 = vst [vmem:[%s191 + $0x1c8] sm:$0xff] %v306
                %v308 = vld [vmem:[%s190 + $0x3a0] sm:$0xff]
                %309 = vst [vmem:[%s191 + $0x1d0] sm:$0xff] %v308
                %v310 = vld [vmem:[%s190 + $0x3b0] sm:$0xff]
                %311 = vst [vmem:[%s191 + $0x1d8] sm:$0xff] %v310
                %v312 = vld [vmem:[%s190 + $0x3c0] sm:$0xff]
                %313 = vst [vmem:[%s191 + $0x1e0] sm:$0xff] %v312
                %v314 = vld [vmem:[%s190 + $0x3d0] sm:$0xff]
                %315 = vst [vmem:[%s191 + $0x1e8] sm:$0xff] %v314
                %v316 = vld [vmem:[%s190 + $0x3e0] sm:$0xff]
                %317 = vst [vmem:[%s191 + $0x1f0] sm:$0xff] %v316
                %v318 = vld [vmem:[%s190 + $0x3f0] sm:$0xff]
                %319 = vst [vmem:[%s191 + $0x1f8] sm:$0xff] %v318
              $region41: #{generator_forward.13} parent=35 // loop_footer
                %s189 = sadd.s32 1, %s185
              $region42: #{generator_forward.13} parent=35 // loop_footer_branch
                %184 = sbr.rel target = $region38
              $region43: #{generator_forward.13} parent=35 // loop_exit
                _
            $region36: #{generator_forward.13} parent=27 // pred_fallthru
              _
          $region28: #{generator_forward.13} parent=23 // pred_fallthru
            _
          %460 = vnop
        $region24: #{generator_forward.13} parent=15 // pred_fallthru
          _
      $region16: #{generator_forward.13} parent=5 // pred_fallthru
        _
      %p461 = scmp.le.s32.totalorder 1, %s8
      %p462 = scmp.lt.s32.totalorder %s8, 9
      %p463 = pnand %p461, %p462
      %p464 = pneg %p463
      // Predicated region
      $region59: #{generator_forward.13} parent=5 // pred_check
        _
      $region60: #{generator_forward.13} parent=5 // pred_check_branch
        %466 = sbr.rel (%p463) target = $region62
      $region61: #{generator_forward.13} parent=5 // pred_region
        %s467 = ssub.s32 %s8, 1
        %s468 = sand.u32 %s81, 1
        %s469 = sand.u32 %s81, 1
        %s470 = smul.addr %s469, 512
        %s471 = scalar_lea.vmem [#allocation3], %s470
        // Predicated region
        $region63: #{generator_forward.13} parent=61 // pred_check
          %p472 = pneg %p94
        $region64: #{generator_forward.13} parent=61 // pred_check_branch
          %474 = sbr.rel (%p472) target = $region66
        $region65: #{generator_forward.13} parent=61 // pred_region
          _
        $region66: #{generator_forward.13} parent=61 // pred_fallthru
          _
        %s475 = smul.u32 2, %s20
        %s476 = smul.u32 4, %s22
        %p477 = scmp.lt.s32.totalorder %s19, 3
        %s478 = scalar_select %p477, %s19, 3
        %p479 = scmp.lt.s32.totalorder %s475, 1
        %s480 = scalar_select %p479, %s475, 1
        %p481 = scmp.lt.s32.totalorder %s476, 3
        %s482 = scalar_select %p481, %s476, 3
        %s483 = smul.addr %s480, 4
        %s484 = sadd.s32 %s482, %s483
        %s485 = smul.addr %s478, 8
        %s486 = sadd.s32 %s484, %s485
        %s487 = smul.addr %s486, 4
        %s488 = scalar_lea.vmem %s0, %s487
        %p489 = pneg %p64
        %p490 = pneg %p61
        %s491 = sand.u32 %s81, 1
        %s492 = sand.u32 %s81, 1
        %s493 = smul.addr %s492, 512
        %s494 = scalar_lea.vmem [#allocation3], %s493
        %p495 = pneg %p94
        %p496 = pneg %p91
        %p497 = pneg %p124
        %p498 = pneg %p121
        %s499 = sand.u32 %s111, 1
        %s500 = sand.u32 %s111, 1
        %s501 = smul.addr %s500, 32
        %s502 = scalar_lea.vmem [#allocation4], %s501
        %s503 = smul.u32 2, %s20
        %s504 = smul.u32 4, %s22
        %p505 = scmp.lt.s32.totalorder %s19, 3
        %s506 = scalar_select %p505, %s19, 3
        %p507 = scmp.lt.s32.totalorder %s503, 1
        %s508 = scalar_select %p507, %s503, 1
        %p509 = scmp.lt.s32.totalorder %s504, 3
        %s510 = scalar_select %p509, %s504, 3
        %s511 = smul.addr %s508, 4
        %s512 = sadd.s32 %s510, %s511
        %s513 = smul.addr %s506, 8
        %s514 = sadd.s32 %s512, %s513
        %s515 = smul.addr %s514, 4
        %s516 = scalar_lea.vmem %s0, %s515
        %s517 = smul.u32 2, %s20
        %s518 = smul.u32 4, %s22
        %s519 = smul.u32 64, %s22
        %s520 = smul.u32 2, %s21
        %s521 = smul.u32 2, %s20
        %s522 = smul.u32 2, %s21
        %p523 = scmp.eq.s32.totalorder %s22, 0
        // Predicated region
        $region67: #{generator_forward.13} parent=61 // pred_check
          %p524 = pneg %p523
        $region68: #{generator_forward.13} parent=61 // pred_check_branch
          %526 = sbr.rel (%p524) target = $region70
        $region69: #{generator_forward.13} parent=61 // pred_region
          %527 = vst [vmem:[#allocation2] sm:$0xff] 0.0
          %528 = vst [vmem:[#allocation2 + $0x8] sm:$0xff] 0.0
          %529 = vst [vmem:[#allocation2 + $0x10] sm:$0xff] 0.0
          %530 = vst [vmem:[#allocation2 + $0x18] sm:$0xff] 0.0
        $region70: #{generator_forward.13} parent=61 // pred_fallthru
          _
        %v531 = vld [vmem:[#allocation2] sm:$0xff]
        %v532 = vld [vmem:[#allocation2 + $0x8] sm:$0xff]
        %v533 = vld [vmem:[#allocation2 + $0x10] sm:$0xff]
        %v534 = vld [vmem:[#allocation2 + $0x18] sm:$0xff]
        %v535 = vld [vmem:[%s516] sm:$0xff]
        %v536 = vld [vmem:[%s516 + $0x8] sm:$0xff]
        %v537 = vld [vmem:[%s516 + $0x10] sm:$0xff]
        %v538 = vld [vmem:[%s516 + $0x18] sm:$0xff]
        %v539 = vld [vmem:[%s471] sm:$0xff]
        %v540 = vld [vmem:[%s471 + $0x8] sm:$0xff]
        %v541 = vld [vmem:[%s471 + $0x10] sm:$0xff]
        %v542 = vld [vmem:[%s471 + $0x18] sm:$0xff]
        %v543 = vld [vmem:[%s471 + $0x20] sm:$0xff]
        %v544 = vld [vmem:[%s471 + $0x28] sm:$0xff]
        %v545 = vld [vmem:[%s471 + $0x30] sm:$0xff]
        %v546 = vld [vmem:[%s471 + $0x38] sm:$0xff]
        %v547 = vld [vmem:[%s471 + $0x40] sm:$0xff]
        %v548 = vld [vmem:[%s471 + $0x48] sm:$0xff]
        %v549 = vld [vmem:[%s471 + $0x50] sm:$0xff]
        %v550 = vld [vmem:[%s471 + $0x58] sm:$0xff]
        %v551 = vld [vmem:[%s471 + $0x60] sm:$0xff]
        %v552 = vld [vmem:[%s471 + $0x68] sm:$0xff]
        %v553 = vld [vmem:[%s471 + $0x70] sm:$0xff]
        %v554 = vld [vmem:[%s471 + $0x78] sm:$0xff]
        %v555 = vld [vmem:[%s471 + $0x80] sm:$0xff]
        %v556 = vld [vmem:[%s471 + $0x88] sm:$0xff]
        %v557 = vld [vmem:[%s471 + $0x90] sm:$0xff]
        %v558 = vld [vmem:[%s471 + $0x98] sm:$0xff]
        %v559 = vld [vmem:[%s471 + $0xa0] sm:$0xff]
        %v560 = vld [vmem:[%s471 + $0xa8] sm:$0xff]
        %v561 = vld [vmem:[%s471 + $0xb0] sm:$0xff]
        %v562 = vld [vmem:[%s471 + $0xb8] sm:$0xff]
        %v563 = vld [vmem:[%s471 + $0xc0] sm:$0xff]
        %v564 = vld [vmem:[%s471 + $0xc8] sm:$0xff]
        %v565 = vld [vmem:[%s471 + $0xd0] sm:$0xff]
        %v566 = vld [vmem:[%s471 + $0xd8] sm:$0xff]
        %v567 = vld [vmem:[%s471 + $0xe0] sm:$0xff]
        %v568 = vld [vmem:[%s471 + $0xe8] sm:$0xff]
        %v569 = vld [vmem:[%s471 + $0xf0] sm:$0xff]
        %v570 = vld [vmem:[%s471 + $0xf8] sm:$0xff]
        %v571 = vld [vmem:[%s471 + $0x100] sm:$0xff]
        %v572 = vld [vmem:[%s471 + $0x108] sm:$0xff]
        %v573 = vld [vmem:[%s471 + $0x110] sm:$0xff]
        %v574 = vld [vmem:[%s471 + $0x118] sm:$0xff]
        %v575 = vld [vmem:[%s471 + $0x120] sm:$0xff]
        %v576 = vld [vmem:[%s471 + $0x128] sm:$0xff]
        %v577 = vld [vmem:[%s471 + $0x130] sm:$0xff]
        %v578 = vld [vmem:[%s471 + $0x138] sm:$0xff]
        %v579 = vld [vmem:[%s471 + $0x140] sm:$0xff]
        %v580 = vld [vmem:[%s471 + $0x148] sm:$0xff]
        %v581 = vld [vmem:[%s471 + $0x150] sm:$0xff]
        %v582 = vld [vmem:[%s471 + $0x158] sm:$0xff]
        %v583 = vld [vmem:[%s471 + $0x160] sm:$0xff]
        %v584 = vld [vmem:[%s471 + $0x168] sm:$0xff]
        %v585 = vld [vmem:[%s471 + $0x170] sm:$0xff]
        %v586 = vld [vmem:[%s471 + $0x178] sm:$0xff]
        %v587 = vld [vmem:[%s471 + $0x180] sm:$0xff]
        %v588 = vld [vmem:[%s471 + $0x188] sm:$0xff]
        %v589 = vld [vmem:[%s471 + $0x190] sm:$0xff]
        %v590 = vld [vmem:[%s471 + $0x198] sm:$0xff]
        %v591 = vld [vmem:[%s471 + $0x1a0] sm:$0xff]
        %v592 = vld [vmem:[%s471 + $0x1a8] sm:$0xff]
        %v593 = vld [vmem:[%s471 + $0x1b0] sm:$0xff]
        %v594 = vld [vmem:[%s471 + $0x1b8] sm:$0xff]
        %v595 = vld [vmem:[%s471 + $0x1c0] sm:$0xff]
        %v596 = vld [vmem:[%s471 + $0x1c8] sm:$0xff]
        %v597 = vld [vmem:[%s471 + $0x1d0] sm:$0xff]
        %v598 = vld [vmem:[%s471 + $0x1d8] sm:$0xff]
        %v599 = vld [vmem:[%s471 + $0x1e0] sm:$0xff]
        %v600 = vld [vmem:[%s471 + $0x1e8] sm:$0xff]
        %v601 = vld [vmem:[%s471 + $0x1f0] sm:$0xff]
        %v602 = vld [vmem:[%s471 + $0x1f8] sm:$0xff]
        %v607 = vunpack.c.l.b16 %v535
        %v608 = vunpack.c.h.b16 %v535
        %v609 = vunpack.c.l.b16 %v536
        %v610 = vunpack.c.h.b16 %v536
        %v611 = vunpack.c.l.b16 %v537
        %v612 = vunpack.c.h.b16 %v537
        %v613 = vunpack.c.l.b16 %v538
        %v614 = vunpack.c.h.b16 %v538
        %v615 = vpack.c.b16 %v611, %v607
        %v616 = vpack.c.b16 %v612, %v608
        %v617 = vpack.c.b16 %v613, %v609
        %v618 = vpack.c.b16 %v614, %v610
        %v687 = vunpack.c.l.b16 %v539
        %v688 = vunpack.c.h.b16 %v539
        %v689 = vunpack.c.l.b16 %v540
        %v690 = vunpack.c.h.b16 %v540
        %v691 = vunpack.c.l.b16 %v541
        %v692 = vunpack.c.h.b16 %v541
        %v693 = vunpack.c.l.b16 %v542
        %v694 = vunpack.c.h.b16 %v542
        %v695 = vunpack.c.l.b16 %v543
        %v696 = vunpack.c.h.b16 %v543
        %v697 = vunpack.c.l.b16 %v544
        %v698 = vunpack.c.h.b16 %v544
        %v699 = vunpack.c.l.b16 %v545
        %v700 = vunpack.c.h.b16 %v545
        %v701 = vunpack.c.l.b16 %v546
        %v702 = vunpack.c.h.b16 %v546
        %v703 = vunpack.c.l.b16 %v547
        %v704 = vunpack.c.h.b16 %v547
        %v705 = vunpack.c.l.b16 %v548
        %v706 = vunpack.c.h.b16 %v548
        %v707 = vunpack.c.l.b16 %v549
        %v708 = vunpack.c.h.b16 %v549
        %v709 = vunpack.c.l.b16 %v550
        %v710 = vunpack.c.h.b16 %v550
        %v711 = vunpack.c.l.b16 %v551
        %v712 = vunpack.c.h.b16 %v551
        %v713 = vunpack.c.l.b16 %v552
        %v714 = vunpack.c.h.b16 %v552
        %v715 = vunpack.c.l.b16 %v553
        %v716 = vunpack.c.h.b16 %v553
        %v717 = vunpack.c.l.b16 %v554
        %v718 = vunpack.c.h.b16 %v554
        %v719 = vunpack.c.l.b16 %v555
        %v720 = vunpack.c.h.b16 %v555
        %v721 = vunpack.c.l.b16 %v556
        %v722 = vunpack.c.h.b16 %v556
        %v723 = vunpack.c.l.b16 %v557
        %v724 = vunpack.c.h.b16 %v557
        %v725 = vunpack.c.l.b16 %v558
        %v726 = vunpack.c.h.b16 %v558
        %v727 = vunpack.c.l.b16 %v559
        %v728 = vunpack.c.h.b16 %v559
        %v729 = vunpack.c.l.b16 %v560
        %v730 = vunpack.c.h.b16 %v560
        %v731 = vunpack.c.l.b16 %v561
        %v732 = vunpack.c.h.b16 %v561
        %v733 = vunpack.c.l.b16 %v562
        %v734 = vunpack.c.h.b16 %v562
        %v735 = vunpack.c.l.b16 %v563
        %v736 = vunpack.c.h.b16 %v563
        %v737 = vunpack.c.l.b16 %v564
        %v738 = vunpack.c.h.b16 %v564
        %v739 = vunpack.c.l.b16 %v565
        %v740 = vunpack.c.h.b16 %v565
        %v741 = vunpack.c.l.b16 %v566
        %v742 = vunpack.c.h.b16 %v566
        %v743 = vunpack.c.l.b16 %v567
        %v744 = vunpack.c.h.b16 %v567
        %v745 = vunpack.c.l.b16 %v568
        %v746 = vunpack.c.h.b16 %v568
        %v747 = vunpack.c.l.b16 %v569
        %v748 = vunpack.c.h.b16 %v569
        %v749 = vunpack.c.l.b16 %v570
        %v750 = vunpack.c.h.b16 %v570
        %v751 = vunpack.c.l.b16 %v571
        %v752 = vunpack.c.h.b16 %v571
        %v753 = vunpack.c.l.b16 %v572
        %v754 = vunpack.c.h.b16 %v572
        %v755 = vunpack.c.l.b16 %v573
        %v756 = vunpack.c.h.b16 %v573
        %v757 = vunpack.c.l.b16 %v574
        %v758 = vunpack.c.h.b16 %v574
        %v759 = vunpack.c.l.b16 %v575
        %v760 = vunpack.c.h.b16 %v575
        %v761 = vunpack.c.l.b16 %v576
        %v762 = vunpack.c.h.b16 %v576
        %v763 = vunpack.c.l.b16 %v577
        %v764 = vunpack.c.h.b16 %v577
        %v765 = vunpack.c.l.b16 %v578
        %v766 = vunpack.c.h.b16 %v578
        %v767 = vunpack.c.l.b16 %v579
        %v768 = vunpack.c.h.b16 %v579
        %v769 = vunpack.c.l.b16 %v580
        %v770 = vunpack.c.h.b16 %v580
        %v771 = vunpack.c.l.b16 %v581
        %v772 = vunpack.c.h.b16 %v581
        %v773 = vunpack.c.l.b16 %v582
        %v774 = vunpack.c.h.b16 %v582
        %v775 = vunpack.c.l.b16 %v583
        %v776 = vunpack.c.h.b16 %v583
        %v777 = vunpack.c.l.b16 %v584
        %v778 = vunpack.c.h.b16 %v584
        %v779 = vunpack.c.l.b16 %v585
        %v780 = vunpack.c.h.b16 %v585
        %v781 = vunpack.c.l.b16 %v586
        %v782 = vunpack.c.h.b16 %v586
        %v783 = vunpack.c.l.b16 %v587
        %v784 = vunpack.c.h.b16 %v587
        %v785 = vunpack.c.l.b16 %v588
        %v786 = vunpack.c.h.b16 %v588
        %v787 = vunpack.c.l.b16 %v589
        %v788 = vunpack.c.h.b16 %v589
        %v789 = vunpack.c.l.b16 %v590
        %v790 = vunpack.c.h.b16 %v590
        %v791 = vunpack.c.l.b16 %v591
        %v792 = vunpack.c.h.b16 %v591
        %v793 = vunpack.c.l.b16 %v592
        %v794 = vunpack.c.h.b16 %v592
        %v795 = vunpack.c.l.b16 %v593
        %v796 = vunpack.c.h.b16 %v593
        %v797 = vunpack.c.l.b16 %v594
        %v798 = vunpack.c.h.b16 %v594
        %v799 = vunpack.c.l.b16 %v595
        %v800 = vunpack.c.h.b16 %v595
        %v801 = vunpack.c.l.b16 %v596
        %v802 = vunpack.c.h.b16 %v596
        %v803 = vunpack.c.l.b16 %v597
        %v804 = vunpack.c.h.b16 %v597
        %v805 = vunpack.c.l.b16 %v598
        %v806 = vunpack.c.h.b16 %v598
        %v807 = vunpack.c.l.b16 %v599
        %v808 = vunpack.c.h.b16 %v599
        %v809 = vunpack.c.l.b16 %v600
        %v810 = vunpack.c.h.b16 %v600
        %v811 = vunpack.c.l.b16 %v601
        %v812 = vunpack.c.h.b16 %v601
        %v813 = vunpack.c.l.b16 %v602
        %v814 = vunpack.c.h.b16 %v602
        %v815 = vpack.c.b16 %v689, %v687
        %v816 = vpack.c.b16 %v690, %v688
        %v817 = vpack.c.b16 %v693, %v691
        %v818 = vpack.c.b16 %v694, %v692
        %v819 = vpack.c.b16 %v697, %v695
        %v820 = vpack.c.b16 %v698, %v696
        %v821 = vpack.c.b16 %v701, %v699
        %v822 = vpack.c.b16 %v702, %v700
        %v823 = vpack.c.b16 %v705, %v703
        %v824 = vpack.c.b16 %v706, %v704
        %v825 = vpack.c.b16 %v709, %v707
        %v826 = vpack.c.b16 %v710, %v708
        %v827 = vpack.c.b16 %v713, %v711
        %v828 = vpack.c.b16 %v714, %v712
        %v829 = vpack.c.b16 %v717, %v715
        %v830 = vpack.c.b16 %v718, %v716
        %v831 = vpack.c.b16 %v721, %v719
        %v832 = vpack.c.b16 %v722, %v720
        %v833 = vpack.c.b16 %v725, %v723
        %v834 = vpack.c.b16 %v726, %v724
        %v835 = vpack.c.b16 %v729, %v727
        %v836 = vpack.c.b16 %v730, %v728
        %v837 = vpack.c.b16 %v733, %v731
        %v838 = vpack.c.b16 %v734, %v732
        %v839 = vpack.c.b16 %v737, %v735
        %v840 = vpack.c.b16 %v738, %v736
        %v841 = vpack.c.b16 %v741, %v739
        %v842 = vpack.c.b16 %v742, %v740
        %v843 = vpack.c.b16 %v745, %v743
        %v844 = vpack.c.b16 %v746, %v744
        %v845 = vpack.c.b16 %v749, %v747
        %v846 = vpack.c.b16 %v750, %v748
        %v847 = vpack.c.b16 %v753, %v751
        %v848 = vpack.c.b16 %v754, %v752
        %v849 = vpack.c.b16 %v757, %v755
        %v850 = vpack.c.b16 %v758, %v756
        %v851 = vpack.c.b16 %v761, %v759
        %v852 = vpack.c.b16 %v762, %v760
        %v853 = vpack.c.b16 %v765, %v763
        %v854 = vpack.c.b16 %v766, %v764
        %v855 = vpack.c.b16 %v769, %v767
        %v856 = vpack.c.b16 %v770, %v768
        %v857 = vpack.c.b16 %v773, %v771
        %v858 = vpack.c.b16 %v774, %v772
        %v859 = vpack.c.b16 %v777, %v775
        %v860 = vpack.c.b16 %v778, %v776
        %v861 = vpack.c.b16 %v781, %v779
        %v862 = vpack.c.b16 %v782, %v780
        %v863 = vpack.c.b16 %v785, %v783
        %v864 = vpack.c.b16 %v786, %v784
        %v865 = vpack.c.b16 %v789, %v787
        %v866 = vpack.c.b16 %v790, %v788
        %v867 = vpack.c.b16 %v793, %v791
        %v868 = vpack.c.b16 %v794, %v792
        %v869 = vpack.c.b16 %v797, %v795
        %v870 = vpack.c.b16 %v798, %v796
        %v871 = vpack.c.b16 %v801, %v799
        %v872 = vpack.c.b16 %v802, %v800
        %v873 = vpack.c.b16 %v805, %v803
        %v874 = vpack.c.b16 %v806, %v804
        %v875 = vpack.c.b16 %v809, %v807
        %v876 = vpack.c.b16 %v810, %v808
        %v877 = vpack.c.b16 %v813, %v811
        %v878 = vpack.c.b16 %v814, %v812
        %943 = vmatprep.subr.bf16.mxu0 %v816
        %944 = vmatpush1.bf16.msra.mxu0 %v815
        %945 = vmatprep.subr.bf16.mxu0 %v818
        %946 = vmatpush1.bf16.msra.mxu0 %v817
        %947 = vmatprep.subr.bf16.mxu0 %v820
        %948 = vmatpush1.bf16.msra.mxu0 %v819
        %949 = vmatprep.subr.bf16.mxu0 %v822
        %950 = vmatpush1.bf16.msra.mxu0 %v821
        %951 = vmatprep.subr.bf16.mxu0 %v824
        %952 = vmatpush1.bf16.msra.mxu0 %v823
        %953 = vmatprep.subr.bf16.mxu0 %v826
        %954 = vmatpush1.bf16.msra.mxu0 %v825
        %955 = vmatprep.subr.bf16.mxu0 %v828
        %956 = vmatpush1.bf16.msra.mxu0 %v827
        %957 = vmatprep.subr.bf16.mxu0 %v830
        %958 = vmatpush1.bf16.msra.mxu0 %v829
        %959 = vmatprep.subr.bf16.mxu0 %v832
        %960 = vmatpush1.bf16.msra.mxu0 %v831
        %961 = vmatprep.subr.bf16.mxu0 %v834
        %962 = vmatpush1.bf16.msra.mxu0 %v833
        %963 = vmatprep.subr.bf16.mxu0 %v836
        %964 = vmatpush1.bf16.msra.mxu0 %v835
        %965 = vmatprep.subr.bf16.mxu0 %v838
        %966 = vmatpush1.bf16.msra.mxu0 %v837
        %967 = vmatprep.subr.bf16.mxu0 %v840
        %968 = vmatpush1.bf16.msra.mxu0 %v839
        %969 = vmatprep.subr.bf16.mxu0 %v842
        %970 = vmatpush1.bf16.msra.mxu0 %v841
        %971 = vmatprep.subr.bf16.mxu0 %v844
        %972 = vmatpush1.bf16.msra.mxu0 %v843
        %973 = vmatprep.subr.bf16.mxu0 %v846
        %974 = vmatpush1.bf16.msra.mxu0 %v845
        %975 = vmatprep.mubr.bf16.mxu0 %v616
        %976 = vmatmul.mubr.bf16.gmra.mrb[0].mxu0 %v615
        %v977 = vpop.f32.mrb[0].mxu0
        %v978 = vadd.f32 0.0, %v977
        %v979 = vpop.f32.mrb[0].mxu0
        %v980 = vadd.f32 0.0, %v979
        %v981 = vpop.f32.mrb[0].mxu0
        %v982 = vadd.f32 0.0, %v981
        %v983 = vpop.f32.mrb[0].mxu0
        %v984 = vadd.f32 0.0, %v983
        %985 = vdwg.mxu0
        %986 = vmatprep.subr.bf16.mxu0 %v848
        %987 = vmatpush1.bf16.msra.mxu0 %v847
        %988 = vmatprep.subr.bf16.mxu0 %v850
        %989 = vmatpush1.bf16.msra.mxu0 %v849
        %990 = vmatprep.subr.bf16.mxu0 %v852
        %991 = vmatpush1.bf16.msra.mxu0 %v851
        %992 = vmatprep.subr.bf16.mxu0 %v854
        %993 = vmatpush1.bf16.msra.mxu0 %v853
        %994 = vmatprep.subr.bf16.mxu0 %v856
        %995 = vmatpush1.bf16.msra.mxu0 %v855
        %996 = vmatprep.subr.bf16.mxu0 %v858
        %997 = vmatpush1.bf16.msra.mxu0 %v857
        %998 = vmatprep.subr.bf16.mxu0 %v860
        %999 = vmatpush1.bf16.msra.mxu0 %v859
        %1000 = vmatprep.subr.bf16.mxu0 %v862
        %1001 = vmatpush1.bf16.msra.mxu0 %v861
        %1002 = vmatprep.subr.bf16.mxu0 %v864
        %1003 = vmatpush1.bf16.msra.mxu0 %v863
        %1004 = vmatprep.subr.bf16.mxu0 %v866
        %1005 = vmatpush1.bf16.msra.mxu0 %v865
        %1006 = vmatprep.subr.bf16.mxu0 %v868
        %1007 = vmatpush1.bf16.msra.mxu0 %v867
        %1008 = vmatprep.subr.bf16.mxu0 %v870
        %1009 = vmatpush1.bf16.msra.mxu0 %v869
        %1010 = vmatprep.subr.bf16.mxu0 %v872
        %1011 = vmatpush1.bf16.msra.mxu0 %v871
        %1012 = vmatprep.subr.bf16.mxu0 %v874
        %1013 = vmatpush1.bf16.msra.mxu0 %v873
        %1014 = vmatprep.subr.bf16.mxu0 %v876
        %1015 = vmatpush1.bf16.msra.mxu0 %v875
        %1016 = vmatprep.subr.bf16.mxu0 %v878
        %1017 = vmatpush1.bf16.msra.mxu0 %v877
        %1018 = vmatprep.mubr.bf16.mxu0 %v618
        %1019 = vmatmul.mubr.bf16.gmra.mrb[0].mxu0 %v617
        %v1020 = vpop.f32.mrb[0].mxu0
        %v1021 = vadd.f32 %v978, %v1020
        %v1022 = vpop.f32.mrb[0].mxu0
        %v1023 = vadd.f32 %v980, %v1022
        %v1024 = vpop.f32.mrb[0].mxu0
        %v1025 = vadd.f32 %v982, %v1024
        %v1026 = vpop.f32.mrb[0].mxu0
        %v1027 = vadd.f32 %v984, %v1026
        %1028 = vdwg.mxu0
        %v1029 = vadd.f32 %v531, %v1021
        %v1030 = vadd.f32 %v532, %v1023
        %v1031 = vadd.f32 %v533, %v1025
        %v1032 = vadd.f32 %v534, %v1027
        %1033 = vst [vmem:[#allocation2] sm:$0xff] %v1029
        %1034 = vst [vmem:[#allocation2 + $0x8] sm:$0xff] %v1030
        %1035 = vst [vmem:[#allocation2 + $0x10] sm:$0xff] %v1031
        %1036 = vst [vmem:[#allocation2 + $0x18] sm:$0xff] %v1032
        // Predicated region
        $region71: #{generator_forward.13} parent=61 // pred_check
          %p1037 = pneg %p523
        $region72: #{generator_forward.13} parent=61 // pred_check_branch
          %1039 = sbr.rel (%p1037) target = $region74
        $region73: #{generator_forward.13} parent=61 // pred_region
          %v1040 = vld [vmem:[#allocation2] sm:$0xff]
          %v1041 = vld [vmem:[#allocation2 + $0x8] sm:$0xff]
          %v1042 = vld [vmem:[#allocation2 + $0x10] sm:$0xff]
          %v1043 = vld [vmem:[#allocation2 + $0x18] sm:$0xff]
          %v1044 = vtanh.pop %v1040
          %v1045 = vtanh.pop %v1041
          %v1046 = vtanh.pop %v1042
          %v1047 = vtanh.pop %v1043
          %1048 = vst [vmem:[%s502] sm:$0xff] %v1044
          %1049 = vst [vmem:[%s502 + $0x8] sm:$0xff] %v1045
          %1050 = vst [vmem:[%s502 + $0x10] sm:$0xff] %v1046
          %1051 = vst [vmem:[%s502 + $0x18] sm:$0xff] %v1047
        $region74: #{generator_forward.13} parent=61 // pred_fallthru
          _
        %s1052 = sand.u32 %s111, 1
        %s1053 = sand.u32 %s111, 1
        %s1054 = smul.addr %s1053, 32
        %s1055 = scalar_lea.vmem [#allocation4], %s1054
        // Predicated region
        $region75: #{generator_forward.13} parent=61 // pred_check
          %p1056 = pneg %p121
        $region76: #{generator_forward.13} parent=61 // pred_check_branch
          %1058 = sbr.rel (%p1056) target = $region78
        $region77: #{generator_forward.13} parent=61 // pred_region
          %s1059 = smul.u32 2, %s20
          %s1060 = smul.u32 2, %s21
          %s1061 = smul.addr %s1059, 4
          %s1062 = sadd.s32 %s1060, %s1061
          %s1063 = smul.addr %s19, 8
          %s1064 = sadd.s32 %s1062, %s1063
          %s1065 = smul.addr %s1064, 8
          %s1066 = scalar_lea.vmem %s2, %s1065
          // Predicated region
          $region79: #{generator_forward.13} parent=77 // pred_check
            _
          $region80: #{generator_forward.13} parent=77 // pred_check_branch
            %1068 = sbr.rel (0) target = $region82
          $region81: #{generator_forward.13} parent=77 // pred_region
            // Predicated region
            $region83: #{generator_forward.13} parent=81 // pred_check
              _
            $region84: #{generator_forward.13} parent=81 // pred_check_branch
              %1070 = sbr.rel (0) target = $region86
            $region85: #{generator_forward.13} parent=81 // pred_region
              loop: start=0, step=1, limit=1
              $region87: #{generator_forward.13} parent=85 // loop_pre_header
                _
              $region88: #{generator_forward.13} parent=85 // loop_header
                %s1072 = sphi 0, %s1076
                %p1073 = scmp.ge.s32.totalorder %s1072, 1
                %s1077 = sphi %s1055, %s1055
                %s1078 = sphi %s1066, %s1066
              $region89: #{generator_forward.13} parent=85 // loop_header_branch
                %1075 = sbr.rel (%p1073) target = $region93
              $region90: #{generator_forward.13} parent=85 // loop_body
                %v1079 = vld [vmem:[%s1077] sm:$0xff]
                %1080 = vst [vmem:[%s1078] sm:$0xff] %v1079
                %v1081 = vld [vmem:[%s1077 + $0x8] sm:$0xff]
                %1082 = vst [vmem:[%s1078 + $0x8] sm:$0xff] %v1081
                %v1083 = vld [vmem:[%s1077 + $0x10] sm:$0xff]
                %1084 = vst [vmem:[%s1078 + $0x20] sm:$0xff] %v1083
                %v1085 = vld [vmem:[%s1077 + $0x18] sm:$0xff]
                %1086 = vst [vmem:[%s1078 + $0x28] sm:$0xff] %v1085
              $region91: #{generator_forward.13} parent=85 // loop_footer
                %s1076 = sadd.s32 1, %s1072
              $region92: #{generator_forward.13} parent=85 // loop_footer_branch
                %1071 = sbr.rel target = $region88
              $region93: #{generator_forward.13} parent=85 // loop_exit
                _
            $region86: #{generator_forward.13} parent=81 // pred_fallthru
              _
            // Predicated region
            $region94: #{generator_forward.13} parent=81 // pred_check
              _
            $region95: #{generator_forward.13} parent=81 // pred_check_branch
              %1088 = sbr.rel target = $region97
            $region96: #{generator_forward.13} parent=81 // pred_region
              _
            $region97: #{generator_forward.13} parent=81 // pred_fallthru
              _
          $region82: #{generator_forward.13} parent=77 // pred_fallthru
            _
          %1089 = vnop
        $region78: #{generator_forward.13} parent=61 // pred_fallthru
          _
      $region62: #{generator_forward.13} parent=5 // pred_fallthru
        _
      %p1090 = scmp.le.s32.totalorder 2, %s8
      // Predicated region
      $region98: #{generator_forward.13} parent=5 // pred_check
        %p1091 = pneg %p1090
      $region99: #{generator_forward.13} parent=5 // pred_check_branch
        %1093 = sbr.rel (%p1091) target = $region101
      $region100: #{generator_forward.13} parent=5 // pred_region
        %s1094 = ssub.s32 %s8, 2
        // Predicated region
        $region102: #{generator_forward.13} parent=100 // pred_check
          %p1095 = pneg %p127
        $region103: #{generator_forward.13} parent=100 // pred_check_branch
          %1097 = sbr.rel (%p1095) target = $region105
        $region104: #{generator_forward.13} parent=100 // pred_region
          %s1098 = sand.u32 %s112, 1
          %s1099 = sand.u32 %s112, 1
          %s1100 = smul.addr %s1099, 32
          %s1101 = scalar_lea.vmem [#allocation4], %s1100
        $region105: #{generator_forward.13} parent=100 // pred_fallthru
          _
      $region101: #{generator_forward.13} parent=5 // pred_fallthru
        _
    $region6: #{generator_forward.13} parent=1 // loop_footer
      %s12 = sadd.s32 1, %s8
    $region7: #{generator_forward.13} parent=1 // loop_footer_branch
      %7 = sbr.rel target = $region3
    $region8: #{generator_forward.13} parent=1 // loop_exit
      _

</llo_original>
